<compile_context>
chip_gen: v5e
topology: v5e:2x2
jax: 0.10.0
libtpu: 0.0.40
codegen_flags: <defaults>
</compile_context>

<pallas_src>
import functools

import jax
import jax.numpy as jnp
import numpy as np
from jax.experimental import pallas as pl
from jax.experimental.pallas import tpu as pltpu

_INV_SQRT2 = 0.7071067811865476


def _gelu_exact(y):
    # Matches torch.nn.functional.gelu (erf-based, exact).
    return 0.5 * y * (1.0 + jax.lax.erf(y * _INV_SQRT2))


# --------------------------- Pallas kernels ---------------------------------

def _fc0_kernel(x_ref, w_ref, gb_ref, o_ref):
    # x_ref: (1, Kin, S)   w_ref: (C, Kin)   gb_ref: (C, S) (grid coords + bias folded)
    y = jnp.dot(w_ref[...], x_ref[0], preferred_element_type=jnp.float32)
    o_ref[0] = (y + gb_ref[...]).astype(o_ref.dtype)


def _fno_layer_kernel(x_ref, ert_ref, eit_ref, wr_ref, wi_ref,
                      drt_ref, dit_ref, w_ref, b_ref, o_ref, *, apply_gelu):
    x = x_ref[0]                                                         # (C, S)
    # forward DFT restricted to the kept Fourier modes (lane axis = modes)
    xr = jnp.dot(x, ert_ref[...], preferred_element_type=jnp.float32)    # (C, M)
    xi = jnp.dot(x, eit_ref[...], preferred_element_type=jnp.float32)    # (C, M)
    c_in, n_modes = xr.shape
    # per-mode complex channel mixing on the VPU; modes stay lane-dense
    wr = wr_ref[...]                                                     # (Cin, Cout, M)
    wi = wi_ref[...]
    xr_b = xr.reshape(c_in, 1, n_modes)
    xi_b = xi.reshape(c_in, 1, n_modes)
    yr = jnp.sum(xr_b * wr - xi_b * wi, axis=0)                          # (Cout, M)
    yi = jnp.sum(xr_b * wi + xi_b * wr, axis=0)                          # (Cout, M)
    # inverse DFT back to physical space (1/(H*W) and Hermitian doubling folded in D)
    spec = (jnp.dot(yr, drt_ref[...], preferred_element_type=jnp.float32)
            - jnp.dot(yi, dit_ref[...], preferred_element_type=jnp.float32))  # (C, S)
    # 1x1 conv + residual add (+ GELU), all fused
    y = jnp.dot(w_ref[...], x, preferred_element_type=jnp.float32) + b_ref[...] + spec
    if apply_gelu:
        y = _gelu_exact(y)
    o_ref[0] = y.astype(o_ref.dtype)


def _head_kernel(x_ref, w1_ref, b1_ref, w2_ref, b2_ref, o_ref):
    # Fused fc1(+GELU) + fc2.  fc2 is a VPU multiply + sublane reduce so the
    # stored slab is (1, S) lane-dense instead of an (M, 1) masked store.
    x = x_ref[0]                                                         # (C, S)
    h = jnp.dot(w1_ref[...], x, preferred_element_type=jnp.float32) + b1_ref[...]
    h = _gelu_exact(h)                                                   # (128, S)
    o = jnp.sum(h * w2_ref[...], axis=0, keepdims=True) + b2_ref[...]    # (1, S)
    o_ref[0] = o.astype(o_ref.dtype)


# --------------------------- pallas_call wrappers ----------------------------

def pallas_fc0(xT, wxT, gbT):
    B, Kin, S = xT.shape
    C = wxT.shape[0]
    return pl.pallas_call(
        _fc0_kernel,
        out_shape=jax.ShapeDtypeStruct((B, C, S), jnp.float32),
        grid=(B,),
        in_specs=[
            pl.BlockSpec((1, Kin, S), lambda b: (b, 0, 0)),
            pl.BlockSpec((C, Kin), lambda b: (0, 0)),
            pl.BlockSpec((C, S), lambda b: (0, 0)),
        ],
        out_specs=pl.BlockSpec((1, C, S), lambda b: (b, 0, 0)),
        compiler_params=pltpu.CompilerParams(dimension_semantics=("parallel",)),
    )(xT, wxT, gbT)


def pallas_fno_layer(aT, ert, eit, wr, wi, drt, dit, wconv, bconv, apply_gelu):
    B, C, S = aT.shape
    M = ert.shape[1]
    kernel = functools.partial(_fno_layer_kernel, apply_gelu=apply_gelu)
    return pl.pallas_call(
        kernel,
        out_shape=jax.ShapeDtypeStruct((B, C, S), jnp.float32),
        grid=(B,),
        in_specs=[
            pl.BlockSpec((1, C, S), lambda b: (b, 0, 0)),
            pl.BlockSpec((S, M), lambda b: (0, 0)),
            pl.BlockSpec((S, M), lambda b: (0, 0)),
            pl.BlockSpec((C, C, M), lambda b: (0, 0, 0)),
            pl.BlockSpec((C, C, M), lambda b: (0, 0, 0)),
            pl.BlockSpec((M, S), lambda b: (0, 0)),
            pl.BlockSpec((M, S), lambda b: (0, 0)),
            pl.BlockSpec((C, C), lambda b: (0, 0)),
            pl.BlockSpec((C, 1), lambda b: (0, 0)),
        ],
        out_specs=pl.BlockSpec((1, C, S), lambda b: (b, 0, 0)),
        input_output_aliases={0: 0},            # overwrite the residual-input buffer
        compiler_params=pltpu.CompilerParams(dimension_semantics=("parallel",)),
    )(aT, ert, eit, wr, wi, drt, dit, wconv, bconv)


def pallas_head(aT, w1T, b1, w2, b2):
    B, C, S = aT.shape
    Hd = w1T.shape[0]
    return pl.pallas_call(
        _head_kernel,
        out_shape=jax.ShapeDtypeStruct((B, 1, S), jnp.float32),
        grid=(B,),
        in_specs=[
            pl.BlockSpec((1, C, S), lambda b: (b, 0, 0)),
            pl.BlockSpec((Hd, C), lambda b: (0, 0)),
            pl.BlockSpec((Hd, 1), lambda b: (0, 0)),
            pl.BlockSpec((Hd, 1), lambda b: (0, 0)),
            pl.BlockSpec((1, 1), lambda b: (0, 0)),
        ],
        out_specs=pl.BlockSpec((1, 1, S), lambda b: (b, 0, 0)),
        compiler_params=pltpu.CompilerParams(dimension_semantics=("parallel",)),
    )(aT, w1T, b1, w2, b2)


# ----------------------- constants & weight re-layout ------------------------

def make_dft_mats(H, W, m1, m2):
    """DFT matrices restricted to the kept modes, as trace-time f32 constants.

    Mode order is kx-major / ky-minor with kx in [0..m1-1]+[H-m1..H-1], ky in
    [0..m2-1] (the exact slices of SpectralConv2d_fast).  ErT/EiT (S, M) give
    the forward transform for channels-first activations; DrT/DiT (M, S) give
    the inverse with the 1/(H*W) normalization and the Hermitian (irfft)
    doubling of ky>0 columns folded in.
    """
    assert 2 * m1 <= H and m2 <= W // 2 + 1
    S = H * W
    kx = np.concatenate([np.arange(m1), np.arange(H - m1, H)]).astype(np.float64)
    ky = np.arange(m2, dtype=np.float64)
    ph = 2.0 * np.pi * np.outer(kx, np.arange(H)) / H                   # (2*m1, H)
    pw = 2.0 * np.pi * np.outer(ky, np.arange(W)) / W                   # (m2, W)
    theta = (ph[:, None, :, None] + pw[None, :, None, :]).reshape(2 * m1 * m2, S)
    cq = np.where(ky == 0, 1.0, 2.0)
    if W % 2 == 0 and m2 == W // 2 + 1:
        cq[-1] = 1.0                                                    # Nyquist column not doubled
    scale = np.tile(cq, 2 * m1) / float(H * W)                          # (M,)
    ert = np.cos(theta).T.astype(np.float32)                            # (S, M)
    eit = (-np.sin(theta)).T.astype(np.float32)                         # (S, M)
    drt = (scale[:, None] * np.cos(theta)).astype(np.float32)           # (M, S)
    dit = (scale[:, None] * np.sin(theta)).astype(np.float32)           # (M, S)
    return jnp.asarray(ert), jnp.asarray(eit), jnp.asarray(drt), jnp.asarray(dit)


def _grid_bias(mesh_x, mesh_y, wx_row, wy_row, b):
    """(C, S) bias folding fc0's two grid-coordinate input channels and its bias."""
    gb = (mesh_x[:, None, None] * wx_row[None, None, :]
          + mesh_y[None, :, None] * wy_row[None, None, :]
          + b[None, None, :])                                           # (H, W, C)
    return gb.reshape(-1, b.shape[0]).T                                 # (C, S)


def pack_spectral_weights(w1r, w1i, w2r, w2i):
    """(Cin, Cout, m1, m2) low/high spectral weights -> (Cin, Cout, 2*m1*m2)."""
    c_in, c_out, m1, m2 = w1r.shape

    def flat(w):
        return w.reshape(c_in, c_out, m1 * m2)

    wr = jnp.concatenate([flat(w1r), flat(w2r)], axis=-1)
    wi = jnp.concatenate([flat(w1i), flat(w2i)], axis=-1)
    return wr, wi


# ------------------------------ FNO2d forward --------------------------------

def fno2d_forward(params, x, mesh_x, mesh_y, m1, m2):
    """Pallas forward; internal layout is channels-first (B, C, H*W)."""
    B, H, W, in_ch = x.shape
    S = H * W
    ert, eit, drt, dit = make_dft_mats(H, W, m1, m2)
    gbT = _grid_bias(mesh_x, mesh_y, params['fc0_w'][in_ch],
                     params['fc0_w'][in_ch + 1], params['fc0_b'])
    xT = jnp.transpose(x.reshape(B, S, in_ch), (0, 2, 1))               # (B, in_ch, S)

    a = pallas_fc0(xT, params['fc0_wxT'], gbT)                          # (B, width, S)
    for l in range(4):
        a = pallas_fno_layer(a, ert, eit,
                             params[f'conv{l}_wr_cf'], params[f'conv{l}_wi_cf'],
                             drt, dit,
                             params[f'w{l}_w_cf'], params[f'w{l}_b_cf'],
                             apply_gelu=(l < 3))
    out = pallas_head(a, params['fc1_wT'], params['fc1_b_col'],
                      params['fc2_w'], params['fc2_b_col'])             # (B, 1, S)
    return out.reshape(B, H, W, 1)


# --------------------------- pure-JAX reference -------------------------------

def spectral_conv2d_ref(x, w1r, w1i, w2r, w2i, m1, m2):
    B, H, W, C = x.shape
    x_ft = jnp.fft.rfft2(x, axes=(1, 2))                                # (B, H, W//2+1, C)
    w1 = jax.lax.complex(w1r, w1i)
    w2 = jax.lax.complex(w2r, w2i)
    low = jnp.einsum('bxyi,ioxy->bxyo', x_ft[:, :m1, :m2, :], w1)
    high = jnp.einsum('bxyi,ioxy->bxyo', x_ft[:, H - m1:, :m2, :], w2)
    out_ft = jnp.zeros((B, H, W // 2 + 1, C), jnp.complex64)
    out_ft = out_ft.at[:, :m1, :m2, :].set(low)
    out_ft = out_ft.at[:, H - m1:, :m2, :].set(high)
    return jnp.fft.irfft2(out_ft, s=(H, W), axes=(1, 2)).astype(jnp.float32)


def fno2d_forward_ref(params, x, mesh_x, mesh_y, m1, m2):
    B, H, W, _ = x.shape
    width = params['fc0_w'].shape[1]
    gridx = jnp.broadcast_to(mesh_x.reshape(1, H, 1, 1), (B, H, W, 1))
    gridy = jnp.broadcast_to(mesh_y.reshape(1, 1, W, 1), (B, H, W, 1))
    v = jnp.concatenate([x, gridx, gridy], axis=-1)
    v = v.reshape(B * H * W, -1) @ params['fc0_w'] + params['fc0_b']
    v = v.reshape(B, H, W, width)
    for l in range(4):
        x1 = spectral_conv2d_ref(v, params[f'conv{l}_w1r'], params[f'conv{l}_w1i'],
                                 params[f'conv{l}_w2r'], params[f'conv{l}_w2i'], m1, m2)
        x2 = v.reshape(-1, width) @ params[f'w{l}_w'] + params[f'w{l}_b']
        y = x1.reshape(-1, width) + x2
        v = (_gelu_exact(y) if l < 3 else y).reshape(B, H, W, width)
    v = _gelu_exact(v.reshape(-1, width) @ params['fc1_w'] + params['fc1_b'])
    v = v @ params['fc2_w'] + params['fc2_b']
    return v.reshape(B, H, W, 1)


# ----------------------------------- params ----------------------------------

def make_params(key, width, m1, m2, in_ch=20):
    ks = iter(jax.random.split(key, 64))
    p = {}
    p['fc0_w'] = 0.1 * jax.random.normal(next(ks), (in_ch + 2, width), jnp.float32)
    p['fc0_b'] = 0.1 * jax.random.normal(next(ks), (width,), jnp.float32)
    scale = 1.0 / (width * width)
    for l in range(4):
        for name in ('w1r', 'w1i', 'w2r', 'w2i'):
            p[f'conv{l}_{name}'] = scale * jax.random.uniform(
                next(ks), (width, width, m1, m2), jnp.float32)
        # 1x1 conv weight stored as (in, out); bias (out,)
        p[f'w{l}_w'] = 0.1 * jax.random.normal(next(ks), (width, width), jnp.float32)
        p[f'w{l}_b'] = 0.1 * jax.random.normal(next(ks), (width,), jnp.float32)
    p['fc1_w'] = 0.1 * jax.random.normal(next(ks), (width, 128), jnp.float32)
    p['fc1_b'] = 0.1 * jax.random.normal(next(ks), (128,), jnp.float32)
    p['fc2_w'] = 0.1 * jax.random.normal(next(ks), (128, 1), jnp.float32)
    p['fc2_b'] = 0.1 * jax.random.normal(next(ks), (1,), jnp.float32)

    # ---- Pallas-layout params (weight re-layout hoisted out of forward) ----
    p['fc0_wxT'] = p['fc0_w'][:in_ch].T                                 # (width, in_ch)
    for l in range(4):
        wr, wi = pack_spectral_weights(p[f'conv{l}_w1r'], p[f'conv{l}_w1i'],
                                       p[f'conv{l}_w2r'], p[f'conv{l}_w2i'])
        p[f'conv{l}_wr_cf'] = wr                                        # (Cin, Cout, 2*m1*m2)
        p[f'conv{l}_wi_cf'] = wi
        p[f'w{l}_w_cf'] = p[f'w{l}_w'].T                                # (out, in)
        p[f'w{l}_b_cf'] = p[f'w{l}_b'].reshape(width, 1)
    p['fc1_wT'] = p['fc1_w'].T                                          # (128, width)
    p['fc1_b_col'] = p['fc1_b'].reshape(128, 1)
    p['fc2_b_col'] = p['fc2_b'].reshape(1, 1)
    return p


# ----------------------------------- main ------------------------------------

if __name__ == "__main__":
    B, H, W = 2, 16, 16
    width, m1, m2 = 32, 8, 8          # modes <= H//2 + 1
    key = jax.random.PRNGKey(0)
    k_x, k_p = jax.random.split(key)

    x = jax.random.normal(k_x, (B, H, W, 20), jnp.float32)    # 20 + 2 grid = 22
    mesh_x = jnp.linspace(0.0, 1.0, H, dtype=jnp.float32)
    mesh_y = jnp.linspace(0.0, 1.0, W, dtype=jnp.float32)
    params = make_params(k_p, width, m1, m2)

    fwd = jax.jit(functools.partial(fno2d_forward, m1=m1, m2=m2))
    out = jax.block_until_ready(fwd(params, x, mesh_x, mesh_y))

    # pure-JAX reference (jnp.fft based) for the correctness check
    ref = jax.block_until_ready(fno2d_forward_ref(params, x, mesh_x, mesh_y, m1, m2))

    assert out.shape == (B, H, W, 1)
    assert bool(jnp.all(jnp.isfinite(out)))
    assert jnp.allclose(out, ref, atol=2e-3, rtol=2e-3)
    print("KERNEL_OK")
</pallas_src>

<mosaic_0001>
module attributes {stable_mosaic.version = 11 : i64} {
  func.func @_fc0_kernel(%arg0: i32, %arg1: memref<1x20x256xf32, #tpu.memory_space<vmem>>, %arg2: memref<32x20xf32, #tpu.memory_space<vmem>>, %arg3: memref<32x256xf32, #tpu.memory_space<vmem>>, %arg4: memref<1x32x256xf32, #tpu.memory_space<vmem>>) attributes {dimension_semantics = [#tpu.dimension_semantics<parallel>], iteration_bounds = array<i64: 2>, scalar_prefetch = 0 : i64, scratch_operands = 0 : i64, tpu.core_type = #tpu.core_type<tc>, window_params = [{transform_indices = @transform_0, window_bounds = array<i64: 1, 20, 256>}, {pipeline_mode = #tpu.pipeline_mode<synchronous>, transform_indices = @transform_1, window_bounds = array<i64: 32, 20>}, {pipeline_mode = #tpu.pipeline_mode<synchronous>, transform_indices = @transform_2, window_bounds = array<i64: 32, 256>}, {transform_indices = @transform_3, window_bounds = array<i64: 1, 32, 256>}]} {
    %c0 = arith.constant 0 : index
    %c0_0 = arith.constant 0 : index
    %0 = vector.load %arg2[%c0, %c0_0] : memref<32x20xf32, #tpu.memory_space<vmem>>, vector<32x20xf32>
    %c0_1 = arith.constant 0 : index
    %c0_2 = arith.constant 0 : index
    %c0_3 = arith.constant 0 : index
    %1 = vector.load %arg1[%c0_1, %c0_2, %c0_3] : memref<1x20x256xf32, #tpu.memory_space<vmem>>, vector<1x20x256xf32>
    %2 = vector.shape_cast %1 : vector<1x20x256xf32> to vector<20x256xf32>
    %cst = arith.constant dense<0.000000e+00> : vector<32x256xf32>
    %3 = tpu.matmul %0, %2, %cst {dimension_numbers = #tpu.dot_dimension_numbers<[1], [0], [0], [1], [0, 0, 1, 1], [], []>} : vector<32x20xf32>, vector<20x256xf32>, vector<32x256xf32> -> vector<32x256xf32>
    %c0_4 = arith.constant 0 : index
    %c0_5 = arith.constant 0 : index
    %4 = vector.load %arg3[%c0_4, %c0_5] : memref<32x256xf32, #tpu.memory_space<vmem>>, vector<32x256xf32>
    %5 = arith.addf %3, %4 : vector<32x256xf32>
    %c0_6 = arith.constant 0 : index
    %c0_7 = arith.constant 0 : index
    %c0_8 = arith.constant 0 : index
    %6 = vector.load %arg4[%c0_6, %c0_7, %c0_8] : memref<1x32x256xf32, #tpu.memory_space<vmem>>, vector<1x32x256xf32>
    %7 = vector.shape_cast %6 : vector<1x32x256xf32> to vector<32x256xf32>
    %8 = vector.shape_cast %5 : vector<32x256xf32> to vector<1x32x256xf32>
    tpu.vector_store %arg4[%c0_6, %c0_7, %c0_8], %8 {strides = array<i32>} : memref<1x32x256xf32, #tpu.memory_space<vmem>>, vector<1x32x256xf32>,
    return
  }
  func.func @transform_0(%arg0: i32) -> (i32, i32, i32) {
    %c0_i32 = arith.constant 0 : i32
    %c0_i32_0 = arith.constant 0 : i32
    %c0_i32_1 = arith.constant 0 : i32
    return %arg0, %c0_i32, %c0_i32_0 : i32, i32, i32
  }
  func.func @transform_1(%arg0: i32) -> (i32, i32) {
    %c0_i32 = arith.constant 0 : i32
    %c0_i32_0 = arith.constant 0 : i32
    %c0_i32_1 = arith.constant 0 : i32
    return %c0_i32, %c0_i32_0 : i32, i32
  }
  func.func @transform_2(%arg0: i32) -> (i32, i32) {
    %c0_i32 = arith.constant 0 : i32
    %c0_i32_0 = arith.constant 0 : i32
    %c0_i32_1 = arith.constant 0 : i32
    return %c0_i32, %c0_i32_0 : i32, i32
  }
  func.func @transform_3(%arg0: i32) -> (i32, i32, i32) {
    %c0_i32 = arith.constant 0 : i32
    %c0_i32_0 = arith.constant 0 : i32
    %c0_i32_1 = arith.constant 0 : i32
    return %arg0, %c0_i32, %c0_i32_0 : i32, i32, i32
  }
}

module attributes {stable_mosaic.version = 11 : i64} {
  func.func @_fno_layer_kernel(%arg0: i32, %arg1: memref<1x32x256xf32, #tpu.memory_space<vmem>>, %arg2: memref<256x128xf32, #tpu.memory_space<vmem>>, %arg3: memref<256x128xf32, #tpu.memory_space<vmem>>, %arg4: memref<32x32x128xf32, #tpu.memory_space<vmem>>, %arg5: memref<32x32x128xf32, #tpu.memory_space<vmem>>, %arg6: memref<128x256xf32, #tpu.memory_space<vmem>>, %arg7: memref<128x256xf32, #tpu.memory_space<vmem>>, %arg8: memref<32x32xf32, #tpu.memory_space<vmem>>, %arg9: memref<32x1xf32, #tpu.memory_space<vmem>>, %arg10: memref<1x32x256xf32, #tpu.memory_space<vmem>>) attributes {dimension_semantics = [#tpu.dimension_semantics<parallel>], iteration_bounds = array<i64: 2>, scalar_prefetch = 0 : i64, scratch_operands = 0 : i64, tpu.core_type = #tpu.core_type<tc>, window_params = [{transform_indices = @transform_0, window_bounds = array<i64: 1, 32, 256>}, {pipeline_mode = #tpu.pipeline_mode<synchronous>, transform_indices = @transform_1, window_bounds = array<i64: 256, 128>}, {pipeline_mode = #tpu.pipeline_mode<synchronous>, transform_indices = @transform_2, window_bounds = array<i64: 256, 128>}, {pipeline_mode = #tpu.pipeline_mode<synchronous>, transform_indices = @transform_3, window_bounds = array<i64: 32, 32, 128>}, {pipeline_mode = #tpu.pipeline_mode<synchronous>, transform_indices = @transform_4, window_bounds = array<i64: 32, 32, 128>}, {pipeline_mode = #tpu.pipeline_mode<synchronous>, transform_indices = @transform_5, window_bounds = array<i64: 128, 256>}, {pipeline_mode = #tpu.pipeline_mode<synchronous>, transform_indices = @transform_6, window_bounds = array<i64: 128, 256>}, {pipeline_mode = #tpu.pipeline_mode<synchronous>, transform_indices = @transform_7, window_bounds = array<i64: 32, 32>}, {pipeline_mode = #tpu.pipeline_mode<synchronous>, transform_indices = @transform_8, window_bounds = array<i64: 32, 1>}, {transform_indices = @transform_9, window_bounds = array<i64: 1, 32, 256>}]} {
    %c0 = arith.constant 0 : index
    %c0_0 = arith.constant 0 : index
    %c0_1 = arith.constant 0 : index
    %0 = vector.load %arg1[%c0, %c0_0, %c0_1] : memref<1x32x256xf32, #tpu.memory_space<vmem>>, vector<1x32x256xf32>
    %1 = vector.shape_cast %0 : vector<1x32x256xf32> to vector<32x256xf32>
    %c0_2 = arith.constant 0 : index
    %c0_3 = arith.constant 0 : index
    %2 = vector.load %arg2[%c0_2, %c0_3] : memref<256x128xf32, #tpu.memory_space<vmem>>, vector<256x128xf32>
    %cst = arith.constant dense<0.000000e+00> : vector<32x128xf32>
    %3 = tpu.matmul %1, %2, %cst {dimension_numbers = #tpu.dot_dimension_numbers<[1], [0], [0], [1], [0, 0, 1, 1], [], []>} : vector<32x256xf32>, vector<256x128xf32>, vector<32x128xf32> -> vector<32x128xf32>
    %c0_4 = arith.constant 0 : index
    %c0_5 = arith.constant 0 : index
    %4 = vector.load %arg3[%c0_4, %c0_5] : memref<256x128xf32, #tpu.memory_space<vmem>>, vector<256x128xf32>
    %cst_6 = arith.constant dense<0.000000e+00> : vector<32x128xf32>
    %5 = tpu.matmul %1, %4, %cst_6 {dimension_numbers = #tpu.dot_dimension_numbers<[1], [0], [0], [1], [0, 0, 1, 1], [], []>} : vector<32x256xf32>, vector<256x128xf32>, vector<32x128xf32> -> vector<32x128xf32>
    %c0_7 = arith.constant 0 : index
    %c0_8 = arith.constant 0 : index
    %c0_9 = arith.constant 0 : index
    %6 = vector.load %arg4[%c0_7, %c0_8, %c0_9] : memref<32x32x128xf32, #tpu.memory_space<vmem>>, vector<32x32x128xf32>
    %c0_10 = arith.constant 0 : index
    %c0_11 = arith.constant 0 : index
    %c0_12 = arith.constant 0 : index
    %7 = vector.load %arg5[%c0_10, %c0_11, %c0_12] : memref<32x32x128xf32, #tpu.memory_space<vmem>>, vector<32x32x128xf32>
    %8 = vector.shape_cast %3 : vector<32x128xf32> to vector<32x1x128xf32>
    %9 = vector.shape_cast %5 : vector<32x128xf32> to vector<32x1x128xf32>
    %10 = vector.broadcast %8 : vector<32x1x128xf32> to vector<32x32x128xf32>
    %11 = arith.mulf %10, %6 : vector<32x32x128xf32>
    %12 = vector.broadcast %9 : vector<32x1x128xf32> to vector<32x32x128xf32>
    %13 = arith.mulf %12, %7 : vector<32x32x128xf32>
    %14 = arith.subf %11, %13 : vector<32x32x128xf32>
    %cst_13 = arith.constant dense<0.000000e+00> : vector<32x128xf32>
    %15 = vector.multi_reduction <add>, %14, %cst_13 [0] : vector<32x32x128xf32> to vector<32x128xf32>
    %16 = vector.broadcast %8 : vector<32x1x128xf32> to vector<32x32x128xf32>
    %17 = arith.mulf %16, %7 : vector<32x32x128xf32>
    %18 = vector.broadcast %9 : vector<32x1x128xf32> to vector<32x32x128xf32>
    %19 = arith.mulf %18, %6 : vector<32x32x128xf32>
    %20 = arith.addf %17, %19 : vector<32x32x128xf32>
    %cst_14 = arith.constant dense<0.000000e+00> : vector<32x128xf32>
    %21 = vector.multi_reduction <add>, %20, %cst_14 [0] : vector<32x32x128xf32> to vector<32x128xf32>
    %c0_15 = arith.constant 0 : index
    %c0_16 = arith.constant 0 : index
    %22 = vector.load %arg6[%c0_15, %c0_16] : memref<128x256xf32, #tpu.memory_space<vmem>>, vector<128x256xf32>
    %cst_17 = arith.constant dense<0.000000e+00> : vector<32x256xf32>
    %23 = tpu.matmul %15, %22, %cst_17 {dimension_numbers = #tpu.dot_dimension_numbers<[1], [0], [0], [1], [0, 0, 1, 1], [], []>} : vector<32x128xf32>, vector<128x256xf32>, vector<32x256xf32> -> vector<32x256xf32>
    %c0_18 = arith.constant 0 : index
    %c0_19 = arith.constant 0 : index
    %24 = vector.load %arg7[%c0_18, %c0_19] : memref<128x256xf32, #tpu.memory_space<vmem>>, vector<128x256xf32>
    %cst_20 = arith.constant dense<0.000000e+00> : vector<32x256xf32>
    %25 = tpu.matmul %21, %24, %cst_20 {dimension_numbers = #tpu.dot_dimension_numbers<[1], [0], [0], [1], [0, 0, 1, 1], [], []>} : vector<32x128xf32>, vector<128x256xf32>, vector<32x256xf32> -> vector<32x256xf32>
    %26 = arith.subf %23, %25 : vector<32x256xf32>
    %c0_21 = arith.constant 0 : index
    %c0_22 = arith.constant 0 : index
    %27 = vector.load %arg8[%c0_21, %c0_22] : memref<32x32xf32, #tpu.memory_space<vmem>>, vector<32x32xf32>
    %cst_23 = arith.constant dense<0.000000e+00> : vector<32x256xf32>
    %28 = tpu.matmul %27, %1, %cst_23 {dimension_numbers = #tpu.dot_dimension_numbers<[1], [0], [0], [1], [0, 0, 1, 1], [], []>} : vector<32x32xf32>, vector<32x256xf32>, vector<32x256xf32> -> vector<32x256xf32>
    %c0_24 = arith.constant 0 : index
    %c0_25 = arith.constant 0 : index
    %29 = vector.load %arg9[%c0_24, %c0_25] : memref<32x1xf32, #tpu.memory_space<vmem>>, vector<32x1xf32>
    %30 = vector.broadcast %29 : vector<32x1xf32> to vector<32x256xf32>
    %31 = arith.addf %28, %30 : vector<32x256xf32>
    %32 = arith.addf %31, %26 : vector<32x256xf32>
    %c0_26 = arith.constant 0 : index
    %c0_27 = arith.constant 0 : index
    %c0_28 = arith.constant 0 : index
    %33 = vector.load %arg10[%c0_26, %c0_27, %c0_28] : memref<1x32x256xf32, #tpu.memory_space<vmem>>, vector<1x32x256xf32>
    %34 = vector.shape_cast %33 : vector<1x32x256xf32> to vector<32x256xf32>
    %35 = vector.shape_cast %32 : vector<32x256xf32> to vector<1x32x256xf32>
    tpu.vector_store %arg10[%c0_26, %c0_27, %c0_28], %35 {strides = array<i32>} : memref<1x32x256xf32, #tpu.memory_space<vmem>>, vector<1x32x256xf32>,
    return
  }
  func.func @transform_0(%arg0: i32) -> (i32, i32, i32) {
    %c0_i32 = arith.constant 0 : i32
    %c0_i32_0 = arith.constant 0 : i32
    %c0_i32_1 = arith.constant 0 : i32
    return %arg0, %c0_i32, %c0_i32_0 : i32, i32, i32
  }
  func.func @transform_1(%arg0: i32) -> (i32, i32) {
    %c0_i32 = arith.constant 0 : i32
    %c0_i32_0 = arith.constant 0 : i32
    %c0_i32_1 = arith.constant 0 : i32
    return %c0_i32, %c0_i32_0 : i32, i32
  }
  func.func @transform_2(%arg0: i32) -> (i32, i32) {
    %c0_i32 = arith.constant 0 : i32
    %c0_i32_0 = arith.constant 0 : i32
    %c0_i32_1 = arith.constant 0 : i32
    return %c0_i32, %c0_i32_0 : i32, i32
  }
  func.func @transform_3(%arg0: i32) -> (i32, i32, i32) {
    %c0_i32 = arith.constant 0 : i32
    %c0_i32_0 = arith.constant 0 : i32
    %c0_i32_1 = arith.constant 0 : i32
    %c0_i32_2 = arith.constant 0 : i32
    return %c0_i32, %c0_i32_0, %c0_i32_1 : i32, i32, i32
  }
  func.func @transform_4(%arg0: i32) -> (i32, i32, i32) {
    %c0_i32 = arith.constant 0 : i32
    %c0_i32_0 = arith.constant 0 : i32
    %c0_i32_1 = arith.constant 0 : i32
    %c0_i32_2 = arith.constant 0 : i32
    return %c0_i32, %c0_i32_0, %c0_i32_1 : i32, i32, i32
  }
  func.func @transform_5(%arg0: i32) -> (i32, i32) {
    %c0_i32 = arith.constant 0 : i32
    %c0_i32_0 = arith.constant 0 : i32
    %c0_i32_1 = arith.constant 0 : i32
    return %c0_i32, %c0_i32_0 : i32, i32
  }
  func.func @transform_6(%arg0: i32) -> (i32, i32) {
    %c0_i32 = arith.constant 0 : i32
    %c0_i32_0 = arith.constant 0 : i32
    %c0_i32_1 = arith.constant 0 : i32
    return %c0_i32, %c0_i32_0 : i32, i32
  }
  func.func @transform_7(%arg0: i32) -> (i32, i32) {
    %c0_i32 = arith.constant 0 : i32
    %c0_i32_0 = arith.constant 0 : i32
    %c0_i32_1 = arith.constant 0 : i32
    return %c0_i32, %c0_i32_0 : i32, i32
  }
  func.func @transform_8(%arg0: i32) -> (i32, i32) {
    %c0_i32 = arith.constant 0 : i32
    %c0_i32_0 = arith.constant 0 : i32
    %c0_i32_1 = arith.constant 0 : i32
    return %c0_i32, %c0_i32_0 : i32, i32
  }
  func.func @transform_9(%arg0: i32) -> (i32, i32, i32) {
    %c0_i32 = arith.constant 0 : i32
    %c0_i32_0 = arith.constant 0 : i32
    %c0_i32_1 = arith.constant 0 : i32
    return %arg0, %c0_i32, %c0_i32_0 : i32, i32, i32
  }
}

module attributes {stable_mosaic.version = 11 : i64} {
  func.func @_fno_layer_kernel(%arg0: i32, %arg1: memref<1x32x256xf32, #tpu.memory_space<vmem>>, %arg2: memref<256x128xf32, #tpu.memory_space<vmem>>, %arg3: memref<256x128xf32, #tpu.memory_space<vmem>>, %arg4: memref<32x32x128xf32, #tpu.memory_space<vmem>>, %arg5: memref<32x32x128xf32, #tpu.memory_space<vmem>>, %arg6: memref<128x256xf32, #tpu.memory_space<vmem>>, %arg7: memref<128x256xf32, #tpu.memory_space<vmem>>, %arg8: memref<32x32xf32, #tpu.memory_space<vmem>>, %arg9: memref<32x1xf32, #tpu.memory_space<vmem>>, %arg10: memref<1x32x256xf32, #tpu.memory_space<vmem>>) attributes {dimension_semantics = [#tpu.dimension_semantics<parallel>], iteration_bounds = array<i64: 2>, scalar_prefetch = 0 : i64, scratch_operands = 0 : i64, tpu.core_type = #tpu.core_type<tc>, window_params = [{transform_indices = @transform_0, window_bounds = array<i64: 1, 32, 256>}, {pipeline_mode = #tpu.pipeline_mode<synchronous>, transform_indices = @transform_1, window_bounds = array<i64: 256, 128>}, {pipeline_mode = #tpu.pipeline_mode<synchronous>, transform_indices = @transform_2, window_bounds = array<i64: 256, 128>}, {pipeline_mode = #tpu.pipeline_mode<synchronous>, transform_indices = @transform_3, window_bounds = array<i64: 32, 32, 128>}, {pipeline_mode = #tpu.pipeline_mode<synchronous>, transform_indices = @transform_4, window_bounds = array<i64: 32, 32, 128>}, {pipeline_mode = #tpu.pipeline_mode<synchronous>, transform_indices = @transform_5, window_bounds = array<i64: 128, 256>}, {pipeline_mode = #tpu.pipeline_mode<synchronous>, transform_indices = @transform_6, window_bounds = array<i64: 128, 256>}, {pipeline_mode = #tpu.pipeline_mode<synchronous>, transform_indices = @transform_7, window_bounds = array<i64: 32, 32>}, {pipeline_mode = #tpu.pipeline_mode<synchronous>, transform_indices = @transform_8, window_bounds = array<i64: 32, 1>}, {transform_indices = @transform_9, window_bounds = array<i64: 1, 32, 256>}]} {
    %c0 = arith.constant 0 : index
    %c0_0 = arith.constant 0 : index
    %c0_1 = arith.constant 0 : index
    %0 = vector.load %arg1[%c0, %c0_0, %c0_1] : memref<1x32x256xf32, #tpu.memory_space<vmem>>, vector<1x32x256xf32>
    %1 = vector.shape_cast %0 : vector<1x32x256xf32> to vector<32x256xf32>
    %c0_2 = arith.constant 0 : index
    %c0_3 = arith.constant 0 : index
    %2 = vector.load %arg2[%c0_2, %c0_3] : memref<256x128xf32, #tpu.memory_space<vmem>>, vector<256x128xf32>
    %cst = arith.constant dense<0.000000e+00> : vector<32x128xf32>
    %3 = tpu.matmul %1, %2, %cst {dimension_numbers = #tpu.dot_dimension_numbers<[1], [0], [0], [1], [0, 0, 1, 1], [], []>} : vector<32x256xf32>, vector<256x128xf32>, vector<32x128xf32> -> vector<32x128xf32>
    %c0_4 = arith.constant 0 : index
    %c0_5 = arith.constant 0 : index
    %4 = vector.load %arg3[%c0_4, %c0_5] : memref<256x128xf32, #tpu.memory_space<vmem>>, vector<256x128xf32>
    %cst_6 = arith.constant dense<0.000000e+00> : vector<32x128xf32>
    %5 = tpu.matmul %1, %4, %cst_6 {dimension_numbers = #tpu.dot_dimension_numbers<[1], [0], [0], [1], [0, 0, 1, 1], [], []>} : vector<32x256xf32>, vector<256x128xf32>, vector<32x128xf32> -> vector<32x128xf32>
    %c0_7 = arith.constant 0 : index
    %c0_8 = arith.constant 0 : index
    %c0_9 = arith.constant 0 : index
    %6 = vector.load %arg4[%c0_7, %c0_8, %c0_9] : memref<32x32x128xf32, #tpu.memory_space<vmem>>, vector<32x32x128xf32>
    %c0_10 = arith.constant 0 : index
    %c0_11 = arith.constant 0 : index
    %c0_12 = arith.constant 0 : index
    %7 = vector.load %arg5[%c0_10, %c0_11, %c0_12] : memref<32x32x128xf32, #tpu.memory_space<vmem>>, vector<32x32x128xf32>
    %8 = vector.shape_cast %3 : vector<32x128xf32> to vector<32x1x128xf32>
    %9 = vector.shape_cast %5 : vector<32x128xf32> to vector<32x1x128xf32>
    %10 = vector.broadcast %8 : vector<32x1x128xf32> to vector<32x32x128xf32>
    %11 = arith.mulf %10, %6 : vector<32x32x128xf32>
    %12 = vector.broadcast %9 : vector<32x1x128xf32> to vector<32x32x128xf32>
    %13 = arith.mulf %12, %7 : vector<32x32x128xf32>
    %14 = arith.subf %11, %13 : vector<32x32x128xf32>
    %cst_13 = arith.constant dense<0.000000e+00> : vector<32x128xf32>
    %15 = vector.multi_reduction <add>, %14, %cst_13 [0] : vector<32x32x128xf32> to vector<32x128xf32>
    %16 = vector.broadcast %8 : vector<32x1x128xf32> to vector<32x32x128xf32>
    %17 = arith.mulf %16, %7 : vector<32x32x128xf32>
    %18 = vector.broadcast %9 : vector<32x1x128xf32> to vector<32x32x128xf32>
    %19 = arith.mulf %18, %6 : vector<32x32x128xf32>
    %20 = arith.addf %17, %19 : vector<32x32x128xf32>
    %cst_14 = arith.constant dense<0.000000e+00> : vector<32x128xf32>
    %21 = vector.multi_reduction <add>, %20, %cst_14 [0] : vector<32x32x128xf32> to vector<32x128xf32>
    %c0_15 = arith.constant 0 : index
    %c0_16 = arith.constant 0 : index
    %22 = vector.load %arg6[%c0_15, %c0_16] : memref<128x256xf32, #tpu.memory_space<vmem>>, vector<128x256xf32>
    %cst_17 = arith.constant dense<0.000000e+00> : vector<32x256xf32>
    %23 = tpu.matmul %15, %22, %cst_17 {dimension_numbers = #tpu.dot_dimension_numbers<[1], [0], [0], [1], [0, 0, 1, 1], [], []>} : vector<32x128xf32>, vector<128x256xf32>, vector<32x256xf32> -> vector<32x256xf32>
    %c0_18 = arith.constant 0 : index
    %c0_19 = arith.constant 0 : index
    %24 = vector.load %arg7[%c0_18, %c0_19] : memref<128x256xf32, #tpu.memory_space<vmem>>, vector<128x256xf32>
    %cst_20 = arith.constant dense<0.000000e+00> : vector<32x256xf32>
    %25 = tpu.matmul %21, %24, %cst_20 {dimension_numbers = #tpu.dot_dimension_numbers<[1], [0], [0], [1], [0, 0, 1, 1], [], []>} : vector<32x128xf32>, vector<128x256xf32>, vector<32x256xf32> -> vector<32x256xf32>
    %26 = arith.subf %23, %25 : vector<32x256xf32>
    %c0_21 = arith.constant 0 : index
    %c0_22 = arith.constant 0 : index
    %27 = vector.load %arg8[%c0_21, %c0_22] : memref<32x32xf32, #tpu.memory_space<vmem>>, vector<32x32xf32>
    %cst_23 = arith.constant dense<0.000000e+00> : vector<32x256xf32>
    %28 = tpu.matmul %27, %1, %cst_23 {dimension_numbers = #tpu.dot_dimension_numbers<[1], [0], [0], [1], [0, 0, 1, 1], [], []>} : vector<32x32xf32>, vector<32x256xf32>, vector<32x256xf32> -> vector<32x256xf32>
    %c0_24 = arith.constant 0 : index
    %c0_25 = arith.constant 0 : index
    %29 = vector.load %arg9[%c0_24, %c0_25] : memref<32x1xf32, #tpu.memory_space<vmem>>, vector<32x1xf32>
    %30 = vector.broadcast %29 : vector<32x1xf32> to vector<32x256xf32>
    %31 = arith.addf %28, %30 : vector<32x256xf32>
    %32 = arith.addf %31, %26 : vector<32x256xf32>
    %cst_26 = arith.constant 5.000000e-01 : f32
    %33 = vector.broadcast %cst_26 : f32 to vector<32x256xf32>
    %34 = arith.mulf %33, %32 : vector<32x256xf32>
    %cst_27 = arith.constant 0.707106769 : f32
    %35 = vector.broadcast %cst_27 : f32 to vector<32x256xf32>
    %36 = arith.mulf %32, %35 : vector<32x256xf32>
    %37 = math.erf %36 : vector<32x256xf32>
    %cst_28 = arith.constant 1.000000e+00 : f32
    %38 = vector.broadcast %cst_28 : f32 to vector<32x256xf32>
    %39 = arith.addf %38, %37 : vector<32x256xf32>
    %40 = arith.mulf %34, %39 : vector<32x256xf32>
    %c0_29 = arith.constant 0 : index
    %c0_30 = arith.constant 0 : index
    %c0_31 = arith.constant 0 : index
    %41 = vector.load %arg10[%c0_29, %c0_30, %c0_31] : memref<1x32x256xf32, #tpu.memory_space<vmem>>, vector<1x32x256xf32>
    %42 = vector.shape_cast %41 : vector<1x32x256xf32> to vector<32x256xf32>
    %43 = vector.shape_cast %40 : vector<32x256xf32> to vector<1x32x256xf32>
    tpu.vector_store %arg10[%c0_29, %c0_30, %c0_31], %43 {strides = array<i32>} : memref<1x32x256xf32, #tpu.memory_space<vmem>>, vector<1x32x256xf32>,
    return
  }
  func.func @transform_0(%arg0: i32) -> (i32, i32, i32) {
    %c0_i32 = arith.constant 0 : i32
    %c0_i32_0 = arith.constant 0 : i32
    %c0_i32_1 = arith.constant 0 : i32
    return %arg0, %c0_i32, %c0_i32_0 : i32, i32, i32
  }
  func.func @transform_1(%arg0: i32) -> (i32, i32) {
    %c0_i32 = arith.constant 0 : i32
    %c0_i32_0 = arith.constant 0 : i32
    %c0_i32_1 = arith.constant 0 : i32
    return %c0_i32, %c0_i32_0 : i32, i32
  }
  func.func @transform_2(%arg0: i32) -> (i32, i32) {
    %c0_i32 = arith.constant 0 : i32
    %c0_i32_0 = arith.constant 0 : i32
    %c0_i32_1 = arith.constant 0 : i32
    return %c0_i32, %c0_i32_0 : i32, i32
  }
  func.func @transform_3(%arg0: i32) -> (i32, i32, i32) {
    %c0_i32 = arith.constant 0 : i32
    %c0_i32_0 = arith.constant 0 : i32
    %c0_i32_1 = arith.constant 0 : i32
    %c0_i32_2 = arith.constant 0 : i32
    return %c0_i32, %c0_i32_0, %c0_i32_1 : i32, i32, i32
  }
  func.func @transform_4(%arg0: i32) -> (i32, i32, i32) {
    %c0_i32 = arith.constant 0 : i32
    %c0_i32_0 = arith.constant 0 : i32
    %c0_i32_1 = arith.constant 0 : i32
    %c0_i32_2 = arith.constant 0 : i32
    return %c0_i32, %c0_i32_0, %c0_i32_1 : i32, i32, i32
  }
  func.func @transform_5(%arg0: i32) -> (i32, i32) {
    %c0_i32 = arith.constant 0 : i32
    %c0_i32_0 = arith.constant 0 : i32
    %c0_i32_1 = arith.constant 0 : i32
    return %c0_i32, %c0_i32_0 : i32, i32
  }
  func.func @transform_6(%arg0: i32) -> (i32, i32) {
    %c0_i32 = arith.constant 0 : i32
    %c0_i32_0 = arith.constant 0 : i32
    %c0_i32_1 = arith.constant 0 : i32
    return %c0_i32, %c0_i32_0 : i32, i32
  }
  func.func @transform_7(%arg0: i32) -> (i32, i32) {
    %c0_i32 = arith.constant 0 : i32
    %c0_i32_0 = arith.constant 0 : i32
    %c0_i32_1 = arith.constant 0 : i32
    return %c0_i32, %c0_i32_0 : i32, i32
  }
  func.func @transform_8(%arg0: i32) -> (i32, i32) {
    %c0_i32 = arith.constant 0 : i32
    %c0_i32_0 = arith.constant 0 : i32
    %c0_i32_1 = arith.constant 0 : i32
    return %c0_i32, %c0_i32_0 : i32, i32
  }
  func.func @transform_9(%arg0: i32) -> (i32, i32, i32) {
    %c0_i32 = arith.constant 0 : i32
    %c0_i32_0 = arith.constant 0 : i32
    %c0_i32_1 = arith.constant 0 : i32
    return %arg0, %c0_i32, %c0_i32_0 : i32, i32, i32
  }
}

module attributes {stable_mosaic.version = 11 : i64} {
  func.func @_head_kernel(%arg0: i32, %arg1: memref<1x32x256xf32, #tpu.memory_space<vmem>>, %arg2: memref<128x32xf32, #tpu.memory_space<vmem>>, %arg3: memref<128x1xf32, #tpu.memory_space<vmem>>, %arg4: memref<128x1xf32, #tpu.memory_space<vmem>>, %arg5: memref<1x1xf32, #tpu.memory_space<vmem>>, %arg6: memref<1x1x256xf32, #tpu.memory_space<vmem>>) attributes {dimension_semantics = [#tpu.dimension_semantics<parallel>], iteration_bounds = array<i64: 2>, scalar_prefetch = 0 : i64, scratch_operands = 0 : i64, tpu.core_type = #tpu.core_type<tc>, window_params = [{transform_indices = @transform_0, window_bounds = array<i64: 1, 32, 256>}, {pipeline_mode = #tpu.pipeline_mode<synchronous>, transform_indices = @transform_1, window_bounds = array<i64: 128, 32>}, {pipeline_mode = #tpu.pipeline_mode<synchronous>, transform_indices = @transform_2, window_bounds = array<i64: 128, 1>}, {pipeline_mode = #tpu.pipeline_mode<synchronous>, transform_indices = @transform_3, window_bounds = array<i64: 128, 1>}, {pipeline_mode = #tpu.pipeline_mode<synchronous>, transform_indices = @transform_4, window_bounds = array<i64: 1, 1>}, {transform_indices = @transform_5, window_bounds = array<i64: 1, 1, 256>}]} {
    %c0 = arith.constant 0 : index
    %c0_0 = arith.constant 0 : index
    %c0_1 = arith.constant 0 : index
    %0 = vector.load %arg1[%c0, %c0_0, %c0_1] : memref<1x32x256xf32, #tpu.memory_space<vmem>>, vector<1x32x256xf32>
    %1 = vector.shape_cast %0 : vector<1x32x256xf32> to vector<32x256xf32>
    %c0_2 = arith.constant 0 : index
    %c0_3 = arith.constant 0 : index
    %2 = vector.load %arg2[%c0_2, %c0_3] : memref<128x32xf32, #tpu.memory_space<vmem>>, vector<128x32xf32>
    %cst = arith.constant dense<0.000000e+00> : vector<128x256xf32>
    %3 = tpu.matmul %2, %1, %cst {dimension_numbers = #tpu.dot_dimension_numbers<[1], [0], [0], [1], [0, 0, 1, 1], [], []>} : vector<128x32xf32>, vector<32x256xf32>, vector<128x256xf32> -> vector<128x256xf32>
    %c0_4 = arith.constant 0 : index
    %c0_5 = arith.constant 0 : index
    %4 = vector.load %arg3[%c0_4, %c0_5] : memref<128x1xf32, #tpu.memory_space<vmem>>, vector<128x1xf32>
    %5 = vector.broadcast %4 : vector<128x1xf32> to vector<128x256xf32>
    %6 = arith.addf %3, %5 : vector<128x256xf32>
    %cst_6 = arith.constant 5.000000e-01 : f32
    %7 = vector.broadcast %cst_6 : f32 to vector<128x256xf32>
    %8 = arith.mulf %7, %6 : vector<128x256xf32>
    %cst_7 = arith.constant 0.707106769 : f32
    %9 = vector.broadcast %cst_7 : f32 to vector<128x256xf32>
    %10 = arith.mulf %6, %9 : vector<128x256xf32>
    %11 = math.erf %10 : vector<128x256xf32>
    %cst_8 = arith.constant 1.000000e+00 : f32
    %12 = vector.broadcast %cst_8 : f32 to vector<128x256xf32>
    %13 = arith.addf %12, %11 : vector<128x256xf32>
    %14 = arith.mulf %8, %13 : vector<128x256xf32>
    %c0_9 = arith.constant 0 : index
    %c0_10 = arith.constant 0 : index
    %15 = vector.load %arg4[%c0_9, %c0_10] : memref<128x1xf32, #tpu.memory_space<vmem>>, vector<128x1xf32>
    %16 = vector.broadcast %15 : vector<128x1xf32> to vector<128x256xf32>
    %17 = arith.mulf %14, %16 : vector<128x256xf32>
    %cst_11 = arith.constant dense<0.000000e+00> : vector<256xf32>
    %18 = vector.multi_reduction <add>, %17, %cst_11 [0] : vector<128x256xf32> to vector<256xf32>
    %19 = vector.shape_cast %18 : vector<256xf32> to vector<1x256xf32>
    %c0_12 = arith.constant 0 : index
    %c0_13 = arith.constant 0 : index
    %20 = vector.load %arg5[%c0_12, %c0_13] : memref<1x1xf32, #tpu.memory_space<vmem>>, vector<1x1xf32>
    %21 = vector.broadcast %20 : vector<1x1xf32> to vector<1x256xf32>
    %22 = arith.addf %19, %21 : vector<1x256xf32>
    %c0_14 = arith.constant 0 : index
    %c0_15 = arith.constant 0 : index
    %c0_16 = arith.constant 0 : index
    %23 = vector.load %arg6[%c0_14, %c0_15, %c0_16] : memref<1x1x256xf32, #tpu.memory_space<vmem>>, vector<1x1x256xf32>
    %24 = vector.shape_cast %23 : vector<1x1x256xf32> to vector<1x256xf32>
    %25 = vector.shape_cast %22 : vector<1x256xf32> to vector<1x1x256xf32>
    tpu.vector_store %arg6[%c0_14, %c0_15, %c0_16], %25 {strides = array<i32>} : memref<1x1x256xf32, #tpu.memory_space<vmem>>, vector<1x1x256xf32>,
    return
  }
  func.func @transform_0(%arg0: i32) -> (i32, i32, i32) {
    %c0_i32 = arith.constant 0 : i32
    %c0_i32_0 = arith.constant 0 : i32
    %c0_i32_1 = arith.constant 0 : i32
    return %arg0, %c0_i32, %c0_i32_0 : i32, i32, i32
  }
  func.func @transform_1(%arg0: i32) -> (i32, i32) {
    %c0_i32 = arith.constant 0 : i32
    %c0_i32_0 = arith.constant 0 : i32
    %c0_i32_1 = arith.constant 0 : i32
    return %c0_i32, %c0_i32_0 : i32, i32
  }
  func.func @transform_2(%arg0: i32) -> (i32, i32) {
    %c0_i32 = arith.constant 0 : i32
    %c0_i32_0 = arith.constant 0 : i32
    %c0_i32_1 = arith.constant 0 : i32
    return %c0_i32, %c0_i32_0 : i32, i32
  }
  func.func @transform_3(%arg0: i32) -> (i32, i32) {
    %c0_i32 = arith.constant 0 : i32
    %c0_i32_0 = arith.constant 0 : i32
    %c0_i32_1 = arith.constant 0 : i32
    return %c0_i32, %c0_i32_0 : i32, i32
  }
  func.func @transform_4(%arg0: i32) -> (i32, i32) {
    %c0_i32 = arith.constant 0 : i32
    %c0_i32_0 = arith.constant 0 : i32
    %c0_i32_1 = arith.constant 0 : i32
    return %c0_i32, %c0_i32_0 : i32, i32
  }
  func.func @transform_5(%arg0: i32) -> (i32, i32, i32) {
    %c0_i32 = arith.constant 0 : i32
    %c0_i32_0 = arith.constant 0 : i32
    %c0_i32_1 = arith.constant 0 : i32
    return %arg0, %c0_i32, %c0_i32_0 : i32, i32, i32
  }
}

</mosaic_0001>

<llo_original>
// kernel: fno2d_forward.6
$region0: #{fno2d_forward.6}
  #allocation0 [shape = 'u32[]', space=smem, size = 0x4, offset = 0x4, fixed_abs, tag = 'smem constant byte address 0x4 - core index']
  #allocation1 [shape = 'u32[72,128]{1,0:T(1,128)}', space=vmem, size = 0x9000, scoped, tag = 'internal scratch']
  %s0 = inlined_call_operand.vmem [shape: f32[2,20,256], index: 0, kind: input, shape index: {}]
  %s1 = inlined_call_operand.vmem [shape: f32[32,20], index: 1, kind: input, shape index: {}]
  %s2 = inlined_call_operand.vmem [shape: f32[32,256], index: 2, kind: input, shape index: {}]
  %s3 = inlined_call_operand.vmem [shape: f32[2,32,256], index: 3, kind: output, shape index: {}]
  %s4 = sld [smem:[#allocation0]]
  $region45: #{fno2d_forward.6} parent=0
    _
  %s6 = ssub.s32 1, %s4
  %s7 = scalar_select 0, %s6, %s4
  loop: start=0, step=1, limit=4
  $region2: #{fno2d_forward.6} parent=0 // loop_pre_header
    _
  $region3: #{fno2d_forward.6} parent=0 // loop_header
    %s9 = sphi 0, %s13
    %p10 = scmp.ge.s32.totalorder %s9, 4
    %s19 = sphi 0, %s21
    %s22 = sphi 0, %s19
    %s23 = sphi 0, %s22
    %s39 = sphi 0, %s23
    %s43 = sphi 0, %s43
    %s45 = sphi 0, %s43
    %s46 = sphi 0, %s45
    %s60 = sphi 0, %s46
    %s64 = sphi 0, %s64
    %s66 = sphi 0, %s64
    %s67 = sphi 0, %s66
    %s81 = sphi 0, %s67
    %s87 = sphi 0, %s89
    %s90 = sphi 0, %s87
    %s91 = sphi 0, %s90
    %s107 = sphi 0, %s91
  $region4: #{fno2d_forward.6} parent=0 // loop_header_branch
    %12 = sbr.rel (%p10) target = $region8
  $region5: #{fno2d_forward.6} parent=0 // loop_body
    %s14 = ssub.s32 %s9, 1
    %s15 = ssub.s32 %s9, 2
    %s16 = sadd.s32 %s9, 1
    %s17 = ssub.s32 %s9, %s16
    %p18 = scmp.eq.s32.totalorder %s17, 0
    %s20 = sadd.s32 %s19, 1
    %s21 = scalar_select %p18, %s19, %s20
    %p24 = pneg %p18
    %p25 = scmp.eq.s32.totalorder %s9, 1
    %p26 = por %p24, %p25
    %p27 = scmp.ne.s32.totalorder %s19, %s22
    %p28 = scmp.eq.s32.totalorder %s9, 0
    %p29 = por %p27, %p28
    %p30 = scmp.ne.s32.totalorder %s19, %s22
    %p31 = scmp.eq.s32.totalorder %s14, 1
    %p32 = por %p30, %p31
    %p33 = scmp.ne.s32.totalorder %s22, %s23
    %p34 = scmp.eq.s32.totalorder %s14, 0
    %p35 = por %p33, %p34
    %p36 = scmp.ne.s32.totalorder %s22, %s23
    %p37 = scmp.eq.s32.totalorder %s15, 1
    %p38 = por %p36, %p37
    %p40 = scmp.ne.s32.totalorder %s23, %s39
    %p41 = scmp.eq.s32.totalorder %s15, 0
    %p42 = por %p40, %p41
    %s44 = sadd.s32 %s43, 1
    %p47 = scmp.eq.s32.totalorder %s9, 1
    %p48 = scmp.ne.s32.totalorder %s43, %s45
    %p49 = scmp.eq.s32.totalorder %s9, 0
    %p50 = por %p48, %p49
    %p51 = scmp.ne.s32.totalorder %s43, %s45
    %p52 = scmp.eq.s32.totalorder %s14, 1
    %p53 = por %p51, %p52
    %p54 = scmp.ne.s32.totalorder %s45, %s46
    %p55 = scmp.eq.s32.totalorder %s14, 0
    %p56 = por %p54, %p55
    %p57 = scmp.ne.s32.totalorder %s45, %s46
    %p58 = scmp.eq.s32.totalorder %s15, 1
    %p59 = por %p57, %p58
    %p61 = scmp.ne.s32.totalorder %s46, %s60
    %p62 = scmp.eq.s32.totalorder %s15, 0
    %p63 = por %p61, %p62
    %s65 = sadd.s32 %s64, 1
    %p68 = scmp.eq.s32.totalorder %s9, 1
    %p69 = scmp.ne.s32.totalorder %s64, %s66
    %p70 = scmp.eq.s32.totalorder %s9, 0
    %p71 = por %p69, %p70
    %p72 = scmp.ne.s32.totalorder %s64, %s66
    %p73 = scmp.eq.s32.totalorder %s14, 1
    %p74 = por %p72, %p73
    %p75 = scmp.ne.s32.totalorder %s66, %s67
    %p76 = scmp.eq.s32.totalorder %s14, 0
    %p77 = por %p75, %p76
    %p78 = scmp.ne.s32.totalorder %s66, %s67
    %p79 = scmp.eq.s32.totalorder %s15, 1
    %p80 = por %p78, %p79
    %p82 = scmp.ne.s32.totalorder %s67, %s81
    %p83 = scmp.eq.s32.totalorder %s15, 0
    %p84 = por %p82, %p83
    %s85 = ssub.s32 %s9, %s16
    %p86 = scmp.eq.s32.totalorder %s85, 0
    %s88 = sadd.s32 %s87, 1
    %s89 = scalar_select %p86, %s87, %s88
    %p92 = pneg %p86
    %p93 = scmp.eq.s32.totalorder %s9, 1
    %p94 = por %p92, %p93
    %p95 = scmp.ne.s32.totalorder %s87, %s90
    %p96 = scmp.eq.s32.totalorder %s9, 0
    %p97 = por %p95, %p96
    %p98 = scmp.ne.s32.totalorder %s87, %s90
    %p99 = scmp.eq.s32.totalorder %s14, 1
    %p100 = por %p98, %p99
    %p101 = scmp.ne.s32.totalorder %s90, %s91
    %p102 = scmp.eq.s32.totalorder %s14, 0
    %p103 = por %p101, %p102
    %p104 = scmp.ne.s32.totalorder %s90, %s91
    %p105 = scmp.eq.s32.totalorder %s15, 1
    %p106 = por %p104, %p105
    %p108 = scmp.ne.s32.totalorder %s91, %s107
    %p109 = scmp.eq.s32.totalorder %s15, 0
    %p110 = por %p108, %p109
    %p111 = scmp.le.s32.totalorder 1, %s9
    %p112 = scmp.lt.s32.totalorder %s9, 3
    %p113 = pnand %p111, %p112
    %p114 = pneg %p113
    // Predicated region
    $region9: #{fno2d_forward.6} parent=5 // pred_check
      _
    $region10: #{fno2d_forward.6} parent=5 // pred_check_branch
      %116 = sbr.rel (%p113) target = $region12
    $region11: #{fno2d_forward.6} parent=5 // pred_region
      %s117 = ssub.s32 %s9, 1
      // Predicated region
      $region13: #{fno2d_forward.6} parent=11 // pred_check
        %p118 = pneg %p56
      $region14: #{fno2d_forward.6} parent=11 // pred_check_branch
        %120 = sbr.rel (%p118) target = $region16
      $region15: #{fno2d_forward.6} parent=11 // pred_region
        _
      $region16: #{fno2d_forward.6} parent=11 // pred_fallthru
        _
      // Predicated region
      $region17: #{fno2d_forward.6} parent=11 // pred_check
        %p121 = pneg %p77
      $region18: #{fno2d_forward.6} parent=11 // pred_check_branch
        %123 = sbr.rel (%p121) target = $region20
      $region19: #{fno2d_forward.6} parent=11 // pred_region
        _
      $region20: #{fno2d_forward.6} parent=11 // pred_fallthru
        _
    $region12: #{fno2d_forward.6} parent=5 // pred_fallthru
      _
    %p124 = scmp.lt.s32.totalorder %s9, 2
    // Predicated region
    $region21: #{fno2d_forward.6} parent=5 // pred_check
      %p125 = pneg %p124
    $region22: #{fno2d_forward.6} parent=5 // pred_check_branch
      %127 = sbr.rel (%p125) target = $region24
    $region23: #{fno2d_forward.6} parent=5 // pred_region
      // Predicated region
      $region25: #{fno2d_forward.6} parent=23 // pred_check
        %p128 = pneg %p29
      $region26: #{fno2d_forward.6} parent=23 // pred_check_branch
        %130 = sbr.rel (%p128) target = $region28
      $region27: #{fno2d_forward.6} parent=23 // pred_region
        %p131 = scmp.lt.s32.totalorder %s9, 1
        %s132 = scalar_select %p131, %s9, 1
        %s133 = smul.addr %s132, 6
        %s134 = smul.addr %s133, 8
        %s135 = scalar_lea.vmem %s0, %s134
      $region28: #{fno2d_forward.6} parent=23 // pred_fallthru
        _
    $region24: #{fno2d_forward.6} parent=5 // pred_fallthru
      _
    %p136 = scmp.le.s32.totalorder 1, %s9
    %p137 = scmp.lt.s32.totalorder %s9, 3
    %p138 = pnand %p136, %p137
    %p139 = pneg %p138
    // Predicated region
    $region29: #{fno2d_forward.6} parent=5 // pred_check
      _
    $region30: #{fno2d_forward.6} parent=5 // pred_check_branch
      %141 = sbr.rel (%p138) target = $region32
    $region31: #{fno2d_forward.6} parent=5 // pred_region
      %s142 = ssub.s32 %s9, 1
      %p143 = scmp.lt.s32.totalorder %s14, 1
      %s144 = scalar_select %p143, %s14, 1
      %s145 = smul.addr %s144, 6
      %s146 = smul.addr %s145, 8
      %s147 = scalar_lea.vmem %s0, %s146
      %p148 = pneg %p35
      %p149 = pneg %p32
      %p150 = pneg %p56
      %p151 = pneg %p53
      %p152 = pneg %p77
      %p153 = pneg %p74
      %p154 = pneg %p103
      %p155 = pneg %p100
      %p156 = scmp.lt.s32.totalorder %s14, 1
      %s157 = scalar_select %p156, %s14, 1
      %s158 = smul.addr %s157, 8
      %s159 = smul.addr %s158, 8
      %s160 = scalar_lea.vmem %s3, %s159
      %p161 = scmp.lt.s32.totalorder %s14, 1
      %s162 = scalar_select %p161, %s14, 1
      %s163 = smul.addr %s162, 6
      %s164 = smul.addr %s163, 8
      %s165 = scalar_lea.vmem %s0, %s164
      %p166 = scmp.lt.s32.totalorder %s14, 1
      %s167 = scalar_select %p166, %s14, 1
      %s168 = smul.addr %s167, 8
      %s169 = smul.addr %s168, 8
      %s170 = scalar_lea.vmem %s3, %s169
      %v171 = vld [vmem:[%s1] sm:$0xff]
      %v172 = vld [vmem:[%s1 + $0x8] sm:$0xff]
      %v173 = vld [vmem:[%s1 + $0x10] sm:$0xff]
      %v174 = vld [vmem:[%s1 + $0x18] sm:$0xff]
      %v175 = vld [vmem:[%s165] sm:$0xff]
      %v176 = vld [vmem:[%s165 + $0x8] sm:$0xff]
      %v177 = vld [vmem:[%s165 + $0x10] sm:$0xff]
      %v178 = vld [vmem:[%s165 + $0x18] sm:$0xff]
      %v179 = vld [vmem:[%s165 + $0x20] sm:$0xf]
      %v180 = vld [vmem:[%s165 + $0x28] sm:$0xf]
      %v181 = vld [vmem:[%s2] sm:$0xff]
      %v182 = vld [vmem:[%s2 + $0x8] sm:$0xff]
      %v183 = vld [vmem:[%s2 + $0x10] sm:$0xff]
      %v184 = vld [vmem:[%s2 + $0x18] sm:$0xff]
      %v185 = vld [vmem:[%s2 + $0x20] sm:$0xff]
      %v186 = vld [vmem:[%s2 + $0x28] sm:$0xff]
      %v187 = vld [vmem:[%s2 + $0x30] sm:$0xff]
      %v188 = vld [vmem:[%s2 + $0x38] sm:$0xff]
      %vm189 = vcmask 162816
      %v191 = vsel %vm189, %v171, 0
      %v194 = vsel %vm189, %v172, 0
      %v197 = vsel %vm189, %v173, 0
      %v200 = vsel %vm189, %v174, 0
      %vm202 = vcmask 1043456
      %v204 = vsel %vm202, %v179, 0
      %v207 = vsel %vm202, %v180, 0
      %209 = vmatpush.msra.mxu0 0.0
      %210 = vmatpush.msra.mxu0 0.0
      %211 = vmatpush.msra.mxu0 0.0
      %212 = vmatpush.msra.mxu0 0.0
      %213 = vmatpush.msra.mxu0 0.0
      %214 = vmatpush.msra.mxu0 0.0
      %215 = vmatpush.msra.mxu0 0.0
      %216 = vmatpush.msra.mxu0 0.0
      %217 = vmatpush.msra.mxu0 0.0
      %218 = vmatpush.msra.mxu0 0.0
      %219 = vmatpush.msra.mxu0 0.0
      %220 = vmatpush.msra.mxu0 0.0
      %221 = vmatpush.msra.mxu0 0.0
      %222 = vmatpush.msra.mxu0 %v204
      %223 = vmatpush.msra.mxu0 %v177
      %224 = vmatpush.msra.mxu0 %v175
      %225 = vmatmul.f32.gmra.mxu0 %v191
      %v226 = vpop.f32.mrf.mxu0
      %v227 = vadd.f32 %v181, %v226
      %228 = vmatmul.f32.gmra.mxu0 %v194
      %v229 = vpop.f32.mrf.mxu0
      %v230 = vadd.f32 %v183, %v229
      %231 = vmatmul.f32.gmra.mxu0 %v197
      %v232 = vpop.f32.mrf.mxu0
      %v233 = vadd.f32 %v185, %v232
      %234 = vmatmul.f32.gmra.mxu0 %v200
      %v235 = vpop.f32.mrf.mxu0
      %v236 = vadd.f32 %v187, %v235
      %237 = vdwg.mxu0
      %238 = vmatpush.msra.mxu0 0.0
      %239 = vmatpush.msra.mxu0 0.0
      %240 = vmatpush.msra.mxu0 0.0
      %241 = vmatpush.msra.mxu0 0.0
      %242 = vmatpush.msra.mxu0 0.0
      %243 = vmatpush.msra.mxu0 0.0
      %244 = vmatpush.msra.mxu0 0.0
      %245 = vmatpush.msra.mxu0 0.0
      %246 = vmatpush.msra.mxu0 0.0
      %247 = vmatpush.msra.mxu0 0.0
      %248 = vmatpush.msra.mxu0 0.0
      %249 = vmatpush.msra.mxu0 0.0
      %250 = vmatpush.msra.mxu0 0.0
      %251 = vmatpush.msra.mxu0 %v207
      %252 = vmatpush.msra.mxu0 %v178
      %253 = vmatpush.msra.mxu0 %v176
      %254 = vmatmul.f32.gmra.mxu0 %v191
      %v255 = vpop.f32.mrf.mxu0
      %v256 = vadd.f32 %v182, %v255
      %257 = vmatmul.f32.gmra.mxu0 %v194
      %v258 = vpop.f32.mrf.mxu0
      %v259 = vadd.f32 %v184, %v258
      %260 = vmatmul.f32.gmra.mxu0 %v197
      %v261 = vpop.f32.mrf.mxu0
      %v262 = vadd.f32 %v186, %v261
      %263 = vmatmul.f32.gmra.mxu0 %v200
      %v264 = vpop.f32.mrf.mxu0
      %v265 = vadd.f32 %v188, %v264
      %266 = vdwg.mxu0
      %267 = vst [vmem:[%s170] sm:$0xff] %v227
      %268 = vst [vmem:[%s170 + $0x8] sm:$0xff] %v256
      %269 = vst [vmem:[%s170 + $0x10] sm:$0xff] %v230
      %270 = vst [vmem:[%s170 + $0x18] sm:$0xff] %v259
      %271 = vst [vmem:[%s170 + $0x20] sm:$0xff] %v233
      %272 = vst [vmem:[%s170 + $0x28] sm:$0xff] %v262
      %273 = vst [vmem:[%s170 + $0x30] sm:$0xff] %v236
      %274 = vst [vmem:[%s170 + $0x38] sm:$0xff] %v265
      %p275 = scmp.lt.s32.totalorder %s14, 1
      %s276 = scalar_select %p275, %s14, 1
      %s277 = smul.addr %s276, 8
      %s278 = smul.addr %s277, 8
      %s279 = scalar_lea.vmem %s3, %s278
      // Predicated region
      $region33: #{fno2d_forward.6} parent=31 // pred_check
        %p280 = pneg %p100
      $region34: #{fno2d_forward.6} parent=31 // pred_check_branch
        %282 = sbr.rel (%p280) target = $region36
      $region35: #{fno2d_forward.6} parent=31 // pred_region
        _
      $region36: #{fno2d_forward.6} parent=31 // pred_fallthru
        _
    $region32: #{fno2d_forward.6} parent=5 // pred_fallthru
      _
    %p283 = scmp.le.s32.totalorder 2, %s9
    // Predicated region
    $region37: #{fno2d_forward.6} parent=5 // pred_check
      %p284 = pneg %p283
    $region38: #{fno2d_forward.6} parent=5 // pred_check_branch
      %286 = sbr.rel (%p284) target = $region40
    $region39: #{fno2d_forward.6} parent=5 // pred_region
      %s287 = ssub.s32 %s9, 2
      // Predicated region
      $region41: #{fno2d_forward.6} parent=39 // pred_check
        %p288 = pneg %p106
      $region42: #{fno2d_forward.6} parent=39 // pred_check_branch
        %290 = sbr.rel (%p288) target = $region44
      $region43: #{fno2d_forward.6} parent=39 // pred_region
        %p291 = scmp.lt.s32.totalorder %s15, 1
        %s292 = scalar_select %p291, %s15, 1
        %s293 = smul.addr %s292, 8
        %s294 = smul.addr %s293, 8
        %s295 = scalar_lea.vmem %s3, %s294
      $region44: #{fno2d_forward.6} parent=39 // pred_fallthru
        _
    $region40: #{fno2d_forward.6} parent=5 // pred_fallthru
      _
  $region6: #{fno2d_forward.6} parent=0 // loop_footer
    %s13 = sadd.s32 1, %s9
  $region7: #{fno2d_forward.6} parent=0 // loop_footer_branch
    %8 = sbr.rel target = $region3
  $region8: #{fno2d_forward.6} parent=0 // loop_exit
    _

// kernel: fno2d_forward.11
$region0: #{fno2d_forward.11}
  #allocation0 [shape = 'u32[]', space=smem, size = 0x4, offset = 0x4, fixed_abs, tag = 'smem constant byte address 0x4 - core index']
  #allocation1 [shape = 'u32[72,128]{1,0:T(1,128)}', space=vmem, size = 0x9000, scoped, tag = 'internal scratch']
  #allocation2 [shape = 'f32[1,1]{1,0:T(1,128)S(1)}', space=vmem, size = 0x200, scoped, tag = 'scoped memory for fno2d_forward.11']
  %s0 = inlined_call_operand.vmem [shape: f32[2,32,256], index: 0, kind: input, shape index: {}]
  %s1 = inlined_call_operand.vmem [shape: f32[128,32], index: 1, kind: input, shape index: {}]
  %s2 = inlined_call_operand.vmem [shape: f32[128,1], index: 2, kind: input, shape index: {}]
  %s3 = inlined_call_operand.vmem [shape: f32[128,1], index: 3, kind: input, shape index: {}]
  %s4 = inlined_call_operand.<no memory space> [shape: f32[1,1], index: 4, kind: input, shape index: {}]
  %s5 = inlined_call_operand.vmem [shape: f32[2,1,256], index: 5, kind: output, shape index: {}]
  %s6 = sld [smem:[#allocation0]]
  $region53: #{fno2d_forward.11} parent=0
    _
  %s8 = ssub.s32 1, %s6
  %s9 = scalar_select 0, %s8, %s6
  %v10 = vstv %s4
  %11 = vst [vmem:[#allocation2] sm:$0x1] %v10
  loop: start=0, step=1, limit=4
  $region2: #{fno2d_forward.11} parent=0 // loop_pre_header
    _
  $region3: #{fno2d_forward.11} parent=0 // loop_header
    %s13 = sphi 0, %s17
    %p14 = scmp.ge.s32.totalorder %s13, 4
    %s23 = sphi 0, %s25
    %s26 = sphi 0, %s23
    %s27 = sphi 0, %s26
    %s43 = sphi 0, %s27
    %s47 = sphi 0, %s47
    %s49 = sphi 0, %s47
    %s50 = sphi 0, %s49
    %s64 = sphi 0, %s50
    %s68 = sphi 0, %s68
    %s70 = sphi 0, %s68
    %s71 = sphi 0, %s70
    %s85 = sphi 0, %s71
    %s89 = sphi 0, %s89
    %s91 = sphi 0, %s89
    %s92 = sphi 0, %s91
    %s106 = sphi 0, %s92
    %s110 = sphi 0, %s110
    %s112 = sphi 0, %s110
    %s113 = sphi 0, %s112
    %s127 = sphi 0, %s113
    %s133 = sphi 0, %s135
    %s136 = sphi 0, %s133
    %s137 = sphi 0, %s136
    %s153 = sphi 0, %s137
  $region4: #{fno2d_forward.11} parent=0 // loop_header_branch
    %16 = sbr.rel (%p14) target = $region8
  $region5: #{fno2d_forward.11} parent=0 // loop_body
    %s18 = ssub.s32 %s13, 1
    %s19 = ssub.s32 %s13, 2
    %s20 = sadd.s32 %s13, 1
    %s21 = ssub.s32 %s13, %s20
    %p22 = scmp.eq.s32.totalorder %s21, 0
    %s24 = sadd.s32 %s23, 1
    %s25 = scalar_select %p22, %s23, %s24
    %p28 = pneg %p22
    %p29 = scmp.eq.s32.totalorder %s13, 1
    %p30 = por %p28, %p29
    %p31 = scmp.ne.s32.totalorder %s23, %s26
    %p32 = scmp.eq.s32.totalorder %s13, 0
    %p33 = por %p31, %p32
    %p34 = scmp.ne.s32.totalorder %s23, %s26
    %p35 = scmp.eq.s32.totalorder %s18, 1
    %p36 = por %p34, %p35
    %p37 = scmp.ne.s32.totalorder %s26, %s27
    %p38 = scmp.eq.s32.totalorder %s18, 0
    %p39 = por %p37, %p38
    %p40 = scmp.ne.s32.totalorder %s26, %s27
    %p41 = scmp.eq.s32.totalorder %s19, 1
    %p42 = por %p40, %p41
    %p44 = scmp.ne.s32.totalorder %s27, %s43
    %p45 = scmp.eq.s32.totalorder %s19, 0
    %p46 = por %p44, %p45
    %s48 = sadd.s32 %s47, 1
    %p51 = scmp.eq.s32.totalorder %s13, 1
    %p52 = scmp.ne.s32.totalorder %s47, %s49
    %p53 = scmp.eq.s32.totalorder %s13, 0
    %p54 = por %p52, %p53
    %p55 = scmp.ne.s32.totalorder %s47, %s49
    %p56 = scmp.eq.s32.totalorder %s18, 1
    %p57 = por %p55, %p56
    %p58 = scmp.ne.s32.totalorder %s49, %s50
    %p59 = scmp.eq.s32.totalorder %s18, 0
    %p60 = por %p58, %p59
    %p61 = scmp.ne.s32.totalorder %s49, %s50
    %p62 = scmp.eq.s32.totalorder %s19, 1
    %p63 = por %p61, %p62
    %p65 = scmp.ne.s32.totalorder %s50, %s64
    %p66 = scmp.eq.s32.totalorder %s19, 0
    %p67 = por %p65, %p66
    %s69 = sadd.s32 %s68, 1
    %p72 = scmp.eq.s32.totalorder %s13, 1
    %p73 = scmp.ne.s32.totalorder %s68, %s70
    %p74 = scmp.eq.s32.totalorder %s13, 0
    %p75 = por %p73, %p74
    %p76 = scmp.ne.s32.totalorder %s68, %s70
    %p77 = scmp.eq.s32.totalorder %s18, 1
    %p78 = por %p76, %p77
    %p79 = scmp.ne.s32.totalorder %s70, %s71
    %p80 = scmp.eq.s32.totalorder %s18, 0
    %p81 = por %p79, %p80
    %p82 = scmp.ne.s32.totalorder %s70, %s71
    %p83 = scmp.eq.s32.totalorder %s19, 1
    %p84 = por %p82, %p83
    %p86 = scmp.ne.s32.totalorder %s71, %s85
    %p87 = scmp.eq.s32.totalorder %s19, 0
    %p88 = por %p86, %p87
    %s90 = sadd.s32 %s89, 1
    %p93 = scmp.eq.s32.totalorder %s13, 1
    %p94 = scmp.ne.s32.totalorder %s89, %s91
    %p95 = scmp.eq.s32.totalorder %s13, 0
    %p96 = por %p94, %p95
    %p97 = scmp.ne.s32.totalorder %s89, %s91
    %p98 = scmp.eq.s32.totalorder %s18, 1
    %p99 = por %p97, %p98
    %p100 = scmp.ne.s32.totalorder %s91, %s92
    %p101 = scmp.eq.s32.totalorder %s18, 0
    %p102 = por %p100, %p101
    %p103 = scmp.ne.s32.totalorder %s91, %s92
    %p104 = scmp.eq.s32.totalorder %s19, 1
    %p105 = por %p103, %p104
    %p107 = scmp.ne.s32.totalorder %s92, %s106
    %p108 = scmp.eq.s32.totalorder %s19, 0
    %p109 = por %p107, %p108
    %s111 = sadd.s32 %s110, 1
    %p114 = scmp.eq.s32.totalorder %s13, 1
    %p115 = scmp.ne.s32.totalorder %s110, %s112
    %p116 = scmp.eq.s32.totalorder %s13, 0
    %p117 = por %p115, %p116
    %p118 = scmp.ne.s32.totalorder %s110, %s112
    %p119 = scmp.eq.s32.totalorder %s18, 1
    %p120 = por %p118, %p119
    %p121 = scmp.ne.s32.totalorder %s112, %s113
    %p122 = scmp.eq.s32.totalorder %s18, 0
    %p123 = por %p121, %p122
    %p124 = scmp.ne.s32.totalorder %s112, %s113
    %p125 = scmp.eq.s32.totalorder %s19, 1
    %p126 = por %p124, %p125
    %p128 = scmp.ne.s32.totalorder %s113, %s127
    %p129 = scmp.eq.s32.totalorder %s19, 0
    %p130 = por %p128, %p129
    %s131 = ssub.s32 %s13, %s20
    %p132 = scmp.eq.s32.totalorder %s131, 0
    %s134 = sadd.s32 %s133, 1
    %s135 = scalar_select %p132, %s133, %s134
    %p138 = pneg %p132
    %p139 = scmp.eq.s32.totalorder %s13, 1
    %p140 = por %p138, %p139
    %p141 = scmp.ne.s32.totalorder %s133, %s136
    %p142 = scmp.eq.s32.totalorder %s13, 0
    %p143 = por %p141, %p142
    %p144 = scmp.ne.s32.totalorder %s133, %s136
    %p145 = scmp.eq.s32.totalorder %s18, 1
    %p146 = por %p144, %p145
    %p147 = scmp.ne.s32.totalorder %s136, %s137
    %p148 = scmp.eq.s32.totalorder %s18, 0
    %p149 = por %p147, %p148
    %p150 = scmp.ne.s32.totalorder %s136, %s137
    %p151 = scmp.eq.s32.totalorder %s19, 1
    %p152 = por %p150, %p151
    %p154 = scmp.ne.s32.totalorder %s137, %s153
    %p155 = scmp.eq.s32.totalorder %s19, 0
    %p156 = por %p154, %p155
    %p157 = scmp.le.s32.totalorder 1, %s13
    %p158 = scmp.lt.s32.totalorder %s13, 3
    %p159 = pnand %p157, %p158
    %p160 = pneg %p159
    // Predicated region
    $region9: #{fno2d_forward.11} parent=5 // pred_check
      _
    $region10: #{fno2d_forward.11} parent=5 // pred_check_branch
      %162 = sbr.rel (%p159) target = $region12
    $region11: #{fno2d_forward.11} parent=5 // pred_region
      %s163 = ssub.s32 %s13, 1
      // Predicated region
      $region13: #{fno2d_forward.11} parent=11 // pred_check
        %p164 = pneg %p60
      $region14: #{fno2d_forward.11} parent=11 // pred_check_branch
        %166 = sbr.rel (%p164) target = $region16
      $region15: #{fno2d_forward.11} parent=11 // pred_region
        _
      $region16: #{fno2d_forward.11} parent=11 // pred_fallthru
        _
      // Predicated region
      $region17: #{fno2d_forward.11} parent=11 // pred_check
        %p167 = pneg %p81
      $region18: #{fno2d_forward.11} parent=11 // pred_check_branch
        %169 = sbr.rel (%p167) target = $region20
      $region19: #{fno2d_forward.11} parent=11 // pred_region
        _
      $region20: #{fno2d_forward.11} parent=11 // pred_fallthru
        _
      // Predicated region
      $region21: #{fno2d_forward.11} parent=11 // pred_check
        %p170 = pneg %p102
      $region22: #{fno2d_forward.11} parent=11 // pred_check_branch
        %172 = sbr.rel (%p170) target = $region24
      $region23: #{fno2d_forward.11} parent=11 // pred_region
        _
      $region24: #{fno2d_forward.11} parent=11 // pred_fallthru
        _
      // Predicated region
      $region25: #{fno2d_forward.11} parent=11 // pred_check
        %p173 = pneg %p123
      $region26: #{fno2d_forward.11} parent=11 // pred_check_branch
        %175 = sbr.rel (%p173) target = $region28
      $region27: #{fno2d_forward.11} parent=11 // pred_region
        _
      $region28: #{fno2d_forward.11} parent=11 // pred_fallthru
        _
    $region12: #{fno2d_forward.11} parent=5 // pred_fallthru
      _
    %p176 = scmp.lt.s32.totalorder %s13, 2
    // Predicated region
    $region29: #{fno2d_forward.11} parent=5 // pred_check
      %p177 = pneg %p176
    $region30: #{fno2d_forward.11} parent=5 // pred_check_branch
      %179 = sbr.rel (%p177) target = $region32
    $region31: #{fno2d_forward.11} parent=5 // pred_region
      // Predicated region
      $region33: #{fno2d_forward.11} parent=31 // pred_check
        %p180 = pneg %p33
      $region34: #{fno2d_forward.11} parent=31 // pred_check_branch
        %182 = sbr.rel (%p180) target = $region36
      $region35: #{fno2d_forward.11} parent=31 // pred_region
        %p183 = scmp.lt.s32.totalorder %s13, 1
        %s184 = scalar_select %p183, %s13, 1
        %s185 = smul.addr %s184, 8
        %s186 = smul.addr %s185, 8
        %s187 = scalar_lea.vmem %s0, %s186
      $region36: #{fno2d_forward.11} parent=31 // pred_fallthru
        _
    $region32: #{fno2d_forward.11} parent=5 // pred_fallthru
      _
    %p188 = scmp.le.s32.totalorder 1, %s13
    %p189 = scmp.lt.s32.totalorder %s13, 3
    %p190 = pnand %p188, %p189
    %p191 = pneg %p190
    // Predicated region
    $region37: #{fno2d_forward.11} parent=5 // pred_check
      _
    $region38: #{fno2d_forward.11} parent=5 // pred_check_branch
      %193 = sbr.rel (%p190) target = $region40
    $region39: #{fno2d_forward.11} parent=5 // pred_region
      %s194 = ssub.s32 %s13, 1
      %p195 = scmp.lt.s32.totalorder %s18, 1
      %s196 = scalar_select %p195, %s18, 1
      %s197 = smul.addr %s196, 8
      %s198 = smul.addr %s197, 8
      %s199 = scalar_lea.vmem %s0, %s198
      %p200 = pneg %p39
      %p201 = pneg %p36
      %p202 = pneg %p60
      %p203 = pneg %p57
      %p204 = pneg %p81
      %p205 = pneg %p78
      %p206 = pneg %p102
      %p207 = pneg %p99
      %p208 = pneg %p123
      %p209 = pneg %p120
      %p210 = pneg %p149
      %p211 = pneg %p146
      %p212 = scmp.lt.s32.totalorder %s18, 1
      %s213 = scalar_select %p212, %s18, 1
      %s214 = smul.addr %s213, 2
      %s215 = scalar_lea.vmem %s5, %s214
      %p216 = scmp.lt.s32.totalorder %s18, 1
      %s217 = scalar_select %p216, %s18, 1
      %s218 = smul.addr %s217, 8
      %s219 = smul.addr %s218, 8
      %s220 = scalar_lea.vmem %s0, %s219
      %p221 = scmp.lt.s32.totalorder %s18, 1
      %s222 = scalar_select %p221, %s18, 1
      %s223 = smul.addr %s222, 2
      %s224 = scalar_lea.vmem %s5, %s223
      %v225 = vld [vmem:[%s220] sm:$0xff]
      %v226 = vld [vmem:[%s220 + $0x8] sm:$0xff]
      %v227 = vld [vmem:[%s220 + $0x10] sm:$0xff]
      %v228 = vld [vmem:[%s220 + $0x18] sm:$0xff]
      %v229 = vld [vmem:[%s220 + $0x20] sm:$0xff]
      %v230 = vld [vmem:[%s220 + $0x28] sm:$0xff]
      %v231 = vld [vmem:[%s220 + $0x30] sm:$0xff]
      %v232 = vld [vmem:[%s220 + $0x38] sm:$0xff]
      %v233 = vld [vmem:[%s1] sm:$0xff]
      %v234 = vld [vmem:[%s1 + $0x8] sm:$0xff]
      %v235 = vld [vmem:[%s1 + $0x10] sm:$0xff]
      %v236 = vld [vmem:[%s1 + $0x18] sm:$0xff]
      %v237 = vld [vmem:[%s1 + $0x20] sm:$0xff]
      %v238 = vld [vmem:[%s1 + $0x28] sm:$0xff]
      %v239 = vld [vmem:[%s1 + $0x30] sm:$0xff]
      %v240 = vld [vmem:[%s1 + $0x38] sm:$0xff]
      %v241 = vld [vmem:[%s1 + $0x40] sm:$0xff]
      %v242 = vld [vmem:[%s1 + $0x48] sm:$0xff]
      %v243 = vld [vmem:[%s1 + $0x50] sm:$0xff]
      %v244 = vld [vmem:[%s1 + $0x58] sm:$0xff]
      %v245 = vld [vmem:[%s1 + $0x60] sm:$0xff]
      %v246 = vld [vmem:[%s1 + $0x68] sm:$0xff]
      %v247 = vld [vmem:[%s1 + $0x70] sm:$0xff]
      %v248 = vld [vmem:[%s1 + $0x78] sm:$0xff]
      %v249 = vld [vmem:[%s2] sm:$0xff]
      %v250 = vld [vmem:[%s2 + $0x8] sm:$0xff]
      %v251 = vld [vmem:[%s2 + $0x10] sm:$0xff]
      %v252 = vld [vmem:[%s2 + $0x18] sm:$0xff]
      %v253 = vld [vmem:[%s2 + $0x20] sm:$0xff]
      %v254 = vld [vmem:[%s2 + $0x28] sm:$0xff]
      %v255 = vld [vmem:[%s2 + $0x30] sm:$0xff]
      %v256 = vld [vmem:[%s2 + $0x38] sm:$0xff]
      %v257 = vld [vmem:[%s2 + $0x40] sm:$0xff]
      %v258 = vld [vmem:[%s2 + $0x48] sm:$0xff]
      %v259 = vld [vmem:[%s2 + $0x50] sm:$0xff]
      %v260 = vld [vmem:[%s2 + $0x58] sm:$0xff]
      %v261 = vld [vmem:[%s2 + $0x60] sm:$0xff]
      %v262 = vld [vmem:[%s2 + $0x68] sm:$0xff]
      %v263 = vld [vmem:[%s2 + $0x70] sm:$0xff]
      %v264 = vld [vmem:[%s2 + $0x78] sm:$0xff]
      %266 = vset.pattern.permute.xlu0 0
      %267 = vperm.xlu0 %266, %v249
      %v268 = vpop.permute.xlu0 %267
      %271 = vset.pattern.permute.xlu0 0
      %272 = vperm.xlu0 %271, %v250
      %v273 = vpop.permute.xlu0 %272
      %276 = vset.pattern.permute.xlu0 0
      %277 = vperm.xlu0 %276, %v251
      %v278 = vpop.permute.xlu0 %277
      %281 = vset.pattern.permute.xlu0 0
      %282 = vperm.xlu0 %281, %v252
      %v283 = vpop.permute.xlu0 %282
      %286 = vset.pattern.permute.xlu0 0
      %287 = vperm.xlu0 %286, %v253
      %v288 = vpop.permute.xlu0 %287
      %291 = vset.pattern.permute.xlu0 0
      %292 = vperm.xlu0 %291, %v254
      %v293 = vpop.permute.xlu0 %292
      %296 = vset.pattern.permute.xlu0 0
      %297 = vperm.xlu0 %296, %v255
      %v298 = vpop.permute.xlu0 %297
      %301 = vset.pattern.permute.xlu0 0
      %302 = vperm.xlu0 %301, %v256
      %v303 = vpop.permute.xlu0 %302
      %306 = vset.pattern.permute.xlu0 0
      %307 = vperm.xlu0 %306, %v257
      %v308 = vpop.permute.xlu0 %307
      %311 = vset.pattern.permute.xlu0 0
      %312 = vperm.xlu0 %311, %v258
      %v313 = vpop.permute.xlu0 %312
      %316 = vset.pattern.permute.xlu0 0
      %317 = vperm.xlu0 %316, %v259
      %v318 = vpop.permute.xlu0 %317
      %321 = vset.pattern.permute.xlu0 0
      %322 = vperm.xlu0 %321, %v260
      %v323 = vpop.permute.xlu0 %322
      %326 = vset.pattern.permute.xlu0 0
      %327 = vperm.xlu0 %326, %v261
      %v328 = vpop.permute.xlu0 %327
      %331 = vset.pattern.permute.xlu0 0
      %332 = vperm.xlu0 %331, %v262
      %v333 = vpop.permute.xlu0 %332
      %336 = vset.pattern.permute.xlu0 0
      %337 = vperm.xlu0 %336, %v263
      %v338 = vpop.permute.xlu0 %337
      %341 = vset.pattern.permute.xlu0 0
      %342 = vperm.xlu0 %341, %v264
      %v343 = vpop.permute.xlu0 %342
      %vm345 = vcmask 261120
      %v347 = vsel %vm345, %v233, 0
      %v350 = vsel %vm345, %v234, 0
      %v353 = vsel %vm345, %v235, 0
      %v356 = vsel %vm345, %v236, 0
      %v359 = vsel %vm345, %v237, 0
      %v362 = vsel %vm345, %v238, 0
      %v365 = vsel %vm345, %v239, 0
      %v368 = vsel %vm345, %v240, 0
      %v371 = vsel %vm345, %v241, 0
      %v374 = vsel %vm345, %v242, 0
      %v377 = vsel %vm345, %v243, 0
      %v380 = vsel %vm345, %v244, 0
      %v383 = vsel %vm345, %v245, 0
      %v386 = vsel %vm345, %v246, 0
      %v389 = vsel %vm345, %v247, 0
      %v392 = vsel %vm345, %v248, 0
      %394 = vmatpush.msra.mxu0 0.0
      %395 = vmatpush.msra.mxu0 0.0
      %396 = vmatpush.msra.mxu0 0.0
      %397 = vmatpush.msra.mxu0 0.0
      %398 = vmatpush.msra.mxu0 0.0
      %399 = vmatpush.msra.mxu0 0.0
      %400 = vmatpush.msra.mxu0 0.0
      %401 = vmatpush.msra.mxu0 0.0
      %402 = vmatpush.msra.mxu0 0.0
      %403 = vmatpush.msra.mxu0 0.0
      %404 = vmatpush.msra.mxu0 0.0
      %405 = vmatpush.msra.mxu0 0.0
      %406 = vmatpush.msra.mxu0 %v231
      %407 = vmatpush.msra.mxu0 %v229
      %408 = vmatpush.msra.mxu0 %v227
      %409 = vmatpush.msra.mxu0 %v225
      %410 = vmatmul.f32.gmra.mxu0 %v347
      %v411 = vpop.f32.mrf.mxu0
      %v412 = vadd.f32 %v268, %v411
      %413 = vmatmul.f32.gmra.mxu0 %v350
      %v414 = vpop.f32.mrf.mxu0
      %v415 = vadd.f32 %v273, %v414
      %416 = vmatmul.f32.gmra.mxu0 %v353
      %v417 = vpop.f32.mrf.mxu0
      %v418 = vadd.f32 %v278, %v417
      %419 = vmatmul.f32.gmra.mxu0 %v356
      %v420 = vpop.f32.mrf.mxu0
      %v421 = vadd.f32 %v283, %v420
      %422 = vmatmul.f32.gmra.mxu0 %v359
      %v423 = vpop.f32.mrf.mxu0
      %v424 = vadd.f32 %v288, %v423
      %425 = vmatmul.f32.gmra.mxu0 %v362
      %v426 = vpop.f32.mrf.mxu0
      %v427 = vadd.f32 %v293, %v426
      %428 = vmatmul.f32.gmra.mxu0 %v365
      %v429 = vpop.f32.mrf.mxu0
      %v430 = vadd.f32 %v298, %v429
      %431 = vmatmul.f32.gmra.mxu0 %v368
      %v432 = vpop.f32.mrf.mxu0
      %v433 = vadd.f32 %v303, %v432
      %434 = vmatmul.f32.gmra.mxu0 %v371
      %v435 = vpop.f32.mrf.mxu0
      %v436 = vadd.f32 %v308, %v435
      %437 = vmatmul.f32.gmra.mxu0 %v374
      %v438 = vpop.f32.mrf.mxu0
      %v439 = vadd.f32 %v313, %v438
      %440 = vmatmul.f32.gmra.mxu0 %v377
      %v441 = vpop.f32.mrf.mxu0
      %v442 = vadd.f32 %v318, %v441
      %443 = vmatmul.f32.gmra.mxu0 %v380
      %v444 = vpop.f32.mrf.mxu0
      %v445 = vadd.f32 %v323, %v444
      %446 = vmatmul.f32.gmra.mxu0 %v383
      %v447 = vpop.f32.mrf.mxu0
      %v448 = vadd.f32 %v328, %v447
      %449 = vmatmul.f32.gmra.mxu0 %v386
      %v450 = vpop.f32.mrf.mxu0
      %v451 = vadd.f32 %v333, %v450
      %452 = vmatmul.f32.gmra.mxu0 %v389
      %v453 = vpop.f32.mrf.mxu0
      %v454 = vadd.f32 %v338, %v453
      %455 = vmatmul.f32.gmra.mxu0 %v392
      %v456 = vpop.f32.mrf.mxu0
      %v457 = vadd.f32 %v343, %v456
      %458 = vdwg.mxu0
      %459 = vmatpush.msra.mxu0 0.0
      %460 = vmatpush.msra.mxu0 0.0
      %461 = vmatpush.msra.mxu0 0.0
      %462 = vmatpush.msra.mxu0 0.0
      %463 = vmatpush.msra.mxu0 0.0
      %464 = vmatpush.msra.mxu0 0.0
      %465 = vmatpush.msra.mxu0 0.0
      %466 = vmatpush.msra.mxu0 0.0
      %467 = vmatpush.msra.mxu0 0.0
      %468 = vmatpush.msra.mxu0 0.0
      %469 = vmatpush.msra.mxu0 0.0
      %470 = vmatpush.msra.mxu0 0.0
      %471 = vmatpush.msra.mxu0 %v232
      %472 = vmatpush.msra.mxu0 %v230
      %473 = vmatpush.msra.mxu0 %v228
      %474 = vmatpush.msra.mxu0 %v226
      %475 = vmatmul.f32.gmra.mxu0 %v347
      %v476 = vpop.f32.mrf.mxu0
      %v477 = vadd.f32 %v268, %v476
      %478 = vmatmul.f32.gmra.mxu0 %v350
      %v479 = vpop.f32.mrf.mxu0
      %v480 = vadd.f32 %v273, %v479
      %481 = vmatmul.f32.gmra.mxu0 %v353
      %v482 = vpop.f32.mrf.mxu0
      %v483 = vadd.f32 %v278, %v482
      %484 = vmatmul.f32.gmra.mxu0 %v356
      %v485 = vpop.f32.mrf.mxu0
      %v486 = vadd.f32 %v283, %v485
      %487 = vmatmul.f32.gmra.mxu0 %v359
      %v488 = vpop.f32.mrf.mxu0
      %v489 = vadd.f32 %v288, %v488
      %490 = vmatmul.f32.gmra.mxu0 %v362
      %v491 = vpop.f32.mrf.mxu0
      %v492 = vadd.f32 %v293, %v491
      %493 = vmatmul.f32.gmra.mxu0 %v365
      %v494 = vpop.f32.mrf.mxu0
      %v495 = vadd.f32 %v298, %v494
      %496 = vmatmul.f32.gmra.mxu0 %v368
      %v497 = vpop.f32.mrf.mxu0
      %v498 = vadd.f32 %v303, %v497
      %499 = vmatmul.f32.gmra.mxu0 %v371
      %v500 = vpop.f32.mrf.mxu0
      %v501 = vadd.f32 %v308, %v500
      %502 = vmatmul.f32.gmra.mxu0 %v374
      %v503 = vpop.f32.mrf.mxu0
      %v504 = vadd.f32 %v313, %v503
      %505 = vmatmul.f32.gmra.mxu0 %v377
      %v506 = vpop.f32.mrf.mxu0
      %v507 = vadd.f32 %v318, %v506
      %508 = vmatmul.f32.gmra.mxu0 %v380
      %v509 = vpop.f32.mrf.mxu0
      %v510 = vadd.f32 %v323, %v509
      %511 = vmatmul.f32.gmra.mxu0 %v383
      %v512 = vpop.f32.mrf.mxu0
      %v513 = vadd.f32 %v328, %v512
      %514 = vmatmul.f32.gmra.mxu0 %v386
      %v515 = vpop.f32.mrf.mxu0
      %v516 = vadd.f32 %v333, %v515
      %517 = vmatmul.f32.gmra.mxu0 %v389
      %v518 = vpop.f32.mrf.mxu0
      %v519 = vadd.f32 %v338, %v518
      %520 = vmatmul.f32.gmra.mxu0 %v392
      %v521 = vpop.f32.mrf.mxu0
      %v522 = vadd.f32 %v343, %v521
      %523 = vdwg.mxu0
      %v524 = vmul.f32 %v412, 0.5
      %v525 = vmul.f32 %v477, 0.5
      %v526 = vmul.f32 %v415, 0.5
      %v527 = vmul.f32 %v480, 0.5
      %v528 = vmul.f32 %v418, 0.5
      %v529 = vmul.f32 %v483, 0.5
      %v530 = vmul.f32 %v421, 0.5
      %v531 = vmul.f32 %v486, 0.5
      %v532 = vmul.f32 %v424, 0.5
      %v533 = vmul.f32 %v489, 0.5
      %v534 = vmul.f32 %v427, 0.5
      %v535 = vmul.f32 %v492, 0.5
      %v536 = vmul.f32 %v430, 0.5
      %v537 = vmul.f32 %v495, 0.5
      %v538 = vmul.f32 %v433, 0.5
      %v539 = vmul.f32 %v498, 0.5
      %v540 = vmul.f32 %v436, 0.5
      %v541 = vmul.f32 %v501, 0.5
      %v542 = vmul.f32 %v439, 0.5
      %v543 = vmul.f32 %v504, 0.5
      %v544 = vmul.f32 %v442, 0.5
      %v545 = vmul.f32 %v507, 0.5
      %v546 = vmul.f32 %v445, 0.5
      %v547 = vmul.f32 %v510, 0.5
      %v548 = vmul.f32 %v448, 0.5
      %v549 = vmul.f32 %v513, 0.5
      %v550 = vmul.f32 %v451, 0.5
      %v551 = vmul.f32 %v516, 0.5
      %v552 = vmul.f32 %v454, 0.5
      %v553 = vmul.f32 %v519, 0.5
      %v554 = vmul.f32 %v457, 0.5
      %v555 = vmul.f32 %v522, 0.5
      %v556 = vmul.f32 %v412, 0.70710677
      %v557 = vmul.f32 %v477, 0.70710677
      %v558 = vmul.f32 %v415, 0.70710677
      %v559 = vmul.f32 %v480, 0.70710677
      %v560 = vmul.f32 %v418, 0.70710677
      %v561 = vmul.f32 %v483, 0.70710677
      %v562 = vmul.f32 %v421, 0.70710677
      %v563 = vmul.f32 %v486, 0.70710677
      %v564 = vmul.f32 %v424, 0.70710677
      %v565 = vmul.f32 %v489, 0.70710677
      %v566 = vmul.f32 %v427, 0.70710677
      %v567 = vmul.f32 %v492, 0.70710677
      %v568 = vmul.f32 %v430, 0.70710677
      %v569 = vmul.f32 %v495, 0.70710677
      %v570 = vmul.f32 %v433, 0.70710677
      %v571 = vmul.f32 %v498, 0.70710677
      %v572 = vmul.f32 %v436, 0.70710677
      %v573 = vmul.f32 %v501, 0.70710677
      %v574 = vmul.f32 %v439, 0.70710677
      %v575 = vmul.f32 %v504, 0.70710677
      %v576 = vmul.f32 %v442, 0.70710677
      %v577 = vmul.f32 %v507, 0.70710677
      %v578 = vmul.f32 %v445, 0.70710677
      %v579 = vmul.f32 %v510, 0.70710677
      %v580 = vmul.f32 %v448, 0.70710677
      %v581 = vmul.f32 %v513, 0.70710677
      %v582 = vmul.f32 %v451, 0.70710677
      %v583 = vmul.f32 %v516, 0.70710677
      %v584 = vmul.f32 %v454, 0.70710677
      %v585 = vmul.f32 %v519, 0.70710677
      %v586 = vmul.f32 %v457, 0.70710677
      %v587 = vmul.f32 %v522, 0.70710677
      %v588 = vmul.f32 %v556, %v556
      %v589 = vmin.f32 16.0, %v588
      %v590 = vmul.f32 %v589, 2.1237322e-06
      %v591 = vadd.f32 %v590, 0.00028619796
      %v592 = vmul.f32 %v589, %v591
      %v593 = vadd.f32 %v592, 0.0036580483
      %v594 = vmul.f32 %v589, %v593
      %v595 = vadd.f32 %v594, 0.05243302
      %v596 = vmul.f32 %v589, %v595
      %v597 = vadd.f32 %v596, 0.18741608
      %v598 = vmul.f32 %v589, %v597
      %v599 = vadd.f32 %v598, 1.1283791
      %v600 = vmul.f32 %v556, %v599
      %v601 = vmul.f32 %v589, 3.8918573e-05
      %v602 = vadd.f32 %v601, 0.001143296
      %v603 = vmul.f32 %v589, %v602
      %v604 = vadd.f32 %v603, 0.014752088
      %v605 = vmul.f32 %v589, %v604
      %v606 = vadd.f32 %v605, 0.112945676
      %v607 = vmul.f32 %v589, %v606
      %v608 = vadd.f32 %v607, 0.4994258
      %v609 = vmul.f32 %v589, %v608
      %v610 = vadd.f32 %v609, 1.0
      %v611 = vrcp.pop %v610
      %v612 = vmul.f32 %v610, %v611
      %v613 = vsub.f32 1.0, %v612
      %v614 = vmul.f32 %v611, %v613
      %v615 = vadd.f32 %v611, %v614
      %vm616 = vweird.f32 %v610
      %vm617 = vweird.f32 %v611
      %vm618 = vmor %vm616, %vm617
      %v619 = vsel %vm618, %v611, %v615
      %v620 = vand.u32 2147483647, %v610
      %vm621 = vcmp.eq.f32.partialorder %v620, 8.507059e+37
      %v622 = vand.u32 %v610, 2147483648
      %v623 = vor.u32 1.1754944e-38, %v622
      %v624 = vsel %vm621, %v623, %v619
      %v625 = vmul.f32 %v600, %v624
      %v626 = vmin.f32 %v625, 1.0
      %v627 = vmax.f32 %v626, -1.0
      %v628 = vmul.f32 %v557, %v557
      %v629 = vmin.f32 16.0, %v628
      %v630 = vmul.f32 %v629, 2.1237322e-06
      %v631 = vadd.f32 %v630, 0.00028619796
      %v632 = vmul.f32 %v629, %v631
      %v633 = vadd.f32 %v632, 0.0036580483
      %v634 = vmul.f32 %v629, %v633
      %v635 = vadd.f32 %v634, 0.05243302
      %v636 = vmul.f32 %v629, %v635
      %v637 = vadd.f32 %v636, 0.18741608
      %v638 = vmul.f32 %v629, %v637
      %v639 = vadd.f32 %v638, 1.1283791
      %v640 = vmul.f32 %v557, %v639
      %v641 = vmul.f32 %v629, 3.8918573e-05
      %v642 = vadd.f32 %v641, 0.001143296
      %v643 = vmul.f32 %v629, %v642
      %v644 = vadd.f32 %v643, 0.014752088
      %v645 = vmul.f32 %v629, %v644
      %v646 = vadd.f32 %v645, 0.112945676
      %v647 = vmul.f32 %v629, %v646
      %v648 = vadd.f32 %v647, 0.4994258
      %v649 = vmul.f32 %v629, %v648
      %v650 = vadd.f32 %v649, 1.0
      %v651 = vrcp.pop %v650
      %v652 = vmul.f32 %v650, %v651
      %v653 = vsub.f32 1.0, %v652
      %v654 = vmul.f32 %v651, %v653
      %v655 = vadd.f32 %v651, %v654
      %vm656 = vweird.f32 %v650
      %vm657 = vweird.f32 %v651
      %vm658 = vmor %vm656, %vm657
      %v659 = vsel %vm658, %v651, %v655
      %v660 = vand.u32 2147483647, %v650
      %vm661 = vcmp.eq.f32.partialorder %v660, 8.507059e+37
      %v662 = vand.u32 %v650, 2147483648
      %v663 = vor.u32 1.1754944e-38, %v662
      %v664 = vsel %vm661, %v663, %v659
      %v665 = vmul.f32 %v640, %v664
      %v666 = vmin.f32 %v665, 1.0
      %v667 = vmax.f32 %v666, -1.0
      %v668 = vmul.f32 %v558, %v558
      %v669 = vmin.f32 16.0, %v668
      %v670 = vmul.f32 %v669, 2.1237322e-06
      %v671 = vadd.f32 %v670, 0.00028619796
      %v672 = vmul.f32 %v669, %v671
      %v673 = vadd.f32 %v672, 0.0036580483
      %v674 = vmul.f32 %v669, %v673
      %v675 = vadd.f32 %v674, 0.05243302
      %v676 = vmul.f32 %v669, %v675
      %v677 = vadd.f32 %v676, 0.18741608
      %v678 = vmul.f32 %v669, %v677
      %v679 = vadd.f32 %v678, 1.1283791
      %v680 = vmul.f32 %v558, %v679
      %v681 = vmul.f32 %v669, 3.8918573e-05
      %v682 = vadd.f32 %v681, 0.001143296
      %v683 = vmul.f32 %v669, %v682
      %v684 = vadd.f32 %v683, 0.014752088
      %v685 = vmul.f32 %v669, %v684
      %v686 = vadd.f32 %v685, 0.112945676
      %v687 = vmul.f32 %v669, %v686
      %v688 = vadd.f32 %v687, 0.4994258
      %v689 = vmul.f32 %v669, %v688
      %v690 = vadd.f32 %v689, 1.0
      %v691 = vrcp.pop %v690
      %v692 = vmul.f32 %v690, %v691
      %v693 = vsub.f32 1.0, %v692
      %v694 = vmul.f32 %v691, %v693
      %v695 = vadd.f32 %v691, %v694
      %vm696 = vweird.f32 %v690
      %vm697 = vweird.f32 %v691
      %vm698 = vmor %vm696, %vm697
      %v699 = vsel %vm698, %v691, %v695
      %v700 = vand.u32 2147483647, %v690
      %vm701 = vcmp.eq.f32.partialorder %v700, 8.507059e+37
      %v702 = vand.u32 %v690, 2147483648
      %v703 = vor.u32 1.1754944e-38, %v702
      %v704 = vsel %vm701, %v703, %v699
      %v705 = vmul.f32 %v680, %v704
      %v706 = vmin.f32 %v705, 1.0
      %v707 = vmax.f32 %v706, -1.0
      %v708 = vmul.f32 %v559, %v559
      %v709 = vmin.f32 16.0, %v708
      %v710 = vmul.f32 %v709, 2.1237322e-06
      %v711 = vadd.f32 %v710, 0.00028619796
      %v712 = vmul.f32 %v709, %v711
      %v713 = vadd.f32 %v712, 0.0036580483
      %v714 = vmul.f32 %v709, %v713
      %v715 = vadd.f32 %v714, 0.05243302
      %v716 = vmul.f32 %v709, %v715
      %v717 = vadd.f32 %v716, 0.18741608
      %v718 = vmul.f32 %v709, %v717
      %v719 = vadd.f32 %v718, 1.1283791
      %v720 = vmul.f32 %v559, %v719
      %v721 = vmul.f32 %v709, 3.8918573e-05
      %v722 = vadd.f32 %v721, 0.001143296
      %v723 = vmul.f32 %v709, %v722
      %v724 = vadd.f32 %v723, 0.014752088
      %v725 = vmul.f32 %v709, %v724
      %v726 = vadd.f32 %v725, 0.112945676
      %v727 = vmul.f32 %v709, %v726
      %v728 = vadd.f32 %v727, 0.4994258
      %v729 = vmul.f32 %v709, %v728
      %v730 = vadd.f32 %v729, 1.0
      %v731 = vrcp.pop %v730
      %v732 = vmul.f32 %v730, %v731
      %v733 = vsub.f32 1.0, %v732
      %v734 = vmul.f32 %v731, %v733
      %v735 = vadd.f32 %v731, %v734
      %vm736 = vweird.f32 %v730
      %vm737 = vweird.f32 %v731
      %vm738 = vmor %vm736, %vm737
      %v739 = vsel %vm738, %v731, %v735
      %v740 = vand.u32 2147483647, %v730
      %vm741 = vcmp.eq.f32.partialorder %v740, 8.507059e+37
      %v742 = vand.u32 %v730, 2147483648
      %v743 = vor.u32 1.1754944e-38, %v742
      %v744 = vsel %vm741, %v743, %v739
      %v745 = vmul.f32 %v720, %v744
      %v746 = vmin.f32 %v745, 1.0
      %v747 = vmax.f32 %v746, -1.0
      %v748 = vmul.f32 %v560, %v560
      %v749 = vmin.f32 16.0, %v748
      %v750 = vmul.f32 %v749, 2.1237322e-06
      %v751 = vadd.f32 %v750, 0.00028619796
      %v752 = vmul.f32 %v749, %v751
      %v753 = vadd.f32 %v752, 0.0036580483
      %v754 = vmul.f32 %v749, %v753
      %v755 = vadd.f32 %v754, 0.05243302
      %v756 = vmul.f32 %v749, %v755
      %v757 = vadd.f32 %v756, 0.18741608
      %v758 = vmul.f32 %v749, %v757
      %v759 = vadd.f32 %v758, 1.1283791
      %v760 = vmul.f32 %v560, %v759
      %v761 = vmul.f32 %v749, 3.8918573e-05
      %v762 = vadd.f32 %v761, 0.001143296
      %v763 = vmul.f32 %v749, %v762
      %v764 = vadd.f32 %v763, 0.014752088
      %v765 = vmul.f32 %v749, %v764
      %v766 = vadd.f32 %v765, 0.112945676
      %v767 = vmul.f32 %v749, %v766
      %v768 = vadd.f32 %v767, 0.4994258
      %v769 = vmul.f32 %v749, %v768
      %v770 = vadd.f32 %v769, 1.0
      %v771 = vrcp.pop %v770
      %v772 = vmul.f32 %v770, %v771
      %v773 = vsub.f32 1.0, %v772
      %v774 = vmul.f32 %v771, %v773
      %v775 = vadd.f32 %v771, %v774
      %vm776 = vweird.f32 %v770
      %vm777 = vweird.f32 %v771
      %vm778 = vmor %vm776, %vm777
      %v779 = vsel %vm778, %v771, %v775
      %v780 = vand.u32 2147483647, %v770
      %vm781 = vcmp.eq.f32.partialorder %v780, 8.507059e+37
      %v782 = vand.u32 %v770, 2147483648
      %v783 = vor.u32 1.1754944e-38, %v782
      %v784 = vsel %vm781, %v783, %v779
      %v785 = vmul.f32 %v760, %v784
      %v786 = vmin.f32 %v785, 1.0
      %v787 = vmax.f32 %v786, -1.0
      %v788 = vmul.f32 %v561, %v561
      %v789 = vmin.f32 16.0, %v788
      %v790 = vmul.f32 %v789, 2.1237322e-06
      %v791 = vadd.f32 %v790, 0.00028619796
      %v792 = vmul.f32 %v789, %v791
      %v793 = vadd.f32 %v792, 0.0036580483
      %v794 = vmul.f32 %v789, %v793
      %v795 = vadd.f32 %v794, 0.05243302
      %v796 = vmul.f32 %v789, %v795
      %v797 = vadd.f32 %v796, 0.18741608
      %v798 = vmul.f32 %v789, %v797
      %v799 = vadd.f32 %v798, 1.1283791
      %v800 = vmul.f32 %v561, %v799
      %v801 = vmul.f32 %v789, 3.8918573e-05
      %v802 = vadd.f32 %v801, 0.001143296
      %v803 = vmul.f32 %v789, %v802
      %v804 = vadd.f32 %v803, 0.014752088
      %v805 = vmul.f32 %v789, %v804
      %v806 = vadd.f32 %v805, 0.112945676
      %v807 = vmul.f32 %v789, %v806
      %v808 = vadd.f32 %v807, 0.4994258
      %v809 = vmul.f32 %v789, %v808
      %v810 = vadd.f32 %v809, 1.0
      %v811 = vrcp.pop %v810
      %v812 = vmul.f32 %v810, %v811
      %v813 = vsub.f32 1.0, %v812
      %v814 = vmul.f32 %v811, %v813
      %v815 = vadd.f32 %v811, %v814
      %vm816 = vweird.f32 %v810
      %vm817 = vweird.f32 %v811
      %vm818 = vmor %vm816, %vm817
      %v819 = vsel %vm818, %v811, %v815
      %v820 = vand.u32 2147483647, %v810
      %vm821 = vcmp.eq.f32.partialorder %v820, 8.507059e+37
      %v822 = vand.u32 %v810, 2147483648
      %v823 = vor.u32 1.1754944e-38, %v822
      %v824 = vsel %vm821, %v823, %v819
      %v825 = vmul.f32 %v800, %v824
      %v826 = vmin.f32 %v825, 1.0
      %v827 = vmax.f32 %v826, -1.0
      %v828 = vmul.f32 %v562, %v562
      %v829 = vmin.f32 16.0, %v828
      %v830 = vmul.f32 %v829, 2.1237322e-06
      %v831 = vadd.f32 %v830, 0.00028619796
      %v832 = vmul.f32 %v829, %v831
      %v833 = vadd.f32 %v832, 0.0036580483
      %v834 = vmul.f32 %v829, %v833
      %v835 = vadd.f32 %v834, 0.05243302
      %v836 = vmul.f32 %v829, %v835
      %v837 = vadd.f32 %v836, 0.18741608
      %v838 = vmul.f32 %v829, %v837
      %v839 = vadd.f32 %v838, 1.1283791
      %v840 = vmul.f32 %v562, %v839
      %v841 = vmul.f32 %v829, 3.8918573e-05
      %v842 = vadd.f32 %v841, 0.001143296
      %v843 = vmul.f32 %v829, %v842
      %v844 = vadd.f32 %v843, 0.014752088
      %v845 = vmul.f32 %v829, %v844
      %v846 = vadd.f32 %v845, 0.112945676
      %v847 = vmul.f32 %v829, %v846
      %v848 = vadd.f32 %v847, 0.4994258
      %v849 = vmul.f32 %v829, %v848
      %v850 = vadd.f32 %v849, 1.0
      %v851 = vrcp.pop %v850
      %v852 = vmul.f32 %v850, %v851
      %v853 = vsub.f32 1.0, %v852
      %v854 = vmul.f32 %v851, %v853
      %v855 = vadd.f32 %v851, %v854
      %vm856 = vweird.f32 %v850
      %vm857 = vweird.f32 %v851
      %vm858 = vmor %vm856, %vm857
      %v859 = vsel %vm858, %v851, %v855
      %v860 = vand.u32 2147483647, %v850
      %vm861 = vcmp.eq.f32.partialorder %v860, 8.507059e+37
      %v862 = vand.u32 %v850, 2147483648
      %v863 = vor.u32 1.1754944e-38, %v862
      %v864 = vsel %vm861, %v863, %v859
      %v865 = vmul.f32 %v840, %v864
      %v866 = vmin.f32 %v865, 1.0
      %v867 = vmax.f32 %v866, -1.0
      %v868 = vmul.f32 %v563, %v563
      %v869 = vmin.f32 16.0, %v868
      %v870 = vmul.f32 %v869, 2.1237322e-06
      %v871 = vadd.f32 %v870, 0.00028619796
      %v872 = vmul.f32 %v869, %v871
      %v873 = vadd.f32 %v872, 0.0036580483
      %v874 = vmul.f32 %v869, %v873
      %v875 = vadd.f32 %v874, 0.05243302
      %v876 = vmul.f32 %v869, %v875
      %v877 = vadd.f32 %v876, 0.18741608
      %v878 = vmul.f32 %v869, %v877
      %v879 = vadd.f32 %v878, 1.1283791
      %v880 = vmul.f32 %v563, %v879
      %v881 = vmul.f32 %v869, 3.8918573e-05
      %v882 = vadd.f32 %v881, 0.001143296
      %v883 = vmul.f32 %v869, %v882
      %v884 = vadd.f32 %v883, 0.014752088
      %v885 = vmul.f32 %v869, %v884
      %v886 = vadd.f32 %v885, 0.112945676
      %v887 = vmul.f32 %v869, %v886
      %v888 = vadd.f32 %v887, 0.4994258
      %v889 = vmul.f32 %v869, %v888
      %v890 = vadd.f32 %v889, 1.0
      %v891 = vrcp.pop %v890
      %v892 = vmul.f32 %v890, %v891
      %v893 = vsub.f32 1.0, %v892
      %v894 = vmul.f32 %v891, %v893
      %v895 = vadd.f32 %v891, %v894
      %vm896 = vweird.f32 %v890
      %vm897 = vweird.f32 %v891
      %vm898 = vmor %vm896, %vm897
      %v899 = vsel %vm898, %v891, %v895
      %v900 = vand.u32 2147483647, %v890
      %vm901 = vcmp.eq.f32.partialorder %v900, 8.507059e+37
      %v902 = vand.u32 %v890, 2147483648
      %v903 = vor.u32 1.1754944e-38, %v902
      %v904 = vsel %vm901, %v903, %v899
      %v905 = vmul.f32 %v880, %v904
      %v906 = vmin.f32 %v905, 1.0
      %v907 = vmax.f32 %v906, -1.0
      %v908 = vmul.f32 %v564, %v564
      %v909 = vmin.f32 16.0, %v908
      %v910 = vmul.f32 %v909, 2.1237322e-06
      %v911 = vadd.f32 %v910, 0.00028619796
      %v912 = vmul.f32 %v909, %v911
      %v913 = vadd.f32 %v912, 0.0036580483
      %v914 = vmul.f32 %v909, %v913
      %v915 = vadd.f32 %v914, 0.05243302
      %v916 = vmul.f32 %v909, %v915
      %v917 = vadd.f32 %v916, 0.18741608
      %v918 = vmul.f32 %v909, %v917
      %v919 = vadd.f32 %v918, 1.1283791
      %v920 = vmul.f32 %v564, %v919
      %v921 = vmul.f32 %v909, 3.8918573e-05
      %v922 = vadd.f32 %v921, 0.001143296
      %v923 = vmul.f32 %v909, %v922
      %v924 = vadd.f32 %v923, 0.014752088
      %v925 = vmul.f32 %v909, %v924
      %v926 = vadd.f32 %v925, 0.112945676
      %v927 = vmul.f32 %v909, %v926
      %v928 = vadd.f32 %v927, 0.4994258
      %v929 = vmul.f32 %v909, %v928
      %v930 = vadd.f32 %v929, 1.0
      %v931 = vrcp.pop %v930
      %v932 = vmul.f32 %v930, %v931
      %v933 = vsub.f32 1.0, %v932
      %v934 = vmul.f32 %v931, %v933
      %v935 = vadd.f32 %v931, %v934
      %vm936 = vweird.f32 %v930
      %vm937 = vweird.f32 %v931
      %vm938 = vmor %vm936, %vm937
      %v939 = vsel %vm938, %v931, %v935
      %v940 = vand.u32 2147483647, %v930
      %vm941 = vcmp.eq.f32.partialorder %v940, 8.507059e+37
      %v942 = vand.u32 %v930, 2147483648
      %v943 = vor.u32 1.1754944e-38, %v942
      %v944 = vsel %vm941, %v943, %v939
      %v945 = vmul.f32 %v920, %v944
      %v946 = vmin.f32 %v945, 1.0
      %v947 = vmax.f32 %v946, -1.0
      %v948 = vmul.f32 %v565, %v565
      %v949 = vmin.f32 16.0, %v948
      %v950 = vmul.f32 %v949, 2.1237322e-06
      %v951 = vadd.f32 %v950, 0.00028619796
      %v952 = vmul.f32 %v949, %v951
      %v953 = vadd.f32 %v952, 0.0036580483
      %v954 = vmul.f32 %v949, %v953
      %v955 = vadd.f32 %v954, 0.05243302
      %v956 = vmul.f32 %v949, %v955
      %v957 = vadd.f32 %v956, 0.18741608
      %v958 = vmul.f32 %v949, %v957
      %v959 = vadd.f32 %v958, 1.1283791
      %v960 = vmul.f32 %v565, %v959
      %v961 = vmul.f32 %v949, 3.8918573e-05
      %v962 = vadd.f32 %v961, 0.001143296
      %v963 = vmul.f32 %v949, %v962
      %v964 = vadd.f32 %v963, 0.014752088
      %v965 = vmul.f32 %v949, %v964
      %v966 = vadd.f32 %v965, 0.112945676
      %v967 = vmul.f32 %v949, %v966
      %v968 = vadd.f32 %v967, 0.4994258
      %v969 = vmul.f32 %v949, %v968
      %v970 = vadd.f32 %v969, 1.0
      %v971 = vrcp.pop %v970
      %v972 = vmul.f32 %v970, %v971
      %v973 = vsub.f32 1.0, %v972
      %v974 = vmul.f32 %v971, %v973
      %v975 = vadd.f32 %v971, %v974
      %vm976 = vweird.f32 %v970
      %vm977 = vweird.f32 %v971
      %vm978 = vmor %vm976, %vm977
      %v979 = vsel %vm978, %v971, %v975
      %v980 = vand.u32 2147483647, %v970
      %vm981 = vcmp.eq.f32.partialorder %v980, 8.507059e+37
      %v982 = vand.u32 %v970, 2147483648
      %v983 = vor.u32 1.1754944e-38, %v982
      %v984 = vsel %vm981, %v983, %v979
      %v985 = vmul.f32 %v960, %v984
      %v986 = vmin.f32 %v985, 1.0
      %v987 = vmax.f32 %v986, -1.0
      %v988 = vmul.f32 %v566, %v566
      %v989 = vmin.f32 16.0, %v988
      %v990 = vmul.f32 %v989, 2.1237322e-06
      %v991 = vadd.f32 %v990, 0.00028619796
      %v992 = vmul.f32 %v989, %v991
      %v993 = vadd.f32 %v992, 0.0036580483
      %v994 = vmul.f32 %v989, %v993
      %v995 = vadd.f32 %v994, 0.05243302
      %v996 = vmul.f32 %v989, %v995
      %v997 = vadd.f32 %v996, 0.18741608
      %v998 = vmul.f32 %v989, %v997
      %v999 = vadd.f32 %v998, 1.1283791
      %v1000 = vmul.f32 %v566, %v999
      %v1001 = vmul.f32 %v989, 3.8918573e-05
      %v1002 = vadd.f32 %v1001, 0.001143296
      %v1003 = vmul.f32 %v989, %v1002
      %v1004 = vadd.f32 %v1003, 0.014752088
      %v1005 = vmul.f32 %v989, %v1004
      %v1006 = vadd.f32 %v1005, 0.112945676
      %v1007 = vmul.f32 %v989, %v1006
      %v1008 = vadd.f32 %v1007, 0.4994258
      %v1009 = vmul.f32 %v989, %v1008
      %v1010 = vadd.f32 %v1009, 1.0
      %v1011 = vrcp.pop %v1010
      %v1012 = vmul.f32 %v1010, %v1011
      %v1013 = vsub.f32 1.0, %v1012
      %v1014 = vmul.f32 %v1011, %v1013
      %v1015 = vadd.f32 %v1011, %v1014
      %vm1016 = vweird.f32 %v1010
      %vm1017 = vweird.f32 %v1011
      %vm1018 = vmor %vm1016, %vm1017
      %v1019 = vsel %vm1018, %v1011, %v1015
      %v1020 = vand.u32 2147483647, %v1010
      %vm1021 = vcmp.eq.f32.partialorder %v1020, 8.507059e+37
      %v1022 = vand.u32 %v1010, 2147483648
      %v1023 = vor.u32 1.1754944e-38, %v1022
      %v1024 = vsel %vm1021, %v1023, %v1019
      %v1025 = vmul.f32 %v1000, %v1024
      %v1026 = vmin.f32 %v1025, 1.0
      %v1027 = vmax.f32 %v1026, -1.0
      %v1028 = vmul.f32 %v567, %v567
      %v1029 = vmin.f32 16.0, %v1028
      %v1030 = vmul.f32 %v1029, 2.1237322e-06
      %v1031 = vadd.f32 %v1030, 0.00028619796
      %v1032 = vmul.f32 %v1029, %v1031
      %v1033 = vadd.f32 %v1032, 0.0036580483
      %v1034 = vmul.f32 %v1029, %v1033
      %v1035 = vadd.f32 %v1034, 0.05243302
      %v1036 = vmul.f32 %v1029, %v1035
      %v1037 = vadd.f32 %v1036, 0.18741608
      %v1038 = vmul.f32 %v1029, %v1037
      %v1039 = vadd.f32 %v1038, 1.1283791
      %v1040 = vmul.f32 %v567, %v1039
      %v1041 = vmul.f32 %v1029, 3.8918573e-05
      %v1042 = vadd.f32 %v1041, 0.001143296
      %v1043 = vmul.f32 %v1029, %v1042
      %v1044 = vadd.f32 %v1043, 0.014752088
      %v1045 = vmul.f32 %v1029, %v1044
      %v1046 = vadd.f32 %v1045, 0.112945676
      %v1047 = vmul.f32 %v1029, %v1046
      %v1048 = vadd.f32 %v1047, 0.4994258
      %v1049 = vmul.f32 %v1029, %v1048
      %v1050 = vadd.f32 %v1049, 1.0
      %v1051 = vrcp.pop %v1050
      %v1052 = vmul.f32 %v1050, %v1051
      %v1053 = vsub.f32 1.0, %v1052
      %v1054 = vmul.f32 %v1051, %v1053
      %v1055 = vadd.f32 %v1051, %v1054
      %vm1056 = vweird.f32 %v1050
      %vm1057 = vweird.f32 %v1051
      %vm1058 = vmor %vm1056, %vm1057
      %v1059 = vsel %vm1058, %v1051, %v1055
      %v1060 = vand.u32 2147483647, %v1050
      %vm1061 = vcmp.eq.f32.partialorder %v1060, 8.507059e+37
      %v1062 = vand.u32 %v1050, 2147483648
      %v1063 = vor.u32 1.1754944e-38, %v1062
      %v1064 = vsel %vm1061, %v1063, %v1059
      %v1065 = vmul.f32 %v1040, %v1064
      %v1066 = vmin.f32 %v1065, 1.0
      %v1067 = vmax.f32 %v1066, -1.0
      %v1068 = vmul.f32 %v568, %v568
      %v1069 = vmin.f32 16.0, %v1068
      %v1070 = vmul.f32 %v1069, 2.1237322e-06
      %v1071 = vadd.f32 %v1070, 0.00028619796
      %v1072 = vmul.f32 %v1069, %v1071
      %v1073 = vadd.f32 %v1072, 0.0036580483
      %v1074 = vmul.f32 %v1069, %v1073
      %v1075 = vadd.f32 %v1074, 0.05243302
      %v1076 = vmul.f32 %v1069, %v1075
      %v1077 = vadd.f32 %v1076, 0.18741608
      %v1078 = vmul.f32 %v1069, %v1077
      %v1079 = vadd.f32 %v1078, 1.1283791
      %v1080 = vmul.f32 %v568, %v1079
      %v1081 = vmul.f32 %v1069, 3.8918573e-05
      %v1082 = vadd.f32 %v1081, 0.001143296
      %v1083 = vmul.f32 %v1069, %v1082
      %v1084 = vadd.f32 %v1083, 0.014752088
      %v1085 = vmul.f32 %v1069, %v1084
      %v1086 = vadd.f32 %v1085, 0.112945676
      %v1087 = vmul.f32 %v1069, %v1086
      %v1088 = vadd.f32 %v1087, 0.4994258
      %v1089 = vmul.f32 %v1069, %v1088
      %v1090 = vadd.f32 %v1089, 1.0
      %v1091 = vrcp.pop %v1090
      %v1092 = vmul.f32 %v1090, %v1091
      %v1093 = vsub.f32 1.0, %v1092
      %v1094 = vmul.f32 %v1091, %v1093
      %v1095 = vadd.f32 %v1091, %v1094
      %vm1096 = vweird.f32 %v1090
      %vm1097 = vweird.f32 %v1091
      %vm1098 = vmor %vm1096, %vm1097
      %v1099 = vsel %vm1098, %v1091, %v1095
      %v1100 = vand.u32 2147483647, %v1090
      %vm1101 = vcmp.eq.f32.partialorder %v1100, 8.507059e+37
      %v1102 = vand.u32 %v1090, 2147483648
      %v1103 = vor.u32 1.1754944e-38, %v1102
      %v1104 = vsel %vm1101, %v1103, %v1099
      %v1105 = vmul.f32 %v1080, %v1104
      %v1106 = vmin.f32 %v1105, 1.0
      %v1107 = vmax.f32 %v1106, -1.0
      %v1108 = vmul.f32 %v569, %v569
      %v1109 = vmin.f32 16.0, %v1108
      %v1110 = vmul.f32 %v1109, 2.1237322e-06
      %v1111 = vadd.f32 %v1110, 0.00028619796
      %v1112 = vmul.f32 %v1109, %v1111
      %v1113 = vadd.f32 %v1112, 0.0036580483
      %v1114 = vmul.f32 %v1109, %v1113
      %v1115 = vadd.f32 %v1114, 0.05243302
      %v1116 = vmul.f32 %v1109, %v1115
      %v1117 = vadd.f32 %v1116, 0.18741608
      %v1118 = vmul.f32 %v1109, %v1117
      %v1119 = vadd.f32 %v1118, 1.1283791
      %v1120 = vmul.f32 %v569, %v1119
      %v1121 = vmul.f32 %v1109, 3.8918573e-05
      %v1122 = vadd.f32 %v1121, 0.001143296
      %v1123 = vmul.f32 %v1109, %v1122
      %v1124 = vadd.f32 %v1123, 0.014752088
      %v1125 = vmul.f32 %v1109, %v1124
      %v1126 = vadd.f32 %v1125, 0.112945676
      %v1127 = vmul.f32 %v1109, %v1126
      %v1128 = vadd.f32 %v1127, 0.4994258
      %v1129 = vmul.f32 %v1109, %v1128
      %v1130 = vadd.f32 %v1129, 1.0
      %v1131 = vrcp.pop %v1130
      %v1132 = vmul.f32 %v1130, %v1131
      %v1133 = vsub.f32 1.0, %v1132
      %v1134 = vmul.f32 %v1131, %v1133
      %v1135 = vadd.f32 %v1131, %v1134
      %vm1136 = vweird.f32 %v1130
      %vm1137 = vweird.f32 %v1131
      %vm1138 = vmor %vm1136, %vm1137
      %v1139 = vsel %vm1138, %v1131, %v1135
      %v1140 = vand.u32 2147483647, %v1130
      %vm1141 = vcmp.eq.f32.partialorder %v1140, 8.507059e+37
      %v1142 = vand.u32 %v1130, 2147483648
      %v1143 = vor.u32 1.1754944e-38, %v1142
      %v1144 = vsel %vm1141, %v1143, %v1139
      %v1145 = vmul.f32 %v1120, %v1144
      %v1146 = vmin.f32 %v1145, 1.0
      %v1147 = vmax.f32 %v1146, -1.0
      %v1148 = vmul.f32 %v570, %v570
      %v1149 = vmin.f32 16.0, %v1148
      %v1150 = vmul.f32 %v1149, 2.1237322e-06
      %v1151 = vadd.f32 %v1150, 0.00028619796
      %v1152 = vmul.f32 %v1149, %v1151
      %v1153 = vadd.f32 %v1152, 0.0036580483
      %v1154 = vmul.f32 %v1149, %v1153
      %v1155 = vadd.f32 %v1154, 0.05243302
      %v1156 = vmul.f32 %v1149, %v1155
      %v1157 = vadd.f32 %v1156, 0.18741608
      %v1158 = vmul.f32 %v1149, %v1157
      %v1159 = vadd.f32 %v1158, 1.1283791
      %v1160 = vmul.f32 %v570, %v1159
      %v1161 = vmul.f32 %v1149, 3.8918573e-05
      %v1162 = vadd.f32 %v1161, 0.001143296
      %v1163 = vmul.f32 %v1149, %v1162
      %v1164 = vadd.f32 %v1163, 0.014752088
      %v1165 = vmul.f32 %v1149, %v1164
      %v1166 = vadd.f32 %v1165, 0.112945676
      %v1167 = vmul.f32 %v1149, %v1166
      %v1168 = vadd.f32 %v1167, 0.4994258
      %v1169 = vmul.f32 %v1149, %v1168
      %v1170 = vadd.f32 %v1169, 1.0
      %v1171 = vrcp.pop %v1170
      %v1172 = vmul.f32 %v1170, %v1171
      %v1173 = vsub.f32 1.0, %v1172
      %v1174 = vmul.f32 %v1171, %v1173
      %v1175 = vadd.f32 %v1171, %v1174
      %vm1176 = vweird.f32 %v1170
      %vm1177 = vweird.f32 %v1171
      %vm1178 = vmor %vm1176, %vm1177
      %v1179 = vsel %vm1178, %v1171, %v1175
      %v1180 = vand.u32 2147483647, %v1170
      %vm1181 = vcmp.eq.f32.partialorder %v1180, 8.507059e+37
      %v1182 = vand.u32 %v1170, 2147483648
      %v1183 = vor.u32 1.1754944e-38, %v1182
      %v1184 = vsel %vm1181, %v1183, %v1179
      %v1185 = vmul.f32 %v1160, %v1184
      %v1186 = vmin.f32 %v1185, 1.0
      %v1187 = vmax.f32 %v1186, -1.0
      %v1188 = vmul.f32 %v571, %v571
      %v1189 = vmin.f32 16.0, %v1188
      %v1190 = vmul.f32 %v1189, 2.1237322e-06
      %v1191 = vadd.f32 %v1190, 0.00028619796
      %v1192 = vmul.f32 %v1189, %v1191
      %v1193 = vadd.f32 %v1192, 0.0036580483
      %v1194 = vmul.f32 %v1189, %v1193
      %v1195 = vadd.f32 %v1194, 0.05243302
      %v1196 = vmul.f32 %v1189, %v1195
      %v1197 = vadd.f32 %v1196, 0.18741608
      %v1198 = vmul.f32 %v1189, %v1197
      %v1199 = vadd.f32 %v1198, 1.1283791
      %v1200 = vmul.f32 %v571, %v1199
      %v1201 = vmul.f32 %v1189, 3.8918573e-05
      %v1202 = vadd.f32 %v1201, 0.001143296
      %v1203 = vmul.f32 %v1189, %v1202
      %v1204 = vadd.f32 %v1203, 0.014752088
      %v1205 = vmul.f32 %v1189, %v1204
      %v1206 = vadd.f32 %v1205, 0.112945676
      %v1207 = vmul.f32 %v1189, %v1206
      %v1208 = vadd.f32 %v1207, 0.4994258
      %v1209 = vmul.f32 %v1189, %v1208
      %v1210 = vadd.f32 %v1209, 1.0
      %v1211 = vrcp.pop %v1210
      %v1212 = vmul.f32 %v1210, %v1211
      %v1213 = vsub.f32 1.0, %v1212
      %v1214 = vmul.f32 %v1211, %v1213
      %v1215 = vadd.f32 %v1211, %v1214
      %vm1216 = vweird.f32 %v1210
      %vm1217 = vweird.f32 %v1211
      %vm1218 = vmor %vm1216, %vm1217
      %v1219 = vsel %vm1218, %v1211, %v1215
      %v1220 = vand.u32 2147483647, %v1210
      %vm1221 = vcmp.eq.f32.partialorder %v1220, 8.507059e+37
      %v1222 = vand.u32 %v1210, 2147483648
      %v1223 = vor.u32 1.1754944e-38, %v1222
      %v1224 = vsel %vm1221, %v1223, %v1219
      %v1225 = vmul.f32 %v1200, %v1224
      %v1226 = vmin.f32 %v1225, 1.0
      %v1227 = vmax.f32 %v1226, -1.0
      %v1228 = vmul.f32 %v572, %v572
      %v1229 = vmin.f32 16.0, %v1228
      %v1230 = vmul.f32 %v1229, 2.1237322e-06
      %v1231 = vadd.f32 %v1230, 0.00028619796
      %v1232 = vmul.f32 %v1229, %v1231
      %v1233 = vadd.f32 %v1232, 0.0036580483
      %v1234 = vmul.f32 %v1229, %v1233
      %v1235 = vadd.f32 %v1234, 0.05243302
      %v1236 = vmul.f32 %v1229, %v1235
      %v1237 = vadd.f32 %v1236, 0.18741608
      %v1238 = vmul.f32 %v1229, %v1237
      %v1239 = vadd.f32 %v1238, 1.1283791
      %v1240 = vmul.f32 %v572, %v1239
      %v1241 = vmul.f32 %v1229, 3.8918573e-05
      %v1242 = vadd.f32 %v1241, 0.001143296
      %v1243 = vmul.f32 %v1229, %v1242
      %v1244 = vadd.f32 %v1243, 0.014752088
      %v1245 = vmul.f32 %v1229, %v1244
      %v1246 = vadd.f32 %v1245, 0.112945676
      %v1247 = vmul.f32 %v1229, %v1246
      %v1248 = vadd.f32 %v1247, 0.4994258
      %v1249 = vmul.f32 %v1229, %v1248
      %v1250 = vadd.f32 %v1249, 1.0
      %v1251 = vrcp.pop %v1250
      %v1252 = vmul.f32 %v1250, %v1251
      %v1253 = vsub.f32 1.0, %v1252
      %v1254 = vmul.f32 %v1251, %v1253
      %v1255 = vadd.f32 %v1251, %v1254
      %vm1256 = vweird.f32 %v1250
      %vm1257 = vweird.f32 %v1251
      %vm1258 = vmor %vm1256, %vm1257
      %v1259 = vsel %vm1258, %v1251, %v1255
      %v1260 = vand.u32 2147483647, %v1250
      %vm1261 = vcmp.eq.f32.partialorder %v1260, 8.507059e+37
      %v1262 = vand.u32 %v1250, 2147483648
      %v1263 = vor.u32 1.1754944e-38, %v1262
      %v1264 = vsel %vm1261, %v1263, %v1259
      %v1265 = vmul.f32 %v1240, %v1264
      %v1266 = vmin.f32 %v1265, 1.0
      %v1267 = vmax.f32 %v1266, -1.0
      %v1268 = vmul.f32 %v573, %v573
      %v1269 = vmin.f32 16.0, %v1268
      %v1270 = vmul.f32 %v1269, 2.1237322e-06
      %v1271 = vadd.f32 %v1270, 0.00028619796
      %v1272 = vmul.f32 %v1269, %v1271
      %v1273 = vadd.f32 %v1272, 0.0036580483
      %v1274 = vmul.f32 %v1269, %v1273
      %v1275 = vadd.f32 %v1274, 0.05243302
      %v1276 = vmul.f32 %v1269, %v1275
      %v1277 = vadd.f32 %v1276, 0.18741608
      %v1278 = vmul.f32 %v1269, %v1277
      %v1279 = vadd.f32 %v1278, 1.1283791
      %v1280 = vmul.f32 %v573, %v1279
      %v1281 = vmul.f32 %v1269, 3.8918573e-05
      %v1282 = vadd.f32 %v1281, 0.001143296
      %v1283 = vmul.f32 %v1269, %v1282
      %v1284 = vadd.f32 %v1283, 0.014752088
      %v1285 = vmul.f32 %v1269, %v1284
      %v1286 = vadd.f32 %v1285, 0.112945676
      %v1287 = vmul.f32 %v1269, %v1286
      %v1288 = vadd.f32 %v1287, 0.4994258
      %v1289 = vmul.f32 %v1269, %v1288
      %v1290 = vadd.f32 %v1289, 1.0
      %v1291 = vrcp.pop %v1290
      %v1292 = vmul.f32 %v1290, %v1291
      %v1293 = vsub.f32 1.0, %v1292
      %v1294 = vmul.f32 %v1291, %v1293
      %v1295 = vadd.f32 %v1291, %v1294
      %vm1296 = vweird.f32 %v1290
      %vm1297 = vweird.f32 %v1291
      %vm1298 = vmor %vm1296, %vm1297
      %v1299 = vsel %vm1298, %v1291, %v1295
      %v1300 = vand.u32 2147483647, %v1290
      %vm1301 = vcmp.eq.f32.partialorder %v1300, 8.507059e+37
      %v1302 = vand.u32 %v1290, 2147483648
      %v1303 = vor.u32 1.1754944e-38, %v1302
      %v1304 = vsel %vm1301, %v1303, %v1299
      %v1305 = vmul.f32 %v1280, %v1304
      %v1306 = vmin.f32 %v1305, 1.0
      %v1307 = vmax.f32 %v1306, -1.0
      %v1308 = vmul.f32 %v574, %v574
      %v1309 = vmin.f32 16.0, %v1308
      %v1310 = vmul.f32 %v1309, 2.1237322e-06
      %v1311 = vadd.f32 %v1310, 0.00028619796
      %v1312 = vmul.f32 %v1309, %v1311
      %v1313 = vadd.f32 %v1312, 0.0036580483
      %v1314 = vmul.f32 %v1309, %v1313
      %v1315 = vadd.f32 %v1314, 0.05243302
      %v1316 = vmul.f32 %v1309, %v1315
      %v1317 = vadd.f32 %v1316, 0.18741608
      %v1318 = vmul.f32 %v1309, %v1317
      %v1319 = vadd.f32 %v1318, 1.1283791
      %v1320 = vmul.f32 %v574, %v1319
      %v1321 = vmul.f32 %v1309, 3.8918573e-05
      %v1322 = vadd.f32 %v1321, 0.001143296
      %v1323 = vmul.f32 %v1309, %v1322
      %v1324 = vadd.f32 %v1323, 0.014752088
      %v1325 = vmul.f32 %v1309, %v1324
      %v1326 = vadd.f32 %v1325, 0.112945676
      %v1327 = vmul.f32 %v1309, %v1326
      %v1328 = vadd.f32 %v1327, 0.4994258
      %v1329 = vmul.f32 %v1309, %v1328
      %v1330 = vadd.f32 %v1329, 1.0
      %v1331 = vrcp.pop %v1330
      %v1332 = vmul.f32 %v1330, %v1331
      %v1333 = vsub.f32 1.0, %v1332
      %v1334 = vmul.f32 %v1331, %v1333
      %v1335 = vadd.f32 %v1331, %v1334
      %vm1336 = vweird.f32 %v1330
      %vm1337 = vweird.f32 %v1331
      %vm1338 = vmor %vm1336, %vm1337
      %v1339 = vsel %vm1338, %v1331, %v1335
      %v1340 = vand.u32 2147483647, %v1330
      %vm1341 = vcmp.eq.f32.partialorder %v1340, 8.507059e+37
      %v1342 = vand.u32 %v1330, 2147483648
      %v1343 = vor.u32 1.1754944e-38, %v1342
      %v1344 = vsel %vm1341, %v1343, %v1339
      %v1345 = vmul.f32 %v1320, %v1344
      %v1346 = vmin.f32 %v1345, 1.0
      %v1347 = vmax.f32 %v1346, -1.0
      %v1348 = vmul.f32 %v575, %v575
      %v1349 = vmin.f32 16.0, %v1348
      %v1350 = vmul.f32 %v1349, 2.1237322e-06
      %v1351 = vadd.f32 %v1350, 0.00028619796
      %v1352 = vmul.f32 %v1349, %v1351
      %v1353 = vadd.f32 %v1352, 0.0036580483
      %v1354 = vmul.f32 %v1349, %v1353
      %v1355 = vadd.f32 %v1354, 0.05243302
      %v1356 = vmul.f32 %v1349, %v1355
      %v1357 = vadd.f32 %v1356, 0.18741608
      %v1358 = vmul.f32 %v1349, %v1357
      %v1359 = vadd.f32 %v1358, 1.1283791
      %v1360 = vmul.f32 %v575, %v1359
      %v1361 = vmul.f32 %v1349, 3.8918573e-05
      %v1362 = vadd.f32 %v1361, 0.001143296
      %v1363 = vmul.f32 %v1349, %v1362
      %v1364 = vadd.f32 %v1363, 0.014752088
      %v1365 = vmul.f32 %v1349, %v1364
      %v1366 = vadd.f32 %v1365, 0.112945676
      %v1367 = vmul.f32 %v1349, %v1366
      %v1368 = vadd.f32 %v1367, 0.4994258
      %v1369 = vmul.f32 %v1349, %v1368
      %v1370 = vadd.f32 %v1369, 1.0
      %v1371 = vrcp.pop %v1370
      %v1372 = vmul.f32 %v1370, %v1371
      %v1373 = vsub.f32 1.0, %v1372
      %v1374 = vmul.f32 %v1371, %v1373
      %v1375 = vadd.f32 %v1371, %v1374
      %vm1376 = vweird.f32 %v1370
      %vm1377 = vweird.f32 %v1371
      %vm1378 = vmor %vm1376, %vm1377
      %v1379 = vsel %vm1378, %v1371, %v1375
      %v1380 = vand.u32 2147483647, %v1370
      %vm1381 = vcmp.eq.f32.partialorder %v1380, 8.507059e+37
      %v1382 = vand.u32 %v1370, 2147483648
      %v1383 = vor.u32 1.1754944e-38, %v1382
      %v1384 = vsel %vm1381, %v1383, %v1379
      %v1385 = vmul.f32 %v1360, %v1384
      %v1386 = vmin.f32 %v1385, 1.0
      %v1387 = vmax.f32 %v1386, -1.0
      %v1388 = vmul.f32 %v576, %v576
      %v1389 = vmin.f32 16.0, %v1388
      %v1390 = vmul.f32 %v1389, 2.1237322e-06
      %v1391 = vadd.f32 %v1390, 0.00028619796
      %v1392 = vmul.f32 %v1389, %v1391
      %v1393 = vadd.f32 %v1392, 0.0036580483
      %v1394 = vmul.f32 %v1389, %v1393
      %v1395 = vadd.f32 %v1394, 0.05243302
      %v1396 = vmul.f32 %v1389, %v1395
      %v1397 = vadd.f32 %v1396, 0.18741608
      %v1398 = vmul.f32 %v1389, %v1397
      %v1399 = vadd.f32 %v1398, 1.1283791
      %v1400 = vmul.f32 %v576, %v1399
      %v1401 = vmul.f32 %v1389, 3.8918573e-05
      %v1402 = vadd.f32 %v1401, 0.001143296
      %v1403 = vmul.f32 %v1389, %v1402
      %v1404 = vadd.f32 %v1403, 0.014752088
      %v1405 = vmul.f32 %v1389, %v1404
      %v1406 = vadd.f32 %v1405, 0.112945676
      %v1407 = vmul.f32 %v1389, %v1406
      %v1408 = vadd.f32 %v1407, 0.4994258
      %v1409 = vmul.f32 %v1389, %v1408
      %v1410 = vadd.f32 %v1409, 1.0
      %v1411 = vrcp.pop %v1410
      %v1412 = vmul.f32 %v1410, %v1411
      %v1413 = vsub.f32 1.0, %v1412
      %v1414 = vmul.f32 %v1411, %v1413
      %v1415 = vadd.f32 %v1411, %v1414
      %vm1416 = vweird.f32 %v1410
      %vm1417 = vweird.f32 %v1411
      %vm1418 = vmor %vm1416, %vm1417
      %v1419 = vsel %vm1418, %v1411, %v1415
      %v1420 = vand.u32 2147483647, %v1410
      %vm1421 = vcmp.eq.f32.partialorder %v1420, 8.507059e+37
      %v1422 = vand.u32 %v1410, 2147483648
      %v1423 = vor.u32 1.1754944e-38, %v1422
      %v1424 = vsel %vm1421, %v1423, %v1419
      %v1425 = vmul.f32 %v1400, %v1424
      %v1426 = vmin.f32 %v1425, 1.0
      %v1427 = vmax.f32 %v1426, -1.0
      %v1428 = vmul.f32 %v577, %v577
      %v1429 = vmin.f32 16.0, %v1428
      %v1430 = vmul.f32 %v1429, 2.1237322e-06
      %v1431 = vadd.f32 %v1430, 0.00028619796
      %v1432 = vmul.f32 %v1429, %v1431
      %v1433 = vadd.f32 %v1432, 0.0036580483
      %v1434 = vmul.f32 %v1429, %v1433
      %v1435 = vadd.f32 %v1434, 0.05243302
      %v1436 = vmul.f32 %v1429, %v1435
      %v1437 = vadd.f32 %v1436, 0.18741608
      %v1438 = vmul.f32 %v1429, %v1437
      %v1439 = vadd.f32 %v1438, 1.1283791
      %v1440 = vmul.f32 %v577, %v1439
      %v1441 = vmul.f32 %v1429, 3.8918573e-05
      %v1442 = vadd.f32 %v1441, 0.001143296
      %v1443 = vmul.f32 %v1429, %v1442
      %v1444 = vadd.f32 %v1443, 0.014752088
      %v1445 = vmul.f32 %v1429, %v1444
      %v1446 = vadd.f32 %v1445, 0.112945676
      %v1447 = vmul.f32 %v1429, %v1446
      %v1448 = vadd.f32 %v1447, 0.4994258
      %v1449 = vmul.f32 %v1429, %v1448
      %v1450 = vadd.f32 %v1449, 1.0
      %v1451 = vrcp.pop %v1450
      %v1452 = vmul.f32 %v1450, %v1451
      %v1453 = vsub.f32 1.0, %v1452
      %v1454 = vmul.f32 %v1451, %v1453
      %v1455 = vadd.f32 %v1451, %v1454
      %vm1456 = vweird.f32 %v1450
      %vm1457 = vweird.f32 %v1451
      %vm1458 = vmor %vm1456, %vm1457
      %v1459 = vsel %vm1458, %v1451, %v1455
      %v1460 = vand.u32 2147483647, %v1450
      %vm1461 = vcmp.eq.f32.partialorder %v1460, 8.507059e+37
      %v1462 = vand.u32 %v1450, 2147483648
      %v1463 = vor.u32 1.1754944e-38, %v1462
      %v1464 = vsel %vm1461, %v1463, %v1459
      %v1465 = vmul.f32 %v1440, %v1464
      %v1466 = vmin.f32 %v1465, 1.0
      %v1467 = vmax.f32 %v1466, -1.0
      %v1468 = vmul.f32 %v578, %v578
      %v1469 = vmin.f32 16.0, %v1468
      %v1470 = vmul.f32 %v1469, 2.1237322e-06
      %v1471 = vadd.f32 %v1470, 0.00028619796
      %v1472 = vmul.f32 %v1469, %v1471
      %v1473 = vadd.f32 %v1472, 0.0036580483
      %v1474 = vmul.f32 %v1469, %v1473
      %v1475 = vadd.f32 %v1474, 0.05243302
      %v1476 = vmul.f32 %v1469, %v1475
      %v1477 = vadd.f32 %v1476, 0.18741608
      %v1478 = vmul.f32 %v1469, %v1477
      %v1479 = vadd.f32 %v1478, 1.1283791
      %v1480 = vmul.f32 %v578, %v1479
      %v1481 = vmul.f32 %v1469, 3.8918573e-05
      %v1482 = vadd.f32 %v1481, 0.001143296
      %v1483 = vmul.f32 %v1469, %v1482
      %v1484 = vadd.f32 %v1483, 0.014752088
      %v1485 = vmul.f32 %v1469, %v1484
      %v1486 = vadd.f32 %v1485, 0.112945676
      %v1487 = vmul.f32 %v1469, %v1486
      %v1488 = vadd.f32 %v1487, 0.4994258
      %v1489 = vmul.f32 %v1469, %v1488
      %v1490 = vadd.f32 %v1489, 1.0
      %v1491 = vrcp.pop %v1490
      %v1492 = vmul.f32 %v1490, %v1491
      %v1493 = vsub.f32 1.0, %v1492
      %v1494 = vmul.f32 %v1491, %v1493
      %v1495 = vadd.f32 %v1491, %v1494
      %vm1496 = vweird.f32 %v1490
      %vm1497 = vweird.f32 %v1491
      %vm1498 = vmor %vm1496, %vm1497
      %v1499 = vsel %vm1498, %v1491, %v1495
      %v1500 = vand.u32 2147483647, %v1490
      %vm1501 = vcmp.eq.f32.partialorder %v1500, 8.507059e+37
      %v1502 = vand.u32 %v1490, 2147483648
      %v1503 = vor.u32 1.1754944e-38, %v1502
      %v1504 = vsel %vm1501, %v1503, %v1499
      %v1505 = vmul.f32 %v1480, %v1504
      %v1506 = vmin.f32 %v1505, 1.0
      %v1507 = vmax.f32 %v1506, -1.0
      %v1508 = vmul.f32 %v579, %v579
      %v1509 = vmin.f32 16.0, %v1508
      %v1510 = vmul.f32 %v1509, 2.1237322e-06
      %v1511 = vadd.f32 %v1510, 0.00028619796
      %v1512 = vmul.f32 %v1509, %v1511
      %v1513 = vadd.f32 %v1512, 0.0036580483
      %v1514 = vmul.f32 %v1509, %v1513
      %v1515 = vadd.f32 %v1514, 0.05243302
      %v1516 = vmul.f32 %v1509, %v1515
      %v1517 = vadd.f32 %v1516, 0.18741608
      %v1518 = vmul.f32 %v1509, %v1517
      %v1519 = vadd.f32 %v1518, 1.1283791
      %v1520 = vmul.f32 %v579, %v1519
      %v1521 = vmul.f32 %v1509, 3.8918573e-05
      %v1522 = vadd.f32 %v1521, 0.001143296
      %v1523 = vmul.f32 %v1509, %v1522
      %v1524 = vadd.f32 %v1523, 0.014752088
      %v1525 = vmul.f32 %v1509, %v1524
      %v1526 = vadd.f32 %v1525, 0.112945676
      %v1527 = vmul.f32 %v1509, %v1526
      %v1528 = vadd.f32 %v1527, 0.4994258
      %v1529 = vmul.f32 %v1509, %v1528
      %v1530 = vadd.f32 %v1529, 1.0
      %v1531 = vrcp.pop %v1530
      %v1532 = vmul.f32 %v1530, %v1531
      %v1533 = vsub.f32 1.0, %v1532
      %v1534 = vmul.f32 %v1531, %v1533
      %v1535 = vadd.f32 %v1531, %v1534
      %vm1536 = vweird.f32 %v1530
      %vm1537 = vweird.f32 %v1531
      %vm1538 = vmor %vm1536, %vm1537
      %v1539 = vsel %vm1538, %v1531, %v1535
      %v1540 = vand.u32 2147483647, %v1530
      %vm1541 = vcmp.eq.f32.partialorder %v1540, 8.507059e+37
      %v1542 = vand.u32 %v1530, 2147483648
      %v1543 = vor.u32 1.1754944e-38, %v1542
      %v1544 = vsel %vm1541, %v1543, %v1539
      %v1545 = vmul.f32 %v1520, %v1544
      %v1546 = vmin.f32 %v1545, 1.0
      %v1547 = vmax.f32 %v1546, -1.0
      %v1548 = vmul.f32 %v580, %v580
      %v1549 = vmin.f32 16.0, %v1548
      %v1550 = vmul.f32 %v1549, 2.1237322e-06
      %v1551 = vadd.f32 %v1550, 0.00028619796
      %v1552 = vmul.f32 %v1549, %v1551
      %v1553 = vadd.f32 %v1552, 0.0036580483
      %v1554 = vmul.f32 %v1549, %v1553
      %v1555 = vadd.f32 %v1554, 0.05243302
      %v1556 = vmul.f32 %v1549, %v1555
      %v1557 = vadd.f32 %v1556, 0.18741608
      %v1558 = vmul.f32 %v1549, %v1557
      %v1559 = vadd.f32 %v1558, 1.1283791
      %v1560 = vmul.f32 %v580, %v1559
      %v1561 = vmul.f32 %v1549, 3.8918573e-05
      %v1562 = vadd.f32 %v1561, 0.001143296
      %v1563 = vmul.f32 %v1549, %v1562
      %v1564 = vadd.f32 %v1563, 0.014752088
      %v1565 = vmul.f32 %v1549, %v1564
      %v1566 = vadd.f32 %v1565, 0.112945676
      %v1567 = vmul.f32 %v1549, %v1566
      %v1568 = vadd.f32 %v1567, 0.4994258
      %v1569 = vmul.f32 %v1549, %v1568
      %v1570 = vadd.f32 %v1569, 1.0
      %v1571 = vrcp.pop %v1570
      %v1572 = vmul.f32 %v1570, %v1571
      %v1573 = vsub.f32 1.0, %v1572
      %v1574 = vmul.f32 %v1571, %v1573
      %v1575 = vadd.f32 %v1571, %v1574
      %vm1576 = vweird.f32 %v1570
      %vm1577 = vweird.f32 %v1571
      %vm1578 = vmor %vm1576, %vm1577
      %v1579 = vsel %vm1578, %v1571, %v1575
      %v1580 = vand.u32 2147483647, %v1570
      %vm1581 = vcmp.eq.f32.partialorder %v1580, 8.507059e+37
      %v1582 = vand.u32 %v1570, 2147483648
      %v1583 = vor.u32 1.1754944e-38, %v1582
      %v1584 = vsel %vm1581, %v1583, %v1579
      %v1585 = vmul.f32 %v1560, %v1584
      %v1586 = vmin.f32 %v1585, 1.0
      %v1587 = vmax.f32 %v1586, -1.0
      %v1588 = vmul.f32 %v581, %v581
      %v1589 = vmin.f32 16.0, %v1588
      %v1590 = vmul.f32 %v1589, 2.1237322e-06
      %v1591 = vadd.f32 %v1590, 0.00028619796
      %v1592 = vmul.f32 %v1589, %v1591
      %v1593 = vadd.f32 %v1592, 0.0036580483
      %v1594 = vmul.f32 %v1589, %v1593
      %v1595 = vadd.f32 %v1594, 0.05243302
      %v1596 = vmul.f32 %v1589, %v1595
      %v1597 = vadd.f32 %v1596, 0.18741608
      %v1598 = vmul.f32 %v1589, %v1597
      %v1599 = vadd.f32 %v1598, 1.1283791
      %v1600 = vmul.f32 %v581, %v1599
      %v1601 = vmul.f32 %v1589, 3.8918573e-05
      %v1602 = vadd.f32 %v1601, 0.001143296
      %v1603 = vmul.f32 %v1589, %v1602
      %v1604 = vadd.f32 %v1603, 0.014752088
      %v1605 = vmul.f32 %v1589, %v1604
      %v1606 = vadd.f32 %v1605, 0.112945676
      %v1607 = vmul.f32 %v1589, %v1606
      %v1608 = vadd.f32 %v1607, 0.4994258
      %v1609 = vmul.f32 %v1589, %v1608
      %v1610 = vadd.f32 %v1609, 1.0
      %v1611 = vrcp.pop %v1610
      %v1612 = vmul.f32 %v1610, %v1611
      %v1613 = vsub.f32 1.0, %v1612
      %v1614 = vmul.f32 %v1611, %v1613
      %v1615 = vadd.f32 %v1611, %v1614
      %vm1616 = vweird.f32 %v1610
      %vm1617 = vweird.f32 %v1611
      %vm1618 = vmor %vm1616, %vm1617
      %v1619 = vsel %vm1618, %v1611, %v1615
      %v1620 = vand.u32 2147483647, %v1610
      %vm1621 = vcmp.eq.f32.partialorder %v1620, 8.507059e+37
      %v1622 = vand.u32 %v1610, 2147483648
      %v1623 = vor.u32 1.1754944e-38, %v1622
      %v1624 = vsel %vm1621, %v1623, %v1619
      %v1625 = vmul.f32 %v1600, %v1624
      %v1626 = vmin.f32 %v1625, 1.0
      %v1627 = vmax.f32 %v1626, -1.0
      %v1628 = vmul.f32 %v582, %v582
      %v1629 = vmin.f32 16.0, %v1628
      %v1630 = vmul.f32 %v1629, 2.1237322e-06
      %v1631 = vadd.f32 %v1630, 0.00028619796
      %v1632 = vmul.f32 %v1629, %v1631
      %v1633 = vadd.f32 %v1632, 0.0036580483
      %v1634 = vmul.f32 %v1629, %v1633
      %v1635 = vadd.f32 %v1634, 0.05243302
      %v1636 = vmul.f32 %v1629, %v1635
      %v1637 = vadd.f32 %v1636, 0.18741608
      %v1638 = vmul.f32 %v1629, %v1637
      %v1639 = vadd.f32 %v1638, 1.1283791
      %v1640 = vmul.f32 %v582, %v1639
      %v1641 = vmul.f32 %v1629, 3.8918573e-05
      %v1642 = vadd.f32 %v1641, 0.001143296
      %v1643 = vmul.f32 %v1629, %v1642
      %v1644 = vadd.f32 %v1643, 0.014752088
      %v1645 = vmul.f32 %v1629, %v1644
      %v1646 = vadd.f32 %v1645, 0.112945676
      %v1647 = vmul.f32 %v1629, %v1646
      %v1648 = vadd.f32 %v1647, 0.4994258
      %v1649 = vmul.f32 %v1629, %v1648
      %v1650 = vadd.f32 %v1649, 1.0
      %v1651 = vrcp.pop %v1650
      %v1652 = vmul.f32 %v1650, %v1651
      %v1653 = vsub.f32 1.0, %v1652
      %v1654 = vmul.f32 %v1651, %v1653
      %v1655 = vadd.f32 %v1651, %v1654
      %vm1656 = vweird.f32 %v1650
      %vm1657 = vweird.f32 %v1651
      %vm1658 = vmor %vm1656, %vm1657
      %v1659 = vsel %vm1658, %v1651, %v1655
      %v1660 = vand.u32 2147483647, %v1650
      %vm1661 = vcmp.eq.f32.partialorder %v1660, 8.507059e+37
      %v1662 = vand.u32 %v1650, 2147483648
      %v1663 = vor.u32 1.1754944e-38, %v1662
      %v1664 = vsel %vm1661, %v1663, %v1659
      %v1665 = vmul.f32 %v1640, %v1664
      %v1666 = vmin.f32 %v1665, 1.0
      %v1667 = vmax.f32 %v1666, -1.0
      %v1668 = vmul.f32 %v583, %v583
      %v1669 = vmin.f32 16.0, %v1668
      %v1670 = vmul.f32 %v1669, 2.1237322e-06
      %v1671 = vadd.f32 %v1670, 0.00028619796
      %v1672 = vmul.f32 %v1669, %v1671
      %v1673 = vadd.f32 %v1672, 0.0036580483
      %v1674 = vmul.f32 %v1669, %v1673
      %v1675 = vadd.f32 %v1674, 0.05243302
      %v1676 = vmul.f32 %v1669, %v1675
      %v1677 = vadd.f32 %v1676, 0.18741608
      %v1678 = vmul.f32 %v1669, %v1677
      %v1679 = vadd.f32 %v1678, 1.1283791
      %v1680 = vmul.f32 %v583, %v1679
      %v1681 = vmul.f32 %v1669, 3.8918573e-05
      %v1682 = vadd.f32 %v1681, 0.001143296
      %v1683 = vmul.f32 %v1669, %v1682
      %v1684 = vadd.f32 %v1683, 0.014752088
      %v1685 = vmul.f32 %v1669, %v1684
      %v1686 = vadd.f32 %v1685, 0.112945676
      %v1687 = vmul.f32 %v1669, %v1686
      %v1688 = vadd.f32 %v1687, 0.4994258
      %v1689 = vmul.f32 %v1669, %v1688
      %v1690 = vadd.f32 %v1689, 1.0
      %v1691 = vrcp.pop %v1690
      %v1692 = vmul.f32 %v1690, %v1691
      %v1693 = vsub.f32 1.0, %v1692
      %v1694 = vmul.f32 %v1691, %v1693
      %v1695 = vadd.f32 %v1691, %v1694
      %vm1696 = vweird.f32 %v1690
      %vm1697 = vweird.f32 %v1691
      %vm1698 = vmor %vm1696, %vm1697
      %v1699 = vsel %vm1698, %v1691, %v1695
      %v1700 = vand.u32 2147483647, %v1690
      %vm1701 = vcmp.eq.f32.partialorder %v1700, 8.507059e+37
      %v1702 = vand.u32 %v1690, 2147483648
      %v1703 = vor.u32 1.1754944e-38, %v1702
      %v1704 = vsel %vm1701, %v1703, %v1699
      %v1705 = vmul.f32 %v1680, %v1704
      %v1706 = vmin.f32 %v1705, 1.0
      %v1707 = vmax.f32 %v1706, -1.0
      %v1708 = vmul.f32 %v584, %v584
      %v1709 = vmin.f32 16.0, %v1708
      %v1710 = vmul.f32 %v1709, 2.1237322e-06
      %v1711 = vadd.f32 %v1710, 0.00028619796
      %v1712 = vmul.f32 %v1709, %v1711
      %v1713 = vadd.f32 %v1712, 0.0036580483
      %v1714 = vmul.f32 %v1709, %v1713
      %v1715 = vadd.f32 %v1714, 0.05243302
      %v1716 = vmul.f32 %v1709, %v1715
      %v1717 = vadd.f32 %v1716, 0.18741608
      %v1718 = vmul.f32 %v1709, %v1717
      %v1719 = vadd.f32 %v1718, 1.1283791
      %v1720 = vmul.f32 %v584, %v1719
      %v1721 = vmul.f32 %v1709, 3.8918573e-05
      %v1722 = vadd.f32 %v1721, 0.001143296
      %v1723 = vmul.f32 %v1709, %v1722
      %v1724 = vadd.f32 %v1723, 0.014752088
      %v1725 = vmul.f32 %v1709, %v1724
      %v1726 = vadd.f32 %v1725, 0.112945676
      %v1727 = vmul.f32 %v1709, %v1726
      %v1728 = vadd.f32 %v1727, 0.4994258
      %v1729 = vmul.f32 %v1709, %v1728
      %v1730 = vadd.f32 %v1729, 1.0
      %v1731 = vrcp.pop %v1730
      %v1732 = vmul.f32 %v1730, %v1731
      %v1733 = vsub.f32 1.0, %v1732
      %v1734 = vmul.f32 %v1731, %v1733
      %v1735 = vadd.f32 %v1731, %v1734
      %vm1736 = vweird.f32 %v1730
      %vm1737 = vweird.f32 %v1731
      %vm1738 = vmor %vm1736, %vm1737
      %v1739 = vsel %vm1738, %v1731, %v1735
      %v1740 = vand.u32 2147483647, %v1730
      %vm1741 = vcmp.eq.f32.partialorder %v1740, 8.507059e+37
      %v1742 = vand.u32 %v1730, 2147483648
      %v1743 = vor.u32 1.1754944e-38, %v1742
      %v1744 = vsel %vm1741, %v1743, %v1739
      %v1745 = vmul.f32 %v1720, %v1744
      %v1746 = vmin.f32 %v1745, 1.0
      %v1747 = vmax.f32 %v1746, -1.0
      %v1748 = vmul.f32 %v585, %v585
      %v1749 = vmin.f32 16.0, %v1748
      %v1750 = vmul.f32 %v1749, 2.1237322e-06
      %v1751 = vadd.f32 %v1750, 0.00028619796
      %v1752 = vmul.f32 %v1749, %v1751
      %v1753 = vadd.f32 %v1752, 0.0036580483
      %v1754 = vmul.f32 %v1749, %v1753
      %v1755 = vadd.f32 %v1754, 0.05243302
      %v1756 = vmul.f32 %v1749, %v1755
      %v1757 = vadd.f32 %v1756, 0.18741608
      %v1758 = vmul.f32 %v1749, %v1757
      %v1759 = vadd.f32 %v1758, 1.1283791
      %v1760 = vmul.f32 %v585, %v1759
      %v1761 = vmul.f32 %v1749, 3.8918573e-05
      %v1762 = vadd.f32 %v1761, 0.001143296
      %v1763 = vmul.f32 %v1749, %v1762
      %v1764 = vadd.f32 %v1763, 0.014752088
      %v1765 = vmul.f32 %v1749, %v1764
      %v1766 = vadd.f32 %v1765, 0.112945676
      %v1767 = vmul.f32 %v1749, %v1766
      %v1768 = vadd.f32 %v1767, 0.4994258
      %v1769 = vmul.f32 %v1749, %v1768
      %v1770 = vadd.f32 %v1769, 1.0
      %v1771 = vrcp.pop %v1770
      %v1772 = vmul.f32 %v1770, %v1771
      %v1773 = vsub.f32 1.0, %v1772
      %v1774 = vmul.f32 %v1771, %v1773
      %v1775 = vadd.f32 %v1771, %v1774
      %vm1776 = vweird.f32 %v1770
      %vm1777 = vweird.f32 %v1771
      %vm1778 = vmor %vm1776, %vm1777
      %v1779 = vsel %vm1778, %v1771, %v1775
      %v1780 = vand.u32 2147483647, %v1770
      %vm1781 = vcmp.eq.f32.partialorder %v1780, 8.507059e+37
      %v1782 = vand.u32 %v1770, 2147483648
      %v1783 = vor.u32 1.1754944e-38, %v1782
      %v1784 = vsel %vm1781, %v1783, %v1779
      %v1785 = vmul.f32 %v1760, %v1784
      %v1786 = vmin.f32 %v1785, 1.0
      %v1787 = vmax.f32 %v1786, -1.0
      %v1788 = vmul.f32 %v586, %v586
      %v1789 = vmin.f32 16.0, %v1788
      %v1790 = vmul.f32 %v1789, 2.1237322e-06
      %v1791 = vadd.f32 %v1790, 0.00028619796
      %v1792 = vmul.f32 %v1789, %v1791
      %v1793 = vadd.f32 %v1792, 0.0036580483
      %v1794 = vmul.f32 %v1789, %v1793
      %v1795 = vadd.f32 %v1794, 0.05243302
      %v1796 = vmul.f32 %v1789, %v1795
      %v1797 = vadd.f32 %v1796, 0.18741608
      %v1798 = vmul.f32 %v1789, %v1797
      %v1799 = vadd.f32 %v1798, 1.1283791
      %v1800 = vmul.f32 %v586, %v1799
      %v1801 = vmul.f32 %v1789, 3.8918573e-05
      %v1802 = vadd.f32 %v1801, 0.001143296
      %v1803 = vmul.f32 %v1789, %v1802
      %v1804 = vadd.f32 %v1803, 0.014752088
      %v1805 = vmul.f32 %v1789, %v1804
      %v1806 = vadd.f32 %v1805, 0.112945676
      %v1807 = vmul.f32 %v1789, %v1806
      %v1808 = vadd.f32 %v1807, 0.4994258
      %v1809 = vmul.f32 %v1789, %v1808
      %v1810 = vadd.f32 %v1809, 1.0
      %v1811 = vrcp.pop %v1810
      %v1812 = vmul.f32 %v1810, %v1811
      %v1813 = vsub.f32 1.0, %v1812
      %v1814 = vmul.f32 %v1811, %v1813
      %v1815 = vadd.f32 %v1811, %v1814
      %vm1816 = vweird.f32 %v1810
      %vm1817 = vweird.f32 %v1811
      %vm1818 = vmor %vm1816, %vm1817
      %v1819 = vsel %vm1818, %v1811, %v1815
      %v1820 = vand.u32 2147483647, %v1810
      %vm1821 = vcmp.eq.f32.partialorder %v1820, 8.507059e+37
      %v1822 = vand.u32 %v1810, 2147483648
      %v1823 = vor.u32 1.1754944e-38, %v1822
      %v1824 = vsel %vm1821, %v1823, %v1819
      %v1825 = vmul.f32 %v1800, %v1824
      %v1826 = vmin.f32 %v1825, 1.0
      %v1827 = vmax.f32 %v1826, -1.0
      %v1828 = vmul.f32 %v587, %v587
      %v1829 = vmin.f32 16.0, %v1828
      %v1830 = vmul.f32 %v1829, 2.1237322e-06
      %v1831 = vadd.f32 %v1830, 0.00028619796
      %v1832 = vmul.f32 %v1829, %v1831
      %v1833 = vadd.f32 %v1832, 0.0036580483
      %v1834 = vmul.f32 %v1829, %v1833
      %v1835 = vadd.f32 %v1834, 0.05243302
      %v1836 = vmul.f32 %v1829, %v1835
      %v1837 = vadd.f32 %v1836, 0.18741608
      %v1838 = vmul.f32 %v1829, %v1837
      %v1839 = vadd.f32 %v1838, 1.1283791
      %v1840 = vmul.f32 %v587, %v1839
      %v1841 = vmul.f32 %v1829, 3.8918573e-05
      %v1842 = vadd.f32 %v1841, 0.001143296
      %v1843 = vmul.f32 %v1829, %v1842
      %v1844 = vadd.f32 %v1843, 0.014752088
      %v1845 = vmul.f32 %v1829, %v1844
      %v1846 = vadd.f32 %v1845, 0.112945676
      %v1847 = vmul.f32 %v1829, %v1846
      %v1848 = vadd.f32 %v1847, 0.4994258
      %v1849 = vmul.f32 %v1829, %v1848
      %v1850 = vadd.f32 %v1849, 1.0
      %v1851 = vrcp.pop %v1850
      %v1852 = vmul.f32 %v1850, %v1851
      %v1853 = vsub.f32 1.0, %v1852
      %v1854 = vmul.f32 %v1851, %v1853
      %v1855 = vadd.f32 %v1851, %v1854
      %vm1856 = vweird.f32 %v1850
      %vm1857 = vweird.f32 %v1851
      %vm1858 = vmor %vm1856, %vm1857
      %v1859 = vsel %vm1858, %v1851, %v1855
      %v1860 = vand.u32 2147483647, %v1850
      %vm1861 = vcmp.eq.f32.partialorder %v1860, 8.507059e+37
      %v1862 = vand.u32 %v1850, 2147483648
      %v1863 = vor.u32 1.1754944e-38, %v1862
      %v1864 = vsel %vm1861, %v1863, %v1859
      %v1865 = vmul.f32 %v1840, %v1864
      %v1866 = vmin.f32 %v1865, 1.0
      %v1867 = vmax.f32 %v1866, -1.0
      %v1868 = vadd.f32 %v627, 1.0
      %v1869 = vadd.f32 %v667, 1.0
      %v1870 = vadd.f32 %v707, 1.0
      %v1871 = vadd.f32 %v747, 1.0
      %v1872 = vadd.f32 %v787, 1.0
      %v1873 = vadd.f32 %v827, 1.0
      %v1874 = vadd.f32 %v867, 1.0
      %v1875 = vadd.f32 %v907, 1.0
      %v1876 = vadd.f32 %v947, 1.0
      %v1877 = vadd.f32 %v987, 1.0
      %v1878 = vadd.f32 %v1027, 1.0
      %v1879 = vadd.f32 %v1067, 1.0
      %v1880 = vadd.f32 %v1107, 1.0
      %v1881 = vadd.f32 %v1147, 1.0
      %v1882 = vadd.f32 %v1187, 1.0
      %v1883 = vadd.f32 %v1227, 1.0
      %v1884 = vadd.f32 %v1267, 1.0
      %v1885 = vadd.f32 %v1307, 1.0
      %v1886 = vadd.f32 %v1347, 1.0
      %v1887 = vadd.f32 %v1387, 1.0
      %v1888 = vadd.f32 %v1427, 1.0
      %v1889 = vadd.f32 %v1467, 1.0
      %v1890 = vadd.f32 %v1507, 1.0
      %v1891 = vadd.f32 %v1547, 1.0
      %v1892 = vadd.f32 %v1587, 1.0
      %v1893 = vadd.f32 %v1627, 1.0
      %v1894 = vadd.f32 %v1667, 1.0
      %v1895 = vadd.f32 %v1707, 1.0
      %v1896 = vadd.f32 %v1747, 1.0
      %v1897 = vadd.f32 %v1787, 1.0
      %v1898 = vadd.f32 %v1827, 1.0
      %v1899 = vadd.f32 %v1867, 1.0
      %v1900 = vmul.f32 %v524, %v1868
      %v1901 = vmul.f32 %v525, %v1869
      %v1902 = vmul.f32 %v526, %v1870
      %v1903 = vmul.f32 %v527, %v1871
      %v1904 = vmul.f32 %v528, %v1872
      %v1905 = vmul.f32 %v529, %v1873
      %v1906 = vmul.f32 %v530, %v1874
      %v1907 = vmul.f32 %v531, %v1875
      %v1908 = vmul.f32 %v532, %v1876
      %v1909 = vmul.f32 %v533, %v1877
      %v1910 = vmul.f32 %v534, %v1878
      %v1911 = vmul.f32 %v535, %v1879
      %v1912 = vmul.f32 %v536, %v1880
      %v1913 = vmul.f32 %v537, %v1881
      %v1914 = vmul.f32 %v538, %v1882
      %v1915 = vmul.f32 %v539, %v1883
      %v1916 = vmul.f32 %v540, %v1884
      %v1917 = vmul.f32 %v541, %v1885
      %v1918 = vmul.f32 %v542, %v1886
      %v1919 = vmul.f32 %v543, %v1887
      %v1920 = vmul.f32 %v544, %v1888
      %v1921 = vmul.f32 %v545, %v1889
      %v1922 = vmul.f32 %v546, %v1890
      %v1923 = vmul.f32 %v547, %v1891
      %v1924 = vmul.f32 %v548, %v1892
      %v1925 = vmul.f32 %v549, %v1893
      %v1926 = vmul.f32 %v550, %v1894
      %v1927 = vmul.f32 %v551, %v1895
      %v1928 = vmul.f32 %v552, %v1896
      %v1929 = vmul.f32 %v553, %v1897
      %v1930 = vmul.f32 %v554, %v1898
      %v1931 = vmul.f32 %v555, %v1899
      %v1932 = vld [vmem:[%s3] sm:$0xff]
      %v1933 = vld [vmem:[%s3 + $0x8] sm:$0xff]
      %v1934 = vld [vmem:[%s3 + $0x10] sm:$0xff]
      %v1935 = vld [vmem:[%s3 + $0x18] sm:$0xff]
      %v1936 = vld [vmem:[%s3 + $0x20] sm:$0xff]
      %v1937 = vld [vmem:[%s3 + $0x28] sm:$0xff]
      %v1938 = vld [vmem:[%s3 + $0x30] sm:$0xff]
      %v1939 = vld [vmem:[%s3 + $0x38] sm:$0xff]
      %v1940 = vld [vmem:[%s3 + $0x40] sm:$0xff]
      %v1941 = vld [vmem:[%s3 + $0x48] sm:$0xff]
      %v1942 = vld [vmem:[%s3 + $0x50] sm:$0xff]
      %v1943 = vld [vmem:[%s3 + $0x58] sm:$0xff]
      %v1944 = vld [vmem:[%s3 + $0x60] sm:$0xff]
      %v1945 = vld [vmem:[%s3 + $0x68] sm:$0xff]
      %v1946 = vld [vmem:[%s3 + $0x70] sm:$0xff]
      %v1947 = vld [vmem:[%s3 + $0x78] sm:$0xff]
      %1949 = vset.pattern.permute.xlu0 0
      %1950 = vperm.xlu0 %1949, %v1932
      %v1951 = vpop.permute.xlu0 %1950
      %1954 = vset.pattern.permute.xlu0 0
      %1955 = vperm.xlu0 %1954, %v1933
      %v1956 = vpop.permute.xlu0 %1955
      %1959 = vset.pattern.permute.xlu0 0
      %1960 = vperm.xlu0 %1959, %v1934
      %v1961 = vpop.permute.xlu0 %1960
      %1964 = vset.pattern.permute.xlu0 0
      %1965 = vperm.xlu0 %1964, %v1935
      %v1966 = vpop.permute.xlu0 %1965
      %1969 = vset.pattern.permute.xlu0 0
      %1970 = vperm.xlu0 %1969, %v1936
      %v1971 = vpop.permute.xlu0 %1970
      %1974 = vset.pattern.permute.xlu0 0
      %1975 = vperm.xlu0 %1974, %v1937
      %v1976 = vpop.permute.xlu0 %1975
      %1979 = vset.pattern.permute.xlu0 0
      %1980 = vperm.xlu0 %1979, %v1938
      %v1981 = vpop.permute.xlu0 %1980
      %1984 = vset.pattern.permute.xlu0 0
      %1985 = vperm.xlu0 %1984, %v1939
      %v1986 = vpop.permute.xlu0 %1985
      %1989 = vset.pattern.permute.xlu0 0
      %1990 = vperm.xlu0 %1989, %v1940
      %v1991 = vpop.permute.xlu0 %1990
      %1994 = vset.pattern.permute.xlu0 0
      %1995 = vperm.xlu0 %1994, %v1941
      %v1996 = vpop.permute.xlu0 %1995
      %1999 = vset.pattern.permute.xlu0 0
      %2000 = vperm.xlu0 %1999, %v1942
      %v2001 = vpop.permute.xlu0 %2000
      %2004 = vset.pattern.permute.xlu0 0
      %2005 = vperm.xlu0 %2004, %v1943
      %v2006 = vpop.permute.xlu0 %2005
      %2009 = vset.pattern.permute.xlu0 0
      %2010 = vperm.xlu0 %2009, %v1944
      %v2011 = vpop.permute.xlu0 %2010
      %2014 = vset.pattern.permute.xlu0 0
      %2015 = vperm.xlu0 %2014, %v1945
      %v2016 = vpop.permute.xlu0 %2015
      %2019 = vset.pattern.permute.xlu0 0
      %2020 = vperm.xlu0 %2019, %v1946
      %v2021 = vpop.permute.xlu0 %2020
      %2024 = vset.pattern.permute.xlu0 0
      %2025 = vperm.xlu0 %2024, %v1947
      %v2026 = vpop.permute.xlu0 %2025
      %v2028 = vmul.f32 %v1900, %v1951
      %v2029 = vmul.f32 %v1901, %v1951
      %v2030 = vmul.f32 %v1902, %v1956
      %v2031 = vmul.f32 %v1903, %v1956
      %v2032 = vmul.f32 %v1904, %v1961
      %v2033 = vmul.f32 %v1905, %v1961
      %v2034 = vmul.f32 %v1906, %v1966
      %v2035 = vmul.f32 %v1907, %v1966
      %v2036 = vmul.f32 %v1908, %v1971
      %v2037 = vmul.f32 %v1909, %v1971
      %v2038 = vmul.f32 %v1910, %v1976
      %v2039 = vmul.f32 %v1911, %v1976
      %v2040 = vmul.f32 %v1912, %v1981
      %v2041 = vmul.f32 %v1913, %v1981
      %v2042 = vmul.f32 %v1914, %v1986
      %v2043 = vmul.f32 %v1915, %v1986
      %v2044 = vmul.f32 %v1916, %v1991
      %v2045 = vmul.f32 %v1917, %v1991
      %v2046 = vmul.f32 %v1918, %v1996
      %v2047 = vmul.f32 %v1919, %v1996
      %v2048 = vmul.f32 %v1920, %v2001
      %v2049 = vmul.f32 %v1921, %v2001
      %v2050 = vmul.f32 %v1922, %v2006
      %v2051 = vmul.f32 %v1923, %v2006
      %v2052 = vmul.f32 %v1924, %v2011
      %v2053 = vmul.f32 %v1925, %v2011
      %v2054 = vmul.f32 %v1926, %v2016
      %v2055 = vmul.f32 %v1927, %v2016
      %v2056 = vmul.f32 %v1928, %v2021
      %v2057 = vmul.f32 %v1929, %v2021
      %v2058 = vmul.f32 %v1930, %v2026
      %v2059 = vmul.f32 %v1931, %v2026
      %v2060 = vadd.f32 %v2028, %v2030
      %v2061 = vadd.f32 %v2060, %v2032
      %v2062 = vadd.f32 %v2061, %v2034
      %v2063 = vadd.f32 %v2062, %v2036
      %v2064 = vadd.f32 %v2063, %v2038
      %v2065 = vadd.f32 %v2064, %v2040
      %v2066 = vadd.f32 %v2065, %v2042
      %v2067 = vadd.f32 %v2066, %v2044
      %v2068 = vadd.f32 %v2067, %v2046
      %v2069 = vadd.f32 %v2068, %v2048
      %v2070 = vadd.f32 %v2069, %v2050
      %v2071 = vadd.f32 %v2070, %v2052
      %v2072 = vadd.f32 %v2071, %v2054
      %v2073 = vadd.f32 %v2072, %v2056
      %v2074 = vadd.f32 %v2073, %v2058
      %v2075 = vrot.slane %v2074, 4
      %v2076 = vadd.f32 %v2074, %v2075
      %v2077 = vrot.slane %v2076, 2
      %v2078 = vadd.f32 %v2076, %v2077
      %v2079 = vrot.slane %v2078, 1
      %v2080 = vadd.f32 %v2078, %v2079
      %v2081 = vadd.f32 %v2029, %v2031
      %v2082 = vadd.f32 %v2081, %v2033
      %v2083 = vadd.f32 %v2082, %v2035
      %v2084 = vadd.f32 %v2083, %v2037
      %v2085 = vadd.f32 %v2084, %v2039
      %v2086 = vadd.f32 %v2085, %v2041
      %v2087 = vadd.f32 %v2086, %v2043
      %v2088 = vadd.f32 %v2087, %v2045
      %v2089 = vadd.f32 %v2088, %v2047
      %v2090 = vadd.f32 %v2089, %v2049
      %v2091 = vadd.f32 %v2090, %v2051
      %v2092 = vadd.f32 %v2091, %v2053
      %v2093 = vadd.f32 %v2092, %v2055
      %v2094 = vadd.f32 %v2093, %v2057
      %v2095 = vadd.f32 %v2094, %v2059
      %v2096 = vrot.slane %v2095, 4
      %v2097 = vadd.f32 %v2095, %v2096
      %v2098 = vrot.slane %v2097, 2
      %v2099 = vadd.f32 %v2097, %v2098
      %v2100 = vrot.slane %v2099, 1
      %v2101 = vadd.f32 %v2099, %v2100
      %v2102 = vld [vmem:[#allocation2] sm:$0x1]
      %2104 = vset.pattern.permute.xlu0 0
      %2105 = vperm.xlu0 %2104, %v2102
      %v2106 = vpop.permute.xlu0 %2105
      %v2108 = vperm.slane %v2106, 0
      %v2109 = vadd.f32 %v2080, %v2108
      %v2110 = vadd.f32 %v2101, %v2108
      %v2113 = vrot.slane %v2110, 7
      %vm2114 = vcmask 1040384
      %v2115 = vsel %vm2114, %v2109, %v2113
      %v2117 = vlaneseq
      %vm2118 = vcmp.ge.s32.totalorder %v2117, 0
      %vm2119 = vcmp.lt.s32.totalorder %v2117, 256
      %vm2120 = vmand %vm2118, %vm2119
      %2121 = vst.msk [vmem:[%s224] sm:$0x3] %vm2120, %v2115
      %p2122 = scmp.lt.s32.totalorder %s18, 1
      %s2123 = scalar_select %p2122, %s18, 1
      %s2124 = smul.addr %s2123, 2
      %s2125 = scalar_lea.vmem %s5, %s2124
      // Predicated region
      $region41: #{fno2d_forward.11} parent=39 // pred_check
        %p2126 = pneg %p146
      $region42: #{fno2d_forward.11} parent=39 // pred_check_branch
        %2128 = sbr.rel (%p2126) target = $region44
      $region43: #{fno2d_forward.11} parent=39 // pred_region
        _
      $region44: #{fno2d_forward.11} parent=39 // pred_fallthru
        _
    $region40: #{fno2d_forward.11} parent=5 // pred_fallthru
      _
    %p2129 = scmp.le.s32.totalorder 2, %s13
    // Predicated region
    $region45: #{fno2d_forward.11} parent=5 // pred_check
      %p2130 = pneg %p2129
    $region46: #{fno2d_forward.11} parent=5 // pred_check_branch
      %2132 = sbr.rel (%p2130) target = $region48
    $region47: #{fno2d_forward.11} parent=5 // pred_region
      %s2133 = ssub.s32 %s13, 2
      // Predicated region
      $region49: #{fno2d_forward.11} parent=47 // pred_check
        %p2134 = pneg %p152
      $region50: #{fno2d_forward.11} parent=47 // pred_check_branch
        %2136 = sbr.rel (%p2134) target = $region52
      $region51: #{fno2d_forward.11} parent=47 // pred_region
        %p2137 = scmp.lt.s32.totalorder %s19, 1
        %s2138 = scalar_select %p2137, %s19, 1
        %s2139 = smul.addr %s2138, 2
        %s2140 = scalar_lea.vmem %s5, %s2139
      $region52: #{fno2d_forward.11} parent=47 // pred_fallthru
        _
    $region48: #{fno2d_forward.11} parent=5 // pred_fallthru
      _
  $region6: #{fno2d_forward.11} parent=0 // loop_footer
    %s17 = sadd.s32 1, %s13
  $region7: #{fno2d_forward.11} parent=0 // loop_footer_branch
    %12 = sbr.rel target = $region3
  $region8: #{fno2d_forward.11} parent=0 // loop_exit
    _

// kernel: fno2d_forward.10
$region0: #{fno2d_forward.10}
  #allocation0 [shape = 'u32[]', space=smem, size = 0x4, offset = 0x4, fixed_abs, tag = 'smem constant byte address 0x4 - core index']
  #allocation1 [shape = 'u32[72,128]{1,0:T(1,128)}', space=vmem, size = 0x9000, scoped, tag = 'internal scratch']
  %s0 = inlined_call_operand.vmem [shape: f32[2,32,256], index: 0, kind: input, shape index: {}, may-alias: {0,9}]
  %s1 = inlined_call_operand.vmem [shape: f32[256,128], index: 1, kind: input, shape index: {}]
  %s2 = inlined_call_operand.vmem [shape: f32[256,128], index: 2, kind: input, shape index: {}]
  %s3 = inlined_call_operand.hbm [shape: f32[32,32,128], index: 3, kind: input, shape index: {}]
  %s4 = inlined_call_operand.hbm [shape: f32[32,32,128], index: 4, kind: input, shape index: {}]
  %s5 = inlined_call_operand.vmem [shape: f32[128,256], index: 5, kind: input, shape index: {}]
  %s6 = inlined_call_operand.hbm [shape: f32[128,256], index: 6, kind: input, shape index: {}]
  %s7 = inlined_call_operand.vmem [shape: f32[32,32], index: 7, kind: input, shape index: {}]
  %s8 = inlined_call_operand.vmem [shape: f32[32,1], index: 8, kind: input, shape index: {}]
  %s9 = inlined_call_operand.vmem [shape: f32[2,32,256], index: 9, kind: output, shape index: {}, may-alias: {0,9}]
  %s10 = sld [smem:[#allocation0]]
  $region81: #{fno2d_forward.10} parent=0
    _
  %s12 = ssub.s32 1, %s10
  %s13 = scalar_select 0, %s12, %s10
  $region1: #{fno2d_forward.10} parent=0
    #allocation2 [shape = 'u8[524288]{0}', space=vmem, size = 0x80000, scoped, tag = 'input window, operand 3, single buffered']
    #allocation3 [shape = 's32[2]{0}', space=sflag, size = 0x8, scoped, tag = 'scoped memory for fno2d_forward.10']
    #allocation4 [shape = 'u8[524288]{0}', space=vmem, size = 0x80000, scoped, tag = 'input window, operand 4, single buffered']
    #allocation5 [shape = 's32[1]{0}', space=sflag, size = 0x4, scoped, tag = 'scoped memory for fno2d_forward.10']
    #allocation6 [shape = 'u8[131072]{0}', space=vmem, size = 0x20000, scoped, tag = 'input window, operand 6, single buffered']
    %14 = vsyncpa [#allocation3], 0
    %15 = vsyncpa [#allocation5], 0
    loop: start=0, step=1, limit=4
    $region2: #{fno2d_forward.10} parent=1 // loop_pre_header
      _
    $region3: #{fno2d_forward.10} parent=1 // loop_header
      %s17 = sphi 0, %s21
      %p18 = scmp.ge.s32.totalorder %s17, 4
      %s27 = sphi 0, %s29
      %s30 = sphi 0, %s27
      %s31 = sphi 0, %s30
      %s47 = sphi 0, %s31
      %s51 = sphi 0, %s51
      %s53 = sphi 0, %s51
      %s54 = sphi 0, %s53
      %s68 = sphi 0, %s54
      %s72 = sphi 0, %s72
      %s74 = sphi 0, %s72
      %s75 = sphi 0, %s74
      %s89 = sphi 0, %s75
      %s93 = sphi 0, %s93
      %s95 = sphi 0, %s93
      %s96 = sphi 0, %s95
      %s110 = sphi 0, %s96
      %s114 = sphi 0, %s114
      %s116 = sphi 0, %s114
      %s117 = sphi 0, %s116
      %s131 = sphi 0, %s117
      %s135 = sphi 0, %s135
      %s137 = sphi 0, %s135
      %s138 = sphi 0, %s137
      %s152 = sphi 0, %s138
      %s156 = sphi 0, %s156
      %s158 = sphi 0, %s156
      %s159 = sphi 0, %s158
      %s173 = sphi 0, %s159
      %s177 = sphi 0, %s177
      %s179 = sphi 0, %s177
      %s180 = sphi 0, %s179
      %s194 = sphi 0, %s180
      %s198 = sphi 0, %s198
      %s200 = sphi 0, %s198
      %s201 = sphi 0, %s200
      %s215 = sphi 0, %s201
      %s221 = sphi 0, %s223
      %s224 = sphi 0, %s221
      %s225 = sphi 0, %s224
      %s241 = sphi 0, %s225
    $region4: #{fno2d_forward.10} parent=1 // loop_header_branch
      %20 = sbr.rel (%p18) target = $region8
    $region5: #{fno2d_forward.10} parent=1 // loop_body
      %s22 = ssub.s32 %s17, 1
      %s23 = ssub.s32 %s17, 2
      %s24 = sadd.s32 %s17, 1
      %s25 = ssub.s32 %s17, %s24
      %p26 = scmp.eq.s32.totalorder %s25, 0
      %s28 = sadd.s32 %s27, 1
      %s29 = scalar_select %p26, %s27, %s28
      %p32 = pneg %p26
      %p33 = scmp.eq.s32.totalorder %s17, 1
      %p34 = por %p32, %p33
      %p35 = scmp.ne.s32.totalorder %s27, %s30
      %p36 = scmp.eq.s32.totalorder %s17, 0
      %p37 = por %p35, %p36
      %p38 = scmp.ne.s32.totalorder %s27, %s30
      %p39 = scmp.eq.s32.totalorder %s22, 1
      %p40 = por %p38, %p39
      %p41 = scmp.ne.s32.totalorder %s30, %s31
      %p42 = scmp.eq.s32.totalorder %s22, 0
      %p43 = por %p41, %p42
      %p44 = scmp.ne.s32.totalorder %s30, %s31
      %p45 = scmp.eq.s32.totalorder %s23, 1
      %p46 = por %p44, %p45
      %p48 = scmp.ne.s32.totalorder %s31, %s47
      %p49 = scmp.eq.s32.totalorder %s23, 0
      %p50 = por %p48, %p49
      %s52 = sadd.s32 %s51, 1
      %p55 = scmp.eq.s32.totalorder %s17, 1
      %p56 = scmp.ne.s32.totalorder %s51, %s53
      %p57 = scmp.eq.s32.totalorder %s17, 0
      %p58 = por %p56, %p57
      %p59 = scmp.ne.s32.totalorder %s51, %s53
      %p60 = scmp.eq.s32.totalorder %s22, 1
      %p61 = por %p59, %p60
      %p62 = scmp.ne.s32.totalorder %s53, %s54
      %p63 = scmp.eq.s32.totalorder %s22, 0
      %p64 = por %p62, %p63
      %p65 = scmp.ne.s32.totalorder %s53, %s54
      %p66 = scmp.eq.s32.totalorder %s23, 1
      %p67 = por %p65, %p66
      %p69 = scmp.ne.s32.totalorder %s54, %s68
      %p70 = scmp.eq.s32.totalorder %s23, 0
      %p71 = por %p69, %p70
      %s73 = sadd.s32 %s72, 1
      %p76 = scmp.eq.s32.totalorder %s17, 1
      %p77 = scmp.ne.s32.totalorder %s72, %s74
      %p78 = scmp.eq.s32.totalorder %s17, 0
      %p79 = por %p77, %p78
      %p80 = scmp.ne.s32.totalorder %s72, %s74
      %p81 = scmp.eq.s32.totalorder %s22, 1
      %p82 = por %p80, %p81
      %p83 = scmp.ne.s32.totalorder %s74, %s75
      %p84 = scmp.eq.s32.totalorder %s22, 0
      %p85 = por %p83, %p84
      %p86 = scmp.ne.s32.totalorder %s74, %s75
      %p87 = scmp.eq.s32.totalorder %s23, 1
      %p88 = por %p86, %p87
      %p90 = scmp.ne.s32.totalorder %s75, %s89
      %p91 = scmp.eq.s32.totalorder %s23, 0
      %p92 = por %p90, %p91
      %s94 = sadd.s32 %s93, 1
      %p97 = scmp.eq.s32.totalorder %s17, 1
      %p98 = scmp.ne.s32.totalorder %s93, %s95
      %p99 = scmp.eq.s32.totalorder %s17, 0
      %p100 = por %p98, %p99
      %p101 = scmp.ne.s32.totalorder %s93, %s95
      %p102 = scmp.eq.s32.totalorder %s22, 1
      %p103 = por %p101, %p102
      %p104 = scmp.ne.s32.totalorder %s95, %s96
      %p105 = scmp.eq.s32.totalorder %s22, 0
      %p106 = por %p104, %p105
      %p107 = scmp.ne.s32.totalorder %s95, %s96
      %p108 = scmp.eq.s32.totalorder %s23, 1
      %p109 = por %p107, %p108
      %p111 = scmp.ne.s32.totalorder %s96, %s110
      %p112 = scmp.eq.s32.totalorder %s23, 0
      %p113 = por %p111, %p112
      %s115 = sadd.s32 %s114, 1
      %p118 = scmp.eq.s32.totalorder %s17, 1
      %p119 = scmp.ne.s32.totalorder %s114, %s116
      %p120 = scmp.eq.s32.totalorder %s17, 0
      %p121 = por %p119, %p120
      %p122 = scmp.ne.s32.totalorder %s114, %s116
      %p123 = scmp.eq.s32.totalorder %s22, 1
      %p124 = por %p122, %p123
      %p125 = scmp.ne.s32.totalorder %s116, %s117
      %p126 = scmp.eq.s32.totalorder %s22, 0
      %p127 = por %p125, %p126
      %p128 = scmp.ne.s32.totalorder %s116, %s117
      %p129 = scmp.eq.s32.totalorder %s23, 1
      %p130 = por %p128, %p129
      %p132 = scmp.ne.s32.totalorder %s117, %s131
      %p133 = scmp.eq.s32.totalorder %s23, 0
      %p134 = por %p132, %p133
      %s136 = sadd.s32 %s135, 1
      %p139 = scmp.eq.s32.totalorder %s17, 1
      %p140 = scmp.ne.s32.totalorder %s135, %s137
      %p141 = scmp.eq.s32.totalorder %s17, 0
      %p142 = por %p140, %p141
      %p143 = scmp.ne.s32.totalorder %s135, %s137
      %p144 = scmp.eq.s32.totalorder %s22, 1
      %p145 = por %p143, %p144
      %p146 = scmp.ne.s32.totalorder %s137, %s138
      %p147 = scmp.eq.s32.totalorder %s22, 0
      %p148 = por %p146, %p147
      %p149 = scmp.ne.s32.totalorder %s137, %s138
      %p150 = scmp.eq.s32.totalorder %s23, 1
      %p151 = por %p149, %p150
      %p153 = scmp.ne.s32.totalorder %s138, %s152
      %p154 = scmp.eq.s32.totalorder %s23, 0
      %p155 = por %p153, %p154
      %s157 = sadd.s32 %s156, 1
      %p160 = scmp.eq.s32.totalorder %s17, 1
      %p161 = scmp.ne.s32.totalorder %s156, %s158
      %p162 = scmp.eq.s32.totalorder %s17, 0
      %p163 = por %p161, %p162
      %p164 = scmp.ne.s32.totalorder %s156, %s158
      %p165 = scmp.eq.s32.totalorder %s22, 1
      %p166 = por %p164, %p165
      %p167 = scmp.ne.s32.totalorder %s158, %s159
      %p168 = scmp.eq.s32.totalorder %s22, 0
      %p169 = por %p167, %p168
      %p170 = scmp.ne.s32.totalorder %s158, %s159
      %p171 = scmp.eq.s32.totalorder %s23, 1
      %p172 = por %p170, %p171
      %p174 = scmp.ne.s32.totalorder %s159, %s173
      %p175 = scmp.eq.s32.totalorder %s23, 0
      %p176 = por %p174, %p175
      %s178 = sadd.s32 %s177, 1
      %p181 = scmp.eq.s32.totalorder %s17, 1
      %p182 = scmp.ne.s32.totalorder %s177, %s179
      %p183 = scmp.eq.s32.totalorder %s17, 0
      %p184 = por %p182, %p183
      %p185 = scmp.ne.s32.totalorder %s177, %s179
      %p186 = scmp.eq.s32.totalorder %s22, 1
      %p187 = por %p185, %p186
      %p188 = scmp.ne.s32.totalorder %s179, %s180
      %p189 = scmp.eq.s32.totalorder %s22, 0
      %p190 = por %p188, %p189
      %p191 = scmp.ne.s32.totalorder %s179, %s180
      %p192 = scmp.eq.s32.totalorder %s23, 1
      %p193 = por %p191, %p192
      %p195 = scmp.ne.s32.totalorder %s180, %s194
      %p196 = scmp.eq.s32.totalorder %s23, 0
      %p197 = por %p195, %p196
      %s199 = sadd.s32 %s198, 1
      %p202 = scmp.eq.s32.totalorder %s17, 1
      %p203 = scmp.ne.s32.totalorder %s198, %s200
      %p204 = scmp.eq.s32.totalorder %s17, 0
      %p205 = por %p203, %p204
      %p206 = scmp.ne.s32.totalorder %s198, %s200
      %p207 = scmp.eq.s32.totalorder %s22, 1
      %p208 = por %p206, %p207
      %p209 = scmp.ne.s32.totalorder %s200, %s201
      %p210 = scmp.eq.s32.totalorder %s22, 0
      %p211 = por %p209, %p210
      %p212 = scmp.ne.s32.totalorder %s200, %s201
      %p213 = scmp.eq.s32.totalorder %s23, 1
      %p214 = por %p212, %p213
      %p216 = scmp.ne.s32.totalorder %s201, %s215
      %p217 = scmp.eq.s32.totalorder %s23, 0
      %p218 = por %p216, %p217
      %s219 = ssub.s32 %s17, %s24
      %p220 = scmp.eq.s32.totalorder %s219, 0
      %s222 = sadd.s32 %s221, 1
      %s223 = scalar_select %p220, %s221, %s222
      %p226 = pneg %p220
      %p227 = scmp.eq.s32.totalorder %s17, 1
      %p228 = por %p226, %p227
      %p229 = scmp.ne.s32.totalorder %s221, %s224
      %p230 = scmp.eq.s32.totalorder %s17, 0
      %p231 = por %p229, %p230
      %p232 = scmp.ne.s32.totalorder %s221, %s224
      %p233 = scmp.eq.s32.totalorder %s22, 1
      %p234 = por %p232, %p233
      %p235 = scmp.ne.s32.totalorder %s224, %s225
      %p236 = scmp.eq.s32.totalorder %s22, 0
      %p237 = por %p235, %p236
      %p238 = scmp.ne.s32.totalorder %s224, %s225
      %p239 = scmp.eq.s32.totalorder %s23, 1
      %p240 = por %p238, %p239
      %p242 = scmp.ne.s32.totalorder %s225, %s241
      %p243 = scmp.eq.s32.totalorder %s23, 0
      %p244 = por %p242, %p243
      %p245 = scmp.le.s32.totalorder 1, %s17
      %p246 = scmp.lt.s32.totalorder %s17, 3
      %p247 = pnand %p245, %p246
      %p248 = pneg %p247
      // Predicated region
      $region9: #{fno2d_forward.10} parent=5 // pred_check
        _
      $region10: #{fno2d_forward.10} parent=5 // pred_check_branch
        %250 = sbr.rel (%p247) target = $region12
      $region11: #{fno2d_forward.10} parent=5 // pred_region
        %s251 = ssub.s32 %s17, 1
        // Predicated region
        $region13: #{fno2d_forward.10} parent=11 // pred_check
          %p252 = pneg %p64
        $region14: #{fno2d_forward.10} parent=11 // pred_check_branch
          %254 = sbr.rel (%p252) target = $region16
        $region15: #{fno2d_forward.10} parent=11 // pred_region
          _
        $region16: #{fno2d_forward.10} parent=11 // pred_fallthru
          _
        // Predicated region
        $region17: #{fno2d_forward.10} parent=11 // pred_check
          %p255 = pneg %p85
        $region18: #{fno2d_forward.10} parent=11 // pred_check_branch
          %257 = sbr.rel (%p255) target = $region20
        $region19: #{fno2d_forward.10} parent=11 // pred_region
          _
        $region20: #{fno2d_forward.10} parent=11 // pred_fallthru
          _
        // Predicated region
        $region21: #{fno2d_forward.10} parent=11 // pred_check
          %p258 = pneg %p106
        $region22: #{fno2d_forward.10} parent=11 // pred_check_branch
          %260 = sbr.rel (%p258) target = $region24
        $region23: #{fno2d_forward.10} parent=11 // pred_region
          %262 = vsyncadd [#allocation3], 0
          %s263 = sshll.u32 %s3, 4
          %s264 = int_to_ptr.hbm [resolvable:$true] %s263
          %s265 = sshll.u32 [#allocation2], 4
          %s266 = int_to_ptr.vmem [resolvable:$true] %s265
          %271 = dma.hbm_to_vmem [thread:$0]  %s264, 16384, %s266, [#allocation3], 128, 128, 8
        $region24: #{fno2d_forward.10} parent=11 // pred_fallthru
          _
        // Predicated region
        $region25: #{fno2d_forward.10} parent=11 // pred_check
          %p272 = pneg %p127
        $region26: #{fno2d_forward.10} parent=11 // pred_check_branch
          %274 = sbr.rel (%p272) target = $region28
        $region27: #{fno2d_forward.10} parent=11 // pred_region
          %276 = vsyncadd [#allocation5], 0
          %s277 = sshll.u32 %s4, 4
          %s278 = int_to_ptr.hbm [resolvable:$true] %s277
          %s279 = sshll.u32 [#allocation4], 4
          %s280 = int_to_ptr.vmem [resolvable:$true] %s279
          %285 = dma.hbm_to_vmem [thread:$0]  %s278, 16384, %s280, [#allocation5], 128, 128, 8
        $region28: #{fno2d_forward.10} parent=11 // pred_fallthru
          _
        // Predicated region
        $region29: #{fno2d_forward.10} parent=11 // pred_check
          %p286 = pneg %p148
        $region30: #{fno2d_forward.10} parent=11 // pred_check_branch
          %288 = sbr.rel (%p286) target = $region32
        $region31: #{fno2d_forward.10} parent=11 // pred_region
          _
        $region32: #{fno2d_forward.10} parent=11 // pred_fallthru
          _
        // Predicated region
        $region33: #{fno2d_forward.10} parent=11 // pred_check
          %p289 = pneg %p169
        $region34: #{fno2d_forward.10} parent=11 // pred_check_branch
          %291 = sbr.rel (%p289) target = $region36
        $region35: #{fno2d_forward.10} parent=11 // pred_region
          %293 = vsyncadd [#allocation5], 0
          %s294 = sshll.u32 %s6, 4
          %s295 = int_to_ptr.hbm [resolvable:$true] %s294
          %s296 = sshll.u32 [#allocation6], 4
          %s297 = int_to_ptr.vmem [resolvable:$true] %s296
          %302 = dma.hbm_to_vmem [thread:$0]  %s295, 4096, %s297, [#allocation5], 256, 256, 16
        $region36: #{fno2d_forward.10} parent=11 // pred_fallthru
          _
        // Predicated region
        $region37: #{fno2d_forward.10} parent=11 // pred_check
          %p303 = pneg %p190
        $region38: #{fno2d_forward.10} parent=11 // pred_check_branch
          %305 = sbr.rel (%p303) target = $region40
        $region39: #{fno2d_forward.10} parent=11 // pred_region
          _
        $region40: #{fno2d_forward.10} parent=11 // pred_fallthru
          _
        // Predicated region
        $region41: #{fno2d_forward.10} parent=11 // pred_check
          %p306 = pneg %p211
        $region42: #{fno2d_forward.10} parent=11 // pred_check_branch
          %308 = sbr.rel (%p306) target = $region44
        $region43: #{fno2d_forward.10} parent=11 // pred_region
          _
        $region44: #{fno2d_forward.10} parent=11 // pred_fallthru
          _
      $region12: #{fno2d_forward.10} parent=5 // pred_fallthru
        _
      %p309 = scmp.lt.s32.totalorder %s17, 2
      // Predicated region
      $region45: #{fno2d_forward.10} parent=5 // pred_check
        %p310 = pneg %p309
      $region46: #{fno2d_forward.10} parent=5 // pred_check_branch
        %312 = sbr.rel (%p310) target = $region48
      $region47: #{fno2d_forward.10} parent=5 // pred_region
        // Predicated region
        $region49: #{fno2d_forward.10} parent=47 // pred_check
          %p313 = pneg %p37
        $region50: #{fno2d_forward.10} parent=47 // pred_check_branch
          %315 = sbr.rel (%p313) target = $region52
        $region51: #{fno2d_forward.10} parent=47 // pred_region
          %p316 = scmp.lt.s32.totalorder %s17, 1
          %s317 = scalar_select %p316, %s17, 1
          %s318 = smul.addr %s317, 8
          %s319 = smul.addr %s318, 8
          %s320 = scalar_lea.vmem %s0, %s319
        $region52: #{fno2d_forward.10} parent=47 // pred_fallthru
          _
      $region48: #{fno2d_forward.10} parent=5 // pred_fallthru
        _
      %p321 = scmp.le.s32.totalorder 1, %s17
      %p322 = scmp.lt.s32.totalorder %s17, 3
      %p323 = pnand %p321, %p322
      %p324 = pneg %p323
      // Predicated region
      $region53: #{fno2d_forward.10} parent=5 // pred_check
        _
      $region54: #{fno2d_forward.10} parent=5 // pred_check_branch
        %326 = sbr.rel (%p323) target = $region56
      $region55: #{fno2d_forward.10} parent=5 // pred_region
        %s327 = ssub.s32 %s17, 1
        // Predicated region
        $region57: #{fno2d_forward.10} parent=55 // pred_check
          %p328 = pneg %p106
        $region58: #{fno2d_forward.10} parent=55 // pred_check_branch
          %330 = sbr.rel (%p328) target = $region60
        $region59: #{fno2d_forward.10} parent=55 // pred_region
          %332 = dma.done [#allocation3], 16384
        $region60: #{fno2d_forward.10} parent=55 // pred_fallthru
          _
        // Predicated region
        $region61: #{fno2d_forward.10} parent=55 // pred_check
          %p333 = pneg %p127
        $region62: #{fno2d_forward.10} parent=55 // pred_check_branch
          %335 = sbr.rel (%p333) target = $region64
        $region63: #{fno2d_forward.10} parent=55 // pred_region
          %337 = dma.done [#allocation5], 16384
        $region64: #{fno2d_forward.10} parent=55 // pred_fallthru
          _
        // Predicated region
        $region65: #{fno2d_forward.10} parent=55 // pred_check
          %p338 = pneg %p169
        $region66: #{fno2d_forward.10} parent=55 // pred_check_branch
          %340 = sbr.rel (%p338) target = $region68
        $region67: #{fno2d_forward.10} parent=55 // pred_region
          %342 = dma.done [#allocation5], 4096
        $region68: #{fno2d_forward.10} parent=55 // pred_fallthru
          _
        %p343 = scmp.lt.s32.totalorder %s22, 1
        %s344 = scalar_select %p343, %s22, 1
        %s345 = smul.addr %s344, 8
        %s346 = smul.addr %s345, 8
        %s347 = scalar_lea.vmem %s0, %s346
        %p348 = pneg %p43
        %p349 = pneg %p40
        %p350 = pneg %p64
        %p351 = pneg %p61
        %p352 = pneg %p85
        %p353 = pneg %p82
        %p354 = pneg %p106
        %p355 = pneg %p103
        %p356 = pneg %p127
        %p357 = pneg %p124
        %p358 = pneg %p148
        %p359 = pneg %p145
        %p360 = pneg %p169
        %p361 = pneg %p166
        %p362 = pneg %p190
        %p363 = pneg %p187
        %p364 = pneg %p211
        %p365 = pneg %p208
        %p366 = pneg %p237
        %p367 = pneg %p234
        %p368 = scmp.lt.s32.totalorder %s22, 1
        %s369 = scalar_select %p368, %s22, 1
        %s370 = smul.addr %s369, 8
        %s371 = smul.addr %s370, 8
        %s372 = scalar_lea.vmem %s9, %s371
        %p373 = scmp.lt.s32.totalorder %s22, 1
        %s374 = scalar_select %p373, %s22, 1
        %s375 = smul.addr %s374, 8
        %s376 = smul.addr %s375, 8
        %s377 = scalar_lea.vmem %s0, %s376
        %p378 = scmp.lt.s32.totalorder %s22, 1
        %s379 = scalar_select %p378, %s22, 1
        %s380 = smul.addr %s379, 8
        %s381 = smul.addr %s380, 8
        %s382 = scalar_lea.vmem %s9, %s381
        %v383 = vld [vmem:[%s377] sm:$0xff]
        %v384 = vld [vmem:[%s377 + $0x8] sm:$0xff]
        %v385 = vld [vmem:[%s377 + $0x10] sm:$0xff]
        %v386 = vld [vmem:[%s377 + $0x18] sm:$0xff]
        %v387 = vld [vmem:[%s377 + $0x20] sm:$0xff]
        %v388 = vld [vmem:[%s377 + $0x28] sm:$0xff]
        %v389 = vld [vmem:[%s377 + $0x30] sm:$0xff]
        %v390 = vld [vmem:[%s377 + $0x38] sm:$0xff]
        %v391 = vld [vmem:[%s1] sm:$0xff]
        %v392 = vld [vmem:[%s1 + $0x8] sm:$0xff]
        %v393 = vld [vmem:[%s1 + $0x10] sm:$0xff]
        %v394 = vld [vmem:[%s1 + $0x18] sm:$0xff]
        %v395 = vld [vmem:[%s1 + $0x20] sm:$0xff]
        %v396 = vld [vmem:[%s1 + $0x28] sm:$0xff]
        %v397 = vld [vmem:[%s1 + $0x30] sm:$0xff]
        %v398 = vld [vmem:[%s1 + $0x38] sm:$0xff]
        %v399 = vld [vmem:[%s1 + $0x40] sm:$0xff]
        %v400 = vld [vmem:[%s1 + $0x48] sm:$0xff]
        %v401 = vld [vmem:[%s1 + $0x50] sm:$0xff]
        %v402 = vld [vmem:[%s1 + $0x58] sm:$0xff]
        %v403 = vld [vmem:[%s1 + $0x60] sm:$0xff]
        %v404 = vld [vmem:[%s1 + $0x68] sm:$0xff]
        %v405 = vld [vmem:[%s1 + $0x70] sm:$0xff]
        %v406 = vld [vmem:[%s1 + $0x78] sm:$0xff]
        %v407 = vld [vmem:[%s1 + $0x80] sm:$0xff]
        %v408 = vld [vmem:[%s1 + $0x88] sm:$0xff]
        %v409 = vld [vmem:[%s1 + $0x90] sm:$0xff]
        %v410 = vld [vmem:[%s1 + $0x98] sm:$0xff]
        %v411 = vld [vmem:[%s1 + $0xa0] sm:$0xff]
        %v412 = vld [vmem:[%s1 + $0xa8] sm:$0xff]
        %v413 = vld [vmem:[%s1 + $0xb0] sm:$0xff]
        %v414 = vld [vmem:[%s1 + $0xb8] sm:$0xff]
        %v415 = vld [vmem:[%s1 + $0xc0] sm:$0xff]
        %v416 = vld [vmem:[%s1 + $0xc8] sm:$0xff]
        %v417 = vld [vmem:[%s1 + $0xd0] sm:$0xff]
        %v418 = vld [vmem:[%s1 + $0xd8] sm:$0xff]
        %v419 = vld [vmem:[%s1 + $0xe0] sm:$0xff]
        %v420 = vld [vmem:[%s1 + $0xe8] sm:$0xff]
        %v421 = vld [vmem:[%s1 + $0xf0] sm:$0xff]
        %v422 = vld [vmem:[%s1 + $0xf8] sm:$0xff]
        %423 = vmatpush.msra.mxu0 %v406
        %424 = vmatpush.msra.mxu0 %v405
        %425 = vmatpush.msra.mxu0 %v404
        %426 = vmatpush.msra.mxu0 %v403
        %427 = vmatpush.msra.mxu0 %v402
        %428 = vmatpush.msra.mxu0 %v401
        %429 = vmatpush.msra.mxu0 %v400
        %430 = vmatpush.msra.mxu0 %v399
        %431 = vmatpush.msra.mxu0 %v398
        %432 = vmatpush.msra.mxu0 %v397
        %433 = vmatpush.msra.mxu0 %v396
        %434 = vmatpush.msra.mxu0 %v395
        %435 = vmatpush.msra.mxu0 %v394
        %436 = vmatpush.msra.mxu0 %v393
        %437 = vmatpush.msra.mxu0 %v392
        %438 = vmatpush.msra.mxu0 %v391
        %439 = vmatmul.f32.gmra.mxu0 %v383
        %v440 = vpop.f32.mrf.mxu0
        %v441 = vadd.f32 0.0, %v440
        %442 = vmatmul.f32.gmra.mxu0 %v385
        %v443 = vpop.f32.mrf.mxu0
        %v444 = vadd.f32 0.0, %v443
        %445 = vmatmul.f32.gmra.mxu0 %v387
        %v446 = vpop.f32.mrf.mxu0
        %v447 = vadd.f32 0.0, %v446
        %448 = vmatmul.f32.gmra.mxu0 %v389
        %v449 = vpop.f32.mrf.mxu0
        %v450 = vadd.f32 0.0, %v449
        %451 = vdwg.mxu0
        %452 = vmatpush.msra.mxu0 %v422
        %453 = vmatpush.msra.mxu0 %v421
        %454 = vmatpush.msra.mxu0 %v420
        %455 = vmatpush.msra.mxu0 %v419
        %456 = vmatpush.msra.mxu0 %v418
        %457 = vmatpush.msra.mxu0 %v417
        %458 = vmatpush.msra.mxu0 %v416
        %459 = vmatpush.msra.mxu0 %v415
        %460 = vmatpush.msra.mxu0 %v414
        %461 = vmatpush.msra.mxu0 %v413
        %462 = vmatpush.msra.mxu0 %v412
        %463 = vmatpush.msra.mxu0 %v411
        %464 = vmatpush.msra.mxu0 %v410
        %465 = vmatpush.msra.mxu0 %v409
        %466 = vmatpush.msra.mxu0 %v408
        %467 = vmatpush.msra.mxu0 %v407
        %468 = vmatmul.f32.gmra.mxu0 %v384
        %v469 = vpop.f32.mrf.mxu0
        %v470 = vadd.f32 %v441, %v469
        %471 = vmatmul.f32.gmra.mxu0 %v386
        %v472 = vpop.f32.mrf.mxu0
        %v473 = vadd.f32 %v444, %v472
        %474 = vmatmul.f32.gmra.mxu0 %v388
        %v475 = vpop.f32.mrf.mxu0
        %v476 = vadd.f32 %v447, %v475
        %477 = vmatmul.f32.gmra.mxu0 %v390
        %v478 = vpop.f32.mrf.mxu0
        %v479 = vadd.f32 %v450, %v478
        %480 = vdwg.mxu0
        %v481 = vld [vmem:[%s2] sm:$0xff]
        %v482 = vld [vmem:[%s2 + $0x8] sm:$0xff]
        %v483 = vld [vmem:[%s2 + $0x10] sm:$0xff]
        %v484 = vld [vmem:[%s2 + $0x18] sm:$0xff]
        %v485 = vld [vmem:[%s2 + $0x20] sm:$0xff]
        %v486 = vld [vmem:[%s2 + $0x28] sm:$0xff]
        %v487 = vld [vmem:[%s2 + $0x30] sm:$0xff]
        %v488 = vld [vmem:[%s2 + $0x38] sm:$0xff]
        %v489 = vld [vmem:[%s2 + $0x40] sm:$0xff]
        %v490 = vld [vmem:[%s2 + $0x48] sm:$0xff]
        %v491 = vld [vmem:[%s2 + $0x50] sm:$0xff]
        %v492 = vld [vmem:[%s2 + $0x58] sm:$0xff]
        %v493 = vld [vmem:[%s2 + $0x60] sm:$0xff]
        %v494 = vld [vmem:[%s2 + $0x68] sm:$0xff]
        %v495 = vld [vmem:[%s2 + $0x70] sm:$0xff]
        %v496 = vld [vmem:[%s2 + $0x78] sm:$0xff]
        %v497 = vld [vmem:[%s2 + $0x80] sm:$0xff]
        %v498 = vld [vmem:[%s2 + $0x88] sm:$0xff]
        %v499 = vld [vmem:[%s2 + $0x90] sm:$0xff]
        %v500 = vld [vmem:[%s2 + $0x98] sm:$0xff]
        %v501 = vld [vmem:[%s2 + $0xa0] sm:$0xff]
        %v502 = vld [vmem:[%s2 + $0xa8] sm:$0xff]
        %v503 = vld [vmem:[%s2 + $0xb0] sm:$0xff]
        %v504 = vld [vmem:[%s2 + $0xb8] sm:$0xff]
        %v505 = vld [vmem:[%s2 + $0xc0] sm:$0xff]
        %v506 = vld [vmem:[%s2 + $0xc8] sm:$0xff]
        %v507 = vld [vmem:[%s2 + $0xd0] sm:$0xff]
        %v508 = vld [vmem:[%s2 + $0xd8] sm:$0xff]
        %v509 = vld [vmem:[%s2 + $0xe0] sm:$0xff]
        %v510 = vld [vmem:[%s2 + $0xe8] sm:$0xff]
        %v511 = vld [vmem:[%s2 + $0xf0] sm:$0xff]
        %v512 = vld [vmem:[%s2 + $0xf8] sm:$0xff]
        %513 = vmatpush.msra.mxu0 %v496
        %514 = vmatpush.msra.mxu0 %v495
        %515 = vmatpush.msra.mxu0 %v494
        %516 = vmatpush.msra.mxu0 %v493
        %517 = vmatpush.msra.mxu0 %v492
        %518 = vmatpush.msra.mxu0 %v491
        %519 = vmatpush.msra.mxu0 %v490
        %520 = vmatpush.msra.mxu0 %v489
        %521 = vmatpush.msra.mxu0 %v488
        %522 = vmatpush.msra.mxu0 %v487
        %523 = vmatpush.msra.mxu0 %v486
        %524 = vmatpush.msra.mxu0 %v485
        %525 = vmatpush.msra.mxu0 %v484
        %526 = vmatpush.msra.mxu0 %v483
        %527 = vmatpush.msra.mxu0 %v482
        %528 = vmatpush.msra.mxu0 %v481
        %529 = vmatmul.f32.gmra.mxu0 %v383
        %v530 = vpop.f32.mrf.mxu0
        %v531 = vadd.f32 0.0, %v530
        %532 = vmatmul.f32.gmra.mxu0 %v385
        %v533 = vpop.f32.mrf.mxu0
        %v534 = vadd.f32 0.0, %v533
        %535 = vmatmul.f32.gmra.mxu0 %v387
        %v536 = vpop.f32.mrf.mxu0
        %v537 = vadd.f32 0.0, %v536
        %538 = vmatmul.f32.gmra.mxu0 %v389
        %v539 = vpop.f32.mrf.mxu0
        %v540 = vadd.f32 0.0, %v539
        %541 = vdwg.mxu0
        %542 = vmatpush.msra.mxu0 %v512
        %543 = vmatpush.msra.mxu0 %v511
        %544 = vmatpush.msra.mxu0 %v510
        %545 = vmatpush.msra.mxu0 %v509
        %546 = vmatpush.msra.mxu0 %v508
        %547 = vmatpush.msra.mxu0 %v507
        %548 = vmatpush.msra.mxu0 %v506
        %549 = vmatpush.msra.mxu0 %v505
        %550 = vmatpush.msra.mxu0 %v504
        %551 = vmatpush.msra.mxu0 %v503
        %552 = vmatpush.msra.mxu0 %v502
        %553 = vmatpush.msra.mxu0 %v501
        %554 = vmatpush.msra.mxu0 %v500
        %555 = vmatpush.msra.mxu0 %v499
        %556 = vmatpush.msra.mxu0 %v498
        %557 = vmatpush.msra.mxu0 %v497
        %558 = vmatmul.f32.gmra.mxu0 %v384
        %v559 = vpop.f32.mrf.mxu0
        %v560 = vadd.f32 %v531, %v559
        %561 = vmatmul.f32.gmra.mxu0 %v386
        %v562 = vpop.f32.mrf.mxu0
        %v563 = vadd.f32 %v534, %v562
        %564 = vmatmul.f32.gmra.mxu0 %v388
        %v565 = vpop.f32.mrf.mxu0
        %v566 = vadd.f32 %v537, %v565
        %567 = vmatmul.f32.gmra.mxu0 %v390
        %v568 = vpop.f32.mrf.mxu0
        %v569 = vadd.f32 %v540, %v568
        %570 = vdwg.mxu0
        %v571 = vld [vmem:[#allocation2] sm:$0xff]
        %v572 = vld [vmem:[#allocation2 + $0x8] sm:$0xff]
        %v573 = vld [vmem:[#allocation2 + $0x10] sm:$0xff]
        %v574 = vld [vmem:[#allocation2 + $0x18] sm:$0xff]
        %v575 = vld [vmem:[#allocation2 + $0x20] sm:$0xff]
        %v576 = vld [vmem:[#allocation2 + $0x28] sm:$0xff]
        %v577 = vld [vmem:[#allocation2 + $0x30] sm:$0xff]
        %v578 = vld [vmem:[#allocation2 + $0x38] sm:$0xff]
        %v579 = vld [vmem:[#allocation2 + $0x40] sm:$0xff]
        %v580 = vld [vmem:[#allocation2 + $0x48] sm:$0xff]
        %v581 = vld [vmem:[#allocation2 + $0x50] sm:$0xff]
        %v582 = vld [vmem:[#allocation2 + $0x58] sm:$0xff]
        %v583 = vld [vmem:[#allocation2 + $0x60] sm:$0xff]
        %v584 = vld [vmem:[#allocation2 + $0x68] sm:$0xff]
        %v585 = vld [vmem:[#allocation2 + $0x70] sm:$0xff]
        %v586 = vld [vmem:[#allocation2 + $0x78] sm:$0xff]
        %v587 = vld [vmem:[#allocation2 + $0x80] sm:$0xff]
        %v588 = vld [vmem:[#allocation2 + $0x88] sm:$0xff]
        %v589 = vld [vmem:[#allocation2 + $0x90] sm:$0xff]
        %v590 = vld [vmem:[#allocation2 + $0x98] sm:$0xff]
        %v591 = vld [vmem:[#allocation2 + $0xa0] sm:$0xff]
        %v592 = vld [vmem:[#allocation2 + $0xa8] sm:$0xff]
        %v593 = vld [vmem:[#allocation2 + $0xb0] sm:$0xff]
        %v594 = vld [vmem:[#allocation2 + $0xb8] sm:$0xff]
        %v595 = vld [vmem:[#allocation2 + $0xc0] sm:$0xff]
        %v596 = vld [vmem:[#allocation2 + $0xc8] sm:$0xff]
        %v597 = vld [vmem:[#allocation2 + $0xd0] sm:$0xff]
        %v598 = vld [vmem:[#allocation2 + $0xd8] sm:$0xff]
        %v599 = vld [vmem:[#allocation2 + $0xe0] sm:$0xff]
        %v600 = vld [vmem:[#allocation2 + $0xe8] sm:$0xff]
        %v601 = vld [vmem:[#allocation2 + $0xf0] sm:$0xff]
        %v602 = vld [vmem:[#allocation2 + $0xf8] sm:$0xff]
        %v603 = vld [vmem:[#allocation2 + $0x100] sm:$0xff]
        %v604 = vld [vmem:[#allocation2 + $0x108] sm:$0xff]
        %v605 = vld [vmem:[#allocation2 + $0x110] sm:$0xff]
        %v606 = vld [vmem:[#allocation2 + $0x118] sm:$0xff]
        %v607 = vld [vmem:[#allocation2 + $0x120] sm:$0xff]
        %v608 = vld [vmem:[#allocation2 + $0x128] sm:$0xff]
        %v609 = vld [vmem:[#allocation2 + $0x130] sm:$0xff]
        %v610 = vld [vmem:[#allocation2 + $0x138] sm:$0xff]
        %v611 = vld [vmem:[#allocation2 + $0x140] sm:$0xff]
        %v612 = vld [vmem:[#allocation2 + $0x148] sm:$0xff]
        %v613 = vld [vmem:[#allocation2 + $0x150] sm:$0xff]
        %v614 = vld [vmem:[#allocation2 + $0x158] sm:$0xff]
        %v615 = vld [vmem:[#allocation2 + $0x160] sm:$0xff]
        %v616 = vld [vmem:[#allocation2 + $0x168] sm:$0xff]
        %v617 = vld [vmem:[#allocation2 + $0x170] sm:$0xff]
        %v618 = vld [vmem:[#allocation2 + $0x178] sm:$0xff]
        %v619 = vld [vmem:[#allocation2 + $0x180] sm:$0xff]
        %v620 = vld [vmem:[#allocation2 + $0x188] sm:$0xff]
        %v621 = vld [vmem:[#allocation2 + $0x190] sm:$0xff]
        %v622 = vld [vmem:[#allocation2 + $0x198] sm:$0xff]
        %v623 = vld [vmem:[#allocation2 + $0x1a0] sm:$0xff]
        %v624 = vld [vmem:[#allocation2 + $0x1a8] sm:$0xff]
        %v625 = vld [vmem:[#allocation2 + $0x1b0] sm:$0xff]
        %v626 = vld [vmem:[#allocation2 + $0x1b8] sm:$0xff]
        %v627 = vld [vmem:[#allocation2 + $0x1c0] sm:$0xff]
        %v628 = vld [vmem:[#allocation2 + $0x1c8] sm:$0xff]
        %v629 = vld [vmem:[#allocation2 + $0x1d0] sm:$0xff]
        %v630 = vld [vmem:[#allocation2 + $0x1d8] sm:$0xff]
        %v631 = vld [vmem:[#allocation2 + $0x1e0] sm:$0xff]
        %v632 = vld [vmem:[#allocation2 + $0x1e8] sm:$0xff]
        %v633 = vld [vmem:[#allocation2 + $0x1f0] sm:$0xff]
        %v634 = vld [vmem:[#allocation2 + $0x1f8] sm:$0xff]
        %v635 = vld [vmem:[#allocation2 + $0x200] sm:$0xff]
        %v636 = vld [vmem:[#allocation2 + $0x208] sm:$0xff]
        %v637 = vld [vmem:[#allocation2 + $0x210] sm:$0xff]
        %v638 = vld [vmem:[#allocation2 + $0x218] sm:$0xff]
        %v639 = vld [vmem:[#allocation2 + $0x220] sm:$0xff]
        %v640 = vld [vmem:[#allocation2 + $0x228] sm:$0xff]
        %v641 = vld [vmem:[#allocation2 + $0x230] sm:$0xff]
        %v642 = vld [vmem:[#allocation2 + $0x238] sm:$0xff]
        %v643 = vld [vmem:[#allocation2 + $0x240] sm:$0xff]
        %v644 = vld [vmem:[#allocation2 + $0x248] sm:$0xff]
        %v645 = vld [vmem:[#allocation2 + $0x250] sm:$0xff]
        %v646 = vld [vmem:[#allocation2 + $0x258] sm:$0xff]
        %v647 = vld [vmem:[#allocation2 + $0x260] sm:$0xff]
        %v648 = vld [vmem:[#allocation2 + $0x268] sm:$0xff]
        %v649 = vld [vmem:[#allocation2 + $0x270] sm:$0xff]
        %v650 = vld [vmem:[#allocation2 + $0x278] sm:$0xff]
        %v651 = vld [vmem:[#allocation2 + $0x280] sm:$0xff]
        %v652 = vld [vmem:[#allocation2 + $0x288] sm:$0xff]
        %v653 = vld [vmem:[#allocation2 + $0x290] sm:$0xff]
        %v654 = vld [vmem:[#allocation2 + $0x298] sm:$0xff]
        %v655 = vld [vmem:[#allocation2 + $0x2a0] sm:$0xff]
        %v656 = vld [vmem:[#allocation2 + $0x2a8] sm:$0xff]
        %v657 = vld [vmem:[#allocation2 + $0x2b0] sm:$0xff]
        %v658 = vld [vmem:[#allocation2 + $0x2b8] sm:$0xff]
        %v659 = vld [vmem:[#allocation2 + $0x2c0] sm:$0xff]
        %v660 = vld [vmem:[#allocation2 + $0x2c8] sm:$0xff]
        %v661 = vld [vmem:[#allocation2 + $0x2d0] sm:$0xff]
        %v662 = vld [vmem:[#allocation2 + $0x2d8] sm:$0xff]
        %v663 = vld [vmem:[#allocation2 + $0x2e0] sm:$0xff]
        %v664 = vld [vmem:[#allocation2 + $0x2e8] sm:$0xff]
        %v665 = vld [vmem:[#allocation2 + $0x2f0] sm:$0xff]
        %v666 = vld [vmem:[#allocation2 + $0x2f8] sm:$0xff]
        %v667 = vld [vmem:[#allocation2 + $0x300] sm:$0xff]
        %v668 = vld [vmem:[#allocation2 + $0x308] sm:$0xff]
        %v669 = vld [vmem:[#allocation2 + $0x310] sm:$0xff]
        %v670 = vld [vmem:[#allocation2 + $0x318] sm:$0xff]
        %v671 = vld [vmem:[#allocation2 + $0x320] sm:$0xff]
        %v672 = vld [vmem:[#allocation2 + $0x328] sm:$0xff]
        %v673 = vld [vmem:[#allocation2 + $0x330] sm:$0xff]
        %v674 = vld [vmem:[#allocation2 + $0x338] sm:$0xff]
        %v675 = vld [vmem:[#allocation2 + $0x340] sm:$0xff]
        %v676 = vld [vmem:[#allocation2 + $0x348] sm:$0xff]
        %v677 = vld [vmem:[#allocation2 + $0x350] sm:$0xff]
        %v678 = vld [vmem:[#allocation2 + $0x358] sm:$0xff]
        %v679 = vld [vmem:[#allocation2 + $0x360] sm:$0xff]
        %v680 = vld [vmem:[#allocation2 + $0x368] sm:$0xff]
        %v681 = vld [vmem:[#allocation2 + $0x370] sm:$0xff]
        %v682 = vld [vmem:[#allocation2 + $0x378] sm:$0xff]
        %v683 = vld [vmem:[#allocation2 + $0x380] sm:$0xff]
        %v684 = vld [vmem:[#allocation2 + $0x388] sm:$0xff]
        %v685 = vld [vmem:[#allocation2 + $0x390] sm:$0xff]
        %v686 = vld [vmem:[#allocation2 + $0x398] sm:$0xff]
        %v687 = vld [vmem:[#allocation2 + $0x3a0] sm:$0xff]
        %v688 = vld [vmem:[#allocation2 + $0x3a8] sm:$0xff]
        %v689 = vld [vmem:[#allocation2 + $0x3b0] sm:$0xff]
        %v690 = vld [vmem:[#allocation2 + $0x3b8] sm:$0xff]
        %v691 = vld [vmem:[#allocation2 + $0x3c0] sm:$0xff]
        %v692 = vld [vmem:[#allocation2 + $0x3c8] sm:$0xff]
        %v693 = vld [vmem:[#allocation2 + $0x3d0] sm:$0xff]
        %v694 = vld [vmem:[#allocation2 + $0x3d8] sm:$0xff]
        %v695 = vld [vmem:[#allocation2 + $0x3e0] sm:$0xff]
        %v696 = vld [vmem:[#allocation2 + $0x3e8] sm:$0xff]
        %v697 = vld [vmem:[#allocation2 + $0x3f0] sm:$0xff]
        %v698 = vld [vmem:[#allocation2 + $0x3f8] sm:$0xff]
        %v699 = vld [vmem:[#allocation4] sm:$0xff]
        %v700 = vld [vmem:[#allocation4 + $0x8] sm:$0xff]
        %v701 = vld [vmem:[#allocation4 + $0x10] sm:$0xff]
        %v702 = vld [vmem:[#allocation4 + $0x18] sm:$0xff]
        %v703 = vld [vmem:[#allocation4 + $0x20] sm:$0xff]
        %v704 = vld [vmem:[#allocation4 + $0x28] sm:$0xff]
        %v705 = vld [vmem:[#allocation4 + $0x30] sm:$0xff]
        %v706 = vld [vmem:[#allocation4 + $0x38] sm:$0xff]
        %v707 = vld [vmem:[#allocation4 + $0x40] sm:$0xff]
        %v708 = vld [vmem:[#allocation4 + $0x48] sm:$0xff]
        %v709 = vld [vmem:[#allocation4 + $0x50] sm:$0xff]
        %v710 = vld [vmem:[#allocation4 + $0x58] sm:$0xff]
        %v711 = vld [vmem:[#allocation4 + $0x60] sm:$0xff]
        %v712 = vld [vmem:[#allocation4 + $0x68] sm:$0xff]
        %v713 = vld [vmem:[#allocation4 + $0x70] sm:$0xff]
        %v714 = vld [vmem:[#allocation4 + $0x78] sm:$0xff]
        %v715 = vld [vmem:[#allocation4 + $0x80] sm:$0xff]
        %v716 = vld [vmem:[#allocation4 + $0x88] sm:$0xff]
        %v717 = vld [vmem:[#allocation4 + $0x90] sm:$0xff]
        %v718 = vld [vmem:[#allocation4 + $0x98] sm:$0xff]
        %v719 = vld [vmem:[#allocation4 + $0xa0] sm:$0xff]
        %v720 = vld [vmem:[#allocation4 + $0xa8] sm:$0xff]
        %v721 = vld [vmem:[#allocation4 + $0xb0] sm:$0xff]
        %v722 = vld [vmem:[#allocation4 + $0xb8] sm:$0xff]
        %v723 = vld [vmem:[#allocation4 + $0xc0] sm:$0xff]
        %v724 = vld [vmem:[#allocation4 + $0xc8] sm:$0xff]
        %v725 = vld [vmem:[#allocation4 + $0xd0] sm:$0xff]
        %v726 = vld [vmem:[#allocation4 + $0xd8] sm:$0xff]
        %v727 = vld [vmem:[#allocation4 + $0xe0] sm:$0xff]
        %v728 = vld [vmem:[#allocation4 + $0xe8] sm:$0xff]
        %v729 = vld [vmem:[#allocation4 + $0xf0] sm:$0xff]
        %v730 = vld [vmem:[#allocation4 + $0xf8] sm:$0xff]
        %v731 = vld [vmem:[#allocation4 + $0x100] sm:$0xff]
        %v732 = vld [vmem:[#allocation4 + $0x108] sm:$0xff]
        %v733 = vld [vmem:[#allocation4 + $0x110] sm:$0xff]
        %v734 = vld [vmem:[#allocation4 + $0x118] sm:$0xff]
        %v735 = vld [vmem:[#allocation4 + $0x120] sm:$0xff]
        %v736 = vld [vmem:[#allocation4 + $0x128] sm:$0xff]
        %v737 = vld [vmem:[#allocation4 + $0x130] sm:$0xff]
        %v738 = vld [vmem:[#allocation4 + $0x138] sm:$0xff]
        %v739 = vld [vmem:[#allocation4 + $0x140] sm:$0xff]
        %v740 = vld [vmem:[#allocation4 + $0x148] sm:$0xff]
        %v741 = vld [vmem:[#allocation4 + $0x150] sm:$0xff]
        %v742 = vld [vmem:[#allocation4 + $0x158] sm:$0xff]
        %v743 = vld [vmem:[#allocation4 + $0x160] sm:$0xff]
        %v744 = vld [vmem:[#allocation4 + $0x168] sm:$0xff]
        %v745 = vld [vmem:[#allocation4 + $0x170] sm:$0xff]
        %v746 = vld [vmem:[#allocation4 + $0x178] sm:$0xff]
        %v747 = vld [vmem:[#allocation4 + $0x180] sm:$0xff]
        %v748 = vld [vmem:[#allocation4 + $0x188] sm:$0xff]
        %v749 = vld [vmem:[#allocation4 + $0x190] sm:$0xff]
        %v750 = vld [vmem:[#allocation4 + $0x198] sm:$0xff]
        %v751 = vld [vmem:[#allocation4 + $0x1a0] sm:$0xff]
        %v752 = vld [vmem:[#allocation4 + $0x1a8] sm:$0xff]
        %v753 = vld [vmem:[#allocation4 + $0x1b0] sm:$0xff]
        %v754 = vld [vmem:[#allocation4 + $0x1b8] sm:$0xff]
        %v755 = vld [vmem:[#allocation4 + $0x1c0] sm:$0xff]
        %v756 = vld [vmem:[#allocation4 + $0x1c8] sm:$0xff]
        %v757 = vld [vmem:[#allocation4 + $0x1d0] sm:$0xff]
        %v758 = vld [vmem:[#allocation4 + $0x1d8] sm:$0xff]
        %v759 = vld [vmem:[#allocation4 + $0x1e0] sm:$0xff]
        %v760 = vld [vmem:[#allocation4 + $0x1e8] sm:$0xff]
        %v761 = vld [vmem:[#allocation4 + $0x1f0] sm:$0xff]
        %v762 = vld [vmem:[#allocation4 + $0x1f8] sm:$0xff]
        %v763 = vld [vmem:[#allocation4 + $0x200] sm:$0xff]
        %v764 = vld [vmem:[#allocation4 + $0x208] sm:$0xff]
        %v765 = vld [vmem:[#allocation4 + $0x210] sm:$0xff]
        %v766 = vld [vmem:[#allocation4 + $0x218] sm:$0xff]
        %v767 = vld [vmem:[#allocation4 + $0x220] sm:$0xff]
        %v768 = vld [vmem:[#allocation4 + $0x228] sm:$0xff]
        %v769 = vld [vmem:[#allocation4 + $0x230] sm:$0xff]
        %v770 = vld [vmem:[#allocation4 + $0x238] sm:$0xff]
        %v771 = vld [vmem:[#allocation4 + $0x240] sm:$0xff]
        %v772 = vld [vmem:[#allocation4 + $0x248] sm:$0xff]
        %v773 = vld [vmem:[#allocation4 + $0x250] sm:$0xff]
        %v774 = vld [vmem:[#allocation4 + $0x258] sm:$0xff]
        %v775 = vld [vmem:[#allocation4 + $0x260] sm:$0xff]
        %v776 = vld [vmem:[#allocation4 + $0x268] sm:$0xff]
        %v777 = vld [vmem:[#allocation4 + $0x270] sm:$0xff]
        %v778 = vld [vmem:[#allocation4 + $0x278] sm:$0xff]
        %v779 = vld [vmem:[#allocation4 + $0x280] sm:$0xff]
        %v780 = vld [vmem:[#allocation4 + $0x288] sm:$0xff]
        %v781 = vld [vmem:[#allocation4 + $0x290] sm:$0xff]
        %v782 = vld [vmem:[#allocation4 + $0x298] sm:$0xff]
        %v783 = vld [vmem:[#allocation4 + $0x2a0] sm:$0xff]
        %v784 = vld [vmem:[#allocation4 + $0x2a8] sm:$0xff]
        %v785 = vld [vmem:[#allocation4 + $0x2b0] sm:$0xff]
        %v786 = vld [vmem:[#allocation4 + $0x2b8] sm:$0xff]
        %v787 = vld [vmem:[#allocation4 + $0x2c0] sm:$0xff]
        %v788 = vld [vmem:[#allocation4 + $0x2c8] sm:$0xff]
        %v789 = vld [vmem:[#allocation4 + $0x2d0] sm:$0xff]
        %v790 = vld [vmem:[#allocation4 + $0x2d8] sm:$0xff]
        %v791 = vld [vmem:[#allocation4 + $0x2e0] sm:$0xff]
        %v792 = vld [vmem:[#allocation4 + $0x2e8] sm:$0xff]
        %v793 = vld [vmem:[#allocation4 + $0x2f0] sm:$0xff]
        %v794 = vld [vmem:[#allocation4 + $0x2f8] sm:$0xff]
        %v795 = vld [vmem:[#allocation4 + $0x300] sm:$0xff]
        %v796 = vld [vmem:[#allocation4 + $0x308] sm:$0xff]
        %v797 = vld [vmem:[#allocation4 + $0x310] sm:$0xff]
        %v798 = vld [vmem:[#allocation4 + $0x318] sm:$0xff]
        %v799 = vld [vmem:[#allocation4 + $0x320] sm:$0xff]
        %v800 = vld [vmem:[#allocation4 + $0x328] sm:$0xff]
        %v801 = vld [vmem:[#allocation4 + $0x330] sm:$0xff]
        %v802 = vld [vmem:[#allocation4 + $0x338] sm:$0xff]
        %v803 = vld [vmem:[#allocation4 + $0x340] sm:$0xff]
        %v804 = vld [vmem:[#allocation4 + $0x348] sm:$0xff]
        %v805 = vld [vmem:[#allocation4 + $0x350] sm:$0xff]
        %v806 = vld [vmem:[#allocation4 + $0x358] sm:$0xff]
        %v807 = vld [vmem:[#allocation4 + $0x360] sm:$0xff]
        %v808 = vld [vmem:[#allocation4 + $0x368] sm:$0xff]
        %v809 = vld [vmem:[#allocation4 + $0x370] sm:$0xff]
        %v810 = vld [vmem:[#allocation4 + $0x378] sm:$0xff]
        %v811 = vld [vmem:[#allocation4 + $0x380] sm:$0xff]
        %v812 = vld [vmem:[#allocation4 + $0x388] sm:$0xff]
        %v813 = vld [vmem:[#allocation4 + $0x390] sm:$0xff]
        %v814 = vld [vmem:[#allocation4 + $0x398] sm:$0xff]
        %v815 = vld [vmem:[#allocation4 + $0x3a0] sm:$0xff]
        %v816 = vld [vmem:[#allocation4 + $0x3a8] sm:$0xff]
        %v817 = vld [vmem:[#allocation4 + $0x3b0] sm:$0xff]
        %v818 = vld [vmem:[#allocation4 + $0x3b8] sm:$0xff]
        %v819 = vld [vmem:[#allocation4 + $0x3c0] sm:$0xff]
        %v820 = vld [vmem:[#allocation4 + $0x3c8] sm:$0xff]
        %v821 = vld [vmem:[#allocation4 + $0x3d0] sm:$0xff]
        %v822 = vld [vmem:[#allocation4 + $0x3d8] sm:$0xff]
        %v823 = vld [vmem:[#allocation4 + $0x3e0] sm:$0xff]
        %v824 = vld [vmem:[#allocation4 + $0x3e8] sm:$0xff]
        %v825 = vld [vmem:[#allocation4 + $0x3f0] sm:$0xff]
        %v826 = vld [vmem:[#allocation4 + $0x3f8] sm:$0xff]
        %v831 = vrot.slane %v470, 1
        %v832 = vrot.slane %v470, 2
        %v833 = vrot.slane %v470, 3
        %v834 = vrot.slane %v470, 4
        %v835 = vrot.slane %v470, 5
        %v836 = vrot.slane %v470, 6
        %v837 = vrot.slane %v470, 7
        %v838 = vrot.slane %v473, 1
        %v839 = vrot.slane %v473, 2
        %v840 = vrot.slane %v473, 3
        %v841 = vrot.slane %v473, 4
        %v842 = vrot.slane %v473, 5
        %v843 = vrot.slane %v473, 6
        %v844 = vrot.slane %v473, 7
        %v845 = vrot.slane %v476, 1
        %v846 = vrot.slane %v476, 2
        %v847 = vrot.slane %v476, 3
        %v848 = vrot.slane %v476, 4
        %v849 = vrot.slane %v476, 5
        %v850 = vrot.slane %v476, 6
        %v851 = vrot.slane %v476, 7
        %v852 = vrot.slane %v479, 1
        %v853 = vrot.slane %v479, 2
        %v854 = vrot.slane %v479, 3
        %v855 = vrot.slane %v479, 4
        %v856 = vrot.slane %v479, 5
        %v857 = vrot.slane %v479, 6
        %v858 = vrot.slane %v479, 7
        %v863 = vrot.slane %v560, 1
        %v864 = vrot.slane %v560, 2
        %v865 = vrot.slane %v560, 3
        %v866 = vrot.slane %v560, 4
        %v867 = vrot.slane %v560, 5
        %v868 = vrot.slane %v560, 6
        %v869 = vrot.slane %v560, 7
        %v870 = vrot.slane %v563, 1
        %v871 = vrot.slane %v563, 2
        %v872 = vrot.slane %v563, 3
        %v873 = vrot.slane %v563, 4
        %v874 = vrot.slane %v563, 5
        %v875 = vrot.slane %v563, 6
        %v876 = vrot.slane %v563, 7
        %v877 = vrot.slane %v566, 1
        %v878 = vrot.slane %v566, 2
        %v879 = vrot.slane %v566, 3
        %v880 = vrot.slane %v566, 4
        %v881 = vrot.slane %v566, 5
        %v882 = vrot.slane %v566, 6
        %v883 = vrot.slane %v566, 7
        %v884 = vrot.slane %v569, 1
        %v885 = vrot.slane %v569, 2
        %v886 = vrot.slane %v569, 3
        %v887 = vrot.slane %v569, 4
        %v888 = vrot.slane %v569, 5
        %v889 = vrot.slane %v569, 6
        %v890 = vrot.slane %v569, 7
        %v891 = vperm.slane %v470, 0
        %v892 = vperm.slane %v831, 0
        %v893 = vperm.slane %v832, 0
        %v894 = vperm.slane %v833, 0
        %v895 = vperm.slane %v834, 0
        %v896 = vperm.slane %v835, 0
        %v897 = vperm.slane %v836, 0
        %v898 = vperm.slane %v837, 0
        %v899 = vperm.slane %v473, 0
        %v900 = vperm.slane %v838, 0
        %v901 = vperm.slane %v839, 0
        %v902 = vperm.slane %v840, 0
        %v903 = vperm.slane %v841, 0
        %v904 = vperm.slane %v842, 0
        %v905 = vperm.slane %v843, 0
        %v906 = vperm.slane %v844, 0
        %v907 = vperm.slane %v476, 0
        %v908 = vperm.slane %v845, 0
        %v909 = vperm.slane %v846, 0
        %v910 = vperm.slane %v847, 0
        %v911 = vperm.slane %v848, 0
        %v912 = vperm.slane %v849, 0
        %v913 = vperm.slane %v850, 0
        %v914 = vperm.slane %v851, 0
        %v915 = vperm.slane %v479, 0
        %v916 = vperm.slane %v852, 0
        %v917 = vperm.slane %v853, 0
        %v918 = vperm.slane %v854, 0
        %v919 = vperm.slane %v855, 0
        %v920 = vperm.slane %v856, 0
        %v921 = vperm.slane %v857, 0
        %v922 = vperm.slane %v858, 0
        %v955 = vmul.f32 %v891, %v571
        %v956 = vmul.f32 %v891, %v572
        %v957 = vmul.f32 %v891, %v573
        %v958 = vmul.f32 %v891, %v574
        %v959 = vmul.f32 %v892, %v575
        %v960 = vmul.f32 %v892, %v576
        %v961 = vmul.f32 %v892, %v577
        %v962 = vmul.f32 %v892, %v578
        %v963 = vmul.f32 %v893, %v579
        %v964 = vmul.f32 %v893, %v580
        %v965 = vmul.f32 %v893, %v581
        %v966 = vmul.f32 %v893, %v582
        %v967 = vmul.f32 %v894, %v583
        %v968 = vmul.f32 %v894, %v584
        %v969 = vmul.f32 %v894, %v585
        %v970 = vmul.f32 %v894, %v586
        %v971 = vmul.f32 %v895, %v587
        %v972 = vmul.f32 %v895, %v588
        %v973 = vmul.f32 %v895, %v589
        %v974 = vmul.f32 %v895, %v590
        %v975 = vmul.f32 %v896, %v591
        %v976 = vmul.f32 %v896, %v592
        %v977 = vmul.f32 %v896, %v593
        %v978 = vmul.f32 %v896, %v594
        %v979 = vmul.f32 %v897, %v595
        %v980 = vmul.f32 %v897, %v596
        %v981 = vmul.f32 %v897, %v597
        %v982 = vmul.f32 %v897, %v598
        %v983 = vmul.f32 %v898, %v599
        %v984 = vmul.f32 %v898, %v600
        %v985 = vmul.f32 %v898, %v601
        %v986 = vmul.f32 %v898, %v602
        %v987 = vmul.f32 %v899, %v603
        %v988 = vmul.f32 %v899, %v604
        %v989 = vmul.f32 %v899, %v605
        %v990 = vmul.f32 %v899, %v606
        %v991 = vmul.f32 %v900, %v607
        %v992 = vmul.f32 %v900, %v608
        %v993 = vmul.f32 %v900, %v609
        %v994 = vmul.f32 %v900, %v610
        %v995 = vmul.f32 %v901, %v611
        %v996 = vmul.f32 %v901, %v612
        %v997 = vmul.f32 %v901, %v613
        %v998 = vmul.f32 %v901, %v614
        %v999 = vmul.f32 %v902, %v615
        %v1000 = vmul.f32 %v902, %v616
        %v1001 = vmul.f32 %v902, %v617
        %v1002 = vmul.f32 %v902, %v618
        %v1003 = vmul.f32 %v903, %v619
        %v1004 = vmul.f32 %v903, %v620
        %v1005 = vmul.f32 %v903, %v621
        %v1006 = vmul.f32 %v903, %v622
        %v1007 = vmul.f32 %v904, %v623
        %v1008 = vmul.f32 %v904, %v624
        %v1009 = vmul.f32 %v904, %v625
        %v1010 = vmul.f32 %v904, %v626
        %v1011 = vmul.f32 %v905, %v627
        %v1012 = vmul.f32 %v905, %v628
        %v1013 = vmul.f32 %v905, %v629
        %v1014 = vmul.f32 %v905, %v630
        %v1015 = vmul.f32 %v906, %v631
        %v1016 = vmul.f32 %v906, %v632
        %v1017 = vmul.f32 %v906, %v633
        %v1018 = vmul.f32 %v906, %v634
        %v1019 = vmul.f32 %v907, %v635
        %v1020 = vmul.f32 %v907, %v636
        %v1021 = vmul.f32 %v907, %v637
        %v1022 = vmul.f32 %v907, %v638
        %v1023 = vmul.f32 %v908, %v639
        %v1024 = vmul.f32 %v908, %v640
        %v1025 = vmul.f32 %v908, %v641
        %v1026 = vmul.f32 %v908, %v642
        %v1027 = vmul.f32 %v909, %v643
        %v1028 = vmul.f32 %v909, %v644
        %v1029 = vmul.f32 %v909, %v645
        %v1030 = vmul.f32 %v909, %v646
        %v1031 = vmul.f32 %v910, %v647
        %v1032 = vmul.f32 %v910, %v648
        %v1033 = vmul.f32 %v910, %v649
        %v1034 = vmul.f32 %v910, %v650
        %v1035 = vmul.f32 %v911, %v651
        %v1036 = vmul.f32 %v911, %v652
        %v1037 = vmul.f32 %v911, %v653
        %v1038 = vmul.f32 %v911, %v654
        %v1039 = vmul.f32 %v912, %v655
        %v1040 = vmul.f32 %v912, %v656
        %v1041 = vmul.f32 %v912, %v657
        %v1042 = vmul.f32 %v912, %v658
        %v1043 = vmul.f32 %v913, %v659
        %v1044 = vmul.f32 %v913, %v660
        %v1045 = vmul.f32 %v913, %v661
        %v1046 = vmul.f32 %v913, %v662
        %v1047 = vmul.f32 %v914, %v663
        %v1048 = vmul.f32 %v914, %v664
        %v1049 = vmul.f32 %v914, %v665
        %v1050 = vmul.f32 %v914, %v666
        %v1051 = vmul.f32 %v915, %v667
        %v1052 = vmul.f32 %v915, %v668
        %v1053 = vmul.f32 %v915, %v669
        %v1054 = vmul.f32 %v915, %v670
        %v1055 = vmul.f32 %v916, %v671
        %v1056 = vmul.f32 %v916, %v672
        %v1057 = vmul.f32 %v916, %v673
        %v1058 = vmul.f32 %v916, %v674
        %v1059 = vmul.f32 %v917, %v675
        %v1060 = vmul.f32 %v917, %v676
        %v1061 = vmul.f32 %v917, %v677
        %v1062 = vmul.f32 %v917, %v678
        %v1063 = vmul.f32 %v918, %v679
        %v1064 = vmul.f32 %v918, %v680
        %v1065 = vmul.f32 %v918, %v681
        %v1066 = vmul.f32 %v918, %v682
        %v1067 = vmul.f32 %v919, %v683
        %v1068 = vmul.f32 %v919, %v684
        %v1069 = vmul.f32 %v919, %v685
        %v1070 = vmul.f32 %v919, %v686
        %v1071 = vmul.f32 %v920, %v687
        %v1072 = vmul.f32 %v920, %v688
        %v1073 = vmul.f32 %v920, %v689
        %v1074 = vmul.f32 %v920, %v690
        %v1075 = vmul.f32 %v921, %v691
        %v1076 = vmul.f32 %v921, %v692
        %v1077 = vmul.f32 %v921, %v693
        %v1078 = vmul.f32 %v921, %v694
        %v1079 = vmul.f32 %v922, %v695
        %v1080 = vmul.f32 %v922, %v696
        %v1081 = vmul.f32 %v922, %v697
        %v1082 = vmul.f32 %v922, %v698
        %v1083 = vperm.slane %v560, 0
        %v1084 = vperm.slane %v863, 0
        %v1085 = vperm.slane %v864, 0
        %v1086 = vperm.slane %v865, 0
        %v1087 = vperm.slane %v866, 0
        %v1088 = vperm.slane %v867, 0
        %v1089 = vperm.slane %v868, 0
        %v1090 = vperm.slane %v869, 0
        %v1091 = vperm.slane %v563, 0
        %v1092 = vperm.slane %v870, 0
        %v1093 = vperm.slane %v871, 0
        %v1094 = vperm.slane %v872, 0
        %v1095 = vperm.slane %v873, 0
        %v1096 = vperm.slane %v874, 0
        %v1097 = vperm.slane %v875, 0
        %v1098 = vperm.slane %v876, 0
        %v1099 = vperm.slane %v566, 0
        %v1100 = vperm.slane %v877, 0
        %v1101 = vperm.slane %v878, 0
        %v1102 = vperm.slane %v879, 0
        %v1103 = vperm.slane %v880, 0
        %v1104 = vperm.slane %v881, 0
        %v1105 = vperm.slane %v882, 0
        %v1106 = vperm.slane %v883, 0
        %v1107 = vperm.slane %v569, 0
        %v1108 = vperm.slane %v884, 0
        %v1109 = vperm.slane %v885, 0
        %v1110 = vperm.slane %v886, 0
        %v1111 = vperm.slane %v887, 0
        %v1112 = vperm.slane %v888, 0
        %v1113 = vperm.slane %v889, 0
        %v1114 = vperm.slane %v890, 0
        %v1147 = vmul.f32 %v1083, %v699
        %v1148 = vmul.f32 %v1083, %v700
        %v1149 = vmul.f32 %v1083, %v701
        %v1150 = vmul.f32 %v1083, %v702
        %v1151 = vmul.f32 %v1084, %v703
        %v1152 = vmul.f32 %v1084, %v704
        %v1153 = vmul.f32 %v1084, %v705
        %v1154 = vmul.f32 %v1084, %v706
        %v1155 = vmul.f32 %v1085, %v707
        %v1156 = vmul.f32 %v1085, %v708
        %v1157 = vmul.f32 %v1085, %v709
        %v1158 = vmul.f32 %v1085, %v710
        %v1159 = vmul.f32 %v1086, %v711
        %v1160 = vmul.f32 %v1086, %v712
        %v1161 = vmul.f32 %v1086, %v713
        %v1162 = vmul.f32 %v1086, %v714
        %v1163 = vmul.f32 %v1087, %v715
        %v1164 = vmul.f32 %v1087, %v716
        %v1165 = vmul.f32 %v1087, %v717
        %v1166 = vmul.f32 %v1087, %v718
        %v1167 = vmul.f32 %v1088, %v719
        %v1168 = vmul.f32 %v1088, %v720
        %v1169 = vmul.f32 %v1088, %v721
        %v1170 = vmul.f32 %v1088, %v722
        %v1171 = vmul.f32 %v1089, %v723
        %v1172 = vmul.f32 %v1089, %v724
        %v1173 = vmul.f32 %v1089, %v725
        %v1174 = vmul.f32 %v1089, %v726
        %v1175 = vmul.f32 %v1090, %v727
        %v1176 = vmul.f32 %v1090, %v728
        %v1177 = vmul.f32 %v1090, %v729
        %v1178 = vmul.f32 %v1090, %v730
        %v1179 = vmul.f32 %v1091, %v731
        %v1180 = vmul.f32 %v1091, %v732
        %v1181 = vmul.f32 %v1091, %v733
        %v1182 = vmul.f32 %v1091, %v734
        %v1183 = vmul.f32 %v1092, %v735
        %v1184 = vmul.f32 %v1092, %v736
        %v1185 = vmul.f32 %v1092, %v737
        %v1186 = vmul.f32 %v1092, %v738
        %v1187 = vmul.f32 %v1093, %v739
        %v1188 = vmul.f32 %v1093, %v740
        %v1189 = vmul.f32 %v1093, %v741
        %v1190 = vmul.f32 %v1093, %v742
        %v1191 = vmul.f32 %v1094, %v743
        %v1192 = vmul.f32 %v1094, %v744
        %v1193 = vmul.f32 %v1094, %v745
        %v1194 = vmul.f32 %v1094, %v746
        %v1195 = vmul.f32 %v1095, %v747
        %v1196 = vmul.f32 %v1095, %v748
        %v1197 = vmul.f32 %v1095, %v749
        %v1198 = vmul.f32 %v1095, %v750
        %v1199 = vmul.f32 %v1096, %v751
        %v1200 = vmul.f32 %v1096, %v752
        %v1201 = vmul.f32 %v1096, %v753
        %v1202 = vmul.f32 %v1096, %v754
        %v1203 = vmul.f32 %v1097, %v755
        %v1204 = vmul.f32 %v1097, %v756
        %v1205 = vmul.f32 %v1097, %v757
        %v1206 = vmul.f32 %v1097, %v758
        %v1207 = vmul.f32 %v1098, %v759
        %v1208 = vmul.f32 %v1098, %v760
        %v1209 = vmul.f32 %v1098, %v761
        %v1210 = vmul.f32 %v1098, %v762
        %v1211 = vmul.f32 %v1099, %v763
        %v1212 = vmul.f32 %v1099, %v764
        %v1213 = vmul.f32 %v1099, %v765
        %v1214 = vmul.f32 %v1099, %v766
        %v1215 = vmul.f32 %v1100, %v767
        %v1216 = vmul.f32 %v1100, %v768
        %v1217 = vmul.f32 %v1100, %v769
        %v1218 = vmul.f32 %v1100, %v770
        %v1219 = vmul.f32 %v1101, %v771
        %v1220 = vmul.f32 %v1101, %v772
        %v1221 = vmul.f32 %v1101, %v773
        %v1222 = vmul.f32 %v1101, %v774
        %v1223 = vmul.f32 %v1102, %v775
        %v1224 = vmul.f32 %v1102, %v776
        %v1225 = vmul.f32 %v1102, %v777
        %v1226 = vmul.f32 %v1102, %v778
        %v1227 = vmul.f32 %v1103, %v779
        %v1228 = vmul.f32 %v1103, %v780
        %v1229 = vmul.f32 %v1103, %v781
        %v1230 = vmul.f32 %v1103, %v782
        %v1231 = vmul.f32 %v1104, %v783
        %v1232 = vmul.f32 %v1104, %v784
        %v1233 = vmul.f32 %v1104, %v785
        %v1234 = vmul.f32 %v1104, %v786
        %v1235 = vmul.f32 %v1105, %v787
        %v1236 = vmul.f32 %v1105, %v788
        %v1237 = vmul.f32 %v1105, %v789
        %v1238 = vmul.f32 %v1105, %v790
        %v1239 = vmul.f32 %v1106, %v791
        %v1240 = vmul.f32 %v1106, %v792
        %v1241 = vmul.f32 %v1106, %v793
        %v1242 = vmul.f32 %v1106, %v794
        %v1243 = vmul.f32 %v1107, %v795
        %v1244 = vmul.f32 %v1107, %v796
        %v1245 = vmul.f32 %v1107, %v797
        %v1246 = vmul.f32 %v1107, %v798
        %v1247 = vmul.f32 %v1108, %v799
        %v1248 = vmul.f32 %v1108, %v800
        %v1249 = vmul.f32 %v1108, %v801
        %v1250 = vmul.f32 %v1108, %v802
        %v1251 = vmul.f32 %v1109, %v803
        %v1252 = vmul.f32 %v1109, %v804
        %v1253 = vmul.f32 %v1109, %v805
        %v1254 = vmul.f32 %v1109, %v806
        %v1255 = vmul.f32 %v1110, %v807
        %v1256 = vmul.f32 %v1110, %v808
        %v1257 = vmul.f32 %v1110, %v809
        %v1258 = vmul.f32 %v1110, %v810
        %v1259 = vmul.f32 %v1111, %v811
        %v1260 = vmul.f32 %v1111, %v812
        %v1261 = vmul.f32 %v1111, %v813
        %v1262 = vmul.f32 %v1111, %v814
        %v1263 = vmul.f32 %v1112, %v815
        %v1264 = vmul.f32 %v1112, %v816
        %v1265 = vmul.f32 %v1112, %v817
        %v1266 = vmul.f32 %v1112, %v818
        %v1267 = vmul.f32 %v1113, %v819
        %v1268 = vmul.f32 %v1113, %v820
        %v1269 = vmul.f32 %v1113, %v821
        %v1270 = vmul.f32 %v1113, %v822
        %v1271 = vmul.f32 %v1114, %v823
        %v1272 = vmul.f32 %v1114, %v824
        %v1273 = vmul.f32 %v1114, %v825
        %v1274 = vmul.f32 %v1114, %v826
        %v1275 = vsub.f32 %v955, %v1147
        %v1276 = vsub.f32 %v956, %v1148
        %v1277 = vsub.f32 %v957, %v1149
        %v1278 = vsub.f32 %v958, %v1150
        %v1279 = vsub.f32 %v959, %v1151
        %v1280 = vsub.f32 %v960, %v1152
        %v1281 = vsub.f32 %v961, %v1153
        %v1282 = vsub.f32 %v962, %v1154
        %v1283 = vsub.f32 %v963, %v1155
        %v1284 = vsub.f32 %v964, %v1156
        %v1285 = vsub.f32 %v965, %v1157
        %v1286 = vsub.f32 %v966, %v1158
        %v1287 = vsub.f32 %v967, %v1159
        %v1288 = vsub.f32 %v968, %v1160
        %v1289 = vsub.f32 %v969, %v1161
        %v1290 = vsub.f32 %v970, %v1162
        %v1291 = vsub.f32 %v971, %v1163
        %v1292 = vsub.f32 %v972, %v1164
        %v1293 = vsub.f32 %v973, %v1165
        %v1294 = vsub.f32 %v974, %v1166
        %v1295 = vsub.f32 %v975, %v1167
        %v1296 = vsub.f32 %v976, %v1168
        %v1297 = vsub.f32 %v977, %v1169
        %v1298 = vsub.f32 %v978, %v1170
        %v1299 = vsub.f32 %v979, %v1171
        %v1300 = vsub.f32 %v980, %v1172
        %v1301 = vsub.f32 %v981, %v1173
        %v1302 = vsub.f32 %v982, %v1174
        %v1303 = vsub.f32 %v983, %v1175
        %v1304 = vsub.f32 %v984, %v1176
        %v1305 = vsub.f32 %v985, %v1177
        %v1306 = vsub.f32 %v986, %v1178
        %v1307 = vsub.f32 %v987, %v1179
        %v1308 = vsub.f32 %v988, %v1180
        %v1309 = vsub.f32 %v989, %v1181
        %v1310 = vsub.f32 %v990, %v1182
        %v1311 = vsub.f32 %v991, %v1183
        %v1312 = vsub.f32 %v992, %v1184
        %v1313 = vsub.f32 %v993, %v1185
        %v1314 = vsub.f32 %v994, %v1186
        %v1315 = vsub.f32 %v995, %v1187
        %v1316 = vsub.f32 %v996, %v1188
        %v1317 = vsub.f32 %v997, %v1189
        %v1318 = vsub.f32 %v998, %v1190
        %v1319 = vsub.f32 %v999, %v1191
        %v1320 = vsub.f32 %v1000, %v1192
        %v1321 = vsub.f32 %v1001, %v1193
        %v1322 = vsub.f32 %v1002, %v1194
        %v1323 = vsub.f32 %v1003, %v1195
        %v1324 = vsub.f32 %v1004, %v1196
        %v1325 = vsub.f32 %v1005, %v1197
        %v1326 = vsub.f32 %v1006, %v1198
        %v1327 = vsub.f32 %v1007, %v1199
        %v1328 = vsub.f32 %v1008, %v1200
        %v1329 = vsub.f32 %v1009, %v1201
        %v1330 = vsub.f32 %v1010, %v1202
        %v1331 = vsub.f32 %v1011, %v1203
        %v1332 = vsub.f32 %v1012, %v1204
        %v1333 = vsub.f32 %v1013, %v1205
        %v1334 = vsub.f32 %v1014, %v1206
        %v1335 = vsub.f32 %v1015, %v1207
        %v1336 = vsub.f32 %v1016, %v1208
        %v1337 = vsub.f32 %v1017, %v1209
        %v1338 = vsub.f32 %v1018, %v1210
        %v1339 = vsub.f32 %v1019, %v1211
        %v1340 = vsub.f32 %v1020, %v1212
        %v1341 = vsub.f32 %v1021, %v1213
        %v1342 = vsub.f32 %v1022, %v1214
        %v1343 = vsub.f32 %v1023, %v1215
        %v1344 = vsub.f32 %v1024, %v1216
        %v1345 = vsub.f32 %v1025, %v1217
        %v1346 = vsub.f32 %v1026, %v1218
        %v1347 = vsub.f32 %v1027, %v1219
        %v1348 = vsub.f32 %v1028, %v1220
        %v1349 = vsub.f32 %v1029, %v1221
        %v1350 = vsub.f32 %v1030, %v1222
        %v1351 = vsub.f32 %v1031, %v1223
        %v1352 = vsub.f32 %v1032, %v1224
        %v1353 = vsub.f32 %v1033, %v1225
        %v1354 = vsub.f32 %v1034, %v1226
        %v1355 = vsub.f32 %v1035, %v1227
        %v1356 = vsub.f32 %v1036, %v1228
        %v1357 = vsub.f32 %v1037, %v1229
        %v1358 = vsub.f32 %v1038, %v1230
        %v1359 = vsub.f32 %v1039, %v1231
        %v1360 = vsub.f32 %v1040, %v1232
        %v1361 = vsub.f32 %v1041, %v1233
        %v1362 = vsub.f32 %v1042, %v1234
        %v1363 = vsub.f32 %v1043, %v1235
        %v1364 = vsub.f32 %v1044, %v1236
        %v1365 = vsub.f32 %v1045, %v1237
        %v1366 = vsub.f32 %v1046, %v1238
        %v1367 = vsub.f32 %v1047, %v1239
        %v1368 = vsub.f32 %v1048, %v1240
        %v1369 = vsub.f32 %v1049, %v1241
        %v1370 = vsub.f32 %v1050, %v1242
        %v1371 = vsub.f32 %v1051, %v1243
        %v1372 = vsub.f32 %v1052, %v1244
        %v1373 = vsub.f32 %v1053, %v1245
        %v1374 = vsub.f32 %v1054, %v1246
        %v1375 = vsub.f32 %v1055, %v1247
        %v1376 = vsub.f32 %v1056, %v1248
        %v1377 = vsub.f32 %v1057, %v1249
        %v1378 = vsub.f32 %v1058, %v1250
        %v1379 = vsub.f32 %v1059, %v1251
        %v1380 = vsub.f32 %v1060, %v1252
        %v1381 = vsub.f32 %v1061, %v1253
        %v1382 = vsub.f32 %v1062, %v1254
        %v1383 = vsub.f32 %v1063, %v1255
        %v1384 = vsub.f32 %v1064, %v1256
        %v1385 = vsub.f32 %v1065, %v1257
        %v1386 = vsub.f32 %v1066, %v1258
        %v1387 = vsub.f32 %v1067, %v1259
        %v1388 = vsub.f32 %v1068, %v1260
        %v1389 = vsub.f32 %v1069, %v1261
        %v1390 = vsub.f32 %v1070, %v1262
        %v1391 = vsub.f32 %v1071, %v1263
        %v1392 = vsub.f32 %v1072, %v1264
        %v1393 = vsub.f32 %v1073, %v1265
        %v1394 = vsub.f32 %v1074, %v1266
        %v1395 = vsub.f32 %v1075, %v1267
        %v1396 = vsub.f32 %v1076, %v1268
        %v1397 = vsub.f32 %v1077, %v1269
        %v1398 = vsub.f32 %v1078, %v1270
        %v1399 = vsub.f32 %v1079, %v1271
        %v1400 = vsub.f32 %v1080, %v1272
        %v1401 = vsub.f32 %v1081, %v1273
        %v1402 = vsub.f32 %v1082, %v1274
        %v1403 = vadd.f32 %v1275, %v1279
        %v1404 = vadd.f32 %v1403, %v1283
        %v1405 = vadd.f32 %v1404, %v1287
        %v1406 = vadd.f32 %v1405, %v1291
        %v1407 = vadd.f32 %v1406, %v1295
        %v1408 = vadd.f32 %v1407, %v1299
        %v1409 = vadd.f32 %v1408, %v1303
        %v1410 = vadd.f32 %v1409, %v1307
        %v1411 = vadd.f32 %v1410, %v1311
        %v1412 = vadd.f32 %v1411, %v1315
        %v1413 = vadd.f32 %v1412, %v1319
        %v1414 = vadd.f32 %v1413, %v1323
        %v1415 = vadd.f32 %v1414, %v1327
        %v1416 = vadd.f32 %v1415, %v1331
        %v1417 = vadd.f32 %v1416, %v1335
        %v1418 = vadd.f32 %v1417, %v1339
        %v1419 = vadd.f32 %v1418, %v1343
        %v1420 = vadd.f32 %v1419, %v1347
        %v1421 = vadd.f32 %v1420, %v1351
        %v1422 = vadd.f32 %v1421, %v1355
        %v1423 = vadd.f32 %v1422, %v1359
        %v1424 = vadd.f32 %v1423, %v1363
        %v1425 = vadd.f32 %v1424, %v1367
        %v1426 = vadd.f32 %v1425, %v1371
        %v1427 = vadd.f32 %v1426, %v1375
        %v1428 = vadd.f32 %v1427, %v1379
        %v1429 = vadd.f32 %v1428, %v1383
        %v1430 = vadd.f32 %v1429, %v1387
        %v1431 = vadd.f32 %v1430, %v1391
        %v1432 = vadd.f32 %v1431, %v1395
        %v1433 = vadd.f32 %v1432, %v1399
        %v1434 = vadd.f32 %v1276, %v1280
        %v1435 = vadd.f32 %v1434, %v1284
        %v1436 = vadd.f32 %v1435, %v1288
        %v1437 = vadd.f32 %v1436, %v1292
        %v1438 = vadd.f32 %v1437, %v1296
        %v1439 = vadd.f32 %v1438, %v1300
        %v1440 = vadd.f32 %v1439, %v1304
        %v1441 = vadd.f32 %v1440, %v1308
        %v1442 = vadd.f32 %v1441, %v1312
        %v1443 = vadd.f32 %v1442, %v1316
        %v1444 = vadd.f32 %v1443, %v1320
        %v1445 = vadd.f32 %v1444, %v1324
        %v1446 = vadd.f32 %v1445, %v1328
        %v1447 = vadd.f32 %v1446, %v1332
        %v1448 = vadd.f32 %v1447, %v1336
        %v1449 = vadd.f32 %v1448, %v1340
        %v1450 = vadd.f32 %v1449, %v1344
        %v1451 = vadd.f32 %v1450, %v1348
        %v1452 = vadd.f32 %v1451, %v1352
        %v1453 = vadd.f32 %v1452, %v1356
        %v1454 = vadd.f32 %v1453, %v1360
        %v1455 = vadd.f32 %v1454, %v1364
        %v1456 = vadd.f32 %v1455, %v1368
        %v1457 = vadd.f32 %v1456, %v1372
        %v1458 = vadd.f32 %v1457, %v1376
        %v1459 = vadd.f32 %v1458, %v1380
        %v1460 = vadd.f32 %v1459, %v1384
        %v1461 = vadd.f32 %v1460, %v1388
        %v1462 = vadd.f32 %v1461, %v1392
        %v1463 = vadd.f32 %v1462, %v1396
        %v1464 = vadd.f32 %v1463, %v1400
        %v1465 = vadd.f32 %v1277, %v1281
        %v1466 = vadd.f32 %v1465, %v1285
        %v1467 = vadd.f32 %v1466, %v1289
        %v1468 = vadd.f32 %v1467, %v1293
        %v1469 = vadd.f32 %v1468, %v1297
        %v1470 = vadd.f32 %v1469, %v1301
        %v1471 = vadd.f32 %v1470, %v1305
        %v1472 = vadd.f32 %v1471, %v1309
        %v1473 = vadd.f32 %v1472, %v1313
        %v1474 = vadd.f32 %v1473, %v1317
        %v1475 = vadd.f32 %v1474, %v1321
        %v1476 = vadd.f32 %v1475, %v1325
        %v1477 = vadd.f32 %v1476, %v1329
        %v1478 = vadd.f32 %v1477, %v1333
        %v1479 = vadd.f32 %v1478, %v1337
        %v1480 = vadd.f32 %v1479, %v1341
        %v1481 = vadd.f32 %v1480, %v1345
        %v1482 = vadd.f32 %v1481, %v1349
        %v1483 = vadd.f32 %v1482, %v1353
        %v1484 = vadd.f32 %v1483, %v1357
        %v1485 = vadd.f32 %v1484, %v1361
        %v1486 = vadd.f32 %v1485, %v1365
        %v1487 = vadd.f32 %v1486, %v1369
        %v1488 = vadd.f32 %v1487, %v1373
        %v1489 = vadd.f32 %v1488, %v1377
        %v1490 = vadd.f32 %v1489, %v1381
        %v1491 = vadd.f32 %v1490, %v1385
        %v1492 = vadd.f32 %v1491, %v1389
        %v1493 = vadd.f32 %v1492, %v1393
        %v1494 = vadd.f32 %v1493, %v1397
        %v1495 = vadd.f32 %v1494, %v1401
        %v1496 = vadd.f32 %v1278, %v1282
        %v1497 = vadd.f32 %v1496, %v1286
        %v1498 = vadd.f32 %v1497, %v1290
        %v1499 = vadd.f32 %v1498, %v1294
        %v1500 = vadd.f32 %v1499, %v1298
        %v1501 = vadd.f32 %v1500, %v1302
        %v1502 = vadd.f32 %v1501, %v1306
        %v1503 = vadd.f32 %v1502, %v1310
        %v1504 = vadd.f32 %v1503, %v1314
        %v1505 = vadd.f32 %v1504, %v1318
        %v1506 = vadd.f32 %v1505, %v1322
        %v1507 = vadd.f32 %v1506, %v1326
        %v1508 = vadd.f32 %v1507, %v1330
        %v1509 = vadd.f32 %v1508, %v1334
        %v1510 = vadd.f32 %v1509, %v1338
        %v1511 = vadd.f32 %v1510, %v1342
        %v1512 = vadd.f32 %v1511, %v1346
        %v1513 = vadd.f32 %v1512, %v1350
        %v1514 = vadd.f32 %v1513, %v1354
        %v1515 = vadd.f32 %v1514, %v1358
        %v1516 = vadd.f32 %v1515, %v1362
        %v1517 = vadd.f32 %v1516, %v1366
        %v1518 = vadd.f32 %v1517, %v1370
        %v1519 = vadd.f32 %v1518, %v1374
        %v1520 = vadd.f32 %v1519, %v1378
        %v1521 = vadd.f32 %v1520, %v1382
        %v1522 = vadd.f32 %v1521, %v1386
        %v1523 = vadd.f32 %v1522, %v1390
        %v1524 = vadd.f32 %v1523, %v1394
        %v1525 = vadd.f32 %v1524, %v1398
        %v1526 = vadd.f32 %v1525, %v1402
        %v1527 = vmul.f32 %v891, %v699
        %v1528 = vmul.f32 %v891, %v700
        %v1529 = vmul.f32 %v891, %v701
        %v1530 = vmul.f32 %v891, %v702
        %v1531 = vmul.f32 %v892, %v703
        %v1532 = vmul.f32 %v892, %v704
        %v1533 = vmul.f32 %v892, %v705
        %v1534 = vmul.f32 %v892, %v706
        %v1535 = vmul.f32 %v893, %v707
        %v1536 = vmul.f32 %v893, %v708
        %v1537 = vmul.f32 %v893, %v709
        %v1538 = vmul.f32 %v893, %v710
        %v1539 = vmul.f32 %v894, %v711
        %v1540 = vmul.f32 %v894, %v712
        %v1541 = vmul.f32 %v894, %v713
        %v1542 = vmul.f32 %v894, %v714
        %v1543 = vmul.f32 %v895, %v715
        %v1544 = vmul.f32 %v895, %v716
        %v1545 = vmul.f32 %v895, %v717
        %v1546 = vmul.f32 %v895, %v718
        %v1547 = vmul.f32 %v896, %v719
        %v1548 = vmul.f32 %v896, %v720
        %v1549 = vmul.f32 %v896, %v721
        %v1550 = vmul.f32 %v896, %v722
        %v1551 = vmul.f32 %v897, %v723
        %v1552 = vmul.f32 %v897, %v724
        %v1553 = vmul.f32 %v897, %v725
        %v1554 = vmul.f32 %v897, %v726
        %v1555 = vmul.f32 %v898, %v727
        %v1556 = vmul.f32 %v898, %v728
        %v1557 = vmul.f32 %v898, %v729
        %v1558 = vmul.f32 %v898, %v730
        %v1559 = vmul.f32 %v899, %v731
        %v1560 = vmul.f32 %v899, %v732
        %v1561 = vmul.f32 %v899, %v733
        %v1562 = vmul.f32 %v899, %v734
        %v1563 = vmul.f32 %v900, %v735
        %v1564 = vmul.f32 %v900, %v736
        %v1565 = vmul.f32 %v900, %v737
        %v1566 = vmul.f32 %v900, %v738
        %v1567 = vmul.f32 %v901, %v739
        %v1568 = vmul.f32 %v901, %v740
        %v1569 = vmul.f32 %v901, %v741
        %v1570 = vmul.f32 %v901, %v742
        %v1571 = vmul.f32 %v902, %v743
        %v1572 = vmul.f32 %v902, %v744
        %v1573 = vmul.f32 %v902, %v745
        %v1574 = vmul.f32 %v902, %v746
        %v1575 = vmul.f32 %v903, %v747
        %v1576 = vmul.f32 %v903, %v748
        %v1577 = vmul.f32 %v903, %v749
        %v1578 = vmul.f32 %v903, %v750
        %v1579 = vmul.f32 %v904, %v751
        %v1580 = vmul.f32 %v904, %v752
        %v1581 = vmul.f32 %v904, %v753
        %v1582 = vmul.f32 %v904, %v754
        %v1583 = vmul.f32 %v905, %v755
        %v1584 = vmul.f32 %v905, %v756
        %v1585 = vmul.f32 %v905, %v757
        %v1586 = vmul.f32 %v905, %v758
        %v1587 = vmul.f32 %v906, %v759
        %v1588 = vmul.f32 %v906, %v760
        %v1589 = vmul.f32 %v906, %v761
        %v1590 = vmul.f32 %v906, %v762
        %v1591 = vmul.f32 %v907, %v763
        %v1592 = vmul.f32 %v907, %v764
        %v1593 = vmul.f32 %v907, %v765
        %v1594 = vmul.f32 %v907, %v766
        %v1595 = vmul.f32 %v908, %v767
        %v1596 = vmul.f32 %v908, %v768
        %v1597 = vmul.f32 %v908, %v769
        %v1598 = vmul.f32 %v908, %v770
        %v1599 = vmul.f32 %v909, %v771
        %v1600 = vmul.f32 %v909, %v772
        %v1601 = vmul.f32 %v909, %v773
        %v1602 = vmul.f32 %v909, %v774
        %v1603 = vmul.f32 %v910, %v775
        %v1604 = vmul.f32 %v910, %v776
        %v1605 = vmul.f32 %v910, %v777
        %v1606 = vmul.f32 %v910, %v778
        %v1607 = vmul.f32 %v911, %v779
        %v1608 = vmul.f32 %v911, %v780
        %v1609 = vmul.f32 %v911, %v781
        %v1610 = vmul.f32 %v911, %v782
        %v1611 = vmul.f32 %v912, %v783
        %v1612 = vmul.f32 %v912, %v784
        %v1613 = vmul.f32 %v912, %v785
        %v1614 = vmul.f32 %v912, %v786
        %v1615 = vmul.f32 %v913, %v787
        %v1616 = vmul.f32 %v913, %v788
        %v1617 = vmul.f32 %v913, %v789
        %v1618 = vmul.f32 %v913, %v790
        %v1619 = vmul.f32 %v914, %v791
        %v1620 = vmul.f32 %v914, %v792
        %v1621 = vmul.f32 %v914, %v793
        %v1622 = vmul.f32 %v914, %v794
        %v1623 = vmul.f32 %v915, %v795
        %v1624 = vmul.f32 %v915, %v796
        %v1625 = vmul.f32 %v915, %v797
        %v1626 = vmul.f32 %v915, %v798
        %v1627 = vmul.f32 %v916, %v799
        %v1628 = vmul.f32 %v916, %v800
        %v1629 = vmul.f32 %v916, %v801
        %v1630 = vmul.f32 %v916, %v802
        %v1631 = vmul.f32 %v917, %v803
        %v1632 = vmul.f32 %v917, %v804
        %v1633 = vmul.f32 %v917, %v805
        %v1634 = vmul.f32 %v917, %v806
        %v1635 = vmul.f32 %v918, %v807
        %v1636 = vmul.f32 %v918, %v808
        %v1637 = vmul.f32 %v918, %v809
        %v1638 = vmul.f32 %v918, %v810
        %v1639 = vmul.f32 %v919, %v811
        %v1640 = vmul.f32 %v919, %v812
        %v1641 = vmul.f32 %v919, %v813
        %v1642 = vmul.f32 %v919, %v814
        %v1643 = vmul.f32 %v920, %v815
        %v1644 = vmul.f32 %v920, %v816
        %v1645 = vmul.f32 %v920, %v817
        %v1646 = vmul.f32 %v920, %v818
        %v1647 = vmul.f32 %v921, %v819
        %v1648 = vmul.f32 %v921, %v820
        %v1649 = vmul.f32 %v921, %v821
        %v1650 = vmul.f32 %v921, %v822
        %v1651 = vmul.f32 %v922, %v823
        %v1652 = vmul.f32 %v922, %v824
        %v1653 = vmul.f32 %v922, %v825
        %v1654 = vmul.f32 %v922, %v826
        %v1655 = vmul.f32 %v1083, %v571
        %v1656 = vmul.f32 %v1083, %v572
        %v1657 = vmul.f32 %v1083, %v573
        %v1658 = vmul.f32 %v1083, %v574
        %v1659 = vmul.f32 %v1084, %v575
        %v1660 = vmul.f32 %v1084, %v576
        %v1661 = vmul.f32 %v1084, %v577
        %v1662 = vmul.f32 %v1084, %v578
        %v1663 = vmul.f32 %v1085, %v579
        %v1664 = vmul.f32 %v1085, %v580
        %v1665 = vmul.f32 %v1085, %v581
        %v1666 = vmul.f32 %v1085, %v582
        %v1667 = vmul.f32 %v1086, %v583
        %v1668 = vmul.f32 %v1086, %v584
        %v1669 = vmul.f32 %v1086, %v585
        %v1670 = vmul.f32 %v1086, %v586
        %v1671 = vmul.f32 %v1087, %v587
        %v1672 = vmul.f32 %v1087, %v588
        %v1673 = vmul.f32 %v1087, %v589
        %v1674 = vmul.f32 %v1087, %v590
        %v1675 = vmul.f32 %v1088, %v591
        %v1676 = vmul.f32 %v1088, %v592
        %v1677 = vmul.f32 %v1088, %v593
        %v1678 = vmul.f32 %v1088, %v594
        %v1679 = vmul.f32 %v1089, %v595
        %v1680 = vmul.f32 %v1089, %v596
        %v1681 = vmul.f32 %v1089, %v597
        %v1682 = vmul.f32 %v1089, %v598
        %v1683 = vmul.f32 %v1090, %v599
        %v1684 = vmul.f32 %v1090, %v600
        %v1685 = vmul.f32 %v1090, %v601
        %v1686 = vmul.f32 %v1090, %v602
        %v1687 = vmul.f32 %v1091, %v603
        %v1688 = vmul.f32 %v1091, %v604
        %v1689 = vmul.f32 %v1091, %v605
        %v1690 = vmul.f32 %v1091, %v606
        %v1691 = vmul.f32 %v1092, %v607
        %v1692 = vmul.f32 %v1092, %v608
        %v1693 = vmul.f32 %v1092, %v609
        %v1694 = vmul.f32 %v1092, %v610
        %v1695 = vmul.f32 %v1093, %v611
        %v1696 = vmul.f32 %v1093, %v612
        %v1697 = vmul.f32 %v1093, %v613
        %v1698 = vmul.f32 %v1093, %v614
        %v1699 = vmul.f32 %v1094, %v615
        %v1700 = vmul.f32 %v1094, %v616
        %v1701 = vmul.f32 %v1094, %v617
        %v1702 = vmul.f32 %v1094, %v618
        %v1703 = vmul.f32 %v1095, %v619
        %v1704 = vmul.f32 %v1095, %v620
        %v1705 = vmul.f32 %v1095, %v621
        %v1706 = vmul.f32 %v1095, %v622
        %v1707 = vmul.f32 %v1096, %v623
        %v1708 = vmul.f32 %v1096, %v624
        %v1709 = vmul.f32 %v1096, %v625
        %v1710 = vmul.f32 %v1096, %v626
        %v1711 = vmul.f32 %v1097, %v627
        %v1712 = vmul.f32 %v1097, %v628
        %v1713 = vmul.f32 %v1097, %v629
        %v1714 = vmul.f32 %v1097, %v630
        %v1715 = vmul.f32 %v1098, %v631
        %v1716 = vmul.f32 %v1098, %v632
        %v1717 = vmul.f32 %v1098, %v633
        %v1718 = vmul.f32 %v1098, %v634
        %v1719 = vmul.f32 %v1099, %v635
        %v1720 = vmul.f32 %v1099, %v636
        %v1721 = vmul.f32 %v1099, %v637
        %v1722 = vmul.f32 %v1099, %v638
        %v1723 = vmul.f32 %v1100, %v639
        %v1724 = vmul.f32 %v1100, %v640
        %v1725 = vmul.f32 %v1100, %v641
        %v1726 = vmul.f32 %v1100, %v642
        %v1727 = vmul.f32 %v1101, %v643
        %v1728 = vmul.f32 %v1101, %v644
        %v1729 = vmul.f32 %v1101, %v645
        %v1730 = vmul.f32 %v1101, %v646
        %v1731 = vmul.f32 %v1102, %v647
        %v1732 = vmul.f32 %v1102, %v648
        %v1733 = vmul.f32 %v1102, %v649
        %v1734 = vmul.f32 %v1102, %v650
        %v1735 = vmul.f32 %v1103, %v651
        %v1736 = vmul.f32 %v1103, %v652
        %v1737 = vmul.f32 %v1103, %v653
        %v1738 = vmul.f32 %v1103, %v654
        %v1739 = vmul.f32 %v1104, %v655
        %v1740 = vmul.f32 %v1104, %v656
        %v1741 = vmul.f32 %v1104, %v657
        %v1742 = vmul.f32 %v1104, %v658
        %v1743 = vmul.f32 %v1105, %v659
        %v1744 = vmul.f32 %v1105, %v660
        %v1745 = vmul.f32 %v1105, %v661
        %v1746 = vmul.f32 %v1105, %v662
        %v1747 = vmul.f32 %v1106, %v663
        %v1748 = vmul.f32 %v1106, %v664
        %v1749 = vmul.f32 %v1106, %v665
        %v1750 = vmul.f32 %v1106, %v666
        %v1751 = vmul.f32 %v1107, %v667
        %v1752 = vmul.f32 %v1107, %v668
        %v1753 = vmul.f32 %v1107, %v669
        %v1754 = vmul.f32 %v1107, %v670
        %v1755 = vmul.f32 %v1108, %v671
        %v1756 = vmul.f32 %v1108, %v672
        %v1757 = vmul.f32 %v1108, %v673
        %v1758 = vmul.f32 %v1108, %v674
        %v1759 = vmul.f32 %v1109, %v675
        %v1760 = vmul.f32 %v1109, %v676
        %v1761 = vmul.f32 %v1109, %v677
        %v1762 = vmul.f32 %v1109, %v678
        %v1763 = vmul.f32 %v1110, %v679
        %v1764 = vmul.f32 %v1110, %v680
        %v1765 = vmul.f32 %v1110, %v681
        %v1766 = vmul.f32 %v1110, %v682
        %v1767 = vmul.f32 %v1111, %v683
        %v1768 = vmul.f32 %v1111, %v684
        %v1769 = vmul.f32 %v1111, %v685
        %v1770 = vmul.f32 %v1111, %v686
        %v1771 = vmul.f32 %v1112, %v687
        %v1772 = vmul.f32 %v1112, %v688
        %v1773 = vmul.f32 %v1112, %v689
        %v1774 = vmul.f32 %v1112, %v690
        %v1775 = vmul.f32 %v1113, %v691
        %v1776 = vmul.f32 %v1113, %v692
        %v1777 = vmul.f32 %v1113, %v693
        %v1778 = vmul.f32 %v1113, %v694
        %v1779 = vmul.f32 %v1114, %v695
        %v1780 = vmul.f32 %v1114, %v696
        %v1781 = vmul.f32 %v1114, %v697
        %v1782 = vmul.f32 %v1114, %v698
        %v1783 = vadd.f32 %v1527, %v1655
        %v1784 = vadd.f32 %v1528, %v1656
        %v1785 = vadd.f32 %v1529, %v1657
        %v1786 = vadd.f32 %v1530, %v1658
        %v1787 = vadd.f32 %v1531, %v1659
        %v1788 = vadd.f32 %v1532, %v1660
        %v1789 = vadd.f32 %v1533, %v1661
        %v1790 = vadd.f32 %v1534, %v1662
        %v1791 = vadd.f32 %v1535, %v1663
        %v1792 = vadd.f32 %v1536, %v1664
        %v1793 = vadd.f32 %v1537, %v1665
        %v1794 = vadd.f32 %v1538, %v1666
        %v1795 = vadd.f32 %v1539, %v1667
        %v1796 = vadd.f32 %v1540, %v1668
        %v1797 = vadd.f32 %v1541, %v1669
        %v1798 = vadd.f32 %v1542, %v1670
        %v1799 = vadd.f32 %v1543, %v1671
        %v1800 = vadd.f32 %v1544, %v1672
        %v1801 = vadd.f32 %v1545, %v1673
        %v1802 = vadd.f32 %v1546, %v1674
        %v1803 = vadd.f32 %v1547, %v1675
        %v1804 = vadd.f32 %v1548, %v1676
        %v1805 = vadd.f32 %v1549, %v1677
        %v1806 = vadd.f32 %v1550, %v1678
        %v1807 = vadd.f32 %v1551, %v1679
        %v1808 = vadd.f32 %v1552, %v1680
        %v1809 = vadd.f32 %v1553, %v1681
        %v1810 = vadd.f32 %v1554, %v1682
        %v1811 = vadd.f32 %v1555, %v1683
        %v1812 = vadd.f32 %v1556, %v1684
        %v1813 = vadd.f32 %v1557, %v1685
        %v1814 = vadd.f32 %v1558, %v1686
        %v1815 = vadd.f32 %v1559, %v1687
        %v1816 = vadd.f32 %v1560, %v1688
        %v1817 = vadd.f32 %v1561, %v1689
        %v1818 = vadd.f32 %v1562, %v1690
        %v1819 = vadd.f32 %v1563, %v1691
        %v1820 = vadd.f32 %v1564, %v1692
        %v1821 = vadd.f32 %v1565, %v1693
        %v1822 = vadd.f32 %v1566, %v1694
        %v1823 = vadd.f32 %v1567, %v1695
        %v1824 = vadd.f32 %v1568, %v1696
        %v1825 = vadd.f32 %v1569, %v1697
        %v1826 = vadd.f32 %v1570, %v1698
        %v1827 = vadd.f32 %v1571, %v1699
        %v1828 = vadd.f32 %v1572, %v1700
        %v1829 = vadd.f32 %v1573, %v1701
        %v1830 = vadd.f32 %v1574, %v1702
        %v1831 = vadd.f32 %v1575, %v1703
        %v1832 = vadd.f32 %v1576, %v1704
        %v1833 = vadd.f32 %v1577, %v1705
        %v1834 = vadd.f32 %v1578, %v1706
        %v1835 = vadd.f32 %v1579, %v1707
        %v1836 = vadd.f32 %v1580, %v1708
        %v1837 = vadd.f32 %v1581, %v1709
        %v1838 = vadd.f32 %v1582, %v1710
        %v1839 = vadd.f32 %v1583, %v1711
        %v1840 = vadd.f32 %v1584, %v1712
        %v1841 = vadd.f32 %v1585, %v1713
        %v1842 = vadd.f32 %v1586, %v1714
        %v1843 = vadd.f32 %v1587, %v1715
        %v1844 = vadd.f32 %v1588, %v1716
        %v1845 = vadd.f32 %v1589, %v1717
        %v1846 = vadd.f32 %v1590, %v1718
        %v1847 = vadd.f32 %v1591, %v1719
        %v1848 = vadd.f32 %v1592, %v1720
        %v1849 = vadd.f32 %v1593, %v1721
        %v1850 = vadd.f32 %v1594, %v1722
        %v1851 = vadd.f32 %v1595, %v1723
        %v1852 = vadd.f32 %v1596, %v1724
        %v1853 = vadd.f32 %v1597, %v1725
        %v1854 = vadd.f32 %v1598, %v1726
        %v1855 = vadd.f32 %v1599, %v1727
        %v1856 = vadd.f32 %v1600, %v1728
        %v1857 = vadd.f32 %v1601, %v1729
        %v1858 = vadd.f32 %v1602, %v1730
        %v1859 = vadd.f32 %v1603, %v1731
        %v1860 = vadd.f32 %v1604, %v1732
        %v1861 = vadd.f32 %v1605, %v1733
        %v1862 = vadd.f32 %v1606, %v1734
        %v1863 = vadd.f32 %v1607, %v1735
        %v1864 = vadd.f32 %v1608, %v1736
        %v1865 = vadd.f32 %v1609, %v1737
        %v1866 = vadd.f32 %v1610, %v1738
        %v1867 = vadd.f32 %v1611, %v1739
        %v1868 = vadd.f32 %v1612, %v1740
        %v1869 = vadd.f32 %v1613, %v1741
        %v1870 = vadd.f32 %v1614, %v1742
        %v1871 = vadd.f32 %v1615, %v1743
        %v1872 = vadd.f32 %v1616, %v1744
        %v1873 = vadd.f32 %v1617, %v1745
        %v1874 = vadd.f32 %v1618, %v1746
        %v1875 = vadd.f32 %v1619, %v1747
        %v1876 = vadd.f32 %v1620, %v1748
        %v1877 = vadd.f32 %v1621, %v1749
        %v1878 = vadd.f32 %v1622, %v1750
        %v1879 = vadd.f32 %v1623, %v1751
        %v1880 = vadd.f32 %v1624, %v1752
        %v1881 = vadd.f32 %v1625, %v1753
        %v1882 = vadd.f32 %v1626, %v1754
        %v1883 = vadd.f32 %v1627, %v1755
        %v1884 = vadd.f32 %v1628, %v1756
        %v1885 = vadd.f32 %v1629, %v1757
        %v1886 = vadd.f32 %v1630, %v1758
        %v1887 = vadd.f32 %v1631, %v1759
        %v1888 = vadd.f32 %v1632, %v1760
        %v1889 = vadd.f32 %v1633, %v1761
        %v1890 = vadd.f32 %v1634, %v1762
        %v1891 = vadd.f32 %v1635, %v1763
        %v1892 = vadd.f32 %v1636, %v1764
        %v1893 = vadd.f32 %v1637, %v1765
        %v1894 = vadd.f32 %v1638, %v1766
        %v1895 = vadd.f32 %v1639, %v1767
        %v1896 = vadd.f32 %v1640, %v1768
        %v1897 = vadd.f32 %v1641, %v1769
        %v1898 = vadd.f32 %v1642, %v1770
        %v1899 = vadd.f32 %v1643, %v1771
        %v1900 = vadd.f32 %v1644, %v1772
        %v1901 = vadd.f32 %v1645, %v1773
        %v1902 = vadd.f32 %v1646, %v1774
        %v1903 = vadd.f32 %v1647, %v1775
        %v1904 = vadd.f32 %v1648, %v1776
        %v1905 = vadd.f32 %v1649, %v1777
        %v1906 = vadd.f32 %v1650, %v1778
        %v1907 = vadd.f32 %v1651, %v1779
        %v1908 = vadd.f32 %v1652, %v1780
        %v1909 = vadd.f32 %v1653, %v1781
        %v1910 = vadd.f32 %v1654, %v1782
        %v1911 = vadd.f32 %v1783, %v1787
        %v1912 = vadd.f32 %v1911, %v1791
        %v1913 = vadd.f32 %v1912, %v1795
        %v1914 = vadd.f32 %v1913, %v1799
        %v1915 = vadd.f32 %v1914, %v1803
        %v1916 = vadd.f32 %v1915, %v1807
        %v1917 = vadd.f32 %v1916, %v1811
        %v1918 = vadd.f32 %v1917, %v1815
        %v1919 = vadd.f32 %v1918, %v1819
        %v1920 = vadd.f32 %v1919, %v1823
        %v1921 = vadd.f32 %v1920, %v1827
        %v1922 = vadd.f32 %v1921, %v1831
        %v1923 = vadd.f32 %v1922, %v1835
        %v1924 = vadd.f32 %v1923, %v1839
        %v1925 = vadd.f32 %v1924, %v1843
        %v1926 = vadd.f32 %v1925, %v1847
        %v1927 = vadd.f32 %v1926, %v1851
        %v1928 = vadd.f32 %v1927, %v1855
        %v1929 = vadd.f32 %v1928, %v1859
        %v1930 = vadd.f32 %v1929, %v1863
        %v1931 = vadd.f32 %v1930, %v1867
        %v1932 = vadd.f32 %v1931, %v1871
        %v1933 = vadd.f32 %v1932, %v1875
        %v1934 = vadd.f32 %v1933, %v1879
        %v1935 = vadd.f32 %v1934, %v1883
        %v1936 = vadd.f32 %v1935, %v1887
        %v1937 = vadd.f32 %v1936, %v1891
        %v1938 = vadd.f32 %v1937, %v1895
        %v1939 = vadd.f32 %v1938, %v1899
        %v1940 = vadd.f32 %v1939, %v1903
        %v1941 = vadd.f32 %v1940, %v1907
        %v1942 = vadd.f32 %v1784, %v1788
        %v1943 = vadd.f32 %v1942, %v1792
        %v1944 = vadd.f32 %v1943, %v1796
        %v1945 = vadd.f32 %v1944, %v1800
        %v1946 = vadd.f32 %v1945, %v1804
        %v1947 = vadd.f32 %v1946, %v1808
        %v1948 = vadd.f32 %v1947, %v1812
        %v1949 = vadd.f32 %v1948, %v1816
        %v1950 = vadd.f32 %v1949, %v1820
        %v1951 = vadd.f32 %v1950, %v1824
        %v1952 = vadd.f32 %v1951, %v1828
        %v1953 = vadd.f32 %v1952, %v1832
        %v1954 = vadd.f32 %v1953, %v1836
        %v1955 = vadd.f32 %v1954, %v1840
        %v1956 = vadd.f32 %v1955, %v1844
        %v1957 = vadd.f32 %v1956, %v1848
        %v1958 = vadd.f32 %v1957, %v1852
        %v1959 = vadd.f32 %v1958, %v1856
        %v1960 = vadd.f32 %v1959, %v1860
        %v1961 = vadd.f32 %v1960, %v1864
        %v1962 = vadd.f32 %v1961, %v1868
        %v1963 = vadd.f32 %v1962, %v1872
        %v1964 = vadd.f32 %v1963, %v1876
        %v1965 = vadd.f32 %v1964, %v1880
        %v1966 = vadd.f32 %v1965, %v1884
        %v1967 = vadd.f32 %v1966, %v1888
        %v1968 = vadd.f32 %v1967, %v1892
        %v1969 = vadd.f32 %v1968, %v1896
        %v1970 = vadd.f32 %v1969, %v1900
        %v1971 = vadd.f32 %v1970, %v1904
        %v1972 = vadd.f32 %v1971, %v1908
        %v1973 = vadd.f32 %v1785, %v1789
        %v1974 = vadd.f32 %v1973, %v1793
        %v1975 = vadd.f32 %v1974, %v1797
        %v1976 = vadd.f32 %v1975, %v1801
        %v1977 = vadd.f32 %v1976, %v1805
        %v1978 = vadd.f32 %v1977, %v1809
        %v1979 = vadd.f32 %v1978, %v1813
        %v1980 = vadd.f32 %v1979, %v1817
        %v1981 = vadd.f32 %v1980, %v1821
        %v1982 = vadd.f32 %v1981, %v1825
        %v1983 = vadd.f32 %v1982, %v1829
        %v1984 = vadd.f32 %v1983, %v1833
        %v1985 = vadd.f32 %v1984, %v1837
        %v1986 = vadd.f32 %v1985, %v1841
        %v1987 = vadd.f32 %v1986, %v1845
        %v1988 = vadd.f32 %v1987, %v1849
        %v1989 = vadd.f32 %v1988, %v1853
        %v1990 = vadd.f32 %v1989, %v1857
        %v1991 = vadd.f32 %v1990, %v1861
        %v1992 = vadd.f32 %v1991, %v1865
        %v1993 = vadd.f32 %v1992, %v1869
        %v1994 = vadd.f32 %v1993, %v1873
        %v1995 = vadd.f32 %v1994, %v1877
        %v1996 = vadd.f32 %v1995, %v1881
        %v1997 = vadd.f32 %v1996, %v1885
        %v1998 = vadd.f32 %v1997, %v1889
        %v1999 = vadd.f32 %v1998, %v1893
        %v2000 = vadd.f32 %v1999, %v1897
        %v2001 = vadd.f32 %v2000, %v1901
        %v2002 = vadd.f32 %v2001, %v1905
        %v2003 = vadd.f32 %v2002, %v1909
        %v2004 = vadd.f32 %v1786, %v1790
        %v2005 = vadd.f32 %v2004, %v1794
        %v2006 = vadd.f32 %v2005, %v1798
        %v2007 = vadd.f32 %v2006, %v1802
        %v2008 = vadd.f32 %v2007, %v1806
        %v2009 = vadd.f32 %v2008, %v1810
        %v2010 = vadd.f32 %v2009, %v1814
        %v2011 = vadd.f32 %v2010, %v1818
        %v2012 = vadd.f32 %v2011, %v1822
        %v2013 = vadd.f32 %v2012, %v1826
        %v2014 = vadd.f32 %v2013, %v1830
        %v2015 = vadd.f32 %v2014, %v1834
        %v2016 = vadd.f32 %v2015, %v1838
        %v2017 = vadd.f32 %v2016, %v1842
        %v2018 = vadd.f32 %v2017, %v1846
        %v2019 = vadd.f32 %v2018, %v1850
        %v2020 = vadd.f32 %v2019, %v1854
        %v2021 = vadd.f32 %v2020, %v1858
        %v2022 = vadd.f32 %v2021, %v1862
        %v2023 = vadd.f32 %v2022, %v1866
        %v2024 = vadd.f32 %v2023, %v1870
        %v2025 = vadd.f32 %v2024, %v1874
        %v2026 = vadd.f32 %v2025, %v1878
        %v2027 = vadd.f32 %v2026, %v1882
        %v2028 = vadd.f32 %v2027, %v1886
        %v2029 = vadd.f32 %v2028, %v1890
        %v2030 = vadd.f32 %v2029, %v1894
        %v2031 = vadd.f32 %v2030, %v1898
        %v2032 = vadd.f32 %v2031, %v1902
        %v2033 = vadd.f32 %v2032, %v1906
        %v2034 = vadd.f32 %v2033, %v1910
        %v2035 = vld [vmem:[%s5] sm:$0xff]
        %v2036 = vld [vmem:[%s5 + $0x8] sm:$0xff]
        %v2037 = vld [vmem:[%s5 + $0x10] sm:$0xff]
        %v2038 = vld [vmem:[%s5 + $0x18] sm:$0xff]
        %v2039 = vld [vmem:[%s5 + $0x20] sm:$0xff]
        %v2040 = vld [vmem:[%s5 + $0x28] sm:$0xff]
        %v2041 = vld [vmem:[%s5 + $0x30] sm:$0xff]
        %v2042 = vld [vmem:[%s5 + $0x38] sm:$0xff]
        %v2043 = vld [vmem:[%s5 + $0x40] sm:$0xff]
        %v2044 = vld [vmem:[%s5 + $0x48] sm:$0xff]
        %v2045 = vld [vmem:[%s5 + $0x50] sm:$0xff]
        %v2046 = vld [vmem:[%s5 + $0x58] sm:$0xff]
        %v2047 = vld [vmem:[%s5 + $0x60] sm:$0xff]
        %v2048 = vld [vmem:[%s5 + $0x68] sm:$0xff]
        %v2049 = vld [vmem:[%s5 + $0x70] sm:$0xff]
        %v2050 = vld [vmem:[%s5 + $0x78] sm:$0xff]
        %v2051 = vld [vmem:[%s5 + $0x80] sm:$0xff]
        %v2052 = vld [vmem:[%s5 + $0x88] sm:$0xff]
        %v2053 = vld [vmem:[%s5 + $0x90] sm:$0xff]
        %v2054 = vld [vmem:[%s5 + $0x98] sm:$0xff]
        %v2055 = vld [vmem:[%s5 + $0xa0] sm:$0xff]
        %v2056 = vld [vmem:[%s5 + $0xa8] sm:$0xff]
        %v2057 = vld [vmem:[%s5 + $0xb0] sm:$0xff]
        %v2058 = vld [vmem:[%s5 + $0xb8] sm:$0xff]
        %v2059 = vld [vmem:[%s5 + $0xc0] sm:$0xff]
        %v2060 = vld [vmem:[%s5 + $0xc8] sm:$0xff]
        %v2061 = vld [vmem:[%s5 + $0xd0] sm:$0xff]
        %v2062 = vld [vmem:[%s5 + $0xd8] sm:$0xff]
        %v2063 = vld [vmem:[%s5 + $0xe0] sm:$0xff]
        %v2064 = vld [vmem:[%s5 + $0xe8] sm:$0xff]
        %v2065 = vld [vmem:[%s5 + $0xf0] sm:$0xff]
        %v2066 = vld [vmem:[%s5 + $0xf8] sm:$0xff]
        %2067 = vmatpush.msra.mxu0 %v2065
        %2068 = vmatpush.msra.mxu0 %v2063
        %2069 = vmatpush.msra.mxu0 %v2061
        %2070 = vmatpush.msra.mxu0 %v2059
        %2071 = vmatpush.msra.mxu0 %v2057
        %2072 = vmatpush.msra.mxu0 %v2055
        %2073 = vmatpush.msra.mxu0 %v2053
        %2074 = vmatpush.msra.mxu0 %v2051
        %2075 = vmatpush.msra.mxu0 %v2049
        %2076 = vmatpush.msra.mxu0 %v2047
        %2077 = vmatpush.msra.mxu0 %v2045
        %2078 = vmatpush.msra.mxu0 %v2043
        %2079 = vmatpush.msra.mxu0 %v2041
        %2080 = vmatpush.msra.mxu0 %v2039
        %2081 = vmatpush.msra.mxu0 %v2037
        %2082 = vmatpush.msra.mxu0 %v2035
        %2083 = vmatmul.f32.gmra.mxu0 %v1433
        %v2084 = vpop.f32.mrf.mxu0
        %v2085 = vadd.f32 0.0, %v2084
        %2086 = vmatmul.f32.gmra.mxu0 %v1464
        %v2087 = vpop.f32.mrf.mxu0
        %v2088 = vadd.f32 0.0, %v2087
        %2089 = vmatmul.f32.gmra.mxu0 %v1495
        %v2090 = vpop.f32.mrf.mxu0
        %v2091 = vadd.f32 0.0, %v2090
        %2092 = vmatmul.f32.gmra.mxu0 %v1526
        %v2093 = vpop.f32.mrf.mxu0
        %v2094 = vadd.f32 0.0, %v2093
        %2095 = vdwg.mxu0
        %2096 = vmatpush.msra.mxu0 %v2066
        %2097 = vmatpush.msra.mxu0 %v2064
        %2098 = vmatpush.msra.mxu0 %v2062
        %2099 = vmatpush.msra.mxu0 %v2060
        %2100 = vmatpush.msra.mxu0 %v2058
        %2101 = vmatpush.msra.mxu0 %v2056
        %2102 = vmatpush.msra.mxu0 %v2054
        %2103 = vmatpush.msra.mxu0 %v2052
        %2104 = vmatpush.msra.mxu0 %v2050
        %2105 = vmatpush.msra.mxu0 %v2048
        %2106 = vmatpush.msra.mxu0 %v2046
        %2107 = vmatpush.msra.mxu0 %v2044
        %2108 = vmatpush.msra.mxu0 %v2042
        %2109 = vmatpush.msra.mxu0 %v2040
        %2110 = vmatpush.msra.mxu0 %v2038
        %2111 = vmatpush.msra.mxu0 %v2036
        %2112 = vmatmul.f32.gmra.mxu0 %v1433
        %v2113 = vpop.f32.mrf.mxu0
        %v2114 = vadd.f32 0.0, %v2113
        %2115 = vmatmul.f32.gmra.mxu0 %v1464
        %v2116 = vpop.f32.mrf.mxu0
        %v2117 = vadd.f32 0.0, %v2116
        %2118 = vmatmul.f32.gmra.mxu0 %v1495
        %v2119 = vpop.f32.mrf.mxu0
        %v2120 = vadd.f32 0.0, %v2119
        %2121 = vmatmul.f32.gmra.mxu0 %v1526
        %v2122 = vpop.f32.mrf.mxu0
        %v2123 = vadd.f32 0.0, %v2122
        %2124 = vdwg.mxu0
        %v2125 = vld [vmem:[#allocation6] sm:$0xff]
        %v2126 = vld [vmem:[#allocation6 + $0x8] sm:$0xff]
        %v2127 = vld [vmem:[#allocation6 + $0x10] sm:$0xff]
        %v2128 = vld [vmem:[#allocation6 + $0x18] sm:$0xff]
        %v2129 = vld [vmem:[#allocation6 + $0x20] sm:$0xff]
        %v2130 = vld [vmem:[#allocation6 + $0x28] sm:$0xff]
        %v2131 = vld [vmem:[#allocation6 + $0x30] sm:$0xff]
        %v2132 = vld [vmem:[#allocation6 + $0x38] sm:$0xff]
        %v2133 = vld [vmem:[#allocation6 + $0x40] sm:$0xff]
        %v2134 = vld [vmem:[#allocation6 + $0x48] sm:$0xff]
        %v2135 = vld [vmem:[#allocation6 + $0x50] sm:$0xff]
        %v2136 = vld [vmem:[#allocation6 + $0x58] sm:$0xff]
        %v2137 = vld [vmem:[#allocation6 + $0x60] sm:$0xff]
        %v2138 = vld [vmem:[#allocation6 + $0x68] sm:$0xff]
        %v2139 = vld [vmem:[#allocation6 + $0x70] sm:$0xff]
        %v2140 = vld [vmem:[#allocation6 + $0x78] sm:$0xff]
        %v2141 = vld [vmem:[#allocation6 + $0x80] sm:$0xff]
        %v2142 = vld [vmem:[#allocation6 + $0x88] sm:$0xff]
        %v2143 = vld [vmem:[#allocation6 + $0x90] sm:$0xff]
        %v2144 = vld [vmem:[#allocation6 + $0x98] sm:$0xff]
        %v2145 = vld [vmem:[#allocation6 + $0xa0] sm:$0xff]
        %v2146 = vld [vmem:[#allocation6 + $0xa8] sm:$0xff]
        %v2147 = vld [vmem:[#allocation6 + $0xb0] sm:$0xff]
        %v2148 = vld [vmem:[#allocation6 + $0xb8] sm:$0xff]
        %v2149 = vld [vmem:[#allocation6 + $0xc0] sm:$0xff]
        %v2150 = vld [vmem:[#allocation6 + $0xc8] sm:$0xff]
        %v2151 = vld [vmem:[#allocation6 + $0xd0] sm:$0xff]
        %v2152 = vld [vmem:[#allocation6 + $0xd8] sm:$0xff]
        %v2153 = vld [vmem:[#allocation6 + $0xe0] sm:$0xff]
        %v2154 = vld [vmem:[#allocation6 + $0xe8] sm:$0xff]
        %v2155 = vld [vmem:[#allocation6 + $0xf0] sm:$0xff]
        %v2156 = vld [vmem:[#allocation6 + $0xf8] sm:$0xff]
        %2157 = vmatpush.msra.mxu0 %v2155
        %2158 = vmatpush.msra.mxu0 %v2153
        %2159 = vmatpush.msra.mxu0 %v2151
        %2160 = vmatpush.msra.mxu0 %v2149
        %2161 = vmatpush.msra.mxu0 %v2147
        %2162 = vmatpush.msra.mxu0 %v2145
        %2163 = vmatpush.msra.mxu0 %v2143
        %2164 = vmatpush.msra.mxu0 %v2141
        %2165 = vmatpush.msra.mxu0 %v2139
        %2166 = vmatpush.msra.mxu0 %v2137
        %2167 = vmatpush.msra.mxu0 %v2135
        %2168 = vmatpush.msra.mxu0 %v2133
        %2169 = vmatpush.msra.mxu0 %v2131
        %2170 = vmatpush.msra.mxu0 %v2129
        %2171 = vmatpush.msra.mxu0 %v2127
        %2172 = vmatpush.msra.mxu0 %v2125
        %2173 = vmatmul.f32.gmra.mxu0 %v1941
        %v2174 = vpop.f32.mrf.mxu0
        %v2175 = vadd.f32 0.0, %v2174
        %2176 = vmatmul.f32.gmra.mxu0 %v1972
        %v2177 = vpop.f32.mrf.mxu0
        %v2178 = vadd.f32 0.0, %v2177
        %2179 = vmatmul.f32.gmra.mxu0 %v2003
        %v2180 = vpop.f32.mrf.mxu0
        %v2181 = vadd.f32 0.0, %v2180
        %2182 = vmatmul.f32.gmra.mxu0 %v2034
        %v2183 = vpop.f32.mrf.mxu0
        %v2184 = vadd.f32 0.0, %v2183
        %2185 = vdwg.mxu0
        %2186 = vmatpush.msra.mxu0 %v2156
        %2187 = vmatpush.msra.mxu0 %v2154
        %2188 = vmatpush.msra.mxu0 %v2152
        %2189 = vmatpush.msra.mxu0 %v2150
        %2190 = vmatpush.msra.mxu0 %v2148
        %2191 = vmatpush.msra.mxu0 %v2146
        %2192 = vmatpush.msra.mxu0 %v2144
        %2193 = vmatpush.msra.mxu0 %v2142
        %2194 = vmatpush.msra.mxu0 %v2140
        %2195 = vmatpush.msra.mxu0 %v2138
        %2196 = vmatpush.msra.mxu0 %v2136
        %2197 = vmatpush.msra.mxu0 %v2134
        %2198 = vmatpush.msra.mxu0 %v2132
        %2199 = vmatpush.msra.mxu0 %v2130
        %2200 = vmatpush.msra.mxu0 %v2128
        %2201 = vmatpush.msra.mxu0 %v2126
        %2202 = vmatmul.f32.gmra.mxu0 %v1941
        %v2203 = vpop.f32.mrf.mxu0
        %v2204 = vadd.f32 0.0, %v2203
        %2205 = vmatmul.f32.gmra.mxu0 %v1972
        %v2206 = vpop.f32.mrf.mxu0
        %v2207 = vadd.f32 0.0, %v2206
        %2208 = vmatmul.f32.gmra.mxu0 %v2003
        %v2209 = vpop.f32.mrf.mxu0
        %v2210 = vadd.f32 0.0, %v2209
        %2211 = vmatmul.f32.gmra.mxu0 %v2034
        %v2212 = vpop.f32.mrf.mxu0
        %v2213 = vadd.f32 0.0, %v2212
        %2214 = vdwg.mxu0
        %v2215 = vsub.f32 %v2085, %v2175
        %v2216 = vsub.f32 %v2114, %v2204
        %v2217 = vsub.f32 %v2088, %v2178
        %v2218 = vsub.f32 %v2117, %v2207
        %v2219 = vsub.f32 %v2091, %v2181
        %v2220 = vsub.f32 %v2120, %v2210
        %v2221 = vsub.f32 %v2094, %v2184
        %v2222 = vsub.f32 %v2123, %v2213
        %v2223 = vld [vmem:[%s7] sm:$0xff]
        %v2224 = vld [vmem:[%s7 + $0x8] sm:$0xff]
        %v2225 = vld [vmem:[%s7 + $0x10] sm:$0xff]
        %v2226 = vld [vmem:[%s7 + $0x18] sm:$0xff]
        %v2227 = vld [vmem:[%s8] sm:$0xff]
        %v2228 = vld [vmem:[%s8 + $0x8] sm:$0xff]
        %v2229 = vld [vmem:[%s8 + $0x10] sm:$0xff]
        %v2230 = vld [vmem:[%s8 + $0x18] sm:$0xff]
        %2232 = vset.pattern.permute.xlu0 0
        %2233 = vperm.xlu0 %2232, %v2227
        %v2234 = vpop.permute.xlu0 %2233
        %2237 = vset.pattern.permute.xlu0 0
        %2238 = vperm.xlu0 %2237, %v2228
        %v2239 = vpop.permute.xlu0 %2238
        %2242 = vset.pattern.permute.xlu0 0
        %2243 = vperm.xlu0 %2242, %v2229
        %v2244 = vpop.permute.xlu0 %2243
        %2247 = vset.pattern.permute.xlu0 0
        %2248 = vperm.xlu0 %2247, %v2230
        %v2249 = vpop.permute.xlu0 %2248
        %vm2251 = vcmask 261120
        %v2253 = vsel %vm2251, %v2223, 0
        %v2256 = vsel %vm2251, %v2224, 0
        %v2259 = vsel %vm2251, %v2225, 0
        %v2262 = vsel %vm2251, %v2226, 0
        %2264 = vmatpush.msra.mxu0 0.0
        %2265 = vmatpush.msra.mxu0 0.0
        %2266 = vmatpush.msra.mxu0 0.0
        %2267 = vmatpush.msra.mxu0 0.0
        %2268 = vmatpush.msra.mxu0 0.0
        %2269 = vmatpush.msra.mxu0 0.0
        %2270 = vmatpush.msra.mxu0 0.0
        %2271 = vmatpush.msra.mxu0 0.0
        %2272 = vmatpush.msra.mxu0 0.0
        %2273 = vmatpush.msra.mxu0 0.0
        %2274 = vmatpush.msra.mxu0 0.0
        %2275 = vmatpush.msra.mxu0 0.0
        %2276 = vmatpush.msra.mxu0 %v389
        %2277 = vmatpush.msra.mxu0 %v387
        %2278 = vmatpush.msra.mxu0 %v385
        %2279 = vmatpush.msra.mxu0 %v383
        %2280 = vmatmul.f32.gmra.mxu0 %v2253
        %v2281 = vpop.f32.mrf.mxu0
        %v2282 = vadd.f32 %v2234, %v2281
        %2283 = vmatmul.f32.gmra.mxu0 %v2256
        %v2284 = vpop.f32.mrf.mxu0
        %v2285 = vadd.f32 %v2239, %v2284
        %2286 = vmatmul.f32.gmra.mxu0 %v2259
        %v2287 = vpop.f32.mrf.mxu0
        %v2288 = vadd.f32 %v2244, %v2287
        %2289 = vmatmul.f32.gmra.mxu0 %v2262
        %v2290 = vpop.f32.mrf.mxu0
        %v2291 = vadd.f32 %v2249, %v2290
        %2292 = vdwg.mxu0
        %2293 = vmatpush.msra.mxu0 0.0
        %2294 = vmatpush.msra.mxu0 0.0
        %2295 = vmatpush.msra.mxu0 0.0
        %2296 = vmatpush.msra.mxu0 0.0
        %2297 = vmatpush.msra.mxu0 0.0
        %2298 = vmatpush.msra.mxu0 0.0
        %2299 = vmatpush.msra.mxu0 0.0
        %2300 = vmatpush.msra.mxu0 0.0
        %2301 = vmatpush.msra.mxu0 0.0
        %2302 = vmatpush.msra.mxu0 0.0
        %2303 = vmatpush.msra.mxu0 0.0
        %2304 = vmatpush.msra.mxu0 0.0
        %2305 = vmatpush.msra.mxu0 %v390
        %2306 = vmatpush.msra.mxu0 %v388
        %2307 = vmatpush.msra.mxu0 %v386
        %2308 = vmatpush.msra.mxu0 %v384
        %2309 = vmatmul.f32.gmra.mxu0 %v2253
        %v2310 = vpop.f32.mrf.mxu0
        %v2311 = vadd.f32 %v2234, %v2310
        %2312 = vmatmul.f32.gmra.mxu0 %v2256
        %v2313 = vpop.f32.mrf.mxu0
        %v2314 = vadd.f32 %v2239, %v2313
        %2315 = vmatmul.f32.gmra.mxu0 %v2259
        %v2316 = vpop.f32.mrf.mxu0
        %v2317 = vadd.f32 %v2244, %v2316
        %2318 = vmatmul.f32.gmra.mxu0 %v2262
        %v2319 = vpop.f32.mrf.mxu0
        %v2320 = vadd.f32 %v2249, %v2319
        %2321 = vdwg.mxu0
        %v2322 = vadd.f32 %v2282, %v2215
        %v2323 = vadd.f32 %v2311, %v2216
        %v2324 = vadd.f32 %v2285, %v2217
        %v2325 = vadd.f32 %v2314, %v2218
        %v2326 = vadd.f32 %v2288, %v2219
        %v2327 = vadd.f32 %v2317, %v2220
        %v2328 = vadd.f32 %v2291, %v2221
        %v2329 = vadd.f32 %v2320, %v2222
        %2330 = vst [vmem:[%s382] sm:$0xff] %v2322
        %2331 = vst [vmem:[%s382 + $0x8] sm:$0xff] %v2323
        %2332 = vst [vmem:[%s382 + $0x10] sm:$0xff] %v2324
        %2333 = vst [vmem:[%s382 + $0x18] sm:$0xff] %v2325
        %2334 = vst [vmem:[%s382 + $0x20] sm:$0xff] %v2326
        %2335 = vst [vmem:[%s382 + $0x28] sm:$0xff] %v2327
        %2336 = vst [vmem:[%s382 + $0x30] sm:$0xff] %v2328
        %2337 = vst [vmem:[%s382 + $0x38] sm:$0xff] %v2329
        %p2338 = scmp.lt.s32.totalorder %s22, 1
        %s2339 = scalar_select %p2338, %s22, 1
        %s2340 = smul.addr %s2339, 8
        %s2341 = smul.addr %s2340, 8
        %s2342 = scalar_lea.vmem %s9, %s2341
        // Predicated region
        $region69: #{fno2d_forward.10} parent=55 // pred_check
          %p2343 = pneg %p234
        $region70: #{fno2d_forward.10} parent=55 // pred_check_branch
          %2345 = sbr.rel (%p2343) target = $region72
        $region71: #{fno2d_forward.10} parent=55 // pred_region
          _
        $region72: #{fno2d_forward.10} parent=55 // pred_fallthru
          _
      $region56: #{fno2d_forward.10} parent=5 // pred_fallthru
        _
      %p2346 = scmp.le.s32.totalorder 2, %s17
      // Predicated region
      $region73: #{fno2d_forward.10} parent=5 // pred_check
        %p2347 = pneg %p2346
      $region74: #{fno2d_forward.10} parent=5 // pred_check_branch
        %2349 = sbr.rel (%p2347) target = $region76
      $region75: #{fno2d_forward.10} parent=5 // pred_region
        %s2350 = ssub.s32 %s17, 2
        // Predicated region
        $region77: #{fno2d_forward.10} parent=75 // pred_check
          %p2351 = pneg %p240
        $region78: #{fno2d_forward.10} parent=75 // pred_check_branch
          %2353 = sbr.rel (%p2351) target = $region80
        $region79: #{fno2d_forward.10} parent=75 // pred_region
          %p2354 = scmp.lt.s32.totalorder %s23, 1
          %s2355 = scalar_select %p2354, %s23, 1
          %s2356 = smul.addr %s2355, 8
          %s2357 = smul.addr %s2356, 8
          %s2358 = scalar_lea.vmem %s9, %s2357
        $region80: #{fno2d_forward.10} parent=75 // pred_fallthru
          _
      $region76: #{fno2d_forward.10} parent=5 // pred_fallthru
        _
    $region6: #{fno2d_forward.10} parent=1 // loop_footer
      %s21 = sadd.s32 1, %s17
    $region7: #{fno2d_forward.10} parent=1 // loop_footer_branch
      %16 = sbr.rel target = $region3
    $region8: #{fno2d_forward.10} parent=1 // loop_exit
      _
    %2359 = vsyncpa [#allocation3], 1
    %s2360 = scalar_lea.sflag [#allocation3], 1
    %2361 = vsyncpa %s2360, 1
    %2362 = vsyncpa [#allocation5], 1

// kernel: fno2d_forward.7
$region0: #{fno2d_forward.7}
  #allocation0 [shape = 'u32[]', space=smem, size = 0x4, offset = 0x4, fixed_abs, tag = 'smem constant byte address 0x4 - core index']
  #allocation1 [shape = 'u32[72,128]{1,0:T(1,128)}', space=vmem, size = 0x9000, scoped, tag = 'internal scratch']
  %s0 = inlined_call_operand.vmem [shape: f32[2,32,256], index: 0, kind: input, shape index: {}, may-alias: {0,9}]
  %s1 = inlined_call_operand.vmem [shape: f32[256,128], index: 1, kind: input, shape index: {}]
  %s2 = inlined_call_operand.vmem [shape: f32[256,128], index: 2, kind: input, shape index: {}]
  %s3 = inlined_call_operand.hbm [shape: f32[32,32,128], index: 3, kind: input, shape index: {}]
  %s4 = inlined_call_operand.hbm [shape: f32[32,32,128], index: 4, kind: input, shape index: {}]
  %s5 = inlined_call_operand.vmem [shape: f32[128,256], index: 5, kind: input, shape index: {}]
  %s6 = inlined_call_operand.hbm [shape: f32[128,256], index: 6, kind: input, shape index: {}]
  %s7 = inlined_call_operand.vmem [shape: f32[32,32], index: 7, kind: input, shape index: {}]
  %s8 = inlined_call_operand.vmem [shape: f32[32,1], index: 8, kind: input, shape index: {}]
  %s9 = inlined_call_operand.vmem [shape: f32[2,32,256], index: 9, kind: output, shape index: {}, may-alias: {0,9}]
  %s10 = sld [smem:[#allocation0]]
  $region81: #{fno2d_forward.7} parent=0
    _
  %s12 = ssub.s32 1, %s10
  %s13 = scalar_select 0, %s12, %s10
  $region1: #{fno2d_forward.7} parent=0
    #allocation2 [shape = 'u8[524288]{0}', space=vmem, size = 0x80000, scoped, tag = 'input window, operand 3, single buffered']
    #allocation3 [shape = 's32[2]{0}', space=sflag, size = 0x8, scoped, tag = 'scoped memory for fno2d_forward.7']
    #allocation4 [shape = 'u8[524288]{0}', space=vmem, size = 0x80000, scoped, tag = 'input window, operand 4, single buffered']
    #allocation5 [shape = 's32[1]{0}', space=sflag, size = 0x4, scoped, tag = 'scoped memory for fno2d_forward.7']
    #allocation6 [shape = 'u8[131072]{0}', space=vmem, size = 0x20000, scoped, tag = 'input window, operand 6, single buffered']
    %14 = vsyncpa [#allocation3], 0
    %15 = vsyncpa [#allocation5], 0
    loop: start=0, step=1, limit=4
    $region2: #{fno2d_forward.7} parent=1 // loop_pre_header
      _
    $region3: #{fno2d_forward.7} parent=1 // loop_header
      %s17 = sphi 0, %s21
      %p18 = scmp.ge.s32.totalorder %s17, 4
      %s27 = sphi 0, %s29
      %s30 = sphi 0, %s27
      %s31 = sphi 0, %s30
      %s47 = sphi 0, %s31
      %s51 = sphi 0, %s51
      %s53 = sphi 0, %s51
      %s54 = sphi 0, %s53
      %s68 = sphi 0, %s54
      %s72 = sphi 0, %s72
      %s74 = sphi 0, %s72
      %s75 = sphi 0, %s74
      %s89 = sphi 0, %s75
      %s93 = sphi 0, %s93
      %s95 = sphi 0, %s93
      %s96 = sphi 0, %s95
      %s110 = sphi 0, %s96
      %s114 = sphi 0, %s114
      %s116 = sphi 0, %s114
      %s117 = sphi 0, %s116
      %s131 = sphi 0, %s117
      %s135 = sphi 0, %s135
      %s137 = sphi 0, %s135
      %s138 = sphi 0, %s137
      %s152 = sphi 0, %s138
      %s156 = sphi 0, %s156
      %s158 = sphi 0, %s156
      %s159 = sphi 0, %s158
      %s173 = sphi 0, %s159
      %s177 = sphi 0, %s177
      %s179 = sphi 0, %s177
      %s180 = sphi 0, %s179
      %s194 = sphi 0, %s180
      %s198 = sphi 0, %s198
      %s200 = sphi 0, %s198
      %s201 = sphi 0, %s200
      %s215 = sphi 0, %s201
      %s221 = sphi 0, %s223
      %s224 = sphi 0, %s221
      %s225 = sphi 0, %s224
      %s241 = sphi 0, %s225
    $region4: #{fno2d_forward.7} parent=1 // loop_header_branch
      %20 = sbr.rel (%p18) target = $region8
    $region5: #{fno2d_forward.7} parent=1 // loop_body
      %s22 = ssub.s32 %s17, 1
      %s23 = ssub.s32 %s17, 2
      %s24 = sadd.s32 %s17, 1
      %s25 = ssub.s32 %s17, %s24
      %p26 = scmp.eq.s32.totalorder %s25, 0
      %s28 = sadd.s32 %s27, 1
      %s29 = scalar_select %p26, %s27, %s28
      %p32 = pneg %p26
      %p33 = scmp.eq.s32.totalorder %s17, 1
      %p34 = por %p32, %p33
      %p35 = scmp.ne.s32.totalorder %s27, %s30
      %p36 = scmp.eq.s32.totalorder %s17, 0
      %p37 = por %p35, %p36
      %p38 = scmp.ne.s32.totalorder %s27, %s30
      %p39 = scmp.eq.s32.totalorder %s22, 1
      %p40 = por %p38, %p39
      %p41 = scmp.ne.s32.totalorder %s30, %s31
      %p42 = scmp.eq.s32.totalorder %s22, 0
      %p43 = por %p41, %p42
      %p44 = scmp.ne.s32.totalorder %s30, %s31
      %p45 = scmp.eq.s32.totalorder %s23, 1
      %p46 = por %p44, %p45
      %p48 = scmp.ne.s32.totalorder %s31, %s47
      %p49 = scmp.eq.s32.totalorder %s23, 0
      %p50 = por %p48, %p49
      %s52 = sadd.s32 %s51, 1
      %p55 = scmp.eq.s32.totalorder %s17, 1
      %p56 = scmp.ne.s32.totalorder %s51, %s53
      %p57 = scmp.eq.s32.totalorder %s17, 0
      %p58 = por %p56, %p57
      %p59 = scmp.ne.s32.totalorder %s51, %s53
      %p60 = scmp.eq.s32.totalorder %s22, 1
      %p61 = por %p59, %p60
      %p62 = scmp.ne.s32.totalorder %s53, %s54
      %p63 = scmp.eq.s32.totalorder %s22, 0
      %p64 = por %p62, %p63
      %p65 = scmp.ne.s32.totalorder %s53, %s54
      %p66 = scmp.eq.s32.totalorder %s23, 1
      %p67 = por %p65, %p66
      %p69 = scmp.ne.s32.totalorder %s54, %s68
      %p70 = scmp.eq.s32.totalorder %s23, 0
      %p71 = por %p69, %p70
      %s73 = sadd.s32 %s72, 1
      %p76 = scmp.eq.s32.totalorder %s17, 1
      %p77 = scmp.ne.s32.totalorder %s72, %s74
      %p78 = scmp.eq.s32.totalorder %s17, 0
      %p79 = por %p77, %p78
      %p80 = scmp.ne.s32.totalorder %s72, %s74
      %p81 = scmp.eq.s32.totalorder %s22, 1
      %p82 = por %p80, %p81
      %p83 = scmp.ne.s32.totalorder %s74, %s75
      %p84 = scmp.eq.s32.totalorder %s22, 0
      %p85 = por %p83, %p84
      %p86 = scmp.ne.s32.totalorder %s74, %s75
      %p87 = scmp.eq.s32.totalorder %s23, 1
      %p88 = por %p86, %p87
      %p90 = scmp.ne.s32.totalorder %s75, %s89
      %p91 = scmp.eq.s32.totalorder %s23, 0
      %p92 = por %p90, %p91
      %s94 = sadd.s32 %s93, 1
      %p97 = scmp.eq.s32.totalorder %s17, 1
      %p98 = scmp.ne.s32.totalorder %s93, %s95
      %p99 = scmp.eq.s32.totalorder %s17, 0
      %p100 = por %p98, %p99
      %p101 = scmp.ne.s32.totalorder %s93, %s95
      %p102 = scmp.eq.s32.totalorder %s22, 1
      %p103 = por %p101, %p102
      %p104 = scmp.ne.s32.totalorder %s95, %s96
      %p105 = scmp.eq.s32.totalorder %s22, 0
      %p106 = por %p104, %p105
      %p107 = scmp.ne.s32.totalorder %s95, %s96
      %p108 = scmp.eq.s32.totalorder %s23, 1
      %p109 = por %p107, %p108
      %p111 = scmp.ne.s32.totalorder %s96, %s110
      %p112 = scmp.eq.s32.totalorder %s23, 0
      %p113 = por %p111, %p112
      %s115 = sadd.s32 %s114, 1
      %p118 = scmp.eq.s32.totalorder %s17, 1
      %p119 = scmp.ne.s32.totalorder %s114, %s116
      %p120 = scmp.eq.s32.totalorder %s17, 0
      %p121 = por %p119, %p120
      %p122 = scmp.ne.s32.totalorder %s114, %s116
      %p123 = scmp.eq.s32.totalorder %s22, 1
      %p124 = por %p122, %p123
      %p125 = scmp.ne.s32.totalorder %s116, %s117
      %p126 = scmp.eq.s32.totalorder %s22, 0
      %p127 = por %p125, %p126
      %p128 = scmp.ne.s32.totalorder %s116, %s117
      %p129 = scmp.eq.s32.totalorder %s23, 1
      %p130 = por %p128, %p129
      %p132 = scmp.ne.s32.totalorder %s117, %s131
      %p133 = scmp.eq.s32.totalorder %s23, 0
      %p134 = por %p132, %p133
      %s136 = sadd.s32 %s135, 1
      %p139 = scmp.eq.s32.totalorder %s17, 1
      %p140 = scmp.ne.s32.totalorder %s135, %s137
      %p141 = scmp.eq.s32.totalorder %s17, 0
      %p142 = por %p140, %p141
      %p143 = scmp.ne.s32.totalorder %s135, %s137
      %p144 = scmp.eq.s32.totalorder %s22, 1
      %p145 = por %p143, %p144
      %p146 = scmp.ne.s32.totalorder %s137, %s138
      %p147 = scmp.eq.s32.totalorder %s22, 0
      %p148 = por %p146, %p147
      %p149 = scmp.ne.s32.totalorder %s137, %s138
      %p150 = scmp.eq.s32.totalorder %s23, 1
      %p151 = por %p149, %p150
      %p153 = scmp.ne.s32.totalorder %s138, %s152
      %p154 = scmp.eq.s32.totalorder %s23, 0
      %p155 = por %p153, %p154
      %s157 = sadd.s32 %s156, 1
      %p160 = scmp.eq.s32.totalorder %s17, 1
      %p161 = scmp.ne.s32.totalorder %s156, %s158
      %p162 = scmp.eq.s32.totalorder %s17, 0
      %p163 = por %p161, %p162
      %p164 = scmp.ne.s32.totalorder %s156, %s158
      %p165 = scmp.eq.s32.totalorder %s22, 1
      %p166 = por %p164, %p165
      %p167 = scmp.ne.s32.totalorder %s158, %s159
      %p168 = scmp.eq.s32.totalorder %s22, 0
      %p169 = por %p167, %p168
      %p170 = scmp.ne.s32.totalorder %s158, %s159
      %p171 = scmp.eq.s32.totalorder %s23, 1
      %p172 = por %p170, %p171
      %p174 = scmp.ne.s32.totalorder %s159, %s173
      %p175 = scmp.eq.s32.totalorder %s23, 0
      %p176 = por %p174, %p175
      %s178 = sadd.s32 %s177, 1
      %p181 = scmp.eq.s32.totalorder %s17, 1
      %p182 = scmp.ne.s32.totalorder %s177, %s179
      %p183 = scmp.eq.s32.totalorder %s17, 0
      %p184 = por %p182, %p183
      %p185 = scmp.ne.s32.totalorder %s177, %s179
      %p186 = scmp.eq.s32.totalorder %s22, 1
      %p187 = por %p185, %p186
      %p188 = scmp.ne.s32.totalorder %s179, %s180
      %p189 = scmp.eq.s32.totalorder %s22, 0
      %p190 = por %p188, %p189
      %p191 = scmp.ne.s32.totalorder %s179, %s180
      %p192 = scmp.eq.s32.totalorder %s23, 1
      %p193 = por %p191, %p192
      %p195 = scmp.ne.s32.totalorder %s180, %s194
      %p196 = scmp.eq.s32.totalorder %s23, 0
      %p197 = por %p195, %p196
      %s199 = sadd.s32 %s198, 1
      %p202 = scmp.eq.s32.totalorder %s17, 1
      %p203 = scmp.ne.s32.totalorder %s198, %s200
      %p204 = scmp.eq.s32.totalorder %s17, 0
      %p205 = por %p203, %p204
      %p206 = scmp.ne.s32.totalorder %s198, %s200
      %p207 = scmp.eq.s32.totalorder %s22, 1
      %p208 = por %p206, %p207
      %p209 = scmp.ne.s32.totalorder %s200, %s201
      %p210 = scmp.eq.s32.totalorder %s22, 0
      %p211 = por %p209, %p210
      %p212 = scmp.ne.s32.totalorder %s200, %s201
      %p213 = scmp.eq.s32.totalorder %s23, 1
      %p214 = por %p212, %p213
      %p216 = scmp.ne.s32.totalorder %s201, %s215
      %p217 = scmp.eq.s32.totalorder %s23, 0
      %p218 = por %p216, %p217
      %s219 = ssub.s32 %s17, %s24
      %p220 = scmp.eq.s32.totalorder %s219, 0
      %s222 = sadd.s32 %s221, 1
      %s223 = scalar_select %p220, %s221, %s222
      %p226 = pneg %p220
      %p227 = scmp.eq.s32.totalorder %s17, 1
      %p228 = por %p226, %p227
      %p229 = scmp.ne.s32.totalorder %s221, %s224
      %p230 = scmp.eq.s32.totalorder %s17, 0
      %p231 = por %p229, %p230
      %p232 = scmp.ne.s32.totalorder %s221, %s224
      %p233 = scmp.eq.s32.totalorder %s22, 1
      %p234 = por %p232, %p233
      %p235 = scmp.ne.s32.totalorder %s224, %s225
      %p236 = scmp.eq.s32.totalorder %s22, 0
      %p237 = por %p235, %p236
      %p238 = scmp.ne.s32.totalorder %s224, %s225
      %p239 = scmp.eq.s32.totalorder %s23, 1
      %p240 = por %p238, %p239
      %p242 = scmp.ne.s32.totalorder %s225, %s241
      %p243 = scmp.eq.s32.totalorder %s23, 0
      %p244 = por %p242, %p243
      %p245 = scmp.le.s32.totalorder 1, %s17
      %p246 = scmp.lt.s32.totalorder %s17, 3
      %p247 = pnand %p245, %p246
      %p248 = pneg %p247
      // Predicated region
      $region9: #{fno2d_forward.7} parent=5 // pred_check
        _
      $region10: #{fno2d_forward.7} parent=5 // pred_check_branch
        %250 = sbr.rel (%p247) target = $region12
      $region11: #{fno2d_forward.7} parent=5 // pred_region
        %s251 = ssub.s32 %s17, 1
        // Predicated region
        $region13: #{fno2d_forward.7} parent=11 // pred_check
          %p252 = pneg %p64
        $region14: #{fno2d_forward.7} parent=11 // pred_check_branch
          %254 = sbr.rel (%p252) target = $region16
        $region15: #{fno2d_forward.7} parent=11 // pred_region
          _
        $region16: #{fno2d_forward.7} parent=11 // pred_fallthru
          _
        // Predicated region
        $region17: #{fno2d_forward.7} parent=11 // pred_check
          %p255 = pneg %p85
        $region18: #{fno2d_forward.7} parent=11 // pred_check_branch
          %257 = sbr.rel (%p255) target = $region20
        $region19: #{fno2d_forward.7} parent=11 // pred_region
          _
        $region20: #{fno2d_forward.7} parent=11 // pred_fallthru
          _
        // Predicated region
        $region21: #{fno2d_forward.7} parent=11 // pred_check
          %p258 = pneg %p106
        $region22: #{fno2d_forward.7} parent=11 // pred_check_branch
          %260 = sbr.rel (%p258) target = $region24
        $region23: #{fno2d_forward.7} parent=11 // pred_region
          %262 = vsyncadd [#allocation3], 0
          %s263 = sshll.u32 %s3, 4
          %s264 = int_to_ptr.hbm [resolvable:$true] %s263
          %s265 = sshll.u32 [#allocation2], 4
          %s266 = int_to_ptr.vmem [resolvable:$true] %s265
          %271 = dma.hbm_to_vmem [thread:$0]  %s264, 16384, %s266, [#allocation3], 128, 128, 8
        $region24: #{fno2d_forward.7} parent=11 // pred_fallthru
          _
        // Predicated region
        $region25: #{fno2d_forward.7} parent=11 // pred_check
          %p272 = pneg %p127
        $region26: #{fno2d_forward.7} parent=11 // pred_check_branch
          %274 = sbr.rel (%p272) target = $region28
        $region27: #{fno2d_forward.7} parent=11 // pred_region
          %276 = vsyncadd [#allocation5], 0
          %s277 = sshll.u32 %s4, 4
          %s278 = int_to_ptr.hbm [resolvable:$true] %s277
          %s279 = sshll.u32 [#allocation4], 4
          %s280 = int_to_ptr.vmem [resolvable:$true] %s279
          %285 = dma.hbm_to_vmem [thread:$0]  %s278, 16384, %s280, [#allocation5], 128, 128, 8
        $region28: #{fno2d_forward.7} parent=11 // pred_fallthru
          _
        // Predicated region
        $region29: #{fno2d_forward.7} parent=11 // pred_check
          %p286 = pneg %p148
        $region30: #{fno2d_forward.7} parent=11 // pred_check_branch
          %288 = sbr.rel (%p286) target = $region32
        $region31: #{fno2d_forward.7} parent=11 // pred_region
          _
        $region32: #{fno2d_forward.7} parent=11 // pred_fallthru
          _
        // Predicated region
        $region33: #{fno2d_forward.7} parent=11 // pred_check
          %p289 = pneg %p169
        $region34: #{fno2d_forward.7} parent=11 // pred_check_branch
          %291 = sbr.rel (%p289) target = $region36
        $region35: #{fno2d_forward.7} parent=11 // pred_region
          %293 = vsyncadd [#allocation5], 0
          %s294 = sshll.u32 %s6, 4
          %s295 = int_to_ptr.hbm [resolvable:$true] %s294
          %s296 = sshll.u32 [#allocation6], 4
          %s297 = int_to_ptr.vmem [resolvable:$true] %s296
          %302 = dma.hbm_to_vmem [thread:$0]  %s295, 4096, %s297, [#allocation5], 256, 256, 16
        $region36: #{fno2d_forward.7} parent=11 // pred_fallthru
          _
        // Predicated region
        $region37: #{fno2d_forward.7} parent=11 // pred_check
          %p303 = pneg %p190
        $region38: #{fno2d_forward.7} parent=11 // pred_check_branch
          %305 = sbr.rel (%p303) target = $region40
        $region39: #{fno2d_forward.7} parent=11 // pred_region
          _
        $region40: #{fno2d_forward.7} parent=11 // pred_fallthru
          _
        // Predicated region
        $region41: #{fno2d_forward.7} parent=11 // pred_check
          %p306 = pneg %p211
        $region42: #{fno2d_forward.7} parent=11 // pred_check_branch
          %308 = sbr.rel (%p306) target = $region44
        $region43: #{fno2d_forward.7} parent=11 // pred_region
          _
        $region44: #{fno2d_forward.7} parent=11 // pred_fallthru
          _
      $region12: #{fno2d_forward.7} parent=5 // pred_fallthru
        _
      %p309 = scmp.lt.s32.totalorder %s17, 2
      // Predicated region
      $region45: #{fno2d_forward.7} parent=5 // pred_check
        %p310 = pneg %p309
      $region46: #{fno2d_forward.7} parent=5 // pred_check_branch
        %312 = sbr.rel (%p310) target = $region48
      $region47: #{fno2d_forward.7} parent=5 // pred_region
        // Predicated region
        $region49: #{fno2d_forward.7} parent=47 // pred_check
          %p313 = pneg %p37
        $region50: #{fno2d_forward.7} parent=47 // pred_check_branch
          %315 = sbr.rel (%p313) target = $region52
        $region51: #{fno2d_forward.7} parent=47 // pred_region
          %p316 = scmp.lt.s32.totalorder %s17, 1
          %s317 = scalar_select %p316, %s17, 1
          %s318 = smul.addr %s317, 8
          %s319 = smul.addr %s318, 8
          %s320 = scalar_lea.vmem %s0, %s319
        $region52: #{fno2d_forward.7} parent=47 // pred_fallthru
          _
      $region48: #{fno2d_forward.7} parent=5 // pred_fallthru
        _
      %p321 = scmp.le.s32.totalorder 1, %s17
      %p322 = scmp.lt.s32.totalorder %s17, 3
      %p323 = pnand %p321, %p322
      %p324 = pneg %p323
      // Predicated region
      $region53: #{fno2d_forward.7} parent=5 // pred_check
        _
      $region54: #{fno2d_forward.7} parent=5 // pred_check_branch
        %326 = sbr.rel (%p323) target = $region56
      $region55: #{fno2d_forward.7} parent=5 // pred_region
        %s327 = ssub.s32 %s17, 1
        // Predicated region
        $region57: #{fno2d_forward.7} parent=55 // pred_check
          %p328 = pneg %p106
        $region58: #{fno2d_forward.7} parent=55 // pred_check_branch
          %330 = sbr.rel (%p328) target = $region60
        $region59: #{fno2d_forward.7} parent=55 // pred_region
          %332 = dma.done [#allocation3], 16384
        $region60: #{fno2d_forward.7} parent=55 // pred_fallthru
          _
        // Predicated region
        $region61: #{fno2d_forward.7} parent=55 // pred_check
          %p333 = pneg %p127
        $region62: #{fno2d_forward.7} parent=55 // pred_check_branch
          %335 = sbr.rel (%p333) target = $region64
        $region63: #{fno2d_forward.7} parent=55 // pred_region
          %337 = dma.done [#allocation5], 16384
        $region64: #{fno2d_forward.7} parent=55 // pred_fallthru
          _
        // Predicated region
        $region65: #{fno2d_forward.7} parent=55 // pred_check
          %p338 = pneg %p169
        $region66: #{fno2d_forward.7} parent=55 // pred_check_branch
          %340 = sbr.rel (%p338) target = $region68
        $region67: #{fno2d_forward.7} parent=55 // pred_region
          %342 = dma.done [#allocation5], 4096
        $region68: #{fno2d_forward.7} parent=55 // pred_fallthru
          _
        %p343 = scmp.lt.s32.totalorder %s22, 1
        %s344 = scalar_select %p343, %s22, 1
        %s345 = smul.addr %s344, 8
        %s346 = smul.addr %s345, 8
        %s347 = scalar_lea.vmem %s0, %s346
        %p348 = pneg %p43
        %p349 = pneg %p40
        %p350 = pneg %p64
        %p351 = pneg %p61
        %p352 = pneg %p85
        %p353 = pneg %p82
        %p354 = pneg %p106
        %p355 = pneg %p103
        %p356 = pneg %p127
        %p357 = pneg %p124
        %p358 = pneg %p148
        %p359 = pneg %p145
        %p360 = pneg %p169
        %p361 = pneg %p166
        %p362 = pneg %p190
        %p363 = pneg %p187
        %p364 = pneg %p211
        %p365 = pneg %p208
        %p366 = pneg %p237
        %p367 = pneg %p234
        %p368 = scmp.lt.s32.totalorder %s22, 1
        %s369 = scalar_select %p368, %s22, 1
        %s370 = smul.addr %s369, 8
        %s371 = smul.addr %s370, 8
        %s372 = scalar_lea.vmem %s9, %s371
        %p373 = scmp.lt.s32.totalorder %s22, 1
        %s374 = scalar_select %p373, %s22, 1
        %s375 = smul.addr %s374, 8
        %s376 = smul.addr %s375, 8
        %s377 = scalar_lea.vmem %s0, %s376
        %p378 = scmp.lt.s32.totalorder %s22, 1
        %s379 = scalar_select %p378, %s22, 1
        %s380 = smul.addr %s379, 8
        %s381 = smul.addr %s380, 8
        %s382 = scalar_lea.vmem %s9, %s381
        %v383 = vld [vmem:[%s377] sm:$0xff]
        %v384 = vld [vmem:[%s377 + $0x8] sm:$0xff]
        %v385 = vld [vmem:[%s377 + $0x10] sm:$0xff]
        %v386 = vld [vmem:[%s377 + $0x18] sm:$0xff]
        %v387 = vld [vmem:[%s377 + $0x20] sm:$0xff]
        %v388 = vld [vmem:[%s377 + $0x28] sm:$0xff]
        %v389 = vld [vmem:[%s377 + $0x30] sm:$0xff]
        %v390 = vld [vmem:[%s377 + $0x38] sm:$0xff]
        %v391 = vld [vmem:[%s1] sm:$0xff]
        %v392 = vld [vmem:[%s1 + $0x8] sm:$0xff]
        %v393 = vld [vmem:[%s1 + $0x10] sm:$0xff]
        %v394 = vld [vmem:[%s1 + $0x18] sm:$0xff]
        %v395 = vld [vmem:[%s1 + $0x20] sm:$0xff]
        %v396 = vld [vmem:[%s1 + $0x28] sm:$0xff]
        %v397 = vld [vmem:[%s1 + $0x30] sm:$0xff]
        %v398 = vld [vmem:[%s1 + $0x38] sm:$0xff]
        %v399 = vld [vmem:[%s1 + $0x40] sm:$0xff]
        %v400 = vld [vmem:[%s1 + $0x48] sm:$0xff]
        %v401 = vld [vmem:[%s1 + $0x50] sm:$0xff]
        %v402 = vld [vmem:[%s1 + $0x58] sm:$0xff]
        %v403 = vld [vmem:[%s1 + $0x60] sm:$0xff]
        %v404 = vld [vmem:[%s1 + $0x68] sm:$0xff]
        %v405 = vld [vmem:[%s1 + $0x70] sm:$0xff]
        %v406 = vld [vmem:[%s1 + $0x78] sm:$0xff]
        %v407 = vld [vmem:[%s1 + $0x80] sm:$0xff]
        %v408 = vld [vmem:[%s1 + $0x88] sm:$0xff]
        %v409 = vld [vmem:[%s1 + $0x90] sm:$0xff]
        %v410 = vld [vmem:[%s1 + $0x98] sm:$0xff]
        %v411 = vld [vmem:[%s1 + $0xa0] sm:$0xff]
        %v412 = vld [vmem:[%s1 + $0xa8] sm:$0xff]
        %v413 = vld [vmem:[%s1 + $0xb0] sm:$0xff]
        %v414 = vld [vmem:[%s1 + $0xb8] sm:$0xff]
        %v415 = vld [vmem:[%s1 + $0xc0] sm:$0xff]
        %v416 = vld [vmem:[%s1 + $0xc8] sm:$0xff]
        %v417 = vld [vmem:[%s1 + $0xd0] sm:$0xff]
        %v418 = vld [vmem:[%s1 + $0xd8] sm:$0xff]
        %v419 = vld [vmem:[%s1 + $0xe0] sm:$0xff]
        %v420 = vld [vmem:[%s1 + $0xe8] sm:$0xff]
        %v421 = vld [vmem:[%s1 + $0xf0] sm:$0xff]
        %v422 = vld [vmem:[%s1 + $0xf8] sm:$0xff]
        %423 = vmatpush.msra.mxu0 %v406
        %424 = vmatpush.msra.mxu0 %v405
        %425 = vmatpush.msra.mxu0 %v404
        %426 = vmatpush.msra.mxu0 %v403
        %427 = vmatpush.msra.mxu0 %v402
        %428 = vmatpush.msra.mxu0 %v401
        %429 = vmatpush.msra.mxu0 %v400
        %430 = vmatpush.msra.mxu0 %v399
        %431 = vmatpush.msra.mxu0 %v398
        %432 = vmatpush.msra.mxu0 %v397
        %433 = vmatpush.msra.mxu0 %v396
        %434 = vmatpush.msra.mxu0 %v395
        %435 = vmatpush.msra.mxu0 %v394
        %436 = vmatpush.msra.mxu0 %v393
        %437 = vmatpush.msra.mxu0 %v392
        %438 = vmatpush.msra.mxu0 %v391
        %439 = vmatmul.f32.gmra.mxu0 %v383
        %v440 = vpop.f32.mrf.mxu0
        %v441 = vadd.f32 0.0, %v440
        %442 = vmatmul.f32.gmra.mxu0 %v385
        %v443 = vpop.f32.mrf.mxu0
        %v444 = vadd.f32 0.0, %v443
        %445 = vmatmul.f32.gmra.mxu0 %v387
        %v446 = vpop.f32.mrf.mxu0
        %v447 = vadd.f32 0.0, %v446
        %448 = vmatmul.f32.gmra.mxu0 %v389
        %v449 = vpop.f32.mrf.mxu0
        %v450 = vadd.f32 0.0, %v449
        %451 = vdwg.mxu0
        %452 = vmatpush.msra.mxu0 %v422
        %453 = vmatpush.msra.mxu0 %v421
        %454 = vmatpush.msra.mxu0 %v420
        %455 = vmatpush.msra.mxu0 %v419
        %456 = vmatpush.msra.mxu0 %v418
        %457 = vmatpush.msra.mxu0 %v417
        %458 = vmatpush.msra.mxu0 %v416
        %459 = vmatpush.msra.mxu0 %v415
        %460 = vmatpush.msra.mxu0 %v414
        %461 = vmatpush.msra.mxu0 %v413
        %462 = vmatpush.msra.mxu0 %v412
        %463 = vmatpush.msra.mxu0 %v411
        %464 = vmatpush.msra.mxu0 %v410
        %465 = vmatpush.msra.mxu0 %v409
        %466 = vmatpush.msra.mxu0 %v408
        %467 = vmatpush.msra.mxu0 %v407
        %468 = vmatmul.f32.gmra.mxu0 %v384
        %v469 = vpop.f32.mrf.mxu0
        %v470 = vadd.f32 %v441, %v469
        %471 = vmatmul.f32.gmra.mxu0 %v386
        %v472 = vpop.f32.mrf.mxu0
        %v473 = vadd.f32 %v444, %v472
        %474 = vmatmul.f32.gmra.mxu0 %v388
        %v475 = vpop.f32.mrf.mxu0
        %v476 = vadd.f32 %v447, %v475
        %477 = vmatmul.f32.gmra.mxu0 %v390
        %v478 = vpop.f32.mrf.mxu0
        %v479 = vadd.f32 %v450, %v478
        %480 = vdwg.mxu0
        %v481 = vld [vmem:[%s2] sm:$0xff]
        %v482 = vld [vmem:[%s2 + $0x8] sm:$0xff]
        %v483 = vld [vmem:[%s2 + $0x10] sm:$0xff]
        %v484 = vld [vmem:[%s2 + $0x18] sm:$0xff]
        %v485 = vld [vmem:[%s2 + $0x20] sm:$0xff]
        %v486 = vld [vmem:[%s2 + $0x28] sm:$0xff]
        %v487 = vld [vmem:[%s2 + $0x30] sm:$0xff]
        %v488 = vld [vmem:[%s2 + $0x38] sm:$0xff]
        %v489 = vld [vmem:[%s2 + $0x40] sm:$0xff]
        %v490 = vld [vmem:[%s2 + $0x48] sm:$0xff]
        %v491 = vld [vmem:[%s2 + $0x50] sm:$0xff]
        %v492 = vld [vmem:[%s2 + $0x58] sm:$0xff]
        %v493 = vld [vmem:[%s2 + $0x60] sm:$0xff]
        %v494 = vld [vmem:[%s2 + $0x68] sm:$0xff]
        %v495 = vld [vmem:[%s2 + $0x70] sm:$0xff]
        %v496 = vld [vmem:[%s2 + $0x78] sm:$0xff]
        %v497 = vld [vmem:[%s2 + $0x80] sm:$0xff]
        %v498 = vld [vmem:[%s2 + $0x88] sm:$0xff]
        %v499 = vld [vmem:[%s2 + $0x90] sm:$0xff]
        %v500 = vld [vmem:[%s2 + $0x98] sm:$0xff]
        %v501 = vld [vmem:[%s2 + $0xa0] sm:$0xff]
        %v502 = vld [vmem:[%s2 + $0xa8] sm:$0xff]
        %v503 = vld [vmem:[%s2 + $0xb0] sm:$0xff]
        %v504 = vld [vmem:[%s2 + $0xb8] sm:$0xff]
        %v505 = vld [vmem:[%s2 + $0xc0] sm:$0xff]
        %v506 = vld [vmem:[%s2 + $0xc8] sm:$0xff]
        %v507 = vld [vmem:[%s2 + $0xd0] sm:$0xff]
        %v508 = vld [vmem:[%s2 + $0xd8] sm:$0xff]
        %v509 = vld [vmem:[%s2 + $0xe0] sm:$0xff]
        %v510 = vld [vmem:[%s2 + $0xe8] sm:$0xff]
        %v511 = vld [vmem:[%s2 + $0xf0] sm:$0xff]
        %v512 = vld [vmem:[%s2 + $0xf8] sm:$0xff]
        %513 = vmatpush.msra.mxu0 %v496
        %514 = vmatpush.msra.mxu0 %v495
        %515 = vmatpush.msra.mxu0 %v494
        %516 = vmatpush.msra.mxu0 %v493
        %517 = vmatpush.msra.mxu0 %v492
        %518 = vmatpush.msra.mxu0 %v491
        %519 = vmatpush.msra.mxu0 %v490
        %520 = vmatpush.msra.mxu0 %v489
        %521 = vmatpush.msra.mxu0 %v488
        %522 = vmatpush.msra.mxu0 %v487
        %523 = vmatpush.msra.mxu0 %v486
        %524 = vmatpush.msra.mxu0 %v485
        %525 = vmatpush.msra.mxu0 %v484
        %526 = vmatpush.msra.mxu0 %v483
        %527 = vmatpush.msra.mxu0 %v482
        %528 = vmatpush.msra.mxu0 %v481
        %529 = vmatmul.f32.gmra.mxu0 %v383
        %v530 = vpop.f32.mrf.mxu0
        %v531 = vadd.f32 0.0, %v530
        %532 = vmatmul.f32.gmra.mxu0 %v385
        %v533 = vpop.f32.mrf.mxu0
        %v534 = vadd.f32 0.0, %v533
        %535 = vmatmul.f32.gmra.mxu0 %v387
        %v536 = vpop.f32.mrf.mxu0
        %v537 = vadd.f32 0.0, %v536
        %538 = vmatmul.f32.gmra.mxu0 %v389
        %v539 = vpop.f32.mrf.mxu0
        %v540 = vadd.f32 0.0, %v539
        %541 = vdwg.mxu0
        %542 = vmatpush.msra.mxu0 %v512
        %543 = vmatpush.msra.mxu0 %v511
        %544 = vmatpush.msra.mxu0 %v510
        %545 = vmatpush.msra.mxu0 %v509
        %546 = vmatpush.msra.mxu0 %v508
        %547 = vmatpush.msra.mxu0 %v507
        %548 = vmatpush.msra.mxu0 %v506
        %549 = vmatpush.msra.mxu0 %v505
        %550 = vmatpush.msra.mxu0 %v504
        %551 = vmatpush.msra.mxu0 %v503
        %552 = vmatpush.msra.mxu0 %v502
        %553 = vmatpush.msra.mxu0 %v501
        %554 = vmatpush.msra.mxu0 %v500
        %555 = vmatpush.msra.mxu0 %v499
        %556 = vmatpush.msra.mxu0 %v498
        %557 = vmatpush.msra.mxu0 %v497
        %558 = vmatmul.f32.gmra.mxu0 %v384
        %v559 = vpop.f32.mrf.mxu0
        %v560 = vadd.f32 %v531, %v559
        %561 = vmatmul.f32.gmra.mxu0 %v386
        %v562 = vpop.f32.mrf.mxu0
        %v563 = vadd.f32 %v534, %v562
        %564 = vmatmul.f32.gmra.mxu0 %v388
        %v565 = vpop.f32.mrf.mxu0
        %v566 = vadd.f32 %v537, %v565
        %567 = vmatmul.f32.gmra.mxu0 %v390
        %v568 = vpop.f32.mrf.mxu0
        %v569 = vadd.f32 %v540, %v568
        %570 = vdwg.mxu0
        %v571 = vld [vmem:[#allocation2] sm:$0xff]
        %v572 = vld [vmem:[#allocation2 + $0x8] sm:$0xff]
        %v573 = vld [vmem:[#allocation2 + $0x10] sm:$0xff]
        %v574 = vld [vmem:[#allocation2 + $0x18] sm:$0xff]
        %v575 = vld [vmem:[#allocation2 + $0x20] sm:$0xff]
        %v576 = vld [vmem:[#allocation2 + $0x28] sm:$0xff]
        %v577 = vld [vmem:[#allocation2 + $0x30] sm:$0xff]
        %v578 = vld [vmem:[#allocation2 + $0x38] sm:$0xff]
        %v579 = vld [vmem:[#allocation2 + $0x40] sm:$0xff]
        %v580 = vld [vmem:[#allocation2 + $0x48] sm:$0xff]
        %v581 = vld [vmem:[#allocation2 + $0x50] sm:$0xff]
        %v582 = vld [vmem:[#allocation2 + $0x58] sm:$0xff]
        %v583 = vld [vmem:[#allocation2 + $0x60] sm:$0xff]
        %v584 = vld [vmem:[#allocation2 + $0x68] sm:$0xff]
        %v585 = vld [vmem:[#allocation2 + $0x70] sm:$0xff]
        %v586 = vld [vmem:[#allocation2 + $0x78] sm:$0xff]
        %v587 = vld [vmem:[#allocation2 + $0x80] sm:$0xff]
        %v588 = vld [vmem:[#allocation2 + $0x88] sm:$0xff]
        %v589 = vld [vmem:[#allocation2 + $0x90] sm:$0xff]
        %v590 = vld [vmem:[#allocation2 + $0x98] sm:$0xff]
        %v591 = vld [vmem:[#allocation2 + $0xa0] sm:$0xff]
        %v592 = vld [vmem:[#allocation2 + $0xa8] sm:$0xff]
        %v593 = vld [vmem:[#allocation2 + $0xb0] sm:$0xff]
        %v594 = vld [vmem:[#allocation2 + $0xb8] sm:$0xff]
        %v595 = vld [vmem:[#allocation2 + $0xc0] sm:$0xff]
        %v596 = vld [vmem:[#allocation2 + $0xc8] sm:$0xff]
        %v597 = vld [vmem:[#allocation2 + $0xd0] sm:$0xff]
        %v598 = vld [vmem:[#allocation2 + $0xd8] sm:$0xff]
        %v599 = vld [vmem:[#allocation2 + $0xe0] sm:$0xff]
        %v600 = vld [vmem:[#allocation2 + $0xe8] sm:$0xff]
        %v601 = vld [vmem:[#allocation2 + $0xf0] sm:$0xff]
        %v602 = vld [vmem:[#allocation2 + $0xf8] sm:$0xff]
        %v603 = vld [vmem:[#allocation2 + $0x100] sm:$0xff]
        %v604 = vld [vmem:[#allocation2 + $0x108] sm:$0xff]
        %v605 = vld [vmem:[#allocation2 + $0x110] sm:$0xff]
        %v606 = vld [vmem:[#allocation2 + $0x118] sm:$0xff]
        %v607 = vld [vmem:[#allocation2 + $0x120] sm:$0xff]
        %v608 = vld [vmem:[#allocation2 + $0x128] sm:$0xff]
        %v609 = vld [vmem:[#allocation2 + $0x130] sm:$0xff]
        %v610 = vld [vmem:[#allocation2 + $0x138] sm:$0xff]
        %v611 = vld [vmem:[#allocation2 + $0x140] sm:$0xff]
        %v612 = vld [vmem:[#allocation2 + $0x148] sm:$0xff]
        %v613 = vld [vmem:[#allocation2 + $0x150] sm:$0xff]
        %v614 = vld [vmem:[#allocation2 + $0x158] sm:$0xff]
        %v615 = vld [vmem:[#allocation2 + $0x160] sm:$0xff]
        %v616 = vld [vmem:[#allocation2 + $0x168] sm:$0xff]
        %v617 = vld [vmem:[#allocation2 + $0x170] sm:$0xff]
        %v618 = vld [vmem:[#allocation2 + $0x178] sm:$0xff]
        %v619 = vld [vmem:[#allocation2 + $0x180] sm:$0xff]
        %v620 = vld [vmem:[#allocation2 + $0x188] sm:$0xff]
        %v621 = vld [vmem:[#allocation2 + $0x190] sm:$0xff]
        %v622 = vld [vmem:[#allocation2 + $0x198] sm:$0xff]
        %v623 = vld [vmem:[#allocation2 + $0x1a0] sm:$0xff]
        %v624 = vld [vmem:[#allocation2 + $0x1a8] sm:$0xff]
        %v625 = vld [vmem:[#allocation2 + $0x1b0] sm:$0xff]
        %v626 = vld [vmem:[#allocation2 + $0x1b8] sm:$0xff]
        %v627 = vld [vmem:[#allocation2 + $0x1c0] sm:$0xff]
        %v628 = vld [vmem:[#allocation2 + $0x1c8] sm:$0xff]
        %v629 = vld [vmem:[#allocation2 + $0x1d0] sm:$0xff]
        %v630 = vld [vmem:[#allocation2 + $0x1d8] sm:$0xff]
        %v631 = vld [vmem:[#allocation2 + $0x1e0] sm:$0xff]
        %v632 = vld [vmem:[#allocation2 + $0x1e8] sm:$0xff]
        %v633 = vld [vmem:[#allocation2 + $0x1f0] sm:$0xff]
        %v634 = vld [vmem:[#allocation2 + $0x1f8] sm:$0xff]
        %v635 = vld [vmem:[#allocation2 + $0x200] sm:$0xff]
        %v636 = vld [vmem:[#allocation2 + $0x208] sm:$0xff]
        %v637 = vld [vmem:[#allocation2 + $0x210] sm:$0xff]
        %v638 = vld [vmem:[#allocation2 + $0x218] sm:$0xff]
        %v639 = vld [vmem:[#allocation2 + $0x220] sm:$0xff]
        %v640 = vld [vmem:[#allocation2 + $0x228] sm:$0xff]
        %v641 = vld [vmem:[#allocation2 + $0x230] sm:$0xff]
        %v642 = vld [vmem:[#allocation2 + $0x238] sm:$0xff]
        %v643 = vld [vmem:[#allocation2 + $0x240] sm:$0xff]
        %v644 = vld [vmem:[#allocation2 + $0x248] sm:$0xff]
        %v645 = vld [vmem:[#allocation2 + $0x250] sm:$0xff]
        %v646 = vld [vmem:[#allocation2 + $0x258] sm:$0xff]
        %v647 = vld [vmem:[#allocation2 + $0x260] sm:$0xff]
        %v648 = vld [vmem:[#allocation2 + $0x268] sm:$0xff]
        %v649 = vld [vmem:[#allocation2 + $0x270] sm:$0xff]
        %v650 = vld [vmem:[#allocation2 + $0x278] sm:$0xff]
        %v651 = vld [vmem:[#allocation2 + $0x280] sm:$0xff]
        %v652 = vld [vmem:[#allocation2 + $0x288] sm:$0xff]
        %v653 = vld [vmem:[#allocation2 + $0x290] sm:$0xff]
        %v654 = vld [vmem:[#allocation2 + $0x298] sm:$0xff]
        %v655 = vld [vmem:[#allocation2 + $0x2a0] sm:$0xff]
        %v656 = vld [vmem:[#allocation2 + $0x2a8] sm:$0xff]
        %v657 = vld [vmem:[#allocation2 + $0x2b0] sm:$0xff]
        %v658 = vld [vmem:[#allocation2 + $0x2b8] sm:$0xff]
        %v659 = vld [vmem:[#allocation2 + $0x2c0] sm:$0xff]
        %v660 = vld [vmem:[#allocation2 + $0x2c8] sm:$0xff]
        %v661 = vld [vmem:[#allocation2 + $0x2d0] sm:$0xff]
        %v662 = vld [vmem:[#allocation2 + $0x2d8] sm:$0xff]
        %v663 = vld [vmem:[#allocation2 + $0x2e0] sm:$0xff]
        %v664 = vld [vmem:[#allocation2 + $0x2e8] sm:$0xff]
        %v665 = vld [vmem:[#allocation2 + $0x2f0] sm:$0xff]
        %v666 = vld [vmem:[#allocation2 + $0x2f8] sm:$0xff]
        %v667 = vld [vmem:[#allocation2 + $0x300] sm:$0xff]
        %v668 = vld [vmem:[#allocation2 + $0x308] sm:$0xff]
        %v669 = vld [vmem:[#allocation2 + $0x310] sm:$0xff]
        %v670 = vld [vmem:[#allocation2 + $0x318] sm:$0xff]
        %v671 = vld [vmem:[#allocation2 + $0x320] sm:$0xff]
        %v672 = vld [vmem:[#allocation2 + $0x328] sm:$0xff]
        %v673 = vld [vmem:[#allocation2 + $0x330] sm:$0xff]
        %v674 = vld [vmem:[#allocation2 + $0x338] sm:$0xff]
        %v675 = vld [vmem:[#allocation2 + $0x340] sm:$0xff]
        %v676 = vld [vmem:[#allocation2 + $0x348] sm:$0xff]
        %v677 = vld [vmem:[#allocation2 + $0x350] sm:$0xff]
        %v678 = vld [vmem:[#allocation2 + $0x358] sm:$0xff]
        %v679 = vld [vmem:[#allocation2 + $0x360] sm:$0xff]
        %v680 = vld [vmem:[#allocation2 + $0x368] sm:$0xff]
        %v681 = vld [vmem:[#allocation2 + $0x370] sm:$0xff]
        %v682 = vld [vmem:[#allocation2 + $0x378] sm:$0xff]
        %v683 = vld [vmem:[#allocation2 + $0x380] sm:$0xff]
        %v684 = vld [vmem:[#allocation2 + $0x388] sm:$0xff]
        %v685 = vld [vmem:[#allocation2 + $0x390] sm:$0xff]
        %v686 = vld [vmem:[#allocation2 + $0x398] sm:$0xff]
        %v687 = vld [vmem:[#allocation2 + $0x3a0] sm:$0xff]
        %v688 = vld [vmem:[#allocation2 + $0x3a8] sm:$0xff]
        %v689 = vld [vmem:[#allocation2 + $0x3b0] sm:$0xff]
        %v690 = vld [vmem:[#allocation2 + $0x3b8] sm:$0xff]
        %v691 = vld [vmem:[#allocation2 + $0x3c0] sm:$0xff]
        %v692 = vld [vmem:[#allocation2 + $0x3c8] sm:$0xff]
        %v693 = vld [vmem:[#allocation2 + $0x3d0] sm:$0xff]
        %v694 = vld [vmem:[#allocation2 + $0x3d8] sm:$0xff]
        %v695 = vld [vmem:[#allocation2 + $0x3e0] sm:$0xff]
        %v696 = vld [vmem:[#allocation2 + $0x3e8] sm:$0xff]
        %v697 = vld [vmem:[#allocation2 + $0x3f0] sm:$0xff]
        %v698 = vld [vmem:[#allocation2 + $0x3f8] sm:$0xff]
        %v699 = vld [vmem:[#allocation4] sm:$0xff]
        %v700 = vld [vmem:[#allocation4 + $0x8] sm:$0xff]
        %v701 = vld [vmem:[#allocation4 + $0x10] sm:$0xff]
        %v702 = vld [vmem:[#allocation4 + $0x18] sm:$0xff]
        %v703 = vld [vmem:[#allocation4 + $0x20] sm:$0xff]
        %v704 = vld [vmem:[#allocation4 + $0x28] sm:$0xff]
        %v705 = vld [vmem:[#allocation4 + $0x30] sm:$0xff]
        %v706 = vld [vmem:[#allocation4 + $0x38] sm:$0xff]
        %v707 = vld [vmem:[#allocation4 + $0x40] sm:$0xff]
        %v708 = vld [vmem:[#allocation4 + $0x48] sm:$0xff]
        %v709 = vld [vmem:[#allocation4 + $0x50] sm:$0xff]
        %v710 = vld [vmem:[#allocation4 + $0x58] sm:$0xff]
        %v711 = vld [vmem:[#allocation4 + $0x60] sm:$0xff]
        %v712 = vld [vmem:[#allocation4 + $0x68] sm:$0xff]
        %v713 = vld [vmem:[#allocation4 + $0x70] sm:$0xff]
        %v714 = vld [vmem:[#allocation4 + $0x78] sm:$0xff]
        %v715 = vld [vmem:[#allocation4 + $0x80] sm:$0xff]
        %v716 = vld [vmem:[#allocation4 + $0x88] sm:$0xff]
        %v717 = vld [vmem:[#allocation4 + $0x90] sm:$0xff]
        %v718 = vld [vmem:[#allocation4 + $0x98] sm:$0xff]
        %v719 = vld [vmem:[#allocation4 + $0xa0] sm:$0xff]
        %v720 = vld [vmem:[#allocation4 + $0xa8] sm:$0xff]
        %v721 = vld [vmem:[#allocation4 + $0xb0] sm:$0xff]
        %v722 = vld [vmem:[#allocation4 + $0xb8] sm:$0xff]
        %v723 = vld [vmem:[#allocation4 + $0xc0] sm:$0xff]
        %v724 = vld [vmem:[#allocation4 + $0xc8] sm:$0xff]
        %v725 = vld [vmem:[#allocation4 + $0xd0] sm:$0xff]
        %v726 = vld [vmem:[#allocation4 + $0xd8] sm:$0xff]
        %v727 = vld [vmem:[#allocation4 + $0xe0] sm:$0xff]
        %v728 = vld [vmem:[#allocation4 + $0xe8] sm:$0xff]
        %v729 = vld [vmem:[#allocation4 + $0xf0] sm:$0xff]
        %v730 = vld [vmem:[#allocation4 + $0xf8] sm:$0xff]
        %v731 = vld [vmem:[#allocation4 + $0x100] sm:$0xff]
        %v732 = vld [vmem:[#allocation4 + $0x108] sm:$0xff]
        %v733 = vld [vmem:[#allocation4 + $0x110] sm:$0xff]
        %v734 = vld [vmem:[#allocation4 + $0x118] sm:$0xff]
        %v735 = vld [vmem:[#allocation4 + $0x120] sm:$0xff]
        %v736 = vld [vmem:[#allocation4 + $0x128] sm:$0xff]
        %v737 = vld [vmem:[#allocation4 + $0x130] sm:$0xff]
        %v738 = vld [vmem:[#allocation4 + $0x138] sm:$0xff]
        %v739 = vld [vmem:[#allocation4 + $0x140] sm:$0xff]
        %v740 = vld [vmem:[#allocation4 + $0x148] sm:$0xff]
        %v741 = vld [vmem:[#allocation4 + $0x150] sm:$0xff]
        %v742 = vld [vmem:[#allocation4 + $0x158] sm:$0xff]
        %v743 = vld [vmem:[#allocation4 + $0x160] sm:$0xff]
        %v744 = vld [vmem:[#allocation4 + $0x168] sm:$0xff]
        %v745 = vld [vmem:[#allocation4 + $0x170] sm:$0xff]
        %v746 = vld [vmem:[#allocation4 + $0x178] sm:$0xff]
        %v747 = vld [vmem:[#allocation4 + $0x180] sm:$0xff]
        %v748 = vld [vmem:[#allocation4 + $0x188] sm:$0xff]
        %v749 = vld [vmem:[#allocation4 + $0x190] sm:$0xff]
        %v750 = vld [vmem:[#allocation4 + $0x198] sm:$0xff]
        %v751 = vld [vmem:[#allocation4 + $0x1a0] sm:$0xff]
        %v752 = vld [vmem:[#allocation4 + $0x1a8] sm:$0xff]
        %v753 = vld [vmem:[#allocation4 + $0x1b0] sm:$0xff]
        %v754 = vld [vmem:[#allocation4 + $0x1b8] sm:$0xff]
        %v755 = vld [vmem:[#allocation4 + $0x1c0] sm:$0xff]
        %v756 = vld [vmem:[#allocation4 + $0x1c8] sm:$0xff]
        %v757 = vld [vmem:[#allocation4 + $0x1d0] sm:$0xff]
        %v758 = vld [vmem:[#allocation4 + $0x1d8] sm:$0xff]
        %v759 = vld [vmem:[#allocation4 + $0x1e0] sm:$0xff]
        %v760 = vld [vmem:[#allocation4 + $0x1e8] sm:$0xff]
        %v761 = vld [vmem:[#allocation4 + $0x1f0] sm:$0xff]
        %v762 = vld [vmem:[#allocation4 + $0x1f8] sm:$0xff]
        %v763 = vld [vmem:[#allocation4 + $0x200] sm:$0xff]
        %v764 = vld [vmem:[#allocation4 + $0x208] sm:$0xff]
        %v765 = vld [vmem:[#allocation4 + $0x210] sm:$0xff]
        %v766 = vld [vmem:[#allocation4 + $0x218] sm:$0xff]
        %v767 = vld [vmem:[#allocation4 + $0x220] sm:$0xff]
        %v768 = vld [vmem:[#allocation4 + $0x228] sm:$0xff]
        %v769 = vld [vmem:[#allocation4 + $0x230] sm:$0xff]
        %v770 = vld [vmem:[#allocation4 + $0x238] sm:$0xff]
        %v771 = vld [vmem:[#allocation4 + $0x240] sm:$0xff]
        %v772 = vld [vmem:[#allocation4 + $0x248] sm:$0xff]
        %v773 = vld [vmem:[#allocation4 + $0x250] sm:$0xff]
        %v774 = vld [vmem:[#allocation4 + $0x258] sm:$0xff]
        %v775 = vld [vmem:[#allocation4 + $0x260] sm:$0xff]
        %v776 = vld [vmem:[#allocation4 + $0x268] sm:$0xff]
        %v777 = vld [vmem:[#allocation4 + $0x270] sm:$0xff]
        %v778 = vld [vmem:[#allocation4 + $0x278] sm:$0xff]
        %v779 = vld [vmem:[#allocation4 + $0x280] sm:$0xff]
        %v780 = vld [vmem:[#allocation4 + $0x288] sm:$0xff]
        %v781 = vld [vmem:[#allocation4 + $0x290] sm:$0xff]
        %v782 = vld [vmem:[#allocation4 + $0x298] sm:$0xff]
        %v783 = vld [vmem:[#allocation4 + $0x2a0] sm:$0xff]
        %v784 = vld [vmem:[#allocation4 + $0x2a8] sm:$0xff]
        %v785 = vld [vmem:[#allocation4 + $0x2b0] sm:$0xff]
        %v786 = vld [vmem:[#allocation4 + $0x2b8] sm:$0xff]
        %v787 = vld [vmem:[#allocation4 + $0x2c0] sm:$0xff]
        %v788 = vld [vmem:[#allocation4 + $0x2c8] sm:$0xff]
        %v789 = vld [vmem:[#allocation4 + $0x2d0] sm:$0xff]
        %v790 = vld [vmem:[#allocation4 + $0x2d8] sm:$0xff]
        %v791 = vld [vmem:[#allocation4 + $0x2e0] sm:$0xff]
        %v792 = vld [vmem:[#allocation4 + $0x2e8] sm:$0xff]
        %v793 = vld [vmem:[#allocation4 + $0x2f0] sm:$0xff]
        %v794 = vld [vmem:[#allocation4 + $0x2f8] sm:$0xff]
        %v795 = vld [vmem:[#allocation4 + $0x300] sm:$0xff]
        %v796 = vld [vmem:[#allocation4 + $0x308] sm:$0xff]
        %v797 = vld [vmem:[#allocation4 + $0x310] sm:$0xff]
        %v798 = vld [vmem:[#allocation4 + $0x318] sm:$0xff]
        %v799 = vld [vmem:[#allocation4 + $0x320] sm:$0xff]
        %v800 = vld [vmem:[#allocation4 + $0x328] sm:$0xff]
        %v801 = vld [vmem:[#allocation4 + $0x330] sm:$0xff]
        %v802 = vld [vmem:[#allocation4 + $0x338] sm:$0xff]
        %v803 = vld [vmem:[#allocation4 + $0x340] sm:$0xff]
        %v804 = vld [vmem:[#allocation4 + $0x348] sm:$0xff]
        %v805 = vld [vmem:[#allocation4 + $0x350] sm:$0xff]
        %v806 = vld [vmem:[#allocation4 + $0x358] sm:$0xff]
        %v807 = vld [vmem:[#allocation4 + $0x360] sm:$0xff]
        %v808 = vld [vmem:[#allocation4 + $0x368] sm:$0xff]
        %v809 = vld [vmem:[#allocation4 + $0x370] sm:$0xff]
        %v810 = vld [vmem:[#allocation4 + $0x378] sm:$0xff]
        %v811 = vld [vmem:[#allocation4 + $0x380] sm:$0xff]
        %v812 = vld [vmem:[#allocation4 + $0x388] sm:$0xff]
        %v813 = vld [vmem:[#allocation4 + $0x390] sm:$0xff]
        %v814 = vld [vmem:[#allocation4 + $0x398] sm:$0xff]
        %v815 = vld [vmem:[#allocation4 + $0x3a0] sm:$0xff]
        %v816 = vld [vmem:[#allocation4 + $0x3a8] sm:$0xff]
        %v817 = vld [vmem:[#allocation4 + $0x3b0] sm:$0xff]
        %v818 = vld [vmem:[#allocation4 + $0x3b8] sm:$0xff]
        %v819 = vld [vmem:[#allocation4 + $0x3c0] sm:$0xff]
        %v820 = vld [vmem:[#allocation4 + $0x3c8] sm:$0xff]
        %v821 = vld [vmem:[#allocation4 + $0x3d0] sm:$0xff]
        %v822 = vld [vmem:[#allocation4 + $0x3d8] sm:$0xff]
        %v823 = vld [vmem:[#allocation4 + $0x3e0] sm:$0xff]
        %v824 = vld [vmem:[#allocation4 + $0x3e8] sm:$0xff]
        %v825 = vld [vmem:[#allocation4 + $0x3f0] sm:$0xff]
        %v826 = vld [vmem:[#allocation4 + $0x3f8] sm:$0xff]
        %v831 = vrot.slane %v470, 1
        %v832 = vrot.slane %v470, 2
        %v833 = vrot.slane %v470, 3
        %v834 = vrot.slane %v470, 4
        %v835 = vrot.slane %v470, 5
        %v836 = vrot.slane %v470, 6
        %v837 = vrot.slane %v470, 7
        %v838 = vrot.slane %v473, 1
        %v839 = vrot.slane %v473, 2
        %v840 = vrot.slane %v473, 3
        %v841 = vrot.slane %v473, 4
        %v842 = vrot.slane %v473, 5
        %v843 = vrot.slane %v473, 6
        %v844 = vrot.slane %v473, 7
        %v845 = vrot.slane %v476, 1
        %v846 = vrot.slane %v476, 2
        %v847 = vrot.slane %v476, 3
        %v848 = vrot.slane %v476, 4
        %v849 = vrot.slane %v476, 5
        %v850 = vrot.slane %v476, 6
        %v851 = vrot.slane %v476, 7
        %v852 = vrot.slane %v479, 1
        %v853 = vrot.slane %v479, 2
        %v854 = vrot.slane %v479, 3
        %v855 = vrot.slane %v479, 4
        %v856 = vrot.slane %v479, 5
        %v857 = vrot.slane %v479, 6
        %v858 = vrot.slane %v479, 7
        %v863 = vrot.slane %v560, 1
        %v864 = vrot.slane %v560, 2
        %v865 = vrot.slane %v560, 3
        %v866 = vrot.slane %v560, 4
        %v867 = vrot.slane %v560, 5
        %v868 = vrot.slane %v560, 6
        %v869 = vrot.slane %v560, 7
        %v870 = vrot.slane %v563, 1
        %v871 = vrot.slane %v563, 2
        %v872 = vrot.slane %v563, 3
        %v873 = vrot.slane %v563, 4
        %v874 = vrot.slane %v563, 5
        %v875 = vrot.slane %v563, 6
        %v876 = vrot.slane %v563, 7
        %v877 = vrot.slane %v566, 1
        %v878 = vrot.slane %v566, 2
        %v879 = vrot.slane %v566, 3
        %v880 = vrot.slane %v566, 4
        %v881 = vrot.slane %v566, 5
        %v882 = vrot.slane %v566, 6
        %v883 = vrot.slane %v566, 7
        %v884 = vrot.slane %v569, 1
        %v885 = vrot.slane %v569, 2
        %v886 = vrot.slane %v569, 3
        %v887 = vrot.slane %v569, 4
        %v888 = vrot.slane %v569, 5
        %v889 = vrot.slane %v569, 6
        %v890 = vrot.slane %v569, 7
        %v891 = vperm.slane %v470, 0
        %v892 = vperm.slane %v831, 0
        %v893 = vperm.slane %v832, 0
        %v894 = vperm.slane %v833, 0
        %v895 = vperm.slane %v834, 0
        %v896 = vperm.slane %v835, 0
        %v897 = vperm.slane %v836, 0
        %v898 = vperm.slane %v837, 0
        %v899 = vperm.slane %v473, 0
        %v900 = vperm.slane %v838, 0
        %v901 = vperm.slane %v839, 0
        %v902 = vperm.slane %v840, 0
        %v903 = vperm.slane %v841, 0
        %v904 = vperm.slane %v842, 0
        %v905 = vperm.slane %v843, 0
        %v906 = vperm.slane %v844, 0
        %v907 = vperm.slane %v476, 0
        %v908 = vperm.slane %v845, 0
        %v909 = vperm.slane %v846, 0
        %v910 = vperm.slane %v847, 0
        %v911 = vperm.slane %v848, 0
        %v912 = vperm.slane %v849, 0
        %v913 = vperm.slane %v850, 0
        %v914 = vperm.slane %v851, 0
        %v915 = vperm.slane %v479, 0
        %v916 = vperm.slane %v852, 0
        %v917 = vperm.slane %v853, 0
        %v918 = vperm.slane %v854, 0
        %v919 = vperm.slane %v855, 0
        %v920 = vperm.slane %v856, 0
        %v921 = vperm.slane %v857, 0
        %v922 = vperm.slane %v858, 0
        %v955 = vmul.f32 %v891, %v571
        %v956 = vmul.f32 %v891, %v572
        %v957 = vmul.f32 %v891, %v573
        %v958 = vmul.f32 %v891, %v574
        %v959 = vmul.f32 %v892, %v575
        %v960 = vmul.f32 %v892, %v576
        %v961 = vmul.f32 %v892, %v577
        %v962 = vmul.f32 %v892, %v578
        %v963 = vmul.f32 %v893, %v579
        %v964 = vmul.f32 %v893, %v580
        %v965 = vmul.f32 %v893, %v581
        %v966 = vmul.f32 %v893, %v582
        %v967 = vmul.f32 %v894, %v583
        %v968 = vmul.f32 %v894, %v584
        %v969 = vmul.f32 %v894, %v585
        %v970 = vmul.f32 %v894, %v586
        %v971 = vmul.f32 %v895, %v587
        %v972 = vmul.f32 %v895, %v588
        %v973 = vmul.f32 %v895, %v589
        %v974 = vmul.f32 %v895, %v590
        %v975 = vmul.f32 %v896, %v591
        %v976 = vmul.f32 %v896, %v592
        %v977 = vmul.f32 %v896, %v593
        %v978 = vmul.f32 %v896, %v594
        %v979 = vmul.f32 %v897, %v595
        %v980 = vmul.f32 %v897, %v596
        %v981 = vmul.f32 %v897, %v597
        %v982 = vmul.f32 %v897, %v598
        %v983 = vmul.f32 %v898, %v599
        %v984 = vmul.f32 %v898, %v600
        %v985 = vmul.f32 %v898, %v601
        %v986 = vmul.f32 %v898, %v602
        %v987 = vmul.f32 %v899, %v603
        %v988 = vmul.f32 %v899, %v604
        %v989 = vmul.f32 %v899, %v605
        %v990 = vmul.f32 %v899, %v606
        %v991 = vmul.f32 %v900, %v607
        %v992 = vmul.f32 %v900, %v608
        %v993 = vmul.f32 %v900, %v609
        %v994 = vmul.f32 %v900, %v610
        %v995 = vmul.f32 %v901, %v611
        %v996 = vmul.f32 %v901, %v612
        %v997 = vmul.f32 %v901, %v613
        %v998 = vmul.f32 %v901, %v614
        %v999 = vmul.f32 %v902, %v615
        %v1000 = vmul.f32 %v902, %v616
        %v1001 = vmul.f32 %v902, %v617
        %v1002 = vmul.f32 %v902, %v618
        %v1003 = vmul.f32 %v903, %v619
        %v1004 = vmul.f32 %v903, %v620
        %v1005 = vmul.f32 %v903, %v621
        %v1006 = vmul.f32 %v903, %v622
        %v1007 = vmul.f32 %v904, %v623
        %v1008 = vmul.f32 %v904, %v624
        %v1009 = vmul.f32 %v904, %v625
        %v1010 = vmul.f32 %v904, %v626
        %v1011 = vmul.f32 %v905, %v627
        %v1012 = vmul.f32 %v905, %v628
        %v1013 = vmul.f32 %v905, %v629
        %v1014 = vmul.f32 %v905, %v630
        %v1015 = vmul.f32 %v906, %v631
        %v1016 = vmul.f32 %v906, %v632
        %v1017 = vmul.f32 %v906, %v633
        %v1018 = vmul.f32 %v906, %v634
        %v1019 = vmul.f32 %v907, %v635
        %v1020 = vmul.f32 %v907, %v636
        %v1021 = vmul.f32 %v907, %v637
        %v1022 = vmul.f32 %v907, %v638
        %v1023 = vmul.f32 %v908, %v639
        %v1024 = vmul.f32 %v908, %v640
        %v1025 = vmul.f32 %v908, %v641
        %v1026 = vmul.f32 %v908, %v642
        %v1027 = vmul.f32 %v909, %v643
        %v1028 = vmul.f32 %v909, %v644
        %v1029 = vmul.f32 %v909, %v645
        %v1030 = vmul.f32 %v909, %v646
        %v1031 = vmul.f32 %v910, %v647
        %v1032 = vmul.f32 %v910, %v648
        %v1033 = vmul.f32 %v910, %v649
        %v1034 = vmul.f32 %v910, %v650
        %v1035 = vmul.f32 %v911, %v651
        %v1036 = vmul.f32 %v911, %v652
        %v1037 = vmul.f32 %v911, %v653
        %v1038 = vmul.f32 %v911, %v654
        %v1039 = vmul.f32 %v912, %v655
        %v1040 = vmul.f32 %v912, %v656
        %v1041 = vmul.f32 %v912, %v657
        %v1042 = vmul.f32 %v912, %v658
        %v1043 = vmul.f32 %v913, %v659
        %v1044 = vmul.f32 %v913, %v660
        %v1045 = vmul.f32 %v913, %v661
        %v1046 = vmul.f32 %v913, %v662
        %v1047 = vmul.f32 %v914, %v663
        %v1048 = vmul.f32 %v914, %v664
        %v1049 = vmul.f32 %v914, %v665
        %v1050 = vmul.f32 %v914, %v666
        %v1051 = vmul.f32 %v915, %v667
        %v1052 = vmul.f32 %v915, %v668
        %v1053 = vmul.f32 %v915, %v669
        %v1054 = vmul.f32 %v915, %v670
        %v1055 = vmul.f32 %v916, %v671
        %v1056 = vmul.f32 %v916, %v672
        %v1057 = vmul.f32 %v916, %v673
        %v1058 = vmul.f32 %v916, %v674
        %v1059 = vmul.f32 %v917, %v675
        %v1060 = vmul.f32 %v917, %v676
        %v1061 = vmul.f32 %v917, %v677
        %v1062 = vmul.f32 %v917, %v678
        %v1063 = vmul.f32 %v918, %v679
        %v1064 = vmul.f32 %v918, %v680
        %v1065 = vmul.f32 %v918, %v681
        %v1066 = vmul.f32 %v918, %v682
        %v1067 = vmul.f32 %v919, %v683
        %v1068 = vmul.f32 %v919, %v684
        %v1069 = vmul.f32 %v919, %v685
        %v1070 = vmul.f32 %v919, %v686
        %v1071 = vmul.f32 %v920, %v687
        %v1072 = vmul.f32 %v920, %v688
        %v1073 = vmul.f32 %v920, %v689
        %v1074 = vmul.f32 %v920, %v690
        %v1075 = vmul.f32 %v921, %v691
        %v1076 = vmul.f32 %v921, %v692
        %v1077 = vmul.f32 %v921, %v693
        %v1078 = vmul.f32 %v921, %v694
        %v1079 = vmul.f32 %v922, %v695
        %v1080 = vmul.f32 %v922, %v696
        %v1081 = vmul.f32 %v922, %v697
        %v1082 = vmul.f32 %v922, %v698
        %v1083 = vperm.slane %v560, 0
        %v1084 = vperm.slane %v863, 0
        %v1085 = vperm.slane %v864, 0
        %v1086 = vperm.slane %v865, 0
        %v1087 = vperm.slane %v866, 0
        %v1088 = vperm.slane %v867, 0
        %v1089 = vperm.slane %v868, 0
        %v1090 = vperm.slane %v869, 0
        %v1091 = vperm.slane %v563, 0
        %v1092 = vperm.slane %v870, 0
        %v1093 = vperm.slane %v871, 0
        %v1094 = vperm.slane %v872, 0
        %v1095 = vperm.slane %v873, 0
        %v1096 = vperm.slane %v874, 0
        %v1097 = vperm.slane %v875, 0
        %v1098 = vperm.slane %v876, 0
        %v1099 = vperm.slane %v566, 0
        %v1100 = vperm.slane %v877, 0
        %v1101 = vperm.slane %v878, 0
        %v1102 = vperm.slane %v879, 0
        %v1103 = vperm.slane %v880, 0
        %v1104 = vperm.slane %v881, 0
        %v1105 = vperm.slane %v882, 0
        %v1106 = vperm.slane %v883, 0
        %v1107 = vperm.slane %v569, 0
        %v1108 = vperm.slane %v884, 0
        %v1109 = vperm.slane %v885, 0
        %v1110 = vperm.slane %v886, 0
        %v1111 = vperm.slane %v887, 0
        %v1112 = vperm.slane %v888, 0
        %v1113 = vperm.slane %v889, 0
        %v1114 = vperm.slane %v890, 0
        %v1147 = vmul.f32 %v1083, %v699
        %v1148 = vmul.f32 %v1083, %v700
        %v1149 = vmul.f32 %v1083, %v701
        %v1150 = vmul.f32 %v1083, %v702
        %v1151 = vmul.f32 %v1084, %v703
        %v1152 = vmul.f32 %v1084, %v704
        %v1153 = vmul.f32 %v1084, %v705
        %v1154 = vmul.f32 %v1084, %v706
        %v1155 = vmul.f32 %v1085, %v707
        %v1156 = vmul.f32 %v1085, %v708
        %v1157 = vmul.f32 %v1085, %v709
        %v1158 = vmul.f32 %v1085, %v710
        %v1159 = vmul.f32 %v1086, %v711
        %v1160 = vmul.f32 %v1086, %v712
        %v1161 = vmul.f32 %v1086, %v713
        %v1162 = vmul.f32 %v1086, %v714
        %v1163 = vmul.f32 %v1087, %v715
        %v1164 = vmul.f32 %v1087, %v716
        %v1165 = vmul.f32 %v1087, %v717
        %v1166 = vmul.f32 %v1087, %v718
        %v1167 = vmul.f32 %v1088, %v719
        %v1168 = vmul.f32 %v1088, %v720
        %v1169 = vmul.f32 %v1088, %v721
        %v1170 = vmul.f32 %v1088, %v722
        %v1171 = vmul.f32 %v1089, %v723
        %v1172 = vmul.f32 %v1089, %v724
        %v1173 = vmul.f32 %v1089, %v725
        %v1174 = vmul.f32 %v1089, %v726
        %v1175 = vmul.f32 %v1090, %v727
        %v1176 = vmul.f32 %v1090, %v728
        %v1177 = vmul.f32 %v1090, %v729
        %v1178 = vmul.f32 %v1090, %v730
        %v1179 = vmul.f32 %v1091, %v731
        %v1180 = vmul.f32 %v1091, %v732
        %v1181 = vmul.f32 %v1091, %v733
        %v1182 = vmul.f32 %v1091, %v734
        %v1183 = vmul.f32 %v1092, %v735
        %v1184 = vmul.f32 %v1092, %v736
        %v1185 = vmul.f32 %v1092, %v737
        %v1186 = vmul.f32 %v1092, %v738
        %v1187 = vmul.f32 %v1093, %v739
        %v1188 = vmul.f32 %v1093, %v740
        %v1189 = vmul.f32 %v1093, %v741
        %v1190 = vmul.f32 %v1093, %v742
        %v1191 = vmul.f32 %v1094, %v743
        %v1192 = vmul.f32 %v1094, %v744
        %v1193 = vmul.f32 %v1094, %v745
        %v1194 = vmul.f32 %v1094, %v746
        %v1195 = vmul.f32 %v1095, %v747
        %v1196 = vmul.f32 %v1095, %v748
        %v1197 = vmul.f32 %v1095, %v749
        %v1198 = vmul.f32 %v1095, %v750
        %v1199 = vmul.f32 %v1096, %v751
        %v1200 = vmul.f32 %v1096, %v752
        %v1201 = vmul.f32 %v1096, %v753
        %v1202 = vmul.f32 %v1096, %v754
        %v1203 = vmul.f32 %v1097, %v755
        %v1204 = vmul.f32 %v1097, %v756
        %v1205 = vmul.f32 %v1097, %v757
        %v1206 = vmul.f32 %v1097, %v758
        %v1207 = vmul.f32 %v1098, %v759
        %v1208 = vmul.f32 %v1098, %v760
        %v1209 = vmul.f32 %v1098, %v761
        %v1210 = vmul.f32 %v1098, %v762
        %v1211 = vmul.f32 %v1099, %v763
        %v1212 = vmul.f32 %v1099, %v764
        %v1213 = vmul.f32 %v1099, %v765
        %v1214 = vmul.f32 %v1099, %v766
        %v1215 = vmul.f32 %v1100, %v767
        %v1216 = vmul.f32 %v1100, %v768
        %v1217 = vmul.f32 %v1100, %v769
        %v1218 = vmul.f32 %v1100, %v770
        %v1219 = vmul.f32 %v1101, %v771
        %v1220 = vmul.f32 %v1101, %v772
        %v1221 = vmul.f32 %v1101, %v773
        %v1222 = vmul.f32 %v1101, %v774
        %v1223 = vmul.f32 %v1102, %v775
        %v1224 = vmul.f32 %v1102, %v776
        %v1225 = vmul.f32 %v1102, %v777
        %v1226 = vmul.f32 %v1102, %v778
        %v1227 = vmul.f32 %v1103, %v779
        %v1228 = vmul.f32 %v1103, %v780
        %v1229 = vmul.f32 %v1103, %v781
        %v1230 = vmul.f32 %v1103, %v782
        %v1231 = vmul.f32 %v1104, %v783
        %v1232 = vmul.f32 %v1104, %v784
        %v1233 = vmul.f32 %v1104, %v785
        %v1234 = vmul.f32 %v1104, %v786
        %v1235 = vmul.f32 %v1105, %v787
        %v1236 = vmul.f32 %v1105, %v788
        %v1237 = vmul.f32 %v1105, %v789
        %v1238 = vmul.f32 %v1105, %v790
        %v1239 = vmul.f32 %v1106, %v791
        %v1240 = vmul.f32 %v1106, %v792
        %v1241 = vmul.f32 %v1106, %v793
        %v1242 = vmul.f32 %v1106, %v794
        %v1243 = vmul.f32 %v1107, %v795
        %v1244 = vmul.f32 %v1107, %v796
        %v1245 = vmul.f32 %v1107, %v797
        %v1246 = vmul.f32 %v1107, %v798
        %v1247 = vmul.f32 %v1108, %v799
        %v1248 = vmul.f32 %v1108, %v800
        %v1249 = vmul.f32 %v1108, %v801
        %v1250 = vmul.f32 %v1108, %v802
        %v1251 = vmul.f32 %v1109, %v803
        %v1252 = vmul.f32 %v1109, %v804
        %v1253 = vmul.f32 %v1109, %v805
        %v1254 = vmul.f32 %v1109, %v806
        %v1255 = vmul.f32 %v1110, %v807
        %v1256 = vmul.f32 %v1110, %v808
        %v1257 = vmul.f32 %v1110, %v809
        %v1258 = vmul.f32 %v1110, %v810
        %v1259 = vmul.f32 %v1111, %v811
        %v1260 = vmul.f32 %v1111, %v812
        %v1261 = vmul.f32 %v1111, %v813
        %v1262 = vmul.f32 %v1111, %v814
        %v1263 = vmul.f32 %v1112, %v815
        %v1264 = vmul.f32 %v1112, %v816
        %v1265 = vmul.f32 %v1112, %v817
        %v1266 = vmul.f32 %v1112, %v818
        %v1267 = vmul.f32 %v1113, %v819
        %v1268 = vmul.f32 %v1113, %v820
        %v1269 = vmul.f32 %v1113, %v821
        %v1270 = vmul.f32 %v1113, %v822
        %v1271 = vmul.f32 %v1114, %v823
        %v1272 = vmul.f32 %v1114, %v824
        %v1273 = vmul.f32 %v1114, %v825
        %v1274 = vmul.f32 %v1114, %v826
        %v1275 = vsub.f32 %v955, %v1147
        %v1276 = vsub.f32 %v956, %v1148
        %v1277 = vsub.f32 %v957, %v1149
        %v1278 = vsub.f32 %v958, %v1150
        %v1279 = vsub.f32 %v959, %v1151
        %v1280 = vsub.f32 %v960, %v1152
        %v1281 = vsub.f32 %v961, %v1153
        %v1282 = vsub.f32 %v962, %v1154
        %v1283 = vsub.f32 %v963, %v1155
        %v1284 = vsub.f32 %v964, %v1156
        %v1285 = vsub.f32 %v965, %v1157
        %v1286 = vsub.f32 %v966, %v1158
        %v1287 = vsub.f32 %v967, %v1159
        %v1288 = vsub.f32 %v968, %v1160
        %v1289 = vsub.f32 %v969, %v1161
        %v1290 = vsub.f32 %v970, %v1162
        %v1291 = vsub.f32 %v971, %v1163
        %v1292 = vsub.f32 %v972, %v1164
        %v1293 = vsub.f32 %v973, %v1165
        %v1294 = vsub.f32 %v974, %v1166
        %v1295 = vsub.f32 %v975, %v1167
        %v1296 = vsub.f32 %v976, %v1168
        %v1297 = vsub.f32 %v977, %v1169
        %v1298 = vsub.f32 %v978, %v1170
        %v1299 = vsub.f32 %v979, %v1171
        %v1300 = vsub.f32 %v980, %v1172
        %v1301 = vsub.f32 %v981, %v1173
        %v1302 = vsub.f32 %v982, %v1174
        %v1303 = vsub.f32 %v983, %v1175
        %v1304 = vsub.f32 %v984, %v1176
        %v1305 = vsub.f32 %v985, %v1177
        %v1306 = vsub.f32 %v986, %v1178
        %v1307 = vsub.f32 %v987, %v1179
        %v1308 = vsub.f32 %v988, %v1180
        %v1309 = vsub.f32 %v989, %v1181
        %v1310 = vsub.f32 %v990, %v1182
        %v1311 = vsub.f32 %v991, %v1183
        %v1312 = vsub.f32 %v992, %v1184
        %v1313 = vsub.f32 %v993, %v1185
        %v1314 = vsub.f32 %v994, %v1186
        %v1315 = vsub.f32 %v995, %v1187
        %v1316 = vsub.f32 %v996, %v1188
        %v1317 = vsub.f32 %v997, %v1189
        %v1318 = vsub.f32 %v998, %v1190
        %v1319 = vsub.f32 %v999, %v1191
        %v1320 = vsub.f32 %v1000, %v1192
        %v1321 = vsub.f32 %v1001, %v1193
        %v1322 = vsub.f32 %v1002, %v1194
        %v1323 = vsub.f32 %v1003, %v1195
        %v1324 = vsub.f32 %v1004, %v1196
        %v1325 = vsub.f32 %v1005, %v1197
        %v1326 = vsub.f32 %v1006, %v1198
        %v1327 = vsub.f32 %v1007, %v1199
        %v1328 = vsub.f32 %v1008, %v1200
        %v1329 = vsub.f32 %v1009, %v1201
        %v1330 = vsub.f32 %v1010, %v1202
        %v1331 = vsub.f32 %v1011, %v1203
        %v1332 = vsub.f32 %v1012, %v1204
        %v1333 = vsub.f32 %v1013, %v1205
        %v1334 = vsub.f32 %v1014, %v1206
        %v1335 = vsub.f32 %v1015, %v1207
        %v1336 = vsub.f32 %v1016, %v1208
        %v1337 = vsub.f32 %v1017, %v1209
        %v1338 = vsub.f32 %v1018, %v1210
        %v1339 = vsub.f32 %v1019, %v1211
        %v1340 = vsub.f32 %v1020, %v1212
        %v1341 = vsub.f32 %v1021, %v1213
        %v1342 = vsub.f32 %v1022, %v1214
        %v1343 = vsub.f32 %v1023, %v1215
        %v1344 = vsub.f32 %v1024, %v1216
        %v1345 = vsub.f32 %v1025, %v1217
        %v1346 = vsub.f32 %v1026, %v1218
        %v1347 = vsub.f32 %v1027, %v1219
        %v1348 = vsub.f32 %v1028, %v1220
        %v1349 = vsub.f32 %v1029, %v1221
        %v1350 = vsub.f32 %v1030, %v1222
        %v1351 = vsub.f32 %v1031, %v1223
        %v1352 = vsub.f32 %v1032, %v1224
        %v1353 = vsub.f32 %v1033, %v1225
        %v1354 = vsub.f32 %v1034, %v1226
        %v1355 = vsub.f32 %v1035, %v1227
        %v1356 = vsub.f32 %v1036, %v1228
        %v1357 = vsub.f32 %v1037, %v1229
        %v1358 = vsub.f32 %v1038, %v1230
        %v1359 = vsub.f32 %v1039, %v1231
        %v1360 = vsub.f32 %v1040, %v1232
        %v1361 = vsub.f32 %v1041, %v1233
        %v1362 = vsub.f32 %v1042, %v1234
        %v1363 = vsub.f32 %v1043, %v1235
        %v1364 = vsub.f32 %v1044, %v1236
        %v1365 = vsub.f32 %v1045, %v1237
        %v1366 = vsub.f32 %v1046, %v1238
        %v1367 = vsub.f32 %v1047, %v1239
        %v1368 = vsub.f32 %v1048, %v1240
        %v1369 = vsub.f32 %v1049, %v1241
        %v1370 = vsub.f32 %v1050, %v1242
        %v1371 = vsub.f32 %v1051, %v1243
        %v1372 = vsub.f32 %v1052, %v1244
        %v1373 = vsub.f32 %v1053, %v1245
        %v1374 = vsub.f32 %v1054, %v1246
        %v1375 = vsub.f32 %v1055, %v1247
        %v1376 = vsub.f32 %v1056, %v1248
        %v1377 = vsub.f32 %v1057, %v1249
        %v1378 = vsub.f32 %v1058, %v1250
        %v1379 = vsub.f32 %v1059, %v1251
        %v1380 = vsub.f32 %v1060, %v1252
        %v1381 = vsub.f32 %v1061, %v1253
        %v1382 = vsub.f32 %v1062, %v1254
        %v1383 = vsub.f32 %v1063, %v1255
        %v1384 = vsub.f32 %v1064, %v1256
        %v1385 = vsub.f32 %v1065, %v1257
        %v1386 = vsub.f32 %v1066, %v1258
        %v1387 = vsub.f32 %v1067, %v1259
        %v1388 = vsub.f32 %v1068, %v1260
        %v1389 = vsub.f32 %v1069, %v1261
        %v1390 = vsub.f32 %v1070, %v1262
        %v1391 = vsub.f32 %v1071, %v1263
        %v1392 = vsub.f32 %v1072, %v1264
        %v1393 = vsub.f32 %v1073, %v1265
        %v1394 = vsub.f32 %v1074, %v1266
        %v1395 = vsub.f32 %v1075, %v1267
        %v1396 = vsub.f32 %v1076, %v1268
        %v1397 = vsub.f32 %v1077, %v1269
        %v1398 = vsub.f32 %v1078, %v1270
        %v1399 = vsub.f32 %v1079, %v1271
        %v1400 = vsub.f32 %v1080, %v1272
        %v1401 = vsub.f32 %v1081, %v1273
        %v1402 = vsub.f32 %v1082, %v1274
        %v1403 = vadd.f32 %v1275, %v1279
        %v1404 = vadd.f32 %v1403, %v1283
        %v1405 = vadd.f32 %v1404, %v1287
        %v1406 = vadd.f32 %v1405, %v1291
        %v1407 = vadd.f32 %v1406, %v1295
        %v1408 = vadd.f32 %v1407, %v1299
        %v1409 = vadd.f32 %v1408, %v1303
        %v1410 = vadd.f32 %v1409, %v1307
        %v1411 = vadd.f32 %v1410, %v1311
        %v1412 = vadd.f32 %v1411, %v1315
        %v1413 = vadd.f32 %v1412, %v1319
        %v1414 = vadd.f32 %v1413, %v1323
        %v1415 = vadd.f32 %v1414, %v1327
        %v1416 = vadd.f32 %v1415, %v1331
        %v1417 = vadd.f32 %v1416, %v1335
        %v1418 = vadd.f32 %v1417, %v1339
        %v1419 = vadd.f32 %v1418, %v1343
        %v1420 = vadd.f32 %v1419, %v1347
        %v1421 = vadd.f32 %v1420, %v1351
        %v1422 = vadd.f32 %v1421, %v1355
        %v1423 = vadd.f32 %v1422, %v1359
        %v1424 = vadd.f32 %v1423, %v1363
        %v1425 = vadd.f32 %v1424, %v1367
        %v1426 = vadd.f32 %v1425, %v1371
        %v1427 = vadd.f32 %v1426, %v1375
        %v1428 = vadd.f32 %v1427, %v1379
        %v1429 = vadd.f32 %v1428, %v1383
        %v1430 = vadd.f32 %v1429, %v1387
        %v1431 = vadd.f32 %v1430, %v1391
        %v1432 = vadd.f32 %v1431, %v1395
        %v1433 = vadd.f32 %v1432, %v1399
        %v1434 = vadd.f32 %v1276, %v1280
        %v1435 = vadd.f32 %v1434, %v1284
        %v1436 = vadd.f32 %v1435, %v1288
        %v1437 = vadd.f32 %v1436, %v1292
        %v1438 = vadd.f32 %v1437, %v1296
        %v1439 = vadd.f32 %v1438, %v1300
        %v1440 = vadd.f32 %v1439, %v1304
        %v1441 = vadd.f32 %v1440, %v1308
        %v1442 = vadd.f32 %v1441, %v1312
        %v1443 = vadd.f32 %v1442, %v1316
        %v1444 = vadd.f32 %v1443, %v1320
        %v1445 = vadd.f32 %v1444, %v1324
        %v1446 = vadd.f32 %v1445, %v1328
        %v1447 = vadd.f32 %v1446, %v1332
        %v1448 = vadd.f32 %v1447, %v1336
        %v1449 = vadd.f32 %v1448, %v1340
        %v1450 = vadd.f32 %v1449, %v1344
        %v1451 = vadd.f32 %v1450, %v1348
        %v1452 = vadd.f32 %v1451, %v1352
        %v1453 = vadd.f32 %v1452, %v1356
        %v1454 = vadd.f32 %v1453, %v1360
        %v1455 = vadd.f32 %v1454, %v1364
        %v1456 = vadd.f32 %v1455, %v1368
        %v1457 = vadd.f32 %v1456, %v1372
        %v1458 = vadd.f32 %v1457, %v1376
        %v1459 = vadd.f32 %v1458, %v1380
        %v1460 = vadd.f32 %v1459, %v1384
        %v1461 = vadd.f32 %v1460, %v1388
        %v1462 = vadd.f32 %v1461, %v1392
        %v1463 = vadd.f32 %v1462, %v1396
        %v1464 = vadd.f32 %v1463, %v1400
        %v1465 = vadd.f32 %v1277, %v1281
        %v1466 = vadd.f32 %v1465, %v1285
        %v1467 = vadd.f32 %v1466, %v1289
        %v1468 = vadd.f32 %v1467, %v1293
        %v1469 = vadd.f32 %v1468, %v1297
        %v1470 = vadd.f32 %v1469, %v1301
        %v1471 = vadd.f32 %v1470, %v1305
        %v1472 = vadd.f32 %v1471, %v1309
        %v1473 = vadd.f32 %v1472, %v1313
        %v1474 = vadd.f32 %v1473, %v1317
        %v1475 = vadd.f32 %v1474, %v1321
        %v1476 = vadd.f32 %v1475, %v1325
        %v1477 = vadd.f32 %v1476, %v1329
        %v1478 = vadd.f32 %v1477, %v1333
        %v1479 = vadd.f32 %v1478, %v1337
        %v1480 = vadd.f32 %v1479, %v1341
        %v1481 = vadd.f32 %v1480, %v1345
        %v1482 = vadd.f32 %v1481, %v1349
        %v1483 = vadd.f32 %v1482, %v1353
        %v1484 = vadd.f32 %v1483, %v1357
        %v1485 = vadd.f32 %v1484, %v1361
        %v1486 = vadd.f32 %v1485, %v1365
        %v1487 = vadd.f32 %v1486, %v1369
        %v1488 = vadd.f32 %v1487, %v1373
        %v1489 = vadd.f32 %v1488, %v1377
        %v1490 = vadd.f32 %v1489, %v1381
        %v1491 = vadd.f32 %v1490, %v1385
        %v1492 = vadd.f32 %v1491, %v1389
        %v1493 = vadd.f32 %v1492, %v1393
        %v1494 = vadd.f32 %v1493, %v1397
        %v1495 = vadd.f32 %v1494, %v1401
        %v1496 = vadd.f32 %v1278, %v1282
        %v1497 = vadd.f32 %v1496, %v1286
        %v1498 = vadd.f32 %v1497, %v1290
        %v1499 = vadd.f32 %v1498, %v1294
        %v1500 = vadd.f32 %v1499, %v1298
        %v1501 = vadd.f32 %v1500, %v1302
        %v1502 = vadd.f32 %v1501, %v1306
        %v1503 = vadd.f32 %v1502, %v1310
        %v1504 = vadd.f32 %v1503, %v1314
        %v1505 = vadd.f32 %v1504, %v1318
        %v1506 = vadd.f32 %v1505, %v1322
        %v1507 = vadd.f32 %v1506, %v1326
        %v1508 = vadd.f32 %v1507, %v1330
        %v1509 = vadd.f32 %v1508, %v1334
        %v1510 = vadd.f32 %v1509, %v1338
        %v1511 = vadd.f32 %v1510, %v1342
        %v1512 = vadd.f32 %v1511, %v1346
        %v1513 = vadd.f32 %v1512, %v1350
        %v1514 = vadd.f32 %v1513, %v1354
        %v1515 = vadd.f32 %v1514, %v1358
        %v1516 = vadd.f32 %v1515, %v1362
        %v1517 = vadd.f32 %v1516, %v1366
        %v1518 = vadd.f32 %v1517, %v1370
        %v1519 = vadd.f32 %v1518, %v1374
        %v1520 = vadd.f32 %v1519, %v1378
        %v1521 = vadd.f32 %v1520, %v1382
        %v1522 = vadd.f32 %v1521, %v1386
        %v1523 = vadd.f32 %v1522, %v1390
        %v1524 = vadd.f32 %v1523, %v1394
        %v1525 = vadd.f32 %v1524, %v1398
        %v1526 = vadd.f32 %v1525, %v1402
        %v1527 = vmul.f32 %v891, %v699
        %v1528 = vmul.f32 %v891, %v700
        %v1529 = vmul.f32 %v891, %v701
        %v1530 = vmul.f32 %v891, %v702
        %v1531 = vmul.f32 %v892, %v703
        %v1532 = vmul.f32 %v892, %v704
        %v1533 = vmul.f32 %v892, %v705
        %v1534 = vmul.f32 %v892, %v706
        %v1535 = vmul.f32 %v893, %v707
        %v1536 = vmul.f32 %v893, %v708
        %v1537 = vmul.f32 %v893, %v709
        %v1538 = vmul.f32 %v893, %v710
        %v1539 = vmul.f32 %v894, %v711
        %v1540 = vmul.f32 %v894, %v712
        %v1541 = vmul.f32 %v894, %v713
        %v1542 = vmul.f32 %v894, %v714
        %v1543 = vmul.f32 %v895, %v715
        %v1544 = vmul.f32 %v895, %v716
        %v1545 = vmul.f32 %v895, %v717
        %v1546 = vmul.f32 %v895, %v718
        %v1547 = vmul.f32 %v896, %v719
        %v1548 = vmul.f32 %v896, %v720
        %v1549 = vmul.f32 %v896, %v721
        %v1550 = vmul.f32 %v896, %v722
        %v1551 = vmul.f32 %v897, %v723
        %v1552 = vmul.f32 %v897, %v724
        %v1553 = vmul.f32 %v897, %v725
        %v1554 = vmul.f32 %v897, %v726
        %v1555 = vmul.f32 %v898, %v727
        %v1556 = vmul.f32 %v898, %v728
        %v1557 = vmul.f32 %v898, %v729
        %v1558 = vmul.f32 %v898, %v730
        %v1559 = vmul.f32 %v899, %v731
        %v1560 = vmul.f32 %v899, %v732
        %v1561 = vmul.f32 %v899, %v733
        %v1562 = vmul.f32 %v899, %v734
        %v1563 = vmul.f32 %v900, %v735
        %v1564 = vmul.f32 %v900, %v736
        %v1565 = vmul.f32 %v900, %v737
        %v1566 = vmul.f32 %v900, %v738
        %v1567 = vmul.f32 %v901, %v739
        %v1568 = vmul.f32 %v901, %v740
        %v1569 = vmul.f32 %v901, %v741
        %v1570 = vmul.f32 %v901, %v742
        %v1571 = vmul.f32 %v902, %v743
        %v1572 = vmul.f32 %v902, %v744
        %v1573 = vmul.f32 %v902, %v745
        %v1574 = vmul.f32 %v902, %v746
        %v1575 = vmul.f32 %v903, %v747
        %v1576 = vmul.f32 %v903, %v748
        %v1577 = vmul.f32 %v903, %v749
        %v1578 = vmul.f32 %v903, %v750
        %v1579 = vmul.f32 %v904, %v751
        %v1580 = vmul.f32 %v904, %v752
        %v1581 = vmul.f32 %v904, %v753
        %v1582 = vmul.f32 %v904, %v754
        %v1583 = vmul.f32 %v905, %v755
        %v1584 = vmul.f32 %v905, %v756
        %v1585 = vmul.f32 %v905, %v757
        %v1586 = vmul.f32 %v905, %v758
        %v1587 = vmul.f32 %v906, %v759
        %v1588 = vmul.f32 %v906, %v760
        %v1589 = vmul.f32 %v906, %v761
        %v1590 = vmul.f32 %v906, %v762
        %v1591 = vmul.f32 %v907, %v763
        %v1592 = vmul.f32 %v907, %v764
        %v1593 = vmul.f32 %v907, %v765
        %v1594 = vmul.f32 %v907, %v766
        %v1595 = vmul.f32 %v908, %v767
        %v1596 = vmul.f32 %v908, %v768
        %v1597 = vmul.f32 %v908, %v769
        %v1598 = vmul.f32 %v908, %v770
        %v1599 = vmul.f32 %v909, %v771
        %v1600 = vmul.f32 %v909, %v772
        %v1601 = vmul.f32 %v909, %v773
        %v1602 = vmul.f32 %v909, %v774
        %v1603 = vmul.f32 %v910, %v775
        %v1604 = vmul.f32 %v910, %v776
        %v1605 = vmul.f32 %v910, %v777
        %v1606 = vmul.f32 %v910, %v778
        %v1607 = vmul.f32 %v911, %v779
        %v1608 = vmul.f32 %v911, %v780
        %v1609 = vmul.f32 %v911, %v781
        %v1610 = vmul.f32 %v911, %v782
        %v1611 = vmul.f32 %v912, %v783
        %v1612 = vmul.f32 %v912, %v784
        %v1613 = vmul.f32 %v912, %v785
        %v1614 = vmul.f32 %v912, %v786
        %v1615 = vmul.f32 %v913, %v787
        %v1616 = vmul.f32 %v913, %v788
        %v1617 = vmul.f32 %v913, %v789
        %v1618 = vmul.f32 %v913, %v790
        %v1619 = vmul.f32 %v914, %v791
        %v1620 = vmul.f32 %v914, %v792
        %v1621 = vmul.f32 %v914, %v793
        %v1622 = vmul.f32 %v914, %v794
        %v1623 = vmul.f32 %v915, %v795
        %v1624 = vmul.f32 %v915, %v796
        %v1625 = vmul.f32 %v915, %v797
        %v1626 = vmul.f32 %v915, %v798
        %v1627 = vmul.f32 %v916, %v799
        %v1628 = vmul.f32 %v916, %v800
        %v1629 = vmul.f32 %v916, %v801
        %v1630 = vmul.f32 %v916, %v802
        %v1631 = vmul.f32 %v917, %v803
        %v1632 = vmul.f32 %v917, %v804
        %v1633 = vmul.f32 %v917, %v805
        %v1634 = vmul.f32 %v917, %v806
        %v1635 = vmul.f32 %v918, %v807
        %v1636 = vmul.f32 %v918, %v808
        %v1637 = vmul.f32 %v918, %v809
        %v1638 = vmul.f32 %v918, %v810
        %v1639 = vmul.f32 %v919, %v811
        %v1640 = vmul.f32 %v919, %v812
        %v1641 = vmul.f32 %v919, %v813
        %v1642 = vmul.f32 %v919, %v814
        %v1643 = vmul.f32 %v920, %v815
        %v1644 = vmul.f32 %v920, %v816
        %v1645 = vmul.f32 %v920, %v817
        %v1646 = vmul.f32 %v920, %v818
        %v1647 = vmul.f32 %v921, %v819
        %v1648 = vmul.f32 %v921, %v820
        %v1649 = vmul.f32 %v921, %v821
        %v1650 = vmul.f32 %v921, %v822
        %v1651 = vmul.f32 %v922, %v823
        %v1652 = vmul.f32 %v922, %v824
        %v1653 = vmul.f32 %v922, %v825
        %v1654 = vmul.f32 %v922, %v826
        %v1655 = vmul.f32 %v1083, %v571
        %v1656 = vmul.f32 %v1083, %v572
        %v1657 = vmul.f32 %v1083, %v573
        %v1658 = vmul.f32 %v1083, %v574
        %v1659 = vmul.f32 %v1084, %v575
        %v1660 = vmul.f32 %v1084, %v576
        %v1661 = vmul.f32 %v1084, %v577
        %v1662 = vmul.f32 %v1084, %v578
        %v1663 = vmul.f32 %v1085, %v579
        %v1664 = vmul.f32 %v1085, %v580
        %v1665 = vmul.f32 %v1085, %v581
        %v1666 = vmul.f32 %v1085, %v582
        %v1667 = vmul.f32 %v1086, %v583
        %v1668 = vmul.f32 %v1086, %v584
        %v1669 = vmul.f32 %v1086, %v585
        %v1670 = vmul.f32 %v1086, %v586
        %v1671 = vmul.f32 %v1087, %v587
        %v1672 = vmul.f32 %v1087, %v588
        %v1673 = vmul.f32 %v1087, %v589
        %v1674 = vmul.f32 %v1087, %v590
        %v1675 = vmul.f32 %v1088, %v591
        %v1676 = vmul.f32 %v1088, %v592
        %v1677 = vmul.f32 %v1088, %v593
        %v1678 = vmul.f32 %v1088, %v594
        %v1679 = vmul.f32 %v1089, %v595
        %v1680 = vmul.f32 %v1089, %v596
        %v1681 = vmul.f32 %v1089, %v597
        %v1682 = vmul.f32 %v1089, %v598
        %v1683 = vmul.f32 %v1090, %v599
        %v1684 = vmul.f32 %v1090, %v600
        %v1685 = vmul.f32 %v1090, %v601
        %v1686 = vmul.f32 %v1090, %v602
        %v1687 = vmul.f32 %v1091, %v603
        %v1688 = vmul.f32 %v1091, %v604
        %v1689 = vmul.f32 %v1091, %v605
        %v1690 = vmul.f32 %v1091, %v606
        %v1691 = vmul.f32 %v1092, %v607
        %v1692 = vmul.f32 %v1092, %v608
        %v1693 = vmul.f32 %v1092, %v609
        %v1694 = vmul.f32 %v1092, %v610
        %v1695 = vmul.f32 %v1093, %v611
        %v1696 = vmul.f32 %v1093, %v612
        %v1697 = vmul.f32 %v1093, %v613
        %v1698 = vmul.f32 %v1093, %v614
        %v1699 = vmul.f32 %v1094, %v615
        %v1700 = vmul.f32 %v1094, %v616
        %v1701 = vmul.f32 %v1094, %v617
        %v1702 = vmul.f32 %v1094, %v618
        %v1703 = vmul.f32 %v1095, %v619
        %v1704 = vmul.f32 %v1095, %v620
        %v1705 = vmul.f32 %v1095, %v621
        %v1706 = vmul.f32 %v1095, %v622
        %v1707 = vmul.f32 %v1096, %v623
        %v1708 = vmul.f32 %v1096, %v624
        %v1709 = vmul.f32 %v1096, %v625
        %v1710 = vmul.f32 %v1096, %v626
        %v1711 = vmul.f32 %v1097, %v627
        %v1712 = vmul.f32 %v1097, %v628
        %v1713 = vmul.f32 %v1097, %v629
        %v1714 = vmul.f32 %v1097, %v630
        %v1715 = vmul.f32 %v1098, %v631
        %v1716 = vmul.f32 %v1098, %v632
        %v1717 = vmul.f32 %v1098, %v633
        %v1718 = vmul.f32 %v1098, %v634
        %v1719 = vmul.f32 %v1099, %v635
        %v1720 = vmul.f32 %v1099, %v636
        %v1721 = vmul.f32 %v1099, %v637
        %v1722 = vmul.f32 %v1099, %v638
        %v1723 = vmul.f32 %v1100, %v639
        %v1724 = vmul.f32 %v1100, %v640
        %v1725 = vmul.f32 %v1100, %v641
        %v1726 = vmul.f32 %v1100, %v642
        %v1727 = vmul.f32 %v1101, %v643
        %v1728 = vmul.f32 %v1101, %v644
        %v1729 = vmul.f32 %v1101, %v645
        %v1730 = vmul.f32 %v1101, %v646
        %v1731 = vmul.f32 %v1102, %v647
        %v1732 = vmul.f32 %v1102, %v648
        %v1733 = vmul.f32 %v1102, %v649
        %v1734 = vmul.f32 %v1102, %v650
        %v1735 = vmul.f32 %v1103, %v651
        %v1736 = vmul.f32 %v1103, %v652
        %v1737 = vmul.f32 %v1103, %v653
        %v1738 = vmul.f32 %v1103, %v654
        %v1739 = vmul.f32 %v1104, %v655
        %v1740 = vmul.f32 %v1104, %v656
        %v1741 = vmul.f32 %v1104, %v657
        %v1742 = vmul.f32 %v1104, %v658
        %v1743 = vmul.f32 %v1105, %v659
        %v1744 = vmul.f32 %v1105, %v660
        %v1745 = vmul.f32 %v1105, %v661
        %v1746 = vmul.f32 %v1105, %v662
        %v1747 = vmul.f32 %v1106, %v663
        %v1748 = vmul.f32 %v1106, %v664
        %v1749 = vmul.f32 %v1106, %v665
        %v1750 = vmul.f32 %v1106, %v666
        %v1751 = vmul.f32 %v1107, %v667
        %v1752 = vmul.f32 %v1107, %v668
        %v1753 = vmul.f32 %v1107, %v669
        %v1754 = vmul.f32 %v1107, %v670
        %v1755 = vmul.f32 %v1108, %v671
        %v1756 = vmul.f32 %v1108, %v672
        %v1757 = vmul.f32 %v1108, %v673
        %v1758 = vmul.f32 %v1108, %v674
        %v1759 = vmul.f32 %v1109, %v675
        %v1760 = vmul.f32 %v1109, %v676
        %v1761 = vmul.f32 %v1109, %v677
        %v1762 = vmul.f32 %v1109, %v678
        %v1763 = vmul.f32 %v1110, %v679
        %v1764 = vmul.f32 %v1110, %v680
        %v1765 = vmul.f32 %v1110, %v681
        %v1766 = vmul.f32 %v1110, %v682
        %v1767 = vmul.f32 %v1111, %v683
        %v1768 = vmul.f32 %v1111, %v684
        %v1769 = vmul.f32 %v1111, %v685
        %v1770 = vmul.f32 %v1111, %v686
        %v1771 = vmul.f32 %v1112, %v687
        %v1772 = vmul.f32 %v1112, %v688
        %v1773 = vmul.f32 %v1112, %v689
        %v1774 = vmul.f32 %v1112, %v690
        %v1775 = vmul.f32 %v1113, %v691
        %v1776 = vmul.f32 %v1113, %v692
        %v1777 = vmul.f32 %v1113, %v693
        %v1778 = vmul.f32 %v1113, %v694
        %v1779 = vmul.f32 %v1114, %v695
        %v1780 = vmul.f32 %v1114, %v696
        %v1781 = vmul.f32 %v1114, %v697
        %v1782 = vmul.f32 %v1114, %v698
        %v1783 = vadd.f32 %v1527, %v1655
        %v1784 = vadd.f32 %v1528, %v1656
        %v1785 = vadd.f32 %v1529, %v1657
        %v1786 = vadd.f32 %v1530, %v1658
        %v1787 = vadd.f32 %v1531, %v1659
        %v1788 = vadd.f32 %v1532, %v1660
        %v1789 = vadd.f32 %v1533, %v1661
        %v1790 = vadd.f32 %v1534, %v1662
        %v1791 = vadd.f32 %v1535, %v1663
        %v1792 = vadd.f32 %v1536, %v1664
        %v1793 = vadd.f32 %v1537, %v1665
        %v1794 = vadd.f32 %v1538, %v1666
        %v1795 = vadd.f32 %v1539, %v1667
        %v1796 = vadd.f32 %v1540, %v1668
        %v1797 = vadd.f32 %v1541, %v1669
        %v1798 = vadd.f32 %v1542, %v1670
        %v1799 = vadd.f32 %v1543, %v1671
        %v1800 = vadd.f32 %v1544, %v1672
        %v1801 = vadd.f32 %v1545, %v1673
        %v1802 = vadd.f32 %v1546, %v1674
        %v1803 = vadd.f32 %v1547, %v1675
        %v1804 = vadd.f32 %v1548, %v1676
        %v1805 = vadd.f32 %v1549, %v1677
        %v1806 = vadd.f32 %v1550, %v1678
        %v1807 = vadd.f32 %v1551, %v1679
        %v1808 = vadd.f32 %v1552, %v1680
        %v1809 = vadd.f32 %v1553, %v1681
        %v1810 = vadd.f32 %v1554, %v1682
        %v1811 = vadd.f32 %v1555, %v1683
        %v1812 = vadd.f32 %v1556, %v1684
        %v1813 = vadd.f32 %v1557, %v1685
        %v1814 = vadd.f32 %v1558, %v1686
        %v1815 = vadd.f32 %v1559, %v1687
        %v1816 = vadd.f32 %v1560, %v1688
        %v1817 = vadd.f32 %v1561, %v1689
        %v1818 = vadd.f32 %v1562, %v1690
        %v1819 = vadd.f32 %v1563, %v1691
        %v1820 = vadd.f32 %v1564, %v1692
        %v1821 = vadd.f32 %v1565, %v1693
        %v1822 = vadd.f32 %v1566, %v1694
        %v1823 = vadd.f32 %v1567, %v1695
        %v1824 = vadd.f32 %v1568, %v1696
        %v1825 = vadd.f32 %v1569, %v1697
        %v1826 = vadd.f32 %v1570, %v1698
        %v1827 = vadd.f32 %v1571, %v1699
        %v1828 = vadd.f32 %v1572, %v1700
        %v1829 = vadd.f32 %v1573, %v1701
        %v1830 = vadd.f32 %v1574, %v1702
        %v1831 = vadd.f32 %v1575, %v1703
        %v1832 = vadd.f32 %v1576, %v1704
        %v1833 = vadd.f32 %v1577, %v1705
        %v1834 = vadd.f32 %v1578, %v1706
        %v1835 = vadd.f32 %v1579, %v1707
        %v1836 = vadd.f32 %v1580, %v1708
        %v1837 = vadd.f32 %v1581, %v1709
        %v1838 = vadd.f32 %v1582, %v1710
        %v1839 = vadd.f32 %v1583, %v1711
        %v1840 = vadd.f32 %v1584, %v1712
        %v1841 = vadd.f32 %v1585, %v1713
        %v1842 = vadd.f32 %v1586, %v1714
        %v1843 = vadd.f32 %v1587, %v1715
        %v1844 = vadd.f32 %v1588, %v1716
        %v1845 = vadd.f32 %v1589, %v1717
        %v1846 = vadd.f32 %v1590, %v1718
        %v1847 = vadd.f32 %v1591, %v1719
        %v1848 = vadd.f32 %v1592, %v1720
        %v1849 = vadd.f32 %v1593, %v1721
        %v1850 = vadd.f32 %v1594, %v1722
        %v1851 = vadd.f32 %v1595, %v1723
        %v1852 = vadd.f32 %v1596, %v1724
        %v1853 = vadd.f32 %v1597, %v1725
        %v1854 = vadd.f32 %v1598, %v1726
        %v1855 = vadd.f32 %v1599, %v1727
        %v1856 = vadd.f32 %v1600, %v1728
        %v1857 = vadd.f32 %v1601, %v1729
        %v1858 = vadd.f32 %v1602, %v1730
        %v1859 = vadd.f32 %v1603, %v1731
        %v1860 = vadd.f32 %v1604, %v1732
        %v1861 = vadd.f32 %v1605, %v1733
        %v1862 = vadd.f32 %v1606, %v1734
        %v1863 = vadd.f32 %v1607, %v1735
        %v1864 = vadd.f32 %v1608, %v1736
        %v1865 = vadd.f32 %v1609, %v1737
        %v1866 = vadd.f32 %v1610, %v1738
        %v1867 = vadd.f32 %v1611, %v1739
        %v1868 = vadd.f32 %v1612, %v1740
        %v1869 = vadd.f32 %v1613, %v1741
        %v1870 = vadd.f32 %v1614, %v1742
        %v1871 = vadd.f32 %v1615, %v1743
        %v1872 = vadd.f32 %v1616, %v1744
        %v1873 = vadd.f32 %v1617, %v1745
        %v1874 = vadd.f32 %v1618, %v1746
        %v1875 = vadd.f32 %v1619, %v1747
        %v1876 = vadd.f32 %v1620, %v1748
        %v1877 = vadd.f32 %v1621, %v1749
        %v1878 = vadd.f32 %v1622, %v1750
        %v1879 = vadd.f32 %v1623, %v1751
        %v1880 = vadd.f32 %v1624, %v1752
        %v1881 = vadd.f32 %v1625, %v1753
        %v1882 = vadd.f32 %v1626, %v1754
        %v1883 = vadd.f32 %v1627, %v1755
        %v1884 = vadd.f32 %v1628, %v1756
        %v1885 = vadd.f32 %v1629, %v1757
        %v1886 = vadd.f32 %v1630, %v1758
        %v1887 = vadd.f32 %v1631, %v1759
        %v1888 = vadd.f32 %v1632, %v1760
        %v1889 = vadd.f32 %v1633, %v1761
        %v1890 = vadd.f32 %v1634, %v1762
        %v1891 = vadd.f32 %v1635, %v1763
        %v1892 = vadd.f32 %v1636, %v1764
        %v1893 = vadd.f32 %v1637, %v1765
        %v1894 = vadd.f32 %v1638, %v1766
        %v1895 = vadd.f32 %v1639, %v1767
        %v1896 = vadd.f32 %v1640, %v1768
        %v1897 = vadd.f32 %v1641, %v1769
        %v1898 = vadd.f32 %v1642, %v1770
        %v1899 = vadd.f32 %v1643, %v1771
        %v1900 = vadd.f32 %v1644, %v1772
        %v1901 = vadd.f32 %v1645, %v1773
        %v1902 = vadd.f32 %v1646, %v1774
        %v1903 = vadd.f32 %v1647, %v1775
        %v1904 = vadd.f32 %v1648, %v1776
        %v1905 = vadd.f32 %v1649, %v1777
        %v1906 = vadd.f32 %v1650, %v1778
        %v1907 = vadd.f32 %v1651, %v1779
        %v1908 = vadd.f32 %v1652, %v1780
        %v1909 = vadd.f32 %v1653, %v1781
        %v1910 = vadd.f32 %v1654, %v1782
        %v1911 = vadd.f32 %v1783, %v1787
        %v1912 = vadd.f32 %v1911, %v1791
        %v1913 = vadd.f32 %v1912, %v1795
        %v1914 = vadd.f32 %v1913, %v1799
        %v1915 = vadd.f32 %v1914, %v1803
        %v1916 = vadd.f32 %v1915, %v1807
        %v1917 = vadd.f32 %v1916, %v1811
        %v1918 = vadd.f32 %v1917, %v1815
        %v1919 = vadd.f32 %v1918, %v1819
        %v1920 = vadd.f32 %v1919, %v1823
        %v1921 = vadd.f32 %v1920, %v1827
        %v1922 = vadd.f32 %v1921, %v1831
        %v1923 = vadd.f32 %v1922, %v1835
        %v1924 = vadd.f32 %v1923, %v1839
        %v1925 = vadd.f32 %v1924, %v1843
        %v1926 = vadd.f32 %v1925, %v1847
        %v1927 = vadd.f32 %v1926, %v1851
        %v1928 = vadd.f32 %v1927, %v1855
        %v1929 = vadd.f32 %v1928, %v1859
        %v1930 = vadd.f32 %v1929, %v1863
        %v1931 = vadd.f32 %v1930, %v1867
        %v1932 = vadd.f32 %v1931, %v1871
        %v1933 = vadd.f32 %v1932, %v1875
        %v1934 = vadd.f32 %v1933, %v1879
        %v1935 = vadd.f32 %v1934, %v1883
        %v1936 = vadd.f32 %v1935, %v1887
        %v1937 = vadd.f32 %v1936, %v1891
        %v1938 = vadd.f32 %v1937, %v1895
        %v1939 = vadd.f32 %v1938, %v1899
        %v1940 = vadd.f32 %v1939, %v1903
        %v1941 = vadd.f32 %v1940, %v1907
        %v1942 = vadd.f32 %v1784, %v1788
        %v1943 = vadd.f32 %v1942, %v1792
        %v1944 = vadd.f32 %v1943, %v1796
        %v1945 = vadd.f32 %v1944, %v1800
        %v1946 = vadd.f32 %v1945, %v1804
        %v1947 = vadd.f32 %v1946, %v1808
        %v1948 = vadd.f32 %v1947, %v1812
        %v1949 = vadd.f32 %v1948, %v1816
        %v1950 = vadd.f32 %v1949, %v1820
        %v1951 = vadd.f32 %v1950, %v1824
        %v1952 = vadd.f32 %v1951, %v1828
        %v1953 = vadd.f32 %v1952, %v1832
        %v1954 = vadd.f32 %v1953, %v1836
        %v1955 = vadd.f32 %v1954, %v1840
        %v1956 = vadd.f32 %v1955, %v1844
        %v1957 = vadd.f32 %v1956, %v1848
        %v1958 = vadd.f32 %v1957, %v1852
        %v1959 = vadd.f32 %v1958, %v1856
        %v1960 = vadd.f32 %v1959, %v1860
        %v1961 = vadd.f32 %v1960, %v1864
        %v1962 = vadd.f32 %v1961, %v1868
        %v1963 = vadd.f32 %v1962, %v1872
        %v1964 = vadd.f32 %v1963, %v1876
        %v1965 = vadd.f32 %v1964, %v1880
        %v1966 = vadd.f32 %v1965, %v1884
        %v1967 = vadd.f32 %v1966, %v1888
        %v1968 = vadd.f32 %v1967, %v1892
        %v1969 = vadd.f32 %v1968, %v1896
        %v1970 = vadd.f32 %v1969, %v1900
        %v1971 = vadd.f32 %v1970, %v1904
        %v1972 = vadd.f32 %v1971, %v1908
        %v1973 = vadd.f32 %v1785, %v1789
        %v1974 = vadd.f32 %v1973, %v1793
        %v1975 = vadd.f32 %v1974, %v1797
        %v1976 = vadd.f32 %v1975, %v1801
        %v1977 = vadd.f32 %v1976, %v1805
        %v1978 = vadd.f32 %v1977, %v1809
        %v1979 = vadd.f32 %v1978, %v1813
        %v1980 = vadd.f32 %v1979, %v1817
        %v1981 = vadd.f32 %v1980, %v1821
        %v1982 = vadd.f32 %v1981, %v1825
        %v1983 = vadd.f32 %v1982, %v1829
        %v1984 = vadd.f32 %v1983, %v1833
        %v1985 = vadd.f32 %v1984, %v1837
        %v1986 = vadd.f32 %v1985, %v1841
        %v1987 = vadd.f32 %v1986, %v1845
        %v1988 = vadd.f32 %v1987, %v1849
        %v1989 = vadd.f32 %v1988, %v1853
        %v1990 = vadd.f32 %v1989, %v1857
        %v1991 = vadd.f32 %v1990, %v1861
        %v1992 = vadd.f32 %v1991, %v1865
        %v1993 = vadd.f32 %v1992, %v1869
        %v1994 = vadd.f32 %v1993, %v1873
        %v1995 = vadd.f32 %v1994, %v1877
        %v1996 = vadd.f32 %v1995, %v1881
        %v1997 = vadd.f32 %v1996, %v1885
        %v1998 = vadd.f32 %v1997, %v1889
        %v1999 = vadd.f32 %v1998, %v1893
        %v2000 = vadd.f32 %v1999, %v1897
        %v2001 = vadd.f32 %v2000, %v1901
        %v2002 = vadd.f32 %v2001, %v1905
        %v2003 = vadd.f32 %v2002, %v1909
        %v2004 = vadd.f32 %v1786, %v1790
        %v2005 = vadd.f32 %v2004, %v1794
        %v2006 = vadd.f32 %v2005, %v1798
        %v2007 = vadd.f32 %v2006, %v1802
        %v2008 = vadd.f32 %v2007, %v1806
        %v2009 = vadd.f32 %v2008, %v1810
        %v2010 = vadd.f32 %v2009, %v1814
        %v2011 = vadd.f32 %v2010, %v1818
        %v2012 = vadd.f32 %v2011, %v1822
        %v2013 = vadd.f32 %v2012, %v1826
        %v2014 = vadd.f32 %v2013, %v1830
        %v2015 = vadd.f32 %v2014, %v1834
        %v2016 = vadd.f32 %v2015, %v1838
        %v2017 = vadd.f32 %v2016, %v1842
        %v2018 = vadd.f32 %v2017, %v1846
        %v2019 = vadd.f32 %v2018, %v1850
        %v2020 = vadd.f32 %v2019, %v1854
        %v2021 = vadd.f32 %v2020, %v1858
        %v2022 = vadd.f32 %v2021, %v1862
        %v2023 = vadd.f32 %v2022, %v1866
        %v2024 = vadd.f32 %v2023, %v1870
        %v2025 = vadd.f32 %v2024, %v1874
        %v2026 = vadd.f32 %v2025, %v1878
        %v2027 = vadd.f32 %v2026, %v1882
        %v2028 = vadd.f32 %v2027, %v1886
        %v2029 = vadd.f32 %v2028, %v1890
        %v2030 = vadd.f32 %v2029, %v1894
        %v2031 = vadd.f32 %v2030, %v1898
        %v2032 = vadd.f32 %v2031, %v1902
        %v2033 = vadd.f32 %v2032, %v1906
        %v2034 = vadd.f32 %v2033, %v1910
        %v2035 = vld [vmem:[%s5] sm:$0xff]
        %v2036 = vld [vmem:[%s5 + $0x8] sm:$0xff]
        %v2037 = vld [vmem:[%s5 + $0x10] sm:$0xff]
        %v2038 = vld [vmem:[%s5 + $0x18] sm:$0xff]
        %v2039 = vld [vmem:[%s5 + $0x20] sm:$0xff]
        %v2040 = vld [vmem:[%s5 + $0x28] sm:$0xff]
        %v2041 = vld [vmem:[%s5 + $0x30] sm:$0xff]
        %v2042 = vld [vmem:[%s5 + $0x38] sm:$0xff]
        %v2043 = vld [vmem:[%s5 + $0x40] sm:$0xff]
        %v2044 = vld [vmem:[%s5 + $0x48] sm:$0xff]
        %v2045 = vld [vmem:[%s5 + $0x50] sm:$0xff]
        %v2046 = vld [vmem:[%s5 + $0x58] sm:$0xff]
        %v2047 = vld [vmem:[%s5 + $0x60] sm:$0xff]
        %v2048 = vld [vmem:[%s5 + $0x68] sm:$0xff]
        %v2049 = vld [vmem:[%s5 + $0x70] sm:$0xff]
        %v2050 = vld [vmem:[%s5 + $0x78] sm:$0xff]
        %v2051 = vld [vmem:[%s5 + $0x80] sm:$0xff]
        %v2052 = vld [vmem:[%s5 + $0x88] sm:$0xff]
        %v2053 = vld [vmem:[%s5 + $0x90] sm:$0xff]
        %v2054 = vld [vmem:[%s5 + $0x98] sm:$0xff]
        %v2055 = vld [vmem:[%s5 + $0xa0] sm:$0xff]
        %v2056 = vld [vmem:[%s5 + $0xa8] sm:$0xff]
        %v2057 = vld [vmem:[%s5 + $0xb0] sm:$0xff]
        %v2058 = vld [vmem:[%s5 + $0xb8] sm:$0xff]
        %v2059 = vld [vmem:[%s5 + $0xc0] sm:$0xff]
        %v2060 = vld [vmem:[%s5 + $0xc8] sm:$0xff]
        %v2061 = vld [vmem:[%s5 + $0xd0] sm:$0xff]
        %v2062 = vld [vmem:[%s5 + $0xd8] sm:$0xff]
        %v2063 = vld [vmem:[%s5 + $0xe0] sm:$0xff]
        %v2064 = vld [vmem:[%s5 + $0xe8] sm:$0xff]
        %v2065 = vld [vmem:[%s5 + $0xf0] sm:$0xff]
        %v2066 = vld [vmem:[%s5 + $0xf8] sm:$0xff]
        %2067 = vmatpush.msra.mxu0 %v2065
        %2068 = vmatpush.msra.mxu0 %v2063
        %2069 = vmatpush.msra.mxu0 %v2061
        %2070 = vmatpush.msra.mxu0 %v2059
        %2071 = vmatpush.msra.mxu0 %v2057
        %2072 = vmatpush.msra.mxu0 %v2055
        %2073 = vmatpush.msra.mxu0 %v2053
        %2074 = vmatpush.msra.mxu0 %v2051
        %2075 = vmatpush.msra.mxu0 %v2049
        %2076 = vmatpush.msra.mxu0 %v2047
        %2077 = vmatpush.msra.mxu0 %v2045
        %2078 = vmatpush.msra.mxu0 %v2043
        %2079 = vmatpush.msra.mxu0 %v2041
        %2080 = vmatpush.msra.mxu0 %v2039
        %2081 = vmatpush.msra.mxu0 %v2037
        %2082 = vmatpush.msra.mxu0 %v2035
        %2083 = vmatmul.f32.gmra.mxu0 %v1433
        %v2084 = vpop.f32.mrf.mxu0
        %v2085 = vadd.f32 0.0, %v2084
        %2086 = vmatmul.f32.gmra.mxu0 %v1464
        %v2087 = vpop.f32.mrf.mxu0
        %v2088 = vadd.f32 0.0, %v2087
        %2089 = vmatmul.f32.gmra.mxu0 %v1495
        %v2090 = vpop.f32.mrf.mxu0
        %v2091 = vadd.f32 0.0, %v2090
        %2092 = vmatmul.f32.gmra.mxu0 %v1526
        %v2093 = vpop.f32.mrf.mxu0
        %v2094 = vadd.f32 0.0, %v2093
        %2095 = vdwg.mxu0
        %2096 = vmatpush.msra.mxu0 %v2066
        %2097 = vmatpush.msra.mxu0 %v2064
        %2098 = vmatpush.msra.mxu0 %v2062
        %2099 = vmatpush.msra.mxu0 %v2060
        %2100 = vmatpush.msra.mxu0 %v2058
        %2101 = vmatpush.msra.mxu0 %v2056
        %2102 = vmatpush.msra.mxu0 %v2054
        %2103 = vmatpush.msra.mxu0 %v2052
        %2104 = vmatpush.msra.mxu0 %v2050
        %2105 = vmatpush.msra.mxu0 %v2048
        %2106 = vmatpush.msra.mxu0 %v2046
        %2107 = vmatpush.msra.mxu0 %v2044
        %2108 = vmatpush.msra.mxu0 %v2042
        %2109 = vmatpush.msra.mxu0 %v2040
        %2110 = vmatpush.msra.mxu0 %v2038
        %2111 = vmatpush.msra.mxu0 %v2036
        %2112 = vmatmul.f32.gmra.mxu0 %v1433
        %v2113 = vpop.f32.mrf.mxu0
        %v2114 = vadd.f32 0.0, %v2113
        %2115 = vmatmul.f32.gmra.mxu0 %v1464
        %v2116 = vpop.f32.mrf.mxu0
        %v2117 = vadd.f32 0.0, %v2116
        %2118 = vmatmul.f32.gmra.mxu0 %v1495
        %v2119 = vpop.f32.mrf.mxu0
        %v2120 = vadd.f32 0.0, %v2119
        %2121 = vmatmul.f32.gmra.mxu0 %v1526
        %v2122 = vpop.f32.mrf.mxu0
        %v2123 = vadd.f32 0.0, %v2122
        %2124 = vdwg.mxu0
        %v2125 = vld [vmem:[#allocation6] sm:$0xff]
        %v2126 = vld [vmem:[#allocation6 + $0x8] sm:$0xff]
        %v2127 = vld [vmem:[#allocation6 + $0x10] sm:$0xff]
        %v2128 = vld [vmem:[#allocation6 + $0x18] sm:$0xff]
        %v2129 = vld [vmem:[#allocation6 + $0x20] sm:$0xff]
        %v2130 = vld [vmem:[#allocation6 + $0x28] sm:$0xff]
        %v2131 = vld [vmem:[#allocation6 + $0x30] sm:$0xff]
        %v2132 = vld [vmem:[#allocation6 + $0x38] sm:$0xff]
        %v2133 = vld [vmem:[#allocation6 + $0x40] sm:$0xff]
        %v2134 = vld [vmem:[#allocation6 + $0x48] sm:$0xff]
        %v2135 = vld [vmem:[#allocation6 + $0x50] sm:$0xff]
        %v2136 = vld [vmem:[#allocation6 + $0x58] sm:$0xff]
        %v2137 = vld [vmem:[#allocation6 + $0x60] sm:$0xff]
        %v2138 = vld [vmem:[#allocation6 + $0x68] sm:$0xff]
        %v2139 = vld [vmem:[#allocation6 + $0x70] sm:$0xff]
        %v2140 = vld [vmem:[#allocation6 + $0x78] sm:$0xff]
        %v2141 = vld [vmem:[#allocation6 + $0x80] sm:$0xff]
        %v2142 = vld [vmem:[#allocation6 + $0x88] sm:$0xff]
        %v2143 = vld [vmem:[#allocation6 + $0x90] sm:$0xff]
        %v2144 = vld [vmem:[#allocation6 + $0x98] sm:$0xff]
        %v2145 = vld [vmem:[#allocation6 + $0xa0] sm:$0xff]
        %v2146 = vld [vmem:[#allocation6 + $0xa8] sm:$0xff]
        %v2147 = vld [vmem:[#allocation6 + $0xb0] sm:$0xff]
        %v2148 = vld [vmem:[#allocation6 + $0xb8] sm:$0xff]
        %v2149 = vld [vmem:[#allocation6 + $0xc0] sm:$0xff]
        %v2150 = vld [vmem:[#allocation6 + $0xc8] sm:$0xff]
        %v2151 = vld [vmem:[#allocation6 + $0xd0] sm:$0xff]
        %v2152 = vld [vmem:[#allocation6 + $0xd8] sm:$0xff]
        %v2153 = vld [vmem:[#allocation6 + $0xe0] sm:$0xff]
        %v2154 = vld [vmem:[#allocation6 + $0xe8] sm:$0xff]
        %v2155 = vld [vmem:[#allocation6 + $0xf0] sm:$0xff]
        %v2156 = vld [vmem:[#allocation6 + $0xf8] sm:$0xff]
        %2157 = vmatpush.msra.mxu0 %v2155
        %2158 = vmatpush.msra.mxu0 %v2153
        %2159 = vmatpush.msra.mxu0 %v2151
        %2160 = vmatpush.msra.mxu0 %v2149
        %2161 = vmatpush.msra.mxu0 %v2147
        %2162 = vmatpush.msra.mxu0 %v2145
        %2163 = vmatpush.msra.mxu0 %v2143
        %2164 = vmatpush.msra.mxu0 %v2141
        %2165 = vmatpush.msra.mxu0 %v2139
        %2166 = vmatpush.msra.mxu0 %v2137
        %2167 = vmatpush.msra.mxu0 %v2135
        %2168 = vmatpush.msra.mxu0 %v2133
        %2169 = vmatpush.msra.mxu0 %v2131
        %2170 = vmatpush.msra.mxu0 %v2129
        %2171 = vmatpush.msra.mxu0 %v2127
        %2172 = vmatpush.msra.mxu0 %v2125
        %2173 = vmatmul.f32.gmra.mxu0 %v1941
        %v2174 = vpop.f32.mrf.mxu0
        %v2175 = vadd.f32 0.0, %v2174
        %2176 = vmatmul.f32.gmra.mxu0 %v1972
        %v2177 = vpop.f32.mrf.mxu0
        %v2178 = vadd.f32 0.0, %v2177
        %2179 = vmatmul.f32.gmra.mxu0 %v2003
        %v2180 = vpop.f32.mrf.mxu0
        %v2181 = vadd.f32 0.0, %v2180
        %2182 = vmatmul.f32.gmra.mxu0 %v2034
        %v2183 = vpop.f32.mrf.mxu0
        %v2184 = vadd.f32 0.0, %v2183
        %2185 = vdwg.mxu0
        %2186 = vmatpush.msra.mxu0 %v2156
        %2187 = vmatpush.msra.mxu0 %v2154
        %2188 = vmatpush.msra.mxu0 %v2152
        %2189 = vmatpush.msra.mxu0 %v2150
        %2190 = vmatpush.msra.mxu0 %v2148
        %2191 = vmatpush.msra.mxu0 %v2146
        %2192 = vmatpush.msra.mxu0 %v2144
        %2193 = vmatpush.msra.mxu0 %v2142
        %2194 = vmatpush.msra.mxu0 %v2140
        %2195 = vmatpush.msra.mxu0 %v2138
        %2196 = vmatpush.msra.mxu0 %v2136
        %2197 = vmatpush.msra.mxu0 %v2134
        %2198 = vmatpush.msra.mxu0 %v2132
        %2199 = vmatpush.msra.mxu0 %v2130
        %2200 = vmatpush.msra.mxu0 %v2128
        %2201 = vmatpush.msra.mxu0 %v2126
        %2202 = vmatmul.f32.gmra.mxu0 %v1941
        %v2203 = vpop.f32.mrf.mxu0
        %v2204 = vadd.f32 0.0, %v2203
        %2205 = vmatmul.f32.gmra.mxu0 %v1972
        %v2206 = vpop.f32.mrf.mxu0
        %v2207 = vadd.f32 0.0, %v2206
        %2208 = vmatmul.f32.gmra.mxu0 %v2003
        %v2209 = vpop.f32.mrf.mxu0
        %v2210 = vadd.f32 0.0, %v2209
        %2211 = vmatmul.f32.gmra.mxu0 %v2034
        %v2212 = vpop.f32.mrf.mxu0
        %v2213 = vadd.f32 0.0, %v2212
        %2214 = vdwg.mxu0
        %v2215 = vsub.f32 %v2085, %v2175
        %v2216 = vsub.f32 %v2114, %v2204
        %v2217 = vsub.f32 %v2088, %v2178
        %v2218 = vsub.f32 %v2117, %v2207
        %v2219 = vsub.f32 %v2091, %v2181
        %v2220 = vsub.f32 %v2120, %v2210
        %v2221 = vsub.f32 %v2094, %v2184
        %v2222 = vsub.f32 %v2123, %v2213
        %v2223 = vld [vmem:[%s7] sm:$0xff]
        %v2224 = vld [vmem:[%s7 + $0x8] sm:$0xff]
        %v2225 = vld [vmem:[%s7 + $0x10] sm:$0xff]
        %v2226 = vld [vmem:[%s7 + $0x18] sm:$0xff]
        %v2227 = vld [vmem:[%s8] sm:$0xff]
        %v2228 = vld [vmem:[%s8 + $0x8] sm:$0xff]
        %v2229 = vld [vmem:[%s8 + $0x10] sm:$0xff]
        %v2230 = vld [vmem:[%s8 + $0x18] sm:$0xff]
        %2232 = vset.pattern.permute.xlu0 0
        %2233 = vperm.xlu0 %2232, %v2227
        %v2234 = vpop.permute.xlu0 %2233
        %2237 = vset.pattern.permute.xlu0 0
        %2238 = vperm.xlu0 %2237, %v2228
        %v2239 = vpop.permute.xlu0 %2238
        %2242 = vset.pattern.permute.xlu0 0
        %2243 = vperm.xlu0 %2242, %v2229
        %v2244 = vpop.permute.xlu0 %2243
        %2247 = vset.pattern.permute.xlu0 0
        %2248 = vperm.xlu0 %2247, %v2230
        %v2249 = vpop.permute.xlu0 %2248
        %vm2251 = vcmask 261120
        %v2253 = vsel %vm2251, %v2223, 0
        %v2256 = vsel %vm2251, %v2224, 0
        %v2259 = vsel %vm2251, %v2225, 0
        %v2262 = vsel %vm2251, %v2226, 0
        %2264 = vmatpush.msra.mxu0 0.0
        %2265 = vmatpush.msra.mxu0 0.0
        %2266 = vmatpush.msra.mxu0 0.0
        %2267 = vmatpush.msra.mxu0 0.0
        %2268 = vmatpush.msra.mxu0 0.0
        %2269 = vmatpush.msra.mxu0 0.0
        %2270 = vmatpush.msra.mxu0 0.0
        %2271 = vmatpush.msra.mxu0 0.0
        %2272 = vmatpush.msra.mxu0 0.0
        %2273 = vmatpush.msra.mxu0 0.0
        %2274 = vmatpush.msra.mxu0 0.0
        %2275 = vmatpush.msra.mxu0 0.0
        %2276 = vmatpush.msra.mxu0 %v389
        %2277 = vmatpush.msra.mxu0 %v387
        %2278 = vmatpush.msra.mxu0 %v385
        %2279 = vmatpush.msra.mxu0 %v383
        %2280 = vmatmul.f32.gmra.mxu0 %v2253
        %v2281 = vpop.f32.mrf.mxu0
        %v2282 = vadd.f32 %v2234, %v2281
        %2283 = vmatmul.f32.gmra.mxu0 %v2256
        %v2284 = vpop.f32.mrf.mxu0
        %v2285 = vadd.f32 %v2239, %v2284
        %2286 = vmatmul.f32.gmra.mxu0 %v2259
        %v2287 = vpop.f32.mrf.mxu0
        %v2288 = vadd.f32 %v2244, %v2287
        %2289 = vmatmul.f32.gmra.mxu0 %v2262
        %v2290 = vpop.f32.mrf.mxu0
        %v2291 = vadd.f32 %v2249, %v2290
        %2292 = vdwg.mxu0
        %2293 = vmatpush.msra.mxu0 0.0
        %2294 = vmatpush.msra.mxu0 0.0
        %2295 = vmatpush.msra.mxu0 0.0
        %2296 = vmatpush.msra.mxu0 0.0
        %2297 = vmatpush.msra.mxu0 0.0
        %2298 = vmatpush.msra.mxu0 0.0
        %2299 = vmatpush.msra.mxu0 0.0
        %2300 = vmatpush.msra.mxu0 0.0
        %2301 = vmatpush.msra.mxu0 0.0
        %2302 = vmatpush.msra.mxu0 0.0
        %2303 = vmatpush.msra.mxu0 0.0
        %2304 = vmatpush.msra.mxu0 0.0
        %2305 = vmatpush.msra.mxu0 %v390
        %2306 = vmatpush.msra.mxu0 %v388
        %2307 = vmatpush.msra.mxu0 %v386
        %2308 = vmatpush.msra.mxu0 %v384
        %2309 = vmatmul.f32.gmra.mxu0 %v2253
        %v2310 = vpop.f32.mrf.mxu0
        %v2311 = vadd.f32 %v2234, %v2310
        %2312 = vmatmul.f32.gmra.mxu0 %v2256
        %v2313 = vpop.f32.mrf.mxu0
        %v2314 = vadd.f32 %v2239, %v2313
        %2315 = vmatmul.f32.gmra.mxu0 %v2259
        %v2316 = vpop.f32.mrf.mxu0
        %v2317 = vadd.f32 %v2244, %v2316
        %2318 = vmatmul.f32.gmra.mxu0 %v2262
        %v2319 = vpop.f32.mrf.mxu0
        %v2320 = vadd.f32 %v2249, %v2319
        %2321 = vdwg.mxu0
        %v2322 = vadd.f32 %v2282, %v2215
        %v2323 = vadd.f32 %v2311, %v2216
        %v2324 = vadd.f32 %v2285, %v2217
        %v2325 = vadd.f32 %v2314, %v2218
        %v2326 = vadd.f32 %v2288, %v2219
        %v2327 = vadd.f32 %v2317, %v2220
        %v2328 = vadd.f32 %v2291, %v2221
        %v2329 = vadd.f32 %v2320, %v2222
        %v2330 = vmul.f32 %v2322, 0.5
        %v2331 = vmul.f32 %v2323, 0.5
        %v2332 = vmul.f32 %v2324, 0.5
        %v2333 = vmul.f32 %v2325, 0.5
        %v2334 = vmul.f32 %v2326, 0.5
        %v2335 = vmul.f32 %v2327, 0.5
        %v2336 = vmul.f32 %v2328, 0.5
        %v2337 = vmul.f32 %v2329, 0.5
        %v2338 = vmul.f32 %v2322, 0.70710677
        %v2339 = vmul.f32 %v2323, 0.70710677
        %v2340 = vmul.f32 %v2324, 0.70710677
        %v2341 = vmul.f32 %v2325, 0.70710677
        %v2342 = vmul.f32 %v2326, 0.70710677
        %v2343 = vmul.f32 %v2327, 0.70710677
        %v2344 = vmul.f32 %v2328, 0.70710677
        %v2345 = vmul.f32 %v2329, 0.70710677
        %v2346 = vmul.f32 %v2338, %v2338
        %v2347 = vmin.f32 16.0, %v2346
        %v2348 = vmul.f32 %v2347, 2.1237322e-06
        %v2349 = vadd.f32 %v2348, 0.00028619796
        %v2350 = vmul.f32 %v2347, %v2349
        %v2351 = vadd.f32 %v2350, 0.0036580483
        %v2352 = vmul.f32 %v2347, %v2351
        %v2353 = vadd.f32 %v2352, 0.05243302
        %v2354 = vmul.f32 %v2347, %v2353
        %v2355 = vadd.f32 %v2354, 0.18741608
        %v2356 = vmul.f32 %v2347, %v2355
        %v2357 = vadd.f32 %v2356, 1.1283791
        %v2358 = vmul.f32 %v2338, %v2357
        %v2359 = vmul.f32 %v2347, 3.8918573e-05
        %v2360 = vadd.f32 %v2359, 0.001143296
        %v2361 = vmul.f32 %v2347, %v2360
        %v2362 = vadd.f32 %v2361, 0.014752088
        %v2363 = vmul.f32 %v2347, %v2362
        %v2364 = vadd.f32 %v2363, 0.112945676
        %v2365 = vmul.f32 %v2347, %v2364
        %v2366 = vadd.f32 %v2365, 0.4994258
        %v2367 = vmul.f32 %v2347, %v2366
        %v2368 = vadd.f32 %v2367, 1.0
        %v2369 = vrcp.pop %v2368
        %v2370 = vmul.f32 %v2368, %v2369
        %v2371 = vsub.f32 1.0, %v2370
        %v2372 = vmul.f32 %v2369, %v2371
        %v2373 = vadd.f32 %v2369, %v2372
        %vm2374 = vweird.f32 %v2368
        %vm2375 = vweird.f32 %v2369
        %vm2376 = vmor %vm2374, %vm2375
        %v2377 = vsel %vm2376, %v2369, %v2373
        %v2378 = vand.u32 2147483647, %v2368
        %vm2379 = vcmp.eq.f32.partialorder %v2378, 8.507059e+37
        %v2380 = vand.u32 %v2368, 2147483648
        %v2381 = vor.u32 1.1754944e-38, %v2380
        %v2382 = vsel %vm2379, %v2381, %v2377
        %v2383 = vmul.f32 %v2358, %v2382
        %v2384 = vmin.f32 %v2383, 1.0
        %v2385 = vmax.f32 %v2384, -1.0
        %v2386 = vmul.f32 %v2339, %v2339
        %v2387 = vmin.f32 16.0, %v2386
        %v2388 = vmul.f32 %v2387, 2.1237322e-06
        %v2389 = vadd.f32 %v2388, 0.00028619796
        %v2390 = vmul.f32 %v2387, %v2389
        %v2391 = vadd.f32 %v2390, 0.0036580483
        %v2392 = vmul.f32 %v2387, %v2391
        %v2393 = vadd.f32 %v2392, 0.05243302
        %v2394 = vmul.f32 %v2387, %v2393
        %v2395 = vadd.f32 %v2394, 0.18741608
        %v2396 = vmul.f32 %v2387, %v2395
        %v2397 = vadd.f32 %v2396, 1.1283791
        %v2398 = vmul.f32 %v2339, %v2397
        %v2399 = vmul.f32 %v2387, 3.8918573e-05
        %v2400 = vadd.f32 %v2399, 0.001143296
        %v2401 = vmul.f32 %v2387, %v2400
        %v2402 = vadd.f32 %v2401, 0.014752088
        %v2403 = vmul.f32 %v2387, %v2402
        %v2404 = vadd.f32 %v2403, 0.112945676
        %v2405 = vmul.f32 %v2387, %v2404
        %v2406 = vadd.f32 %v2405, 0.4994258
        %v2407 = vmul.f32 %v2387, %v2406
        %v2408 = vadd.f32 %v2407, 1.0
        %v2409 = vrcp.pop %v2408
        %v2410 = vmul.f32 %v2408, %v2409
        %v2411 = vsub.f32 1.0, %v2410
        %v2412 = vmul.f32 %v2409, %v2411
        %v2413 = vadd.f32 %v2409, %v2412
        %vm2414 = vweird.f32 %v2408
        %vm2415 = vweird.f32 %v2409
        %vm2416 = vmor %vm2414, %vm2415
        %v2417 = vsel %vm2416, %v2409, %v2413
        %v2418 = vand.u32 2147483647, %v2408
        %vm2419 = vcmp.eq.f32.partialorder %v2418, 8.507059e+37
        %v2420 = vand.u32 %v2408, 2147483648
        %v2421 = vor.u32 1.1754944e-38, %v2420
        %v2422 = vsel %vm2419, %v2421, %v2417
        %v2423 = vmul.f32 %v2398, %v2422
        %v2424 = vmin.f32 %v2423, 1.0
        %v2425 = vmax.f32 %v2424, -1.0
        %v2426 = vmul.f32 %v2340, %v2340
        %v2427 = vmin.f32 16.0, %v2426
        %v2428 = vmul.f32 %v2427, 2.1237322e-06
        %v2429 = vadd.f32 %v2428, 0.00028619796
        %v2430 = vmul.f32 %v2427, %v2429
        %v2431 = vadd.f32 %v2430, 0.0036580483
        %v2432 = vmul.f32 %v2427, %v2431
        %v2433 = vadd.f32 %v2432, 0.05243302
        %v2434 = vmul.f32 %v2427, %v2433
        %v2435 = vadd.f32 %v2434, 0.18741608
        %v2436 = vmul.f32 %v2427, %v2435
        %v2437 = vadd.f32 %v2436, 1.1283791
        %v2438 = vmul.f32 %v2340, %v2437
        %v2439 = vmul.f32 %v2427, 3.8918573e-05
        %v2440 = vadd.f32 %v2439, 0.001143296
        %v2441 = vmul.f32 %v2427, %v2440
        %v2442 = vadd.f32 %v2441, 0.014752088
        %v2443 = vmul.f32 %v2427, %v2442
        %v2444 = vadd.f32 %v2443, 0.112945676
        %v2445 = vmul.f32 %v2427, %v2444
        %v2446 = vadd.f32 %v2445, 0.4994258
        %v2447 = vmul.f32 %v2427, %v2446
        %v2448 = vadd.f32 %v2447, 1.0
        %v2449 = vrcp.pop %v2448
        %v2450 = vmul.f32 %v2448, %v2449
        %v2451 = vsub.f32 1.0, %v2450
        %v2452 = vmul.f32 %v2449, %v2451
        %v2453 = vadd.f32 %v2449, %v2452
        %vm2454 = vweird.f32 %v2448
        %vm2455 = vweird.f32 %v2449
        %vm2456 = vmor %vm2454, %vm2455
        %v2457 = vsel %vm2456, %v2449, %v2453
        %v2458 = vand.u32 2147483647, %v2448
        %vm2459 = vcmp.eq.f32.partialorder %v2458, 8.507059e+37
        %v2460 = vand.u32 %v2448, 2147483648
        %v2461 = vor.u32 1.1754944e-38, %v2460
        %v2462 = vsel %vm2459, %v2461, %v2457
        %v2463 = vmul.f32 %v2438, %v2462
        %v2464 = vmin.f32 %v2463, 1.0
        %v2465 = vmax.f32 %v2464, -1.0
        %v2466 = vmul.f32 %v2341, %v2341
        %v2467 = vmin.f32 16.0, %v2466
        %v2468 = vmul.f32 %v2467, 2.1237322e-06
        %v2469 = vadd.f32 %v2468, 0.00028619796
        %v2470 = vmul.f32 %v2467, %v2469
        %v2471 = vadd.f32 %v2470, 0.0036580483
        %v2472 = vmul.f32 %v2467, %v2471
        %v2473 = vadd.f32 %v2472, 0.05243302
        %v2474 = vmul.f32 %v2467, %v2473
        %v2475 = vadd.f32 %v2474, 0.18741608
        %v2476 = vmul.f32 %v2467, %v2475
        %v2477 = vadd.f32 %v2476, 1.1283791
        %v2478 = vmul.f32 %v2341, %v2477
        %v2479 = vmul.f32 %v2467, 3.8918573e-05
        %v2480 = vadd.f32 %v2479, 0.001143296
        %v2481 = vmul.f32 %v2467, %v2480
        %v2482 = vadd.f32 %v2481, 0.014752088
        %v2483 = vmul.f32 %v2467, %v2482
        %v2484 = vadd.f32 %v2483, 0.112945676
        %v2485 = vmul.f32 %v2467, %v2484
        %v2486 = vadd.f32 %v2485, 0.4994258
        %v2487 = vmul.f32 %v2467, %v2486
        %v2488 = vadd.f32 %v2487, 1.0
        %v2489 = vrcp.pop %v2488
        %v2490 = vmul.f32 %v2488, %v2489
        %v2491 = vsub.f32 1.0, %v2490
        %v2492 = vmul.f32 %v2489, %v2491
        %v2493 = vadd.f32 %v2489, %v2492
        %vm2494 = vweird.f32 %v2488
        %vm2495 = vweird.f32 %v2489
        %vm2496 = vmor %vm2494, %vm2495
        %v2497 = vsel %vm2496, %v2489, %v2493
        %v2498 = vand.u32 2147483647, %v2488
        %vm2499 = vcmp.eq.f32.partialorder %v2498, 8.507059e+37
        %v2500 = vand.u32 %v2488, 2147483648
        %v2501 = vor.u32 1.1754944e-38, %v2500
        %v2502 = vsel %vm2499, %v2501, %v2497
        %v2503 = vmul.f32 %v2478, %v2502
        %v2504 = vmin.f32 %v2503, 1.0
        %v2505 = vmax.f32 %v2504, -1.0
        %v2506 = vmul.f32 %v2342, %v2342
        %v2507 = vmin.f32 16.0, %v2506
        %v2508 = vmul.f32 %v2507, 2.1237322e-06
        %v2509 = vadd.f32 %v2508, 0.00028619796
        %v2510 = vmul.f32 %v2507, %v2509
        %v2511 = vadd.f32 %v2510, 0.0036580483
        %v2512 = vmul.f32 %v2507, %v2511
        %v2513 = vadd.f32 %v2512, 0.05243302
        %v2514 = vmul.f32 %v2507, %v2513
        %v2515 = vadd.f32 %v2514, 0.18741608
        %v2516 = vmul.f32 %v2507, %v2515
        %v2517 = vadd.f32 %v2516, 1.1283791
        %v2518 = vmul.f32 %v2342, %v2517
        %v2519 = vmul.f32 %v2507, 3.8918573e-05
        %v2520 = vadd.f32 %v2519, 0.001143296
        %v2521 = vmul.f32 %v2507, %v2520
        %v2522 = vadd.f32 %v2521, 0.014752088
        %v2523 = vmul.f32 %v2507, %v2522
        %v2524 = vadd.f32 %v2523, 0.112945676
        %v2525 = vmul.f32 %v2507, %v2524
        %v2526 = vadd.f32 %v2525, 0.4994258
        %v2527 = vmul.f32 %v2507, %v2526
        %v2528 = vadd.f32 %v2527, 1.0
        %v2529 = vrcp.pop %v2528
        %v2530 = vmul.f32 %v2528, %v2529
        %v2531 = vsub.f32 1.0, %v2530
        %v2532 = vmul.f32 %v2529, %v2531
        %v2533 = vadd.f32 %v2529, %v2532
        %vm2534 = vweird.f32 %v2528
        %vm2535 = vweird.f32 %v2529
        %vm2536 = vmor %vm2534, %vm2535
        %v2537 = vsel %vm2536, %v2529, %v2533
        %v2538 = vand.u32 2147483647, %v2528
        %vm2539 = vcmp.eq.f32.partialorder %v2538, 8.507059e+37
        %v2540 = vand.u32 %v2528, 2147483648
        %v2541 = vor.u32 1.1754944e-38, %v2540
        %v2542 = vsel %vm2539, %v2541, %v2537
        %v2543 = vmul.f32 %v2518, %v2542
        %v2544 = vmin.f32 %v2543, 1.0
        %v2545 = vmax.f32 %v2544, -1.0
        %v2546 = vmul.f32 %v2343, %v2343
        %v2547 = vmin.f32 16.0, %v2546
        %v2548 = vmul.f32 %v2547, 2.1237322e-06
        %v2549 = vadd.f32 %v2548, 0.00028619796
        %v2550 = vmul.f32 %v2547, %v2549
        %v2551 = vadd.f32 %v2550, 0.0036580483
        %v2552 = vmul.f32 %v2547, %v2551
        %v2553 = vadd.f32 %v2552, 0.05243302
        %v2554 = vmul.f32 %v2547, %v2553
        %v2555 = vadd.f32 %v2554, 0.18741608
        %v2556 = vmul.f32 %v2547, %v2555
        %v2557 = vadd.f32 %v2556, 1.1283791
        %v2558 = vmul.f32 %v2343, %v2557
        %v2559 = vmul.f32 %v2547, 3.8918573e-05
        %v2560 = vadd.f32 %v2559, 0.001143296
        %v2561 = vmul.f32 %v2547, %v2560
        %v2562 = vadd.f32 %v2561, 0.014752088
        %v2563 = vmul.f32 %v2547, %v2562
        %v2564 = vadd.f32 %v2563, 0.112945676
        %v2565 = vmul.f32 %v2547, %v2564
        %v2566 = vadd.f32 %v2565, 0.4994258
        %v2567 = vmul.f32 %v2547, %v2566
        %v2568 = vadd.f32 %v2567, 1.0
        %v2569 = vrcp.pop %v2568
        %v2570 = vmul.f32 %v2568, %v2569
        %v2571 = vsub.f32 1.0, %v2570
        %v2572 = vmul.f32 %v2569, %v2571
        %v2573 = vadd.f32 %v2569, %v2572
        %vm2574 = vweird.f32 %v2568
        %vm2575 = vweird.f32 %v2569
        %vm2576 = vmor %vm2574, %vm2575
        %v2577 = vsel %vm2576, %v2569, %v2573
        %v2578 = vand.u32 2147483647, %v2568
        %vm2579 = vcmp.eq.f32.partialorder %v2578, 8.507059e+37
        %v2580 = vand.u32 %v2568, 2147483648
        %v2581 = vor.u32 1.1754944e-38, %v2580
        %v2582 = vsel %vm2579, %v2581, %v2577
        %v2583 = vmul.f32 %v2558, %v2582
        %v2584 = vmin.f32 %v2583, 1.0
        %v2585 = vmax.f32 %v2584, -1.0
        %v2586 = vmul.f32 %v2344, %v2344
        %v2587 = vmin.f32 16.0, %v2586
        %v2588 = vmul.f32 %v2587, 2.1237322e-06
        %v2589 = vadd.f32 %v2588, 0.00028619796
        %v2590 = vmul.f32 %v2587, %v2589
        %v2591 = vadd.f32 %v2590, 0.0036580483
        %v2592 = vmul.f32 %v2587, %v2591
        %v2593 = vadd.f32 %v2592, 0.05243302
        %v2594 = vmul.f32 %v2587, %v2593
        %v2595 = vadd.f32 %v2594, 0.18741608
        %v2596 = vmul.f32 %v2587, %v2595
        %v2597 = vadd.f32 %v2596, 1.1283791
        %v2598 = vmul.f32 %v2344, %v2597
        %v2599 = vmul.f32 %v2587, 3.8918573e-05
        %v2600 = vadd.f32 %v2599, 0.001143296
        %v2601 = vmul.f32 %v2587, %v2600
        %v2602 = vadd.f32 %v2601, 0.014752088
        %v2603 = vmul.f32 %v2587, %v2602
        %v2604 = vadd.f32 %v2603, 0.112945676
        %v2605 = vmul.f32 %v2587, %v2604
        %v2606 = vadd.f32 %v2605, 0.4994258
        %v2607 = vmul.f32 %v2587, %v2606
        %v2608 = vadd.f32 %v2607, 1.0
        %v2609 = vrcp.pop %v2608
        %v2610 = vmul.f32 %v2608, %v2609
        %v2611 = vsub.f32 1.0, %v2610
        %v2612 = vmul.f32 %v2609, %v2611
        %v2613 = vadd.f32 %v2609, %v2612
        %vm2614 = vweird.f32 %v2608
        %vm2615 = vweird.f32 %v2609
        %vm2616 = vmor %vm2614, %vm2615
        %v2617 = vsel %vm2616, %v2609, %v2613
        %v2618 = vand.u32 2147483647, %v2608
        %vm2619 = vcmp.eq.f32.partialorder %v2618, 8.507059e+37
        %v2620 = vand.u32 %v2608, 2147483648
        %v2621 = vor.u32 1.1754944e-38, %v2620
        %v2622 = vsel %vm2619, %v2621, %v2617
        %v2623 = vmul.f32 %v2598, %v2622
        %v2624 = vmin.f32 %v2623, 1.0
        %v2625 = vmax.f32 %v2624, -1.0
        %v2626 = vmul.f32 %v2345, %v2345
        %v2627 = vmin.f32 16.0, %v2626
        %v2628 = vmul.f32 %v2627, 2.1237322e-06
        %v2629 = vadd.f32 %v2628, 0.00028619796
        %v2630 = vmul.f32 %v2627, %v2629
        %v2631 = vadd.f32 %v2630, 0.0036580483
        %v2632 = vmul.f32 %v2627, %v2631
        %v2633 = vadd.f32 %v2632, 0.05243302
        %v2634 = vmul.f32 %v2627, %v2633
        %v2635 = vadd.f32 %v2634, 0.18741608
        %v2636 = vmul.f32 %v2627, %v2635
        %v2637 = vadd.f32 %v2636, 1.1283791
        %v2638 = vmul.f32 %v2345, %v2637
        %v2639 = vmul.f32 %v2627, 3.8918573e-05
        %v2640 = vadd.f32 %v2639, 0.001143296
        %v2641 = vmul.f32 %v2627, %v2640
        %v2642 = vadd.f32 %v2641, 0.014752088
        %v2643 = vmul.f32 %v2627, %v2642
        %v2644 = vadd.f32 %v2643, 0.112945676
        %v2645 = vmul.f32 %v2627, %v2644
        %v2646 = vadd.f32 %v2645, 0.4994258
        %v2647 = vmul.f32 %v2627, %v2646
        %v2648 = vadd.f32 %v2647, 1.0
        %v2649 = vrcp.pop %v2648
        %v2650 = vmul.f32 %v2648, %v2649
        %v2651 = vsub.f32 1.0, %v2650
        %v2652 = vmul.f32 %v2649, %v2651
        %v2653 = vadd.f32 %v2649, %v2652
        %vm2654 = vweird.f32 %v2648
        %vm2655 = vweird.f32 %v2649
        %vm2656 = vmor %vm2654, %vm2655
        %v2657 = vsel %vm2656, %v2649, %v2653
        %v2658 = vand.u32 2147483647, %v2648
        %vm2659 = vcmp.eq.f32.partialorder %v2658, 8.507059e+37
        %v2660 = vand.u32 %v2648, 2147483648
        %v2661 = vor.u32 1.1754944e-38, %v2660
        %v2662 = vsel %vm2659, %v2661, %v2657
        %v2663 = vmul.f32 %v2638, %v2662
        %v2664 = vmin.f32 %v2663, 1.0
        %v2665 = vmax.f32 %v2664, -1.0
        %v2666 = vadd.f32 %v2385, 1.0
        %v2667 = vadd.f32 %v2425, 1.0
        %v2668 = vadd.f32 %v2465, 1.0
        %v2669 = vadd.f32 %v2505, 1.0
        %v2670 = vadd.f32 %v2545, 1.0
        %v2671 = vadd.f32 %v2585, 1.0
        %v2672 = vadd.f32 %v2625, 1.0
        %v2673 = vadd.f32 %v2665, 1.0
        %v2674 = vmul.f32 %v2330, %v2666
        %v2675 = vmul.f32 %v2331, %v2667
        %v2676 = vmul.f32 %v2332, %v2668
        %v2677 = vmul.f32 %v2333, %v2669
        %v2678 = vmul.f32 %v2334, %v2670
        %v2679 = vmul.f32 %v2335, %v2671
        %v2680 = vmul.f32 %v2336, %v2672
        %v2681 = vmul.f32 %v2337, %v2673
        %2682 = vst [vmem:[%s382] sm:$0xff] %v2674
        %2683 = vst [vmem:[%s382 + $0x8] sm:$0xff] %v2675
        %2684 = vst [vmem:[%s382 + $0x10] sm:$0xff] %v2676
        %2685 = vst [vmem:[%s382 + $0x18] sm:$0xff] %v2677
        %2686 = vst [vmem:[%s382 + $0x20] sm:$0xff] %v2678
        %2687 = vst [vmem:[%s382 + $0x28] sm:$0xff] %v2679
        %2688 = vst [vmem:[%s382 + $0x30] sm:$0xff] %v2680
        %2689 = vst [vmem:[%s382 + $0x38] sm:$0xff] %v2681
        %p2690 = scmp.lt.s32.totalorder %s22, 1
        %s2691 = scalar_select %p2690, %s22, 1
        %s2692 = smul.addr %s2691, 8
        %s2693 = smul.addr %s2692, 8
        %s2694 = scalar_lea.vmem %s9, %s2693
        // Predicated region
        $region69: #{fno2d_forward.7} parent=55 // pred_check
          %p2695 = pneg %p234
        $region70: #{fno2d_forward.7} parent=55 // pred_check_branch
          %2697 = sbr.rel (%p2695) target = $region72
        $region71: #{fno2d_forward.7} parent=55 // pred_region
          _
        $region72: #{fno2d_forward.7} parent=55 // pred_fallthru
          _
      $region56: #{fno2d_forward.7} parent=5 // pred_fallthru
        _
      %p2698 = scmp.le.s32.totalorder 2, %s17
      // Predicated region
      $region73: #{fno2d_forward.7} parent=5 // pred_check
        %p2699 = pneg %p2698
      $region74: #{fno2d_forward.7} parent=5 // pred_check_branch
        %2701 = sbr.rel (%p2699) target = $region76
      $region75: #{fno2d_forward.7} parent=5 // pred_region
        %s2702 = ssub.s32 %s17, 2
        // Predicated region
        $region77: #{fno2d_forward.7} parent=75 // pred_check
          %p2703 = pneg %p240
        $region78: #{fno2d_forward.7} parent=75 // pred_check_branch
          %2705 = sbr.rel (%p2703) target = $region80
        $region79: #{fno2d_forward.7} parent=75 // pred_region
          %p2706 = scmp.lt.s32.totalorder %s23, 1
          %s2707 = scalar_select %p2706, %s23, 1
          %s2708 = smul.addr %s2707, 8
          %s2709 = smul.addr %s2708, 8
          %s2710 = scalar_lea.vmem %s9, %s2709
        $region80: #{fno2d_forward.7} parent=75 // pred_fallthru
          _
      $region76: #{fno2d_forward.7} parent=5 // pred_fallthru
        _
    $region6: #{fno2d_forward.7} parent=1 // loop_footer
      %s21 = sadd.s32 1, %s17
    $region7: #{fno2d_forward.7} parent=1 // loop_footer_branch
      %16 = sbr.rel target = $region3
    $region8: #{fno2d_forward.7} parent=1 // loop_exit
      _
    %2711 = vsyncpa [#allocation3], 1
    %s2712 = scalar_lea.sflag [#allocation3], 1
    %2713 = vsyncpa %s2712, 1
    %2714 = vsyncpa [#allocation5], 1

</llo_original>
